<compile_context>
chip_gen: v7x
topology: tpu7x:2x2x1
jax: 0.10.0
libtpu: 0.0.40
codegen_flags: <defaults>
</compile_context>

<pallas_src>
import jax
import jax.numpy as jnp
from jax.experimental import pallas as pl
from jax.experimental.pallas import tpu as pltpu

HIDDEN_DIM = 14            # Conv1d in_channels
NUM_FEATURES = 256         # d_model
N_LAYERS = 3               # transformer layers
N_HEADS = 4
HEAD_DIM = NUM_FEATURES // N_HEADS
D_FF = 4 * NUM_FEATURES
FF_CHUNK = 256             # D_FF processed in 256-column slabs
N_FF_CHUNKS = D_FF // FF_CHUNK
LN_EPS = 1e-5


def _layer_norm(x, gamma, beta):
    mean = jnp.mean(x, axis=-1, keepdims=True)
    var = jnp.mean(jnp.square(x - mean), axis=-1, keepdims=True)
    inv = jax.lax.rsqrt(var + LN_EPS)
    return (x - mean) * inv * gamma + beta


def _encoder_kernel(h0_ref, wqkv_ref, bqkv_ref, wo_ref, bo_ref,
                    g1_ref, be1_ref, w1_ref, b1_ref, w2_ref, b2_ref,
                    g2_ref, be2_ref, out_ref):
    """One batch element per grid step; layers statically unrolled."""
    D = NUM_FEATURES
    h = h0_ref[0]                                                   # (T, D) f32

    for l in range(N_LAYERS):
        hb = h.astype(jnp.bfloat16)

        # ---- fused QKV projection: one (T, D) @ (D, 3D) matmul -------------
        qkv = jnp.dot(hb, wqkv_ref[l],
                      preferred_element_type=jnp.float32) + bqkv_ref[l]  # (T, 3D)

        # ---- per-head attention (H=4, static); heads are contiguous 64-col
        # slices of the fused output, so the concat below is in natural order.
        oh_list = []
        for hh in range(N_HEADS):
            q = qkv[:, hh * HEAD_DIM:(hh + 1) * HEAD_DIM].astype(jnp.bfloat16)
            k = qkv[:, D + hh * HEAD_DIM:D + (hh + 1) * HEAD_DIM].astype(jnp.bfloat16)
            v = qkv[:, 2 * D + hh * HEAD_DIM:2 * D + (hh + 1) * HEAD_DIM].astype(jnp.bfloat16)

            s = jnp.einsum('qd,kd->qk', q, k,
                           preferred_element_type=jnp.float32)      # (T, T)
            s = s - jnp.max(s, axis=-1, keepdims=True)
            p = jnp.exp(s)
            p = p * pl.reciprocal(jnp.sum(p, axis=-1, keepdims=True), approx=True)
            oh = jnp.dot(p.astype(jnp.bfloat16), v,
                         preferred_element_type=jnp.float32)         # (T, Dh)
            oh_list.append(oh.astype(jnp.bfloat16))

        # ---- single full-K output projection (replaces per-head K=64 accum) -
        attn_cat = jnp.concatenate(oh_list, axis=-1)                 # (T, D) bf16
        attn = jnp.dot(attn_cat, wo_ref[l],
                       preferred_element_type=jnp.float32) + bo_ref[l]

        # ---- post-LN residual block 1 ---------------------------------------
        h = _layer_norm(h + attn, g1_ref[l], be1_ref[l])

        # ---- FFN chunked over D_FF (bounds the f32 intermediate to 256 cols) -
        hb = h.astype(jnp.bfloat16)
        ff = b2_ref[l]                                               # (1, D), broadcasts
        for c in range(N_FF_CHUNKS):
            slab = jnp.dot(hb, w1_ref[l, c],
                           preferred_element_type=jnp.float32) + b1_ref[l, c]
            slab = jnp.maximum(slab, 0.0).astype(jnp.bfloat16)       # (T, FF_CHUNK)
            ff = ff + jnp.dot(slab, w2_ref[l, c],
                              preferred_element_type=jnp.float32)    # (T, D)

        # ---- post-LN residual block 2 ----------------------------------------
        h = _layer_norm(h + ff, g2_ref[l], be2_ref[l])

    out_ref[0] = h.astype(out_ref.dtype)


def delivery_blstm_forward(x, params):
    B, T, C = x.shape
    assert C == HIDDEN_DIM
    D = NUM_FEATURES

    # Conv1d(kernel_size=1, bias=False) == pointwise channel matmul; done in
    # XLA so the lane-sparse (BT, 14) input never enters the kernel.
    h0 = jnp.einsum('btc,cd->btd', x.astype(jnp.float32), params['wc'])  # (B, T, D)

    def whole(a):
        nd = a.ndim
        return pl.BlockSpec(a.shape, lambda b, _nd=nd: (0,) * _nd)

    weight_args = (params['wqkv'], params['bqkv'], params['wo'], params['bo'],
                   params['g1'], params['be1'], params['w1'], params['b1'],
                   params['w2'], params['b2'], params['g2'], params['be2'])

    out = pl.pallas_call(
        _encoder_kernel,
        grid=(B,),
        in_specs=[pl.BlockSpec((1, T, D), lambda b: (b, 0, 0))]
                 + [whole(a) for a in weight_args],
        out_specs=pl.BlockSpec((1, T, D), lambda b: (b, 0, 0)),
        out_shape=jax.ShapeDtypeStruct((B, T, D), jnp.float32),
        compiler_params=pltpu.CompilerParams(
            dimension_semantics=("parallel",),   # batches are independent (2 TCs on v7x)
            vmem_limit_bytes=32 << 20,           # resident weights ~4.8 MiB bf16; safe on v5e/v6e/v7x
        ),
    )(h0, *weight_args)
    return out


def init_params(key):
    """Canonical (torch-like, f32) parameters."""
    D = NUM_FEATURES
    L = N_LAYERS
    ks = jax.random.split(key, 8)

    def nrm(k, shape, scale=0.02):
        return (scale * jax.random.normal(k, shape)).astype(jnp.float32)

    return {
        # Conv1d weight is (out=256, in=14, k=1) in torch; stored transposed (in, out).
        'wc': nrm(ks[0], (HIDDEN_DIM, D)),
        'wq': nrm(ks[1], (L, D, D)),
        'wk': nrm(ks[2], (L, D, D)),
        'wv': nrm(ks[3], (L, D, D)),
        'wo': nrm(ks[4], (L, D, D)),
        'bq': jnp.zeros((L, 1, D), jnp.float32),
        'bk': jnp.zeros((L, 1, D), jnp.float32),
        'bv': jnp.zeros((L, 1, D), jnp.float32),
        'bo': jnp.zeros((L, 1, D), jnp.float32),
        'g1': jnp.ones((L, 1, D), jnp.float32),
        'be1': jnp.zeros((L, 1, D), jnp.float32),
        'w1': nrm(ks[5], (L, D, D_FF)),
        'b1': jnp.zeros((L, 1, D_FF), jnp.float32),
        'w2': nrm(ks[6], (L, D_FF, D)),
        'b2': jnp.zeros((L, 1, D), jnp.float32),
        'g2': jnp.ones((L, 1, D), jnp.float32),
        'be2': jnp.zeros((L, 1, D), jnp.float32),
    }


def prepare_params(p):
    """Host-side weight transforms: fuse QKV, fold 1/sqrt(Dh) into Q, chunk the
    FFN weights over D_FF, cast matmul weights to bf16 (LN params / biases f32)."""
    D, L = NUM_FEATURES, N_LAYERS
    scale = 1.0 / (HEAD_DIM ** 0.5)
    bf = lambda a: a.astype(jnp.bfloat16)

    wqkv = jnp.concatenate([p['wq'] * scale, p['wk'], p['wv']], axis=-1)   # (L, D, 3D)
    bqkv = jnp.concatenate([p['bq'] * scale, p['bk'], p['bv']], axis=-1)   # (L, 1, 3D)

    w1 = p['w1'].reshape(L, D, N_FF_CHUNKS, FF_CHUNK).transpose(0, 2, 1, 3)  # (L, NC, D, FC)
    b1 = p['b1'].reshape(L, 1, N_FF_CHUNKS, FF_CHUNK).transpose(0, 2, 1, 3)  # (L, NC, 1, FC)
    w2 = p['w2'].reshape(L, N_FF_CHUNKS, FF_CHUNK, D)                        # (L, NC, FC, D)

    return {
        'wc': p['wc'].astype(jnp.float32),     # conv runs in the XLA wrapper (f32)
        'wqkv': bf(wqkv), 'bqkv': bqkv.astype(jnp.float32),
        'wo': bf(p['wo']), 'bo': p['bo'],
        'g1': p['g1'], 'be1': p['be1'],
        'w1': bf(w1), 'b1': b1.astype(jnp.float32),
        'w2': bf(w2), 'b2': p['b2'],
        'g2': p['g2'], 'be2': p['be2'],
    }


if __name__ == "__main__":
    key = jax.random.PRNGKey(0)
    k_x, k_p = jax.random.split(key)

    B, T = 2, 8
    x = jax.random.normal(k_x, (B, T, HIDDEN_DIM), dtype=jnp.float32)
    params = prepare_params(init_params(k_p))

    out = jax.block_until_ready(delivery_blstm_forward(x, params))

    assert out.shape == (B, T, NUM_FEATURES), out.shape
    assert out.dtype == jnp.float32
    assert bool(jnp.all(jnp.isfinite(out)))
    print("KERNEL_OK")
</pallas_src>

<mosaic_0001>
module attributes {stable_mosaic.version = 11 : i64} {
  func.func @_encoder_kernel(%arg0: i32, %arg1: memref<1x8x256xf32, #tpu.memory_space<vmem>>, %arg2: memref<3x256x768xbf16, #tpu.memory_space<vmem>>, %arg3: memref<3x1x768xf32, #tpu.memory_space<vmem>>, %arg4: memref<3x256x256xbf16, #tpu.memory_space<vmem>>, %arg5: memref<3x1x256xf32, #tpu.memory_space<vmem>>, %arg6: memref<3x1x256xf32, #tpu.memory_space<vmem>>, %arg7: memref<3x1x256xf32, #tpu.memory_space<vmem>>, %arg8: memref<3x4x256x256xbf16, #tpu.memory_space<vmem>>, %arg9: memref<3x4x1x256xf32, #tpu.memory_space<vmem>>, %arg10: memref<3x4x256x256xbf16, #tpu.memory_space<vmem>>, %arg11: memref<3x1x256xf32, #tpu.memory_space<vmem>>, %arg12: memref<3x1x256xf32, #tpu.memory_space<vmem>>, %arg13: memref<3x1x256xf32, #tpu.memory_space<vmem>>, %arg14: memref<1x8x256xf32, #tpu.memory_space<vmem>>) attributes {dimension_semantics = [#tpu.dimension_semantics<parallel>], iteration_bounds = array<i64: 2>, scalar_prefetch = 0 : i64, scratch_operands = 0 : i64, tpu.core_type = #tpu.core_type<tc>, window_params = [{transform_indices = @transform_0, window_bounds = array<i64: 1, 8, 256>}, {pipeline_mode = #tpu.pipeline_mode<synchronous>, transform_indices = @transform_1, window_bounds = array<i64: 3, 256, 768>}, {pipeline_mode = #tpu.pipeline_mode<synchronous>, transform_indices = @transform_2, window_bounds = array<i64: 3, 1, 768>}, {pipeline_mode = #tpu.pipeline_mode<synchronous>, transform_indices = @transform_3, window_bounds = array<i64: 3, 256, 256>}, {pipeline_mode = #tpu.pipeline_mode<synchronous>, transform_indices = @transform_4, window_bounds = array<i64: 3, 1, 256>}, {pipeline_mode = #tpu.pipeline_mode<synchronous>, transform_indices = @transform_5, window_bounds = array<i64: 3, 1, 256>}, {pipeline_mode = #tpu.pipeline_mode<synchronous>, transform_indices = @transform_6, window_bounds = array<i64: 3, 1, 256>}, {pipeline_mode = #tpu.pipeline_mode<synchronous>, transform_indices = @transform_7, window_bounds = array<i64: 3, 4, 256, 256>}, {pipeline_mode = #tpu.pipeline_mode<synchronous>, transform_indices = @transform_8, window_bounds = array<i64: 3, 4, 1, 256>}, {pipeline_mode = #tpu.pipeline_mode<synchronous>, transform_indices = @transform_9, window_bounds = array<i64: 3, 4, 256, 256>}, {pipeline_mode = #tpu.pipeline_mode<synchronous>, transform_indices = @transform_10, window_bounds = array<i64: 3, 1, 256>}, {pipeline_mode = #tpu.pipeline_mode<synchronous>, transform_indices = @transform_11, window_bounds = array<i64: 3, 1, 256>}, {pipeline_mode = #tpu.pipeline_mode<synchronous>, transform_indices = @transform_12, window_bounds = array<i64: 3, 1, 256>}, {transform_indices = @transform_13, window_bounds = array<i64: 1, 8, 256>}]} {
    %c0 = arith.constant 0 : index
    %c0_0 = arith.constant 0 : index
    %c0_1 = arith.constant 0 : index
    %0 = vector.load %arg1[%c0, %c0_0, %c0_1] : memref<1x8x256xf32, #tpu.memory_space<vmem>>, vector<1x8x256xf32>
    %1 = vector.shape_cast %0 : vector<1x8x256xf32> to vector<8x256xf32>
    %2 = arith.truncf %1 : vector<8x256xf32> to vector<8x256xbf16>
    %c0_2 = arith.constant 0 : index
    %c0_3 = arith.constant 0 : index
    %c0_4 = arith.constant 0 : index
    %3 = vector.load %arg2[%c0_2, %c0_3, %c0_4] : memref<3x256x768xbf16, #tpu.memory_space<vmem>>, vector<1x256x768xbf16>
    %4 = vector.shape_cast %3 : vector<1x256x768xbf16> to vector<256x768xbf16>
    %cst = arith.constant dense<0.000000e+00> : vector<8x768xf32>
    %5 = tpu.matmul %2, %4, %cst {dimension_numbers = #tpu.dot_dimension_numbers<[1], [0], [0], [1], [0, 0, 1, 1], [], []>} : vector<8x256xbf16>, vector<256x768xbf16>, vector<8x768xf32> -> vector<8x768xf32>
    %c0_5 = arith.constant 0 : index
    %c0_6 = arith.constant 0 : index
    %c0_7 = arith.constant 0 : index
    %6 = vector.load %arg3[%c0_5, %c0_6, %c0_7] : memref<3x1x768xf32, #tpu.memory_space<vmem>>, vector<1x1x768xf32>
    %7 = vector.shape_cast %6 : vector<1x1x768xf32> to vector<1x768xf32>
    %8 = vector.broadcast %7 : vector<1x768xf32> to vector<8x768xf32>
    %9 = arith.addf %5, %8 : vector<8x768xf32>
    %10 = vector.extract_strided_slice %9 {offsets = [0, 0], sizes = [8, 64], strides = [1, 1]} : vector<8x768xf32> to vector<8x64xf32>
    %11 = arith.truncf %10 : vector<8x64xf32> to vector<8x64xbf16>
    %12 = vector.extract_strided_slice %9 {offsets = [0, 256], sizes = [8, 64], strides = [1, 1]} : vector<8x768xf32> to vector<8x64xf32>
    %13 = arith.truncf %12 : vector<8x64xf32> to vector<8x64xbf16>
    %14 = vector.extract_strided_slice %9 {offsets = [0, 512], sizes = [8, 64], strides = [1, 1]} : vector<8x768xf32> to vector<8x64xf32>
    %15 = arith.truncf %14 : vector<8x64xf32> to vector<8x64xbf16>
    "tpu.trace_start"() <{level = 10 : i32, message = "qd,kd->qk"}> : () -> ()
    %cst_8 = arith.constant dense<0.000000e+00> : vector<8x8xf32>
    %16 = tpu.matmul %11, %13, %cst_8 {dimension_numbers = #tpu.dot_dimension_numbers<[1], [1], [0], [0], [0, 0, 1, 0], [], []>} : vector<8x64xbf16>, vector<8x64xbf16>, vector<8x8xf32> -> vector<8x8xf32>
    "tpu.trace_stop"() : () -> ()
    %cst_9 = arith.constant dense<0xFF800000> : vector<8xf32>
    %17 = vector.multi_reduction <maximumf>, %16, %cst_9 [1] : vector<8x8xf32> to vector<8xf32>
    %18 = vector.shape_cast %17 : vector<8xf32> to vector<8x1xf32>
    %19 = vector.broadcast %18 : vector<8x1xf32> to vector<8x8xf32>
    %20 = arith.subf %16, %19 : vector<8x8xf32>
    %21 = math.exp %20 : vector<8x8xf32>
    %cst_10 = arith.constant dense<0.000000e+00> : vector<8xf32>
    %22 = vector.multi_reduction <add>, %21, %cst_10 [1] : vector<8x8xf32> to vector<8xf32>
    %23 = vector.shape_cast %22 : vector<8xf32> to vector<8x1xf32>
    %24 = tpu.reciprocal %23 {approx = true} : vector<8x1xf32> -> vector<8x1xf32>
    %25 = vector.broadcast %24 : vector<8x1xf32> to vector<8x8xf32>
    %26 = arith.mulf %21, %25 : vector<8x8xf32>
    %27 = arith.truncf %26 : vector<8x8xf32> to vector<8x8xbf16>
    %cst_11 = arith.constant dense<0.000000e+00> : vector<8x64xf32>
    %28 = tpu.matmul %27, %15, %cst_11 {dimension_numbers = #tpu.dot_dimension_numbers<[1], [0], [0], [1], [0, 0, 1, 1], [], []>} : vector<8x8xbf16>, vector<8x64xbf16>, vector<8x64xf32> -> vector<8x64xf32>
    %29 = arith.truncf %28 : vector<8x64xf32> to vector<8x64xbf16>
    %30 = vector.extract_strided_slice %9 {offsets = [0, 64], sizes = [8, 64], strides = [1, 1]} : vector<8x768xf32> to vector<8x64xf32>
    %31 = arith.truncf %30 : vector<8x64xf32> to vector<8x64xbf16>
    %32 = vector.extract_strided_slice %9 {offsets = [0, 320], sizes = [8, 64], strides = [1, 1]} : vector<8x768xf32> to vector<8x64xf32>
    %33 = arith.truncf %32 : vector<8x64xf32> to vector<8x64xbf16>
    %34 = vector.extract_strided_slice %9 {offsets = [0, 576], sizes = [8, 64], strides = [1, 1]} : vector<8x768xf32> to vector<8x64xf32>
    %35 = arith.truncf %34 : vector<8x64xf32> to vector<8x64xbf16>
    "tpu.trace_start"() <{level = 10 : i32, message = "qd,kd->qk"}> : () -> ()
    %cst_12 = arith.constant dense<0.000000e+00> : vector<8x8xf32>
    %36 = tpu.matmul %31, %33, %cst_12 {dimension_numbers = #tpu.dot_dimension_numbers<[1], [1], [0], [0], [0, 0, 1, 0], [], []>} : vector<8x64xbf16>, vector<8x64xbf16>, vector<8x8xf32> -> vector<8x8xf32>
    "tpu.trace_stop"() : () -> ()
    %cst_13 = arith.constant dense<0xFF800000> : vector<8xf32>
    %37 = vector.multi_reduction <maximumf>, %36, %cst_13 [1] : vector<8x8xf32> to vector<8xf32>
    %38 = vector.shape_cast %37 : vector<8xf32> to vector<8x1xf32>
    %39 = vector.broadcast %38 : vector<8x1xf32> to vector<8x8xf32>
    %40 = arith.subf %36, %39 : vector<8x8xf32>
    %41 = math.exp %40 : vector<8x8xf32>
    %cst_14 = arith.constant dense<0.000000e+00> : vector<8xf32>
    %42 = vector.multi_reduction <add>, %41, %cst_14 [1] : vector<8x8xf32> to vector<8xf32>
    %43 = vector.shape_cast %42 : vector<8xf32> to vector<8x1xf32>
    %44 = tpu.reciprocal %43 {approx = true} : vector<8x1xf32> -> vector<8x1xf32>
    %45 = vector.broadcast %44 : vector<8x1xf32> to vector<8x8xf32>
    %46 = arith.mulf %41, %45 : vector<8x8xf32>
    %47 = arith.truncf %46 : vector<8x8xf32> to vector<8x8xbf16>
    %cst_15 = arith.constant dense<0.000000e+00> : vector<8x64xf32>
    %48 = tpu.matmul %47, %35, %cst_15 {dimension_numbers = #tpu.dot_dimension_numbers<[1], [0], [0], [1], [0, 0, 1, 1], [], []>} : vector<8x8xbf16>, vector<8x64xbf16>, vector<8x64xf32> -> vector<8x64xf32>
    %49 = arith.truncf %48 : vector<8x64xf32> to vector<8x64xbf16>
    %50 = vector.extract_strided_slice %9 {offsets = [0, 128], sizes = [8, 64], strides = [1, 1]} : vector<8x768xf32> to vector<8x64xf32>
    %51 = arith.truncf %50 : vector<8x64xf32> to vector<8x64xbf16>
    %52 = vector.extract_strided_slice %9 {offsets = [0, 384], sizes = [8, 64], strides = [1, 1]} : vector<8x768xf32> to vector<8x64xf32>
    %53 = arith.truncf %52 : vector<8x64xf32> to vector<8x64xbf16>
    %54 = vector.extract_strided_slice %9 {offsets = [0, 640], sizes = [8, 64], strides = [1, 1]} : vector<8x768xf32> to vector<8x64xf32>
    %55 = arith.truncf %54 : vector<8x64xf32> to vector<8x64xbf16>
    "tpu.trace_start"() <{level = 10 : i32, message = "qd,kd->qk"}> : () -> ()
    %cst_16 = arith.constant dense<0.000000e+00> : vector<8x8xf32>
    %56 = tpu.matmul %51, %53, %cst_16 {dimension_numbers = #tpu.dot_dimension_numbers<[1], [1], [0], [0], [0, 0, 1, 0], [], []>} : vector<8x64xbf16>, vector<8x64xbf16>, vector<8x8xf32> -> vector<8x8xf32>
    "tpu.trace_stop"() : () -> ()
    %cst_17 = arith.constant dense<0xFF800000> : vector<8xf32>
    %57 = vector.multi_reduction <maximumf>, %56, %cst_17 [1] : vector<8x8xf32> to vector<8xf32>
    %58 = vector.shape_cast %57 : vector<8xf32> to vector<8x1xf32>
    %59 = vector.broadcast %58 : vector<8x1xf32> to vector<8x8xf32>
    %60 = arith.subf %56, %59 : vector<8x8xf32>
    %61 = math.exp %60 : vector<8x8xf32>
    %cst_18 = arith.constant dense<0.000000e+00> : vector<8xf32>
    %62 = vector.multi_reduction <add>, %61, %cst_18 [1] : vector<8x8xf32> to vector<8xf32>
    %63 = vector.shape_cast %62 : vector<8xf32> to vector<8x1xf32>
    %64 = tpu.reciprocal %63 {approx = true} : vector<8x1xf32> -> vector<8x1xf32>
    %65 = vector.broadcast %64 : vector<8x1xf32> to vector<8x8xf32>
    %66 = arith.mulf %61, %65 : vector<8x8xf32>
    %67 = arith.truncf %66 : vector<8x8xf32> to vector<8x8xbf16>
    %cst_19 = arith.constant dense<0.000000e+00> : vector<8x64xf32>
    %68 = tpu.matmul %67, %55, %cst_19 {dimension_numbers = #tpu.dot_dimension_numbers<[1], [0], [0], [1], [0, 0, 1, 1], [], []>} : vector<8x8xbf16>, vector<8x64xbf16>, vector<8x64xf32> -> vector<8x64xf32>
    %69 = arith.truncf %68 : vector<8x64xf32> to vector<8x64xbf16>
    %70 = vector.extract_strided_slice %9 {offsets = [0, 192], sizes = [8, 64], strides = [1, 1]} : vector<8x768xf32> to vector<8x64xf32>
    %71 = arith.truncf %70 : vector<8x64xf32> to vector<8x64xbf16>
    %72 = vector.extract_strided_slice %9 {offsets = [0, 448], sizes = [8, 64], strides = [1, 1]} : vector<8x768xf32> to vector<8x64xf32>
    %73 = arith.truncf %72 : vector<8x64xf32> to vector<8x64xbf16>
    %74 = vector.extract_strided_slice %9 {offsets = [0, 704], sizes = [8, 64], strides = [1, 1]} : vector<8x768xf32> to vector<8x64xf32>
    %75 = arith.truncf %74 : vector<8x64xf32> to vector<8x64xbf16>
    "tpu.trace_start"() <{level = 10 : i32, message = "qd,kd->qk"}> : () -> ()
    %cst_20 = arith.constant dense<0.000000e+00> : vector<8x8xf32>
    %76 = tpu.matmul %71, %73, %cst_20 {dimension_numbers = #tpu.dot_dimension_numbers<[1], [1], [0], [0], [0, 0, 1, 0], [], []>} : vector<8x64xbf16>, vector<8x64xbf16>, vector<8x8xf32> -> vector<8x8xf32>
    "tpu.trace_stop"() : () -> ()
    %cst_21 = arith.constant dense<0xFF800000> : vector<8xf32>
    %77 = vector.multi_reduction <maximumf>, %76, %cst_21 [1] : vector<8x8xf32> to vector<8xf32>
    %78 = vector.shape_cast %77 : vector<8xf32> to vector<8x1xf32>
    %79 = vector.broadcast %78 : vector<8x1xf32> to vector<8x8xf32>
    %80 = arith.subf %76, %79 : vector<8x8xf32>
    %81 = math.exp %80 : vector<8x8xf32>
    %cst_22 = arith.constant dense<0.000000e+00> : vector<8xf32>
    %82 = vector.multi_reduction <add>, %81, %cst_22 [1] : vector<8x8xf32> to vector<8xf32>
    %83 = vector.shape_cast %82 : vector<8xf32> to vector<8x1xf32>
    %84 = tpu.reciprocal %83 {approx = true} : vector<8x1xf32> -> vector<8x1xf32>
    %85 = vector.broadcast %84 : vector<8x1xf32> to vector<8x8xf32>
    %86 = arith.mulf %81, %85 : vector<8x8xf32>
    %87 = arith.truncf %86 : vector<8x8xf32> to vector<8x8xbf16>
    %cst_23 = arith.constant dense<0.000000e+00> : vector<8x64xf32>
    %88 = tpu.matmul %87, %75, %cst_23 {dimension_numbers = #tpu.dot_dimension_numbers<[1], [0], [0], [1], [0, 0, 1, 1], [], []>} : vector<8x8xbf16>, vector<8x64xbf16>, vector<8x64xf32> -> vector<8x64xf32>
    %89 = arith.truncf %88 : vector<8x64xf32> to vector<8x64xbf16>
    %90 = tpu.concatenate %29, %49, %69, %89 in 1 : vector<8x64xbf16>, vector<8x64xbf16>, vector<8x64xbf16>, vector<8x64xbf16> -> vector<8x256xbf16>
    %c0_24 = arith.constant 0 : index
    %c0_25 = arith.constant 0 : index
    %c0_26 = arith.constant 0 : index
    %91 = vector.load %arg4[%c0_24, %c0_25, %c0_26] : memref<3x256x256xbf16, #tpu.memory_space<vmem>>, vector<1x256x256xbf16>
    %92 = vector.shape_cast %91 : vector<1x256x256xbf16> to vector<256x256xbf16>
    %cst_27 = arith.constant dense<0.000000e+00> : vector<8x256xf32>
    %93 = tpu.matmul %90, %92, %cst_27 {dimension_numbers = #tpu.dot_dimension_numbers<[1], [0], [0], [1], [0, 0, 1, 1], [], []>} : vector<8x256xbf16>, vector<256x256xbf16>, vector<8x256xf32> -> vector<8x256xf32>
    %c0_28 = arith.constant 0 : index
    %c0_29 = arith.constant 0 : index
    %c0_30 = arith.constant 0 : index
    %94 = vector.load %arg5[%c0_28, %c0_29, %c0_30] : memref<3x1x256xf32, #tpu.memory_space<vmem>>, vector<1x1x256xf32>
    %95 = vector.shape_cast %94 : vector<1x1x256xf32> to vector<1x256xf32>
    %96 = vector.broadcast %95 : vector<1x256xf32> to vector<8x256xf32>
    %97 = arith.addf %93, %96 : vector<8x256xf32>
    %98 = arith.addf %1, %97 : vector<8x256xf32>
    %c0_31 = arith.constant 0 : index
    %c0_32 = arith.constant 0 : index
    %c0_33 = arith.constant 0 : index
    %99 = vector.load %arg6[%c0_31, %c0_32, %c0_33] : memref<3x1x256xf32, #tpu.memory_space<vmem>>, vector<1x1x256xf32>
    %100 = vector.shape_cast %99 : vector<1x1x256xf32> to vector<1x256xf32>
    %c0_34 = arith.constant 0 : index
    %c0_35 = arith.constant 0 : index
    %c0_36 = arith.constant 0 : index
    %101 = vector.load %arg7[%c0_34, %c0_35, %c0_36] : memref<3x1x256xf32, #tpu.memory_space<vmem>>, vector<1x1x256xf32>
    %102 = vector.shape_cast %101 : vector<1x1x256xf32> to vector<1x256xf32>
    %cst_37 = arith.constant dense<0.000000e+00> : vector<8xf32>
    %103 = vector.multi_reduction <add>, %98, %cst_37 [1] : vector<8x256xf32> to vector<8xf32>
    %104 = vector.shape_cast %103 : vector<8xf32> to vector<8x1xf32>
    %cst_38 = arith.constant 2.560000e+02 : f32
    %105 = vector.broadcast %cst_38 : f32 to vector<8x1xf32>
    %106 = arith.divf %104, %105 : vector<8x1xf32>
    %107 = vector.broadcast %106 : vector<8x1xf32> to vector<8x256xf32>
    %108 = arith.subf %98, %107 : vector<8x256xf32>
    %109 = arith.mulf %108, %108 : vector<8x256xf32>
    %cst_39 = arith.constant dense<0.000000e+00> : vector<8xf32>
    %110 = vector.multi_reduction <add>, %109, %cst_39 [1] : vector<8x256xf32> to vector<8xf32>
    %111 = vector.shape_cast %110 : vector<8xf32> to vector<8x1xf32>
    %cst_40 = arith.constant 2.560000e+02 : f32
    %112 = vector.broadcast %cst_40 : f32 to vector<8x1xf32>
    %113 = arith.divf %111, %112 : vector<8x1xf32>
    %cst_41 = arith.constant 9.99999974E-6 : f32
    %114 = vector.broadcast %cst_41 : f32 to vector<8x1xf32>
    %115 = arith.addf %113, %114 : vector<8x1xf32>
    %116 = math.rsqrt %115 : vector<8x1xf32>
    %117 = vector.broadcast %106 : vector<8x1xf32> to vector<8x256xf32>
    %118 = arith.subf %98, %117 : vector<8x256xf32>
    %119 = vector.broadcast %116 : vector<8x1xf32> to vector<8x256xf32>
    %120 = arith.mulf %118, %119 : vector<8x256xf32>
    %121 = vector.broadcast %100 : vector<1x256xf32> to vector<8x256xf32>
    %122 = arith.mulf %120, %121 : vector<8x256xf32>
    %123 = vector.broadcast %102 : vector<1x256xf32> to vector<8x256xf32>
    %124 = arith.addf %122, %123 : vector<8x256xf32>
    %125 = arith.truncf %124 : vector<8x256xf32> to vector<8x256xbf16>
    %c0_42 = arith.constant 0 : index
    %c0_43 = arith.constant 0 : index
    %c0_44 = arith.constant 0 : index
    %126 = vector.load %arg11[%c0_42, %c0_43, %c0_44] : memref<3x1x256xf32, #tpu.memory_space<vmem>>, vector<1x1x256xf32>
    %127 = vector.shape_cast %126 : vector<1x1x256xf32> to vector<1x256xf32>
    %c0_45 = arith.constant 0 : index
    %c0_46 = arith.constant 0 : index
    %c0_47 = arith.constant 0 : index
    %c0_48 = arith.constant 0 : index
    %128 = vector.load %arg8[%c0_45, %c0_46, %c0_47, %c0_48] : memref<3x4x256x256xbf16, #tpu.memory_space<vmem>>, vector<1x1x256x256xbf16>
    %129 = vector.shape_cast %128 : vector<1x1x256x256xbf16> to vector<256x256xbf16>
    %cst_49 = arith.constant dense<0.000000e+00> : vector<8x256xf32>
    %130 = tpu.matmul %125, %129, %cst_49 {dimension_numbers = #tpu.dot_dimension_numbers<[1], [0], [0], [1], [0, 0, 1, 1], [], []>} : vector<8x256xbf16>, vector<256x256xbf16>, vector<8x256xf32> -> vector<8x256xf32>
    %c0_50 = arith.constant 0 : index
    %c0_51 = arith.constant 0 : index
    %c0_52 = arith.constant 0 : index
    %c0_53 = arith.constant 0 : index
    %131 = vector.load %arg9[%c0_50, %c0_51, %c0_52, %c0_53] : memref<3x4x1x256xf32, #tpu.memory_space<vmem>>, vector<1x1x1x256xf32>
    %132 = vector.shape_cast %131 : vector<1x1x1x256xf32> to vector<1x256xf32>
    %133 = vector.broadcast %132 : vector<1x256xf32> to vector<8x256xf32>
    %134 = arith.addf %130, %133 : vector<8x256xf32>
    %cst_54 = arith.constant 0.000000e+00 : f32
    %135 = vector.broadcast %cst_54 : f32 to vector<8x256xf32>
    %136 = arith.maximumf %134, %135 : vector<8x256xf32>
    %137 = arith.truncf %136 : vector<8x256xf32> to vector<8x256xbf16>
    %c0_55 = arith.constant 0 : index
    %c0_56 = arith.constant 0 : index
    %c0_57 = arith.constant 0 : index
    %c0_58 = arith.constant 0 : index
    %138 = vector.load %arg10[%c0_55, %c0_56, %c0_57, %c0_58] : memref<3x4x256x256xbf16, #tpu.memory_space<vmem>>, vector<1x1x256x256xbf16>
    %139 = vector.shape_cast %138 : vector<1x1x256x256xbf16> to vector<256x256xbf16>
    %cst_59 = arith.constant dense<0.000000e+00> : vector<8x256xf32>
    %140 = tpu.matmul %137, %139, %cst_59 {dimension_numbers = #tpu.dot_dimension_numbers<[1], [0], [0], [1], [0, 0, 1, 1], [], []>} : vector<8x256xbf16>, vector<256x256xbf16>, vector<8x256xf32> -> vector<8x256xf32>
    %141 = vector.broadcast %127 : vector<1x256xf32> to vector<8x256xf32>
    %142 = arith.addf %141, %140 : vector<8x256xf32>
    %c0_60 = arith.constant 0 : index
    %c1 = arith.constant 1 : index
    %c0_61 = arith.constant 0 : index
    %c0_62 = arith.constant 0 : index
    %143 = vector.load %arg8[%c0_60, %c1, %c0_61, %c0_62] : memref<3x4x256x256xbf16, #tpu.memory_space<vmem>>, vector<1x1x256x256xbf16>
    %144 = vector.shape_cast %143 : vector<1x1x256x256xbf16> to vector<256x256xbf16>
    %cst_63 = arith.constant dense<0.000000e+00> : vector<8x256xf32>
    %145 = tpu.matmul %125, %144, %cst_63 {dimension_numbers = #tpu.dot_dimension_numbers<[1], [0], [0], [1], [0, 0, 1, 1], [], []>} : vector<8x256xbf16>, vector<256x256xbf16>, vector<8x256xf32> -> vector<8x256xf32>
    %c0_64 = arith.constant 0 : index
    %c1_65 = arith.constant 1 : index
    %c0_66 = arith.constant 0 : index
    %c0_67 = arith.constant 0 : index
    %146 = vector.load %arg9[%c0_64, %c1_65, %c0_66, %c0_67] : memref<3x4x1x256xf32, #tpu.memory_space<vmem>>, vector<1x1x1x256xf32>
    %147 = vector.shape_cast %146 : vector<1x1x1x256xf32> to vector<1x256xf32>
    %148 = vector.broadcast %147 : vector<1x256xf32> to vector<8x256xf32>
    %149 = arith.addf %145, %148 : vector<8x256xf32>
    %cst_68 = arith.constant 0.000000e+00 : f32
    %150 = vector.broadcast %cst_68 : f32 to vector<8x256xf32>
    %151 = arith.maximumf %149, %150 : vector<8x256xf32>
    %152 = arith.truncf %151 : vector<8x256xf32> to vector<8x256xbf16>
    %c0_69 = arith.constant 0 : index
    %c1_70 = arith.constant 1 : index
    %c0_71 = arith.constant 0 : index
    %c0_72 = arith.constant 0 : index
    %153 = vector.load %arg10[%c0_69, %c1_70, %c0_71, %c0_72] : memref<3x4x256x256xbf16, #tpu.memory_space<vmem>>, vector<1x1x256x256xbf16>
    %154 = vector.shape_cast %153 : vector<1x1x256x256xbf16> to vector<256x256xbf16>
    %cst_73 = arith.constant dense<0.000000e+00> : vector<8x256xf32>
    %155 = tpu.matmul %152, %154, %cst_73 {dimension_numbers = #tpu.dot_dimension_numbers<[1], [0], [0], [1], [0, 0, 1, 1], [], []>} : vector<8x256xbf16>, vector<256x256xbf16>, vector<8x256xf32> -> vector<8x256xf32>
    %156 = arith.addf %142, %155 : vector<8x256xf32>
    %c0_74 = arith.constant 0 : index
    %c2 = arith.constant 2 : index
    %c0_75 = arith.constant 0 : index
    %c0_76 = arith.constant 0 : index
    %157 = vector.load %arg8[%c0_74, %c2, %c0_75, %c0_76] : memref<3x4x256x256xbf16, #tpu.memory_space<vmem>>, vector<1x1x256x256xbf16>
    %158 = vector.shape_cast %157 : vector<1x1x256x256xbf16> to vector<256x256xbf16>
    %cst_77 = arith.constant dense<0.000000e+00> : vector<8x256xf32>
    %159 = tpu.matmul %125, %158, %cst_77 {dimension_numbers = #tpu.dot_dimension_numbers<[1], [0], [0], [1], [0, 0, 1, 1], [], []>} : vector<8x256xbf16>, vector<256x256xbf16>, vector<8x256xf32> -> vector<8x256xf32>
    %c0_78 = arith.constant 0 : index
    %c2_79 = arith.constant 2 : index
    %c0_80 = arith.constant 0 : index
    %c0_81 = arith.constant 0 : index
    %160 = vector.load %arg9[%c0_78, %c2_79, %c0_80, %c0_81] : memref<3x4x1x256xf32, #tpu.memory_space<vmem>>, vector<1x1x1x256xf32>
    %161 = vector.shape_cast %160 : vector<1x1x1x256xf32> to vector<1x256xf32>
    %162 = vector.broadcast %161 : vector<1x256xf32> to vector<8x256xf32>
    %163 = arith.addf %159, %162 : vector<8x256xf32>
    %cst_82 = arith.constant 0.000000e+00 : f32
    %164 = vector.broadcast %cst_82 : f32 to vector<8x256xf32>
    %165 = arith.maximumf %163, %164 : vector<8x256xf32>
    %166 = arith.truncf %165 : vector<8x256xf32> to vector<8x256xbf16>
    %c0_83 = arith.constant 0 : index
    %c2_84 = arith.constant 2 : index
    %c0_85 = arith.constant 0 : index
    %c0_86 = arith.constant 0 : index
    %167 = vector.load %arg10[%c0_83, %c2_84, %c0_85, %c0_86] : memref<3x4x256x256xbf16, #tpu.memory_space<vmem>>, vector<1x1x256x256xbf16>
    %168 = vector.shape_cast %167 : vector<1x1x256x256xbf16> to vector<256x256xbf16>
    %cst_87 = arith.constant dense<0.000000e+00> : vector<8x256xf32>
    %169 = tpu.matmul %166, %168, %cst_87 {dimension_numbers = #tpu.dot_dimension_numbers<[1], [0], [0], [1], [0, 0, 1, 1], [], []>} : vector<8x256xbf16>, vector<256x256xbf16>, vector<8x256xf32> -> vector<8x256xf32>
    %170 = arith.addf %156, %169 : vector<8x256xf32>
    %c0_88 = arith.constant 0 : index
    %c3 = arith.constant 3 : index
    %c0_89 = arith.constant 0 : index
    %c0_90 = arith.constant 0 : index
    %171 = vector.load %arg8[%c0_88, %c3, %c0_89, %c0_90] : memref<3x4x256x256xbf16, #tpu.memory_space<vmem>>, vector<1x1x256x256xbf16>
    %172 = vector.shape_cast %171 : vector<1x1x256x256xbf16> to vector<256x256xbf16>
    %cst_91 = arith.constant dense<0.000000e+00> : vector<8x256xf32>
    %173 = tpu.matmul %125, %172, %cst_91 {dimension_numbers = #tpu.dot_dimension_numbers<[1], [0], [0], [1], [0, 0, 1, 1], [], []>} : vector<8x256xbf16>, vector<256x256xbf16>, vector<8x256xf32> -> vector<8x256xf32>
    %c0_92 = arith.constant 0 : index
    %c3_93 = arith.constant 3 : index
    %c0_94 = arith.constant 0 : index
    %c0_95 = arith.constant 0 : index
    %174 = vector.load %arg9[%c0_92, %c3_93, %c0_94, %c0_95] : memref<3x4x1x256xf32, #tpu.memory_space<vmem>>, vector<1x1x1x256xf32>
    %175 = vector.shape_cast %174 : vector<1x1x1x256xf32> to vector<1x256xf32>
    %176 = vector.broadcast %175 : vector<1x256xf32> to vector<8x256xf32>
    %177 = arith.addf %173, %176 : vector<8x256xf32>
    %cst_96 = arith.constant 0.000000e+00 : f32
    %178 = vector.broadcast %cst_96 : f32 to vector<8x256xf32>
    %179 = arith.maximumf %177, %178 : vector<8x256xf32>
    %180 = arith.truncf %179 : vector<8x256xf32> to vector<8x256xbf16>
    %c0_97 = arith.constant 0 : index
    %c3_98 = arith.constant 3 : index
    %c0_99 = arith.constant 0 : index
    %c0_100 = arith.constant 0 : index
    %181 = vector.load %arg10[%c0_97, %c3_98, %c0_99, %c0_100] : memref<3x4x256x256xbf16, #tpu.memory_space<vmem>>, vector<1x1x256x256xbf16>
    %182 = vector.shape_cast %181 : vector<1x1x256x256xbf16> to vector<256x256xbf16>
    %cst_101 = arith.constant dense<0.000000e+00> : vector<8x256xf32>
    %183 = tpu.matmul %180, %182, %cst_101 {dimension_numbers = #tpu.dot_dimension_numbers<[1], [0], [0], [1], [0, 0, 1, 1], [], []>} : vector<8x256xbf16>, vector<256x256xbf16>, vector<8x256xf32> -> vector<8x256xf32>
    %184 = arith.addf %170, %183 : vector<8x256xf32>
    %185 = arith.addf %124, %184 : vector<8x256xf32>
    %c0_102 = arith.constant 0 : index
    %c0_103 = arith.constant 0 : index
    %c0_104 = arith.constant 0 : index
    %186 = vector.load %arg12[%c0_102, %c0_103, %c0_104] : memref<3x1x256xf32, #tpu.memory_space<vmem>>, vector<1x1x256xf32>
    %187 = vector.shape_cast %186 : vector<1x1x256xf32> to vector<1x256xf32>
    %c0_105 = arith.constant 0 : index
    %c0_106 = arith.constant 0 : index
    %c0_107 = arith.constant 0 : index
    %188 = vector.load %arg13[%c0_105, %c0_106, %c0_107] : memref<3x1x256xf32, #tpu.memory_space<vmem>>, vector<1x1x256xf32>
    %189 = vector.shape_cast %188 : vector<1x1x256xf32> to vector<1x256xf32>
    %cst_108 = arith.constant dense<0.000000e+00> : vector<8xf32>
    %190 = vector.multi_reduction <add>, %185, %cst_108 [1] : vector<8x256xf32> to vector<8xf32>
    %191 = vector.shape_cast %190 : vector<8xf32> to vector<8x1xf32>
    %cst_109 = arith.constant 2.560000e+02 : f32
    %192 = vector.broadcast %cst_109 : f32 to vector<8x1xf32>
    %193 = arith.divf %191, %192 : vector<8x1xf32>
    %194 = vector.broadcast %193 : vector<8x1xf32> to vector<8x256xf32>
    %195 = arith.subf %185, %194 : vector<8x256xf32>
    %196 = arith.mulf %195, %195 : vector<8x256xf32>
    %cst_110 = arith.constant dense<0.000000e+00> : vector<8xf32>
    %197 = vector.multi_reduction <add>, %196, %cst_110 [1] : vector<8x256xf32> to vector<8xf32>
    %198 = vector.shape_cast %197 : vector<8xf32> to vector<8x1xf32>
    %cst_111 = arith.constant 2.560000e+02 : f32
    %199 = vector.broadcast %cst_111 : f32 to vector<8x1xf32>
    %200 = arith.divf %198, %199 : vector<8x1xf32>
    %cst_112 = arith.constant 9.99999974E-6 : f32
    %201 = vector.broadcast %cst_112 : f32 to vector<8x1xf32>
    %202 = arith.addf %200, %201 : vector<8x1xf32>
    %203 = math.rsqrt %202 : vector<8x1xf32>
    %204 = vector.broadcast %193 : vector<8x1xf32> to vector<8x256xf32>
    %205 = arith.subf %185, %204 : vector<8x256xf32>
    %206 = vector.broadcast %203 : vector<8x1xf32> to vector<8x256xf32>
    %207 = arith.mulf %205, %206 : vector<8x256xf32>
    %208 = vector.broadcast %187 : vector<1x256xf32> to vector<8x256xf32>
    %209 = arith.mulf %207, %208 : vector<8x256xf32>
    %210 = vector.broadcast %189 : vector<1x256xf32> to vector<8x256xf32>
    %211 = arith.addf %209, %210 : vector<8x256xf32>
    %212 = arith.truncf %211 : vector<8x256xf32> to vector<8x256xbf16>
    %c1_113 = arith.constant 1 : index
    %c0_114 = arith.constant 0 : index
    %c0_115 = arith.constant 0 : index
    %213 = vector.load %arg2[%c1_113, %c0_114, %c0_115] : memref<3x256x768xbf16, #tpu.memory_space<vmem>>, vector<1x256x768xbf16>
    %214 = vector.shape_cast %213 : vector<1x256x768xbf16> to vector<256x768xbf16>
    %cst_116 = arith.constant dense<0.000000e+00> : vector<8x768xf32>
    %215 = tpu.matmul %212, %214, %cst_116 {dimension_numbers = #tpu.dot_dimension_numbers<[1], [0], [0], [1], [0, 0, 1, 1], [], []>} : vector<8x256xbf16>, vector<256x768xbf16>, vector<8x768xf32> -> vector<8x768xf32>
    %c1_117 = arith.constant 1 : index
    %c0_118 = arith.constant 0 : index
    %c0_119 = arith.constant 0 : index
    %216 = vector.load %arg3[%c1_117, %c0_118, %c0_119] : memref<3x1x768xf32, #tpu.memory_space<vmem>>, vector<1x1x768xf32>
    %217 = vector.shape_cast %216 : vector<1x1x768xf32> to vector<1x768xf32>
    %218 = vector.broadcast %217 : vector<1x768xf32> to vector<8x768xf32>
    %219 = arith.addf %215, %218 : vector<8x768xf32>
    %220 = vector.extract_strided_slice %219 {offsets = [0, 0], sizes = [8, 64], strides = [1, 1]} : vector<8x768xf32> to vector<8x64xf32>
    %221 = arith.truncf %220 : vector<8x64xf32> to vector<8x64xbf16>
    %222 = vector.extract_strided_slice %219 {offsets = [0, 256], sizes = [8, 64], strides = [1, 1]} : vector<8x768xf32> to vector<8x64xf32>
    %223 = arith.truncf %222 : vector<8x64xf32> to vector<8x64xbf16>
    %224 = vector.extract_strided_slice %219 {offsets = [0, 512], sizes = [8, 64], strides = [1, 1]} : vector<8x768xf32> to vector<8x64xf32>
    %225 = arith.truncf %224 : vector<8x64xf32> to vector<8x64xbf16>
    "tpu.trace_start"() <{level = 10 : i32, message = "qd,kd->qk"}> : () -> ()
    %cst_120 = arith.constant dense<0.000000e+00> : vector<8x8xf32>
    %226 = tpu.matmul %221, %223, %cst_120 {dimension_numbers = #tpu.dot_dimension_numbers<[1], [1], [0], [0], [0, 0, 1, 0], [], []>} : vector<8x64xbf16>, vector<8x64xbf16>, vector<8x8xf32> -> vector<8x8xf32>
    "tpu.trace_stop"() : () -> ()
    %cst_121 = arith.constant dense<0xFF800000> : vector<8xf32>
    %227 = vector.multi_reduction <maximumf>, %226, %cst_121 [1] : vector<8x8xf32> to vector<8xf32>
    %228 = vector.shape_cast %227 : vector<8xf32> to vector<8x1xf32>
    %229 = vector.broadcast %228 : vector<8x1xf32> to vector<8x8xf32>
    %230 = arith.subf %226, %229 : vector<8x8xf32>
    %231 = math.exp %230 : vector<8x8xf32>
    %cst_122 = arith.constant dense<0.000000e+00> : vector<8xf32>
    %232 = vector.multi_reduction <add>, %231, %cst_122 [1] : vector<8x8xf32> to vector<8xf32>
    %233 = vector.shape_cast %232 : vector<8xf32> to vector<8x1xf32>
    %234 = tpu.reciprocal %233 {approx = true} : vector<8x1xf32> -> vector<8x1xf32>
    %235 = vector.broadcast %234 : vector<8x1xf32> to vector<8x8xf32>
    %236 = arith.mulf %231, %235 : vector<8x8xf32>
    %237 = arith.truncf %236 : vector<8x8xf32> to vector<8x8xbf16>
    %cst_123 = arith.constant dense<0.000000e+00> : vector<8x64xf32>
    %238 = tpu.matmul %237, %225, %cst_123 {dimension_numbers = #tpu.dot_dimension_numbers<[1], [0], [0], [1], [0, 0, 1, 1], [], []>} : vector<8x8xbf16>, vector<8x64xbf16>, vector<8x64xf32> -> vector<8x64xf32>
    %239 = arith.truncf %238 : vector<8x64xf32> to vector<8x64xbf16>
    %240 = vector.extract_strided_slice %219 {offsets = [0, 64], sizes = [8, 64], strides = [1, 1]} : vector<8x768xf32> to vector<8x64xf32>
    %241 = arith.truncf %240 : vector<8x64xf32> to vector<8x64xbf16>
    %242 = vector.extract_strided_slice %219 {offsets = [0, 320], sizes = [8, 64], strides = [1, 1]} : vector<8x768xf32> to vector<8x64xf32>
    %243 = arith.truncf %242 : vector<8x64xf32> to vector<8x64xbf16>
    %244 = vector.extract_strided_slice %219 {offsets = [0, 576], sizes = [8, 64], strides = [1, 1]} : vector<8x768xf32> to vector<8x64xf32>
    %245 = arith.truncf %244 : vector<8x64xf32> to vector<8x64xbf16>
    "tpu.trace_start"() <{level = 10 : i32, message = "qd,kd->qk"}> : () -> ()
    %cst_124 = arith.constant dense<0.000000e+00> : vector<8x8xf32>
    %246 = tpu.matmul %241, %243, %cst_124 {dimension_numbers = #tpu.dot_dimension_numbers<[1], [1], [0], [0], [0, 0, 1, 0], [], []>} : vector<8x64xbf16>, vector<8x64xbf16>, vector<8x8xf32> -> vector<8x8xf32>
    "tpu.trace_stop"() : () -> ()
    %cst_125 = arith.constant dense<0xFF800000> : vector<8xf32>
    %247 = vector.multi_reduction <maximumf>, %246, %cst_125 [1] : vector<8x8xf32> to vector<8xf32>
    %248 = vector.shape_cast %247 : vector<8xf32> to vector<8x1xf32>
    %249 = vector.broadcast %248 : vector<8x1xf32> to vector<8x8xf32>
    %250 = arith.subf %246, %249 : vector<8x8xf32>
    %251 = math.exp %250 : vector<8x8xf32>
    %cst_126 = arith.constant dense<0.000000e+00> : vector<8xf32>
    %252 = vector.multi_reduction <add>, %251, %cst_126 [1] : vector<8x8xf32> to vector<8xf32>
    %253 = vector.shape_cast %252 : vector<8xf32> to vector<8x1xf32>
    %254 = tpu.reciprocal %253 {approx = true} : vector<8x1xf32> -> vector<8x1xf32>
    %255 = vector.broadcast %254 : vector<8x1xf32> to vector<8x8xf32>
    %256 = arith.mulf %251, %255 : vector<8x8xf32>
    %257 = arith.truncf %256 : vector<8x8xf32> to vector<8x8xbf16>
    %cst_127 = arith.constant dense<0.000000e+00> : vector<8x64xf32>
    %258 = tpu.matmul %257, %245, %cst_127 {dimension_numbers = #tpu.dot_dimension_numbers<[1], [0], [0], [1], [0, 0, 1, 1], [], []>} : vector<8x8xbf16>, vector<8x64xbf16>, vector<8x64xf32> -> vector<8x64xf32>
    %259 = arith.truncf %258 : vector<8x64xf32> to vector<8x64xbf16>
    %260 = vector.extract_strided_slice %219 {offsets = [0, 128], sizes = [8, 64], strides = [1, 1]} : vector<8x768xf32> to vector<8x64xf32>
    %261 = arith.truncf %260 : vector<8x64xf32> to vector<8x64xbf16>
    %262 = vector.extract_strided_slice %219 {offsets = [0, 384], sizes = [8, 64], strides = [1, 1]} : vector<8x768xf32> to vector<8x64xf32>
    %263 = arith.truncf %262 : vector<8x64xf32> to vector<8x64xbf16>
    %264 = vector.extract_strided_slice %219 {offsets = [0, 640], sizes = [8, 64], strides = [1, 1]} : vector<8x768xf32> to vector<8x64xf32>
    %265 = arith.truncf %264 : vector<8x64xf32> to vector<8x64xbf16>
    "tpu.trace_start"() <{level = 10 : i32, message = "qd,kd->qk"}> : () -> ()
    %cst_128 = arith.constant dense<0.000000e+00> : vector<8x8xf32>
    %266 = tpu.matmul %261, %263, %cst_128 {dimension_numbers = #tpu.dot_dimension_numbers<[1], [1], [0], [0], [0, 0, 1, 0], [], []>} : vector<8x64xbf16>, vector<8x64xbf16>, vector<8x8xf32> -> vector<8x8xf32>
    "tpu.trace_stop"() : () -> ()
    %cst_129 = arith.constant dense<0xFF800000> : vector<8xf32>
    %267 = vector.multi_reduction <maximumf>, %266, %cst_129 [1] : vector<8x8xf32> to vector<8xf32>
    %268 = vector.shape_cast %267 : vector<8xf32> to vector<8x1xf32>
    %269 = vector.broadcast %268 : vector<8x1xf32> to vector<8x8xf32>
    %270 = arith.subf %266, %269 : vector<8x8xf32>
    %271 = math.exp %270 : vector<8x8xf32>
    %cst_130 = arith.constant dense<0.000000e+00> : vector<8xf32>
    %272 = vector.multi_reduction <add>, %271, %cst_130 [1] : vector<8x8xf32> to vector<8xf32>
    %273 = vector.shape_cast %272 : vector<8xf32> to vector<8x1xf32>
    %274 = tpu.reciprocal %273 {approx = true} : vector<8x1xf32> -> vector<8x1xf32>
    %275 = vector.broadcast %274 : vector<8x1xf32> to vector<8x8xf32>
    %276 = arith.mulf %271, %275 : vector<8x8xf32>
    %277 = arith.truncf %276 : vector<8x8xf32> to vector<8x8xbf16>
    %cst_131 = arith.constant dense<0.000000e+00> : vector<8x64xf32>
    %278 = tpu.matmul %277, %265, %cst_131 {dimension_numbers = #tpu.dot_dimension_numbers<[1], [0], [0], [1], [0, 0, 1, 1], [], []>} : vector<8x8xbf16>, vector<8x64xbf16>, vector<8x64xf32> -> vector<8x64xf32>
    %279 = arith.truncf %278 : vector<8x64xf32> to vector<8x64xbf16>
    %280 = vector.extract_strided_slice %219 {offsets = [0, 192], sizes = [8, 64], strides = [1, 1]} : vector<8x768xf32> to vector<8x64xf32>
    %281 = arith.truncf %280 : vector<8x64xf32> to vector<8x64xbf16>
    %282 = vector.extract_strided_slice %219 {offsets = [0, 448], sizes = [8, 64], strides = [1, 1]} : vector<8x768xf32> to vector<8x64xf32>
    %283 = arith.truncf %282 : vector<8x64xf32> to vector<8x64xbf16>
    %284 = vector.extract_strided_slice %219 {offsets = [0, 704], sizes = [8, 64], strides = [1, 1]} : vector<8x768xf32> to vector<8x64xf32>
    %285 = arith.truncf %284 : vector<8x64xf32> to vector<8x64xbf16>
    "tpu.trace_start"() <{level = 10 : i32, message = "qd,kd->qk"}> : () -> ()
    %cst_132 = arith.constant dense<0.000000e+00> : vector<8x8xf32>
    %286 = tpu.matmul %281, %283, %cst_132 {dimension_numbers = #tpu.dot_dimension_numbers<[1], [1], [0], [0], [0, 0, 1, 0], [], []>} : vector<8x64xbf16>, vector<8x64xbf16>, vector<8x8xf32> -> vector<8x8xf32>
    "tpu.trace_stop"() : () -> ()
    %cst_133 = arith.constant dense<0xFF800000> : vector<8xf32>
    %287 = vector.multi_reduction <maximumf>, %286, %cst_133 [1] : vector<8x8xf32> to vector<8xf32>
    %288 = vector.shape_cast %287 : vector<8xf32> to vector<8x1xf32>
    %289 = vector.broadcast %288 : vector<8x1xf32> to vector<8x8xf32>
    %290 = arith.subf %286, %289 : vector<8x8xf32>
    %291 = math.exp %290 : vector<8x8xf32>
    %cst_134 = arith.constant dense<0.000000e+00> : vector<8xf32>
    %292 = vector.multi_reduction <add>, %291, %cst_134 [1] : vector<8x8xf32> to vector<8xf32>
    %293 = vector.shape_cast %292 : vector<8xf32> to vector<8x1xf32>
    %294 = tpu.reciprocal %293 {approx = true} : vector<8x1xf32> -> vector<8x1xf32>
    %295 = vector.broadcast %294 : vector<8x1xf32> to vector<8x8xf32>
    %296 = arith.mulf %291, %295 : vector<8x8xf32>
    %297 = arith.truncf %296 : vector<8x8xf32> to vector<8x8xbf16>
    %cst_135 = arith.constant dense<0.000000e+00> : vector<8x64xf32>
    %298 = tpu.matmul %297, %285, %cst_135 {dimension_numbers = #tpu.dot_dimension_numbers<[1], [0], [0], [1], [0, 0, 1, 1], [], []>} : vector<8x8xbf16>, vector<8x64xbf16>, vector<8x64xf32> -> vector<8x64xf32>
    %299 = arith.truncf %298 : vector<8x64xf32> to vector<8x64xbf16>
    %300 = tpu.concatenate %239, %259, %279, %299 in 1 : vector<8x64xbf16>, vector<8x64xbf16>, vector<8x64xbf16>, vector<8x64xbf16> -> vector<8x256xbf16>
    %c1_136 = arith.constant 1 : index
    %c0_137 = arith.constant 0 : index
    %c0_138 = arith.constant 0 : index
    %301 = vector.load %arg4[%c1_136, %c0_137, %c0_138] : memref<3x256x256xbf16, #tpu.memory_space<vmem>>, vector<1x256x256xbf16>
    %302 = vector.shape_cast %301 : vector<1x256x256xbf16> to vector<256x256xbf16>
    %cst_139 = arith.constant dense<0.000000e+00> : vector<8x256xf32>
    %303 = tpu.matmul %300, %302, %cst_139 {dimension_numbers = #tpu.dot_dimension_numbers<[1], [0], [0], [1], [0, 0, 1, 1], [], []>} : vector<8x256xbf16>, vector<256x256xbf16>, vector<8x256xf32> -> vector<8x256xf32>
    %c1_140 = arith.constant 1 : index
    %c0_141 = arith.constant 0 : index
    %c0_142 = arith.constant 0 : index
    %304 = vector.load %arg5[%c1_140, %c0_141, %c0_142] : memref<3x1x256xf32, #tpu.memory_space<vmem>>, vector<1x1x256xf32>
    %305 = vector.shape_cast %304 : vector<1x1x256xf32> to vector<1x256xf32>
    %306 = vector.broadcast %305 : vector<1x256xf32> to vector<8x256xf32>
    %307 = arith.addf %303, %306 : vector<8x256xf32>
    %308 = arith.addf %211, %307 : vector<8x256xf32>
    %c1_143 = arith.constant 1 : index
    %c0_144 = arith.constant 0 : index
    %c0_145 = arith.constant 0 : index
    %309 = vector.load %arg6[%c1_143, %c0_144, %c0_145] : memref<3x1x256xf32, #tpu.memory_space<vmem>>, vector<1x1x256xf32>
    %310 = vector.shape_cast %309 : vector<1x1x256xf32> to vector<1x256xf32>
    %c1_146 = arith.constant 1 : index
    %c0_147 = arith.constant 0 : index
    %c0_148 = arith.constant 0 : index
    %311 = vector.load %arg7[%c1_146, %c0_147, %c0_148] : memref<3x1x256xf32, #tpu.memory_space<vmem>>, vector<1x1x256xf32>
    %312 = vector.shape_cast %311 : vector<1x1x256xf32> to vector<1x256xf32>
    %cst_149 = arith.constant dense<0.000000e+00> : vector<8xf32>
    %313 = vector.multi_reduction <add>, %308, %cst_149 [1] : vector<8x256xf32> to vector<8xf32>
    %314 = vector.shape_cast %313 : vector<8xf32> to vector<8x1xf32>
    %cst_150 = arith.constant 2.560000e+02 : f32
    %315 = vector.broadcast %cst_150 : f32 to vector<8x1xf32>
    %316 = arith.divf %314, %315 : vector<8x1xf32>
    %317 = vector.broadcast %316 : vector<8x1xf32> to vector<8x256xf32>
    %318 = arith.subf %308, %317 : vector<8x256xf32>
    %319 = arith.mulf %318, %318 : vector<8x256xf32>
    %cst_151 = arith.constant dense<0.000000e+00> : vector<8xf32>
    %320 = vector.multi_reduction <add>, %319, %cst_151 [1] : vector<8x256xf32> to vector<8xf32>
    %321 = vector.shape_cast %320 : vector<8xf32> to vector<8x1xf32>
    %cst_152 = arith.constant 2.560000e+02 : f32
    %322 = vector.broadcast %cst_152 : f32 to vector<8x1xf32>
    %323 = arith.divf %321, %322 : vector<8x1xf32>
    %cst_153 = arith.constant 9.99999974E-6 : f32
    %324 = vector.broadcast %cst_153 : f32 to vector<8x1xf32>
    %325 = arith.addf %323, %324 : vector<8x1xf32>
    %326 = math.rsqrt %325 : vector<8x1xf32>
    %327 = vector.broadcast %316 : vector<8x1xf32> to vector<8x256xf32>
    %328 = arith.subf %308, %327 : vector<8x256xf32>
    %329 = vector.broadcast %326 : vector<8x1xf32> to vector<8x256xf32>
    %330 = arith.mulf %328, %329 : vector<8x256xf32>
    %331 = vector.broadcast %310 : vector<1x256xf32> to vector<8x256xf32>
    %332 = arith.mulf %330, %331 : vector<8x256xf32>
    %333 = vector.broadcast %312 : vector<1x256xf32> to vector<8x256xf32>
    %334 = arith.addf %332, %333 : vector<8x256xf32>
    %335 = arith.truncf %334 : vector<8x256xf32> to vector<8x256xbf16>
    %c1_154 = arith.constant 1 : index
    %c0_155 = arith.constant 0 : index
    %c0_156 = arith.constant 0 : index
    %336 = vector.load %arg11[%c1_154, %c0_155, %c0_156] : memref<3x1x256xf32, #tpu.memory_space<vmem>>, vector<1x1x256xf32>
    %337 = vector.shape_cast %336 : vector<1x1x256xf32> to vector<1x256xf32>
    %c1_157 = arith.constant 1 : index
    %c0_158 = arith.constant 0 : index
    %c0_159 = arith.constant 0 : index
    %c0_160 = arith.constant 0 : index
    %338 = vector.load %arg8[%c1_157, %c0_158, %c0_159, %c0_160] : memref<3x4x256x256xbf16, #tpu.memory_space<vmem>>, vector<1x1x256x256xbf16>
    %339 = vector.shape_cast %338 : vector<1x1x256x256xbf16> to vector<256x256xbf16>
    %cst_161 = arith.constant dense<0.000000e+00> : vector<8x256xf32>
    %340 = tpu.matmul %335, %339, %cst_161 {dimension_numbers = #tpu.dot_dimension_numbers<[1], [0], [0], [1], [0, 0, 1, 1], [], []>} : vector<8x256xbf16>, vector<256x256xbf16>, vector<8x256xf32> -> vector<8x256xf32>
    %c1_162 = arith.constant 1 : index
    %c0_163 = arith.constant 0 : index
    %c0_164 = arith.constant 0 : index
    %c0_165 = arith.constant 0 : index
    %341 = vector.load %arg9[%c1_162, %c0_163, %c0_164, %c0_165] : memref<3x4x1x256xf32, #tpu.memory_space<vmem>>, vector<1x1x1x256xf32>
    %342 = vector.shape_cast %341 : vector<1x1x1x256xf32> to vector<1x256xf32>
    %343 = vector.broadcast %342 : vector<1x256xf32> to vector<8x256xf32>
    %344 = arith.addf %340, %343 : vector<8x256xf32>
    %cst_166 = arith.constant 0.000000e+00 : f32
    %345 = vector.broadcast %cst_166 : f32 to vector<8x256xf32>
    %346 = arith.maximumf %344, %345 : vector<8x256xf32>
    %347 = arith.truncf %346 : vector<8x256xf32> to vector<8x256xbf16>
    %c1_167 = arith.constant 1 : index
    %c0_168 = arith.constant 0 : index
    %c0_169 = arith.constant 0 : index
    %c0_170 = arith.constant 0 : index
    %348 = vector.load %arg10[%c1_167, %c0_168, %c0_169, %c0_170] : memref<3x4x256x256xbf16, #tpu.memory_space<vmem>>, vector<1x1x256x256xbf16>
    %349 = vector.shape_cast %348 : vector<1x1x256x256xbf16> to vector<256x256xbf16>
    %cst_171 = arith.constant dense<0.000000e+00> : vector<8x256xf32>
    %350 = tpu.matmul %347, %349, %cst_171 {dimension_numbers = #tpu.dot_dimension_numbers<[1], [0], [0], [1], [0, 0, 1, 1], [], []>} : vector<8x256xbf16>, vector<256x256xbf16>, vector<8x256xf32> -> vector<8x256xf32>
    %351 = vector.broadcast %337 : vector<1x256xf32> to vector<8x256xf32>
    %352 = arith.addf %351, %350 : vector<8x256xf32>
    %c1_172 = arith.constant 1 : index
    %c1_173 = arith.constant 1 : index
    %c0_174 = arith.constant 0 : index
    %c0_175 = arith.constant 0 : index
    %353 = vector.load %arg8[%c1_172, %c1_173, %c0_174, %c0_175] : memref<3x4x256x256xbf16, #tpu.memory_space<vmem>>, vector<1x1x256x256xbf16>
    %354 = vector.shape_cast %353 : vector<1x1x256x256xbf16> to vector<256x256xbf16>
    %cst_176 = arith.constant dense<0.000000e+00> : vector<8x256xf32>
    %355 = tpu.matmul %335, %354, %cst_176 {dimension_numbers = #tpu.dot_dimension_numbers<[1], [0], [0], [1], [0, 0, 1, 1], [], []>} : vector<8x256xbf16>, vector<256x256xbf16>, vector<8x256xf32> -> vector<8x256xf32>
    %c1_177 = arith.constant 1 : index
    %c1_178 = arith.constant 1 : index
    %c0_179 = arith.constant 0 : index
    %c0_180 = arith.constant 0 : index
    %356 = vector.load %arg9[%c1_177, %c1_178, %c0_179, %c0_180] : memref<3x4x1x256xf32, #tpu.memory_space<vmem>>, vector<1x1x1x256xf32>
    %357 = vector.shape_cast %356 : vector<1x1x1x256xf32> to vector<1x256xf32>
    %358 = vector.broadcast %357 : vector<1x256xf32> to vector<8x256xf32>
    %359 = arith.addf %355, %358 : vector<8x256xf32>
    %cst_181 = arith.constant 0.000000e+00 : f32
    %360 = vector.broadcast %cst_181 : f32 to vector<8x256xf32>
    %361 = arith.maximumf %359, %360 : vector<8x256xf32>
    %362 = arith.truncf %361 : vector<8x256xf32> to vector<8x256xbf16>
    %c1_182 = arith.constant 1 : index
    %c1_183 = arith.constant 1 : index
    %c0_184 = arith.constant 0 : index
    %c0_185 = arith.constant 0 : index
    %363 = vector.load %arg10[%c1_182, %c1_183, %c0_184, %c0_185] : memref<3x4x256x256xbf16, #tpu.memory_space<vmem>>, vector<1x1x256x256xbf16>
    %364 = vector.shape_cast %363 : vector<1x1x256x256xbf16> to vector<256x256xbf16>
    %cst_186 = arith.constant dense<0.000000e+00> : vector<8x256xf32>
    %365 = tpu.matmul %362, %364, %cst_186 {dimension_numbers = #tpu.dot_dimension_numbers<[1], [0], [0], [1], [0, 0, 1, 1], [], []>} : vector<8x256xbf16>, vector<256x256xbf16>, vector<8x256xf32> -> vector<8x256xf32>
    %366 = arith.addf %352, %365 : vector<8x256xf32>
    %c1_187 = arith.constant 1 : index
    %c2_188 = arith.constant 2 : index
    %c0_189 = arith.constant 0 : index
    %c0_190 = arith.constant 0 : index
    %367 = vector.load %arg8[%c1_187, %c2_188, %c0_189, %c0_190] : memref<3x4x256x256xbf16, #tpu.memory_space<vmem>>, vector<1x1x256x256xbf16>
    %368 = vector.shape_cast %367 : vector<1x1x256x256xbf16> to vector<256x256xbf16>
    %cst_191 = arith.constant dense<0.000000e+00> : vector<8x256xf32>
    %369 = tpu.matmul %335, %368, %cst_191 {dimension_numbers = #tpu.dot_dimension_numbers<[1], [0], [0], [1], [0, 0, 1, 1], [], []>} : vector<8x256xbf16>, vector<256x256xbf16>, vector<8x256xf32> -> vector<8x256xf32>
    %c1_192 = arith.constant 1 : index
    %c2_193 = arith.constant 2 : index
    %c0_194 = arith.constant 0 : index
    %c0_195 = arith.constant 0 : index
    %370 = vector.load %arg9[%c1_192, %c2_193, %c0_194, %c0_195] : memref<3x4x1x256xf32, #tpu.memory_space<vmem>>, vector<1x1x1x256xf32>
    %371 = vector.shape_cast %370 : vector<1x1x1x256xf32> to vector<1x256xf32>
    %372 = vector.broadcast %371 : vector<1x256xf32> to vector<8x256xf32>
    %373 = arith.addf %369, %372 : vector<8x256xf32>
    %cst_196 = arith.constant 0.000000e+00 : f32
    %374 = vector.broadcast %cst_196 : f32 to vector<8x256xf32>
    %375 = arith.maximumf %373, %374 : vector<8x256xf32>
    %376 = arith.truncf %375 : vector<8x256xf32> to vector<8x256xbf16>
    %c1_197 = arith.constant 1 : index
    %c2_198 = arith.constant 2 : index
    %c0_199 = arith.constant 0 : index
    %c0_200 = arith.constant 0 : index
    %377 = vector.load %arg10[%c1_197, %c2_198, %c0_199, %c0_200] : memref<3x4x256x256xbf16, #tpu.memory_space<vmem>>, vector<1x1x256x256xbf16>
    %378 = vector.shape_cast %377 : vector<1x1x256x256xbf16> to vector<256x256xbf16>
    %cst_201 = arith.constant dense<0.000000e+00> : vector<8x256xf32>
    %379 = tpu.matmul %376, %378, %cst_201 {dimension_numbers = #tpu.dot_dimension_numbers<[1], [0], [0], [1], [0, 0, 1, 1], [], []>} : vector<8x256xbf16>, vector<256x256xbf16>, vector<8x256xf32> -> vector<8x256xf32>
    %380 = arith.addf %366, %379 : vector<8x256xf32>
    %c1_202 = arith.constant 1 : index
    %c3_203 = arith.constant 3 : index
    %c0_204 = arith.constant 0 : index
    %c0_205 = arith.constant 0 : index
    %381 = vector.load %arg8[%c1_202, %c3_203, %c0_204, %c0_205] : memref<3x4x256x256xbf16, #tpu.memory_space<vmem>>, vector<1x1x256x256xbf16>
    %382 = vector.shape_cast %381 : vector<1x1x256x256xbf16> to vector<256x256xbf16>
    %cst_206 = arith.constant dense<0.000000e+00> : vector<8x256xf32>
    %383 = tpu.matmul %335, %382, %cst_206 {dimension_numbers = #tpu.dot_dimension_numbers<[1], [0], [0], [1], [0, 0, 1, 1], [], []>} : vector<8x256xbf16>, vector<256x256xbf16>, vector<8x256xf32> -> vector<8x256xf32>
    %c1_207 = arith.constant 1 : index
    %c3_208 = arith.constant 3 : index
    %c0_209 = arith.constant 0 : index
    %c0_210 = arith.constant 0 : index
    %384 = vector.load %arg9[%c1_207, %c3_208, %c0_209, %c0_210] : memref<3x4x1x256xf32, #tpu.memory_space<vmem>>, vector<1x1x1x256xf32>
    %385 = vector.shape_cast %384 : vector<1x1x1x256xf32> to vector<1x256xf32>
    %386 = vector.broadcast %385 : vector<1x256xf32> to vector<8x256xf32>
    %387 = arith.addf %383, %386 : vector<8x256xf32>
    %cst_211 = arith.constant 0.000000e+00 : f32
    %388 = vector.broadcast %cst_211 : f32 to vector<8x256xf32>
    %389 = arith.maximumf %387, %388 : vector<8x256xf32>
    %390 = arith.truncf %389 : vector<8x256xf32> to vector<8x256xbf16>
    %c1_212 = arith.constant 1 : index
    %c3_213 = arith.constant 3 : index
    %c0_214 = arith.constant 0 : index
    %c0_215 = arith.constant 0 : index
    %391 = vector.load %arg10[%c1_212, %c3_213, %c0_214, %c0_215] : memref<3x4x256x256xbf16, #tpu.memory_space<vmem>>, vector<1x1x256x256xbf16>
    %392 = vector.shape_cast %391 : vector<1x1x256x256xbf16> to vector<256x256xbf16>
    %cst_216 = arith.constant dense<0.000000e+00> : vector<8x256xf32>
    %393 = tpu.matmul %390, %392, %cst_216 {dimension_numbers = #tpu.dot_dimension_numbers<[1], [0], [0], [1], [0, 0, 1, 1], [], []>} : vector<8x256xbf16>, vector<256x256xbf16>, vector<8x256xf32> -> vector<8x256xf32>
    %394 = arith.addf %380, %393 : vector<8x256xf32>
    %395 = arith.addf %334, %394 : vector<8x256xf32>
    %c1_217 = arith.constant 1 : index
    %c0_218 = arith.constant 0 : index
    %c0_219 = arith.constant 0 : index
    %396 = vector.load %arg12[%c1_217, %c0_218, %c0_219] : memref<3x1x256xf32, #tpu.memory_space<vmem>>, vector<1x1x256xf32>
    %397 = vector.shape_cast %396 : vector<1x1x256xf32> to vector<1x256xf32>
    %c1_220 = arith.constant 1 : index
    %c0_221 = arith.constant 0 : index
    %c0_222 = arith.constant 0 : index
    %398 = vector.load %arg13[%c1_220, %c0_221, %c0_222] : memref<3x1x256xf32, #tpu.memory_space<vmem>>, vector<1x1x256xf32>
    %399 = vector.shape_cast %398 : vector<1x1x256xf32> to vector<1x256xf32>
    %cst_223 = arith.constant dense<0.000000e+00> : vector<8xf32>
    %400 = vector.multi_reduction <add>, %395, %cst_223 [1] : vector<8x256xf32> to vector<8xf32>
    %401 = vector.shape_cast %400 : vector<8xf32> to vector<8x1xf32>
    %cst_224 = arith.constant 2.560000e+02 : f32
    %402 = vector.broadcast %cst_224 : f32 to vector<8x1xf32>
    %403 = arith.divf %401, %402 : vector<8x1xf32>
    %404 = vector.broadcast %403 : vector<8x1xf32> to vector<8x256xf32>
    %405 = arith.subf %395, %404 : vector<8x256xf32>
    %406 = arith.mulf %405, %405 : vector<8x256xf32>
    %cst_225 = arith.constant dense<0.000000e+00> : vector<8xf32>
    %407 = vector.multi_reduction <add>, %406, %cst_225 [1] : vector<8x256xf32> to vector<8xf32>
    %408 = vector.shape_cast %407 : vector<8xf32> to vector<8x1xf32>
    %cst_226 = arith.constant 2.560000e+02 : f32
    %409 = vector.broadcast %cst_226 : f32 to vector<8x1xf32>
    %410 = arith.divf %408, %409 : vector<8x1xf32>
    %cst_227 = arith.constant 9.99999974E-6 : f32
    %411 = vector.broadcast %cst_227 : f32 to vector<8x1xf32>
    %412 = arith.addf %410, %411 : vector<8x1xf32>
    %413 = math.rsqrt %412 : vector<8x1xf32>
    %414 = vector.broadcast %403 : vector<8x1xf32> to vector<8x256xf32>
    %415 = arith.subf %395, %414 : vector<8x256xf32>
    %416 = vector.broadcast %413 : vector<8x1xf32> to vector<8x256xf32>
    %417 = arith.mulf %415, %416 : vector<8x256xf32>
    %418 = vector.broadcast %397 : vector<1x256xf32> to vector<8x256xf32>
    %419 = arith.mulf %417, %418 : vector<8x256xf32>
    %420 = vector.broadcast %399 : vector<1x256xf32> to vector<8x256xf32>
    %421 = arith.addf %419, %420 : vector<8x256xf32>
    %422 = arith.truncf %421 : vector<8x256xf32> to vector<8x256xbf16>
    %c2_228 = arith.constant 2 : index
    %c0_229 = arith.constant 0 : index
    %c0_230 = arith.constant 0 : index
    %423 = vector.load %arg2[%c2_228, %c0_229, %c0_230] : memref<3x256x768xbf16, #tpu.memory_space<vmem>>, vector<1x256x768xbf16>
    %424 = vector.shape_cast %423 : vector<1x256x768xbf16> to vector<256x768xbf16>
    %cst_231 = arith.constant dense<0.000000e+00> : vector<8x768xf32>
    %425 = tpu.matmul %422, %424, %cst_231 {dimension_numbers = #tpu.dot_dimension_numbers<[1], [0], [0], [1], [0, 0, 1, 1], [], []>} : vector<8x256xbf16>, vector<256x768xbf16>, vector<8x768xf32> -> vector<8x768xf32>
    %c2_232 = arith.constant 2 : index
    %c0_233 = arith.constant 0 : index
    %c0_234 = arith.constant 0 : index
    %426 = vector.load %arg3[%c2_232, %c0_233, %c0_234] : memref<3x1x768xf32, #tpu.memory_space<vmem>>, vector<1x1x768xf32>
    %427 = vector.shape_cast %426 : vector<1x1x768xf32> to vector<1x768xf32>
    %428 = vector.broadcast %427 : vector<1x768xf32> to vector<8x768xf32>
    %429 = arith.addf %425, %428 : vector<8x768xf32>
    %430 = vector.extract_strided_slice %429 {offsets = [0, 0], sizes = [8, 64], strides = [1, 1]} : vector<8x768xf32> to vector<8x64xf32>
    %431 = arith.truncf %430 : vector<8x64xf32> to vector<8x64xbf16>
    %432 = vector.extract_strided_slice %429 {offsets = [0, 256], sizes = [8, 64], strides = [1, 1]} : vector<8x768xf32> to vector<8x64xf32>
    %433 = arith.truncf %432 : vector<8x64xf32> to vector<8x64xbf16>
    %434 = vector.extract_strided_slice %429 {offsets = [0, 512], sizes = [8, 64], strides = [1, 1]} : vector<8x768xf32> to vector<8x64xf32>
    %435 = arith.truncf %434 : vector<8x64xf32> to vector<8x64xbf16>
    "tpu.trace_start"() <{level = 10 : i32, message = "qd,kd->qk"}> : () -> ()
    %cst_235 = arith.constant dense<0.000000e+00> : vector<8x8xf32>
    %436 = tpu.matmul %431, %433, %cst_235 {dimension_numbers = #tpu.dot_dimension_numbers<[1], [1], [0], [0], [0, 0, 1, 0], [], []>} : vector<8x64xbf16>, vector<8x64xbf16>, vector<8x8xf32> -> vector<8x8xf32>
    "tpu.trace_stop"() : () -> ()
    %cst_236 = arith.constant dense<0xFF800000> : vector<8xf32>
    %437 = vector.multi_reduction <maximumf>, %436, %cst_236 [1] : vector<8x8xf32> to vector<8xf32>
    %438 = vector.shape_cast %437 : vector<8xf32> to vector<8x1xf32>
    %439 = vector.broadcast %438 : vector<8x1xf32> to vector<8x8xf32>
    %440 = arith.subf %436, %439 : vector<8x8xf32>
    %441 = math.exp %440 : vector<8x8xf32>
    %cst_237 = arith.constant dense<0.000000e+00> : vector<8xf32>
    %442 = vector.multi_reduction <add>, %441, %cst_237 [1] : vector<8x8xf32> to vector<8xf32>
    %443 = vector.shape_cast %442 : vector<8xf32> to vector<8x1xf32>
    %444 = tpu.reciprocal %443 {approx = true} : vector<8x1xf32> -> vector<8x1xf32>
    %445 = vector.broadcast %444 : vector<8x1xf32> to vector<8x8xf32>
    %446 = arith.mulf %441, %445 : vector<8x8xf32>
    %447 = arith.truncf %446 : vector<8x8xf32> to vector<8x8xbf16>
    %cst_238 = arith.constant dense<0.000000e+00> : vector<8x64xf32>
    %448 = tpu.matmul %447, %435, %cst_238 {dimension_numbers = #tpu.dot_dimension_numbers<[1], [0], [0], [1], [0, 0, 1, 1], [], []>} : vector<8x8xbf16>, vector<8x64xbf16>, vector<8x64xf32> -> vector<8x64xf32>
    %449 = arith.truncf %448 : vector<8x64xf32> to vector<8x64xbf16>
    %450 = vector.extract_strided_slice %429 {offsets = [0, 64], sizes = [8, 64], strides = [1, 1]} : vector<8x768xf32> to vector<8x64xf32>
    %451 = arith.truncf %450 : vector<8x64xf32> to vector<8x64xbf16>
    %452 = vector.extract_strided_slice %429 {offsets = [0, 320], sizes = [8, 64], strides = [1, 1]} : vector<8x768xf32> to vector<8x64xf32>
    %453 = arith.truncf %452 : vector<8x64xf32> to vector<8x64xbf16>
    %454 = vector.extract_strided_slice %429 {offsets = [0, 576], sizes = [8, 64], strides = [1, 1]} : vector<8x768xf32> to vector<8x64xf32>
    %455 = arith.truncf %454 : vector<8x64xf32> to vector<8x64xbf16>
    "tpu.trace_start"() <{level = 10 : i32, message = "qd,kd->qk"}> : () -> ()
    %cst_239 = arith.constant dense<0.000000e+00> : vector<8x8xf32>
    %456 = tpu.matmul %451, %453, %cst_239 {dimension_numbers = #tpu.dot_dimension_numbers<[1], [1], [0], [0], [0, 0, 1, 0], [], []>} : vector<8x64xbf16>, vector<8x64xbf16>, vector<8x8xf32> -> vector<8x8xf32>
    "tpu.trace_stop"() : () -> ()
    %cst_240 = arith.constant dense<0xFF800000> : vector<8xf32>
    %457 = vector.multi_reduction <maximumf>, %456, %cst_240 [1] : vector<8x8xf32> to vector<8xf32>
    %458 = vector.shape_cast %457 : vector<8xf32> to vector<8x1xf32>
    %459 = vector.broadcast %458 : vector<8x1xf32> to vector<8x8xf32>
    %460 = arith.subf %456, %459 : vector<8x8xf32>
    %461 = math.exp %460 : vector<8x8xf32>
    %cst_241 = arith.constant dense<0.000000e+00> : vector<8xf32>
    %462 = vector.multi_reduction <add>, %461, %cst_241 [1] : vector<8x8xf32> to vector<8xf32>
    %463 = vector.shape_cast %462 : vector<8xf32> to vector<8x1xf32>
    %464 = tpu.reciprocal %463 {approx = true} : vector<8x1xf32> -> vector<8x1xf32>
    %465 = vector.broadcast %464 : vector<8x1xf32> to vector<8x8xf32>
    %466 = arith.mulf %461, %465 : vector<8x8xf32>
    %467 = arith.truncf %466 : vector<8x8xf32> to vector<8x8xbf16>
    %cst_242 = arith.constant dense<0.000000e+00> : vector<8x64xf32>
    %468 = tpu.matmul %467, %455, %cst_242 {dimension_numbers = #tpu.dot_dimension_numbers<[1], [0], [0], [1], [0, 0, 1, 1], [], []>} : vector<8x8xbf16>, vector<8x64xbf16>, vector<8x64xf32> -> vector<8x64xf32>
    %469 = arith.truncf %468 : vector<8x64xf32> to vector<8x64xbf16>
    %470 = vector.extract_strided_slice %429 {offsets = [0, 128], sizes = [8, 64], strides = [1, 1]} : vector<8x768xf32> to vector<8x64xf32>
    %471 = arith.truncf %470 : vector<8x64xf32> to vector<8x64xbf16>
    %472 = vector.extract_strided_slice %429 {offsets = [0, 384], sizes = [8, 64], strides = [1, 1]} : vector<8x768xf32> to vector<8x64xf32>
    %473 = arith.truncf %472 : vector<8x64xf32> to vector<8x64xbf16>
    %474 = vector.extract_strided_slice %429 {offsets = [0, 640], sizes = [8, 64], strides = [1, 1]} : vector<8x768xf32> to vector<8x64xf32>
    %475 = arith.truncf %474 : vector<8x64xf32> to vector<8x64xbf16>
    "tpu.trace_start"() <{level = 10 : i32, message = "qd,kd->qk"}> : () -> ()
    %cst_243 = arith.constant dense<0.000000e+00> : vector<8x8xf32>
    %476 = tpu.matmul %471, %473, %cst_243 {dimension_numbers = #tpu.dot_dimension_numbers<[1], [1], [0], [0], [0, 0, 1, 0], [], []>} : vector<8x64xbf16>, vector<8x64xbf16>, vector<8x8xf32> -> vector<8x8xf32>
    "tpu.trace_stop"() : () -> ()
    %cst_244 = arith.constant dense<0xFF800000> : vector<8xf32>
    %477 = vector.multi_reduction <maximumf>, %476, %cst_244 [1] : vector<8x8xf32> to vector<8xf32>
    %478 = vector.shape_cast %477 : vector<8xf32> to vector<8x1xf32>
    %479 = vector.broadcast %478 : vector<8x1xf32> to vector<8x8xf32>
    %480 = arith.subf %476, %479 : vector<8x8xf32>
    %481 = math.exp %480 : vector<8x8xf32>
    %cst_245 = arith.constant dense<0.000000e+00> : vector<8xf32>
    %482 = vector.multi_reduction <add>, %481, %cst_245 [1] : vector<8x8xf32> to vector<8xf32>
    %483 = vector.shape_cast %482 : vector<8xf32> to vector<8x1xf32>
    %484 = tpu.reciprocal %483 {approx = true} : vector<8x1xf32> -> vector<8x1xf32>
    %485 = vector.broadcast %484 : vector<8x1xf32> to vector<8x8xf32>
    %486 = arith.mulf %481, %485 : vector<8x8xf32>
    %487 = arith.truncf %486 : vector<8x8xf32> to vector<8x8xbf16>
    %cst_246 = arith.constant dense<0.000000e+00> : vector<8x64xf32>
    %488 = tpu.matmul %487, %475, %cst_246 {dimension_numbers = #tpu.dot_dimension_numbers<[1], [0], [0], [1], [0, 0, 1, 1], [], []>} : vector<8x8xbf16>, vector<8x64xbf16>, vector<8x64xf32> -> vector<8x64xf32>
    %489 = arith.truncf %488 : vector<8x64xf32> to vector<8x64xbf16>
    %490 = vector.extract_strided_slice %429 {offsets = [0, 192], sizes = [8, 64], strides = [1, 1]} : vector<8x768xf32> to vector<8x64xf32>
    %491 = arith.truncf %490 : vector<8x64xf32> to vector<8x64xbf16>
    %492 = vector.extract_strided_slice %429 {offsets = [0, 448], sizes = [8, 64], strides = [1, 1]} : vector<8x768xf32> to vector<8x64xf32>
    %493 = arith.truncf %492 : vector<8x64xf32> to vector<8x64xbf16>
    %494 = vector.extract_strided_slice %429 {offsets = [0, 704], sizes = [8, 64], strides = [1, 1]} : vector<8x768xf32> to vector<8x64xf32>
    %495 = arith.truncf %494 : vector<8x64xf32> to vector<8x64xbf16>
    "tpu.trace_start"() <{level = 10 : i32, message = "qd,kd->qk"}> : () -> ()
    %cst_247 = arith.constant dense<0.000000e+00> : vector<8x8xf32>
    %496 = tpu.matmul %491, %493, %cst_247 {dimension_numbers = #tpu.dot_dimension_numbers<[1], [1], [0], [0], [0, 0, 1, 0], [], []>} : vector<8x64xbf16>, vector<8x64xbf16>, vector<8x8xf32> -> vector<8x8xf32>
    "tpu.trace_stop"() : () -> ()
    %cst_248 = arith.constant dense<0xFF800000> : vector<8xf32>
    %497 = vector.multi_reduction <maximumf>, %496, %cst_248 [1] : vector<8x8xf32> to vector<8xf32>
    %498 = vector.shape_cast %497 : vector<8xf32> to vector<8x1xf32>
    %499 = vector.broadcast %498 : vector<8x1xf32> to vector<8x8xf32>
    %500 = arith.subf %496, %499 : vector<8x8xf32>
    %501 = math.exp %500 : vector<8x8xf32>
    %cst_249 = arith.constant dense<0.000000e+00> : vector<8xf32>
    %502 = vector.multi_reduction <add>, %501, %cst_249 [1] : vector<8x8xf32> to vector<8xf32>
    %503 = vector.shape_cast %502 : vector<8xf32> to vector<8x1xf32>
    %504 = tpu.reciprocal %503 {approx = true} : vector<8x1xf32> -> vector<8x1xf32>
    %505 = vector.broadcast %504 : vector<8x1xf32> to vector<8x8xf32>
    %506 = arith.mulf %501, %505 : vector<8x8xf32>
    %507 = arith.truncf %506 : vector<8x8xf32> to vector<8x8xbf16>
    %cst_250 = arith.constant dense<0.000000e+00> : vector<8x64xf32>
    %508 = tpu.matmul %507, %495, %cst_250 {dimension_numbers = #tpu.dot_dimension_numbers<[1], [0], [0], [1], [0, 0, 1, 1], [], []>} : vector<8x8xbf16>, vector<8x64xbf16>, vector<8x64xf32> -> vector<8x64xf32>
    %509 = arith.truncf %508 : vector<8x64xf32> to vector<8x64xbf16>
    %510 = tpu.concatenate %449, %469, %489, %509 in 1 : vector<8x64xbf16>, vector<8x64xbf16>, vector<8x64xbf16>, vector<8x64xbf16> -> vector<8x256xbf16>
    %c2_251 = arith.constant 2 : index
    %c0_252 = arith.constant 0 : index
    %c0_253 = arith.constant 0 : index
    %511 = vector.load %arg4[%c2_251, %c0_252, %c0_253] : memref<3x256x256xbf16, #tpu.memory_space<vmem>>, vector<1x256x256xbf16>
    %512 = vector.shape_cast %511 : vector<1x256x256xbf16> to vector<256x256xbf16>
    %cst_254 = arith.constant dense<0.000000e+00> : vector<8x256xf32>
    %513 = tpu.matmul %510, %512, %cst_254 {dimension_numbers = #tpu.dot_dimension_numbers<[1], [0], [0], [1], [0, 0, 1, 1], [], []>} : vector<8x256xbf16>, vector<256x256xbf16>, vector<8x256xf32> -> vector<8x256xf32>
    %c2_255 = arith.constant 2 : index
    %c0_256 = arith.constant 0 : index
    %c0_257 = arith.constant 0 : index
    %514 = vector.load %arg5[%c2_255, %c0_256, %c0_257] : memref<3x1x256xf32, #tpu.memory_space<vmem>>, vector<1x1x256xf32>
    %515 = vector.shape_cast %514 : vector<1x1x256xf32> to vector<1x256xf32>
    %516 = vector.broadcast %515 : vector<1x256xf32> to vector<8x256xf32>
    %517 = arith.addf %513, %516 : vector<8x256xf32>
    %518 = arith.addf %421, %517 : vector<8x256xf32>
    %c2_258 = arith.constant 2 : index
    %c0_259 = arith.constant 0 : index
    %c0_260 = arith.constant 0 : index
    %519 = vector.load %arg6[%c2_258, %c0_259, %c0_260] : memref<3x1x256xf32, #tpu.memory_space<vmem>>, vector<1x1x256xf32>
    %520 = vector.shape_cast %519 : vector<1x1x256xf32> to vector<1x256xf32>
    %c2_261 = arith.constant 2 : index
    %c0_262 = arith.constant 0 : index
    %c0_263 = arith.constant 0 : index
    %521 = vector.load %arg7[%c2_261, %c0_262, %c0_263] : memref<3x1x256xf32, #tpu.memory_space<vmem>>, vector<1x1x256xf32>
    %522 = vector.shape_cast %521 : vector<1x1x256xf32> to vector<1x256xf32>
    %cst_264 = arith.constant dense<0.000000e+00> : vector<8xf32>
    %523 = vector.multi_reduction <add>, %518, %cst_264 [1] : vector<8x256xf32> to vector<8xf32>
    %524 = vector.shape_cast %523 : vector<8xf32> to vector<8x1xf32>
    %cst_265 = arith.constant 2.560000e+02 : f32
    %525 = vector.broadcast %cst_265 : f32 to vector<8x1xf32>
    %526 = arith.divf %524, %525 : vector<8x1xf32>
    %527 = vector.broadcast %526 : vector<8x1xf32> to vector<8x256xf32>
    %528 = arith.subf %518, %527 : vector<8x256xf32>
    %529 = arith.mulf %528, %528 : vector<8x256xf32>
    %cst_266 = arith.constant dense<0.000000e+00> : vector<8xf32>
    %530 = vector.multi_reduction <add>, %529, %cst_266 [1] : vector<8x256xf32> to vector<8xf32>
    %531 = vector.shape_cast %530 : vector<8xf32> to vector<8x1xf32>
    %cst_267 = arith.constant 2.560000e+02 : f32
    %532 = vector.broadcast %cst_267 : f32 to vector<8x1xf32>
    %533 = arith.divf %531, %532 : vector<8x1xf32>
    %cst_268 = arith.constant 9.99999974E-6 : f32
    %534 = vector.broadcast %cst_268 : f32 to vector<8x1xf32>
    %535 = arith.addf %533, %534 : vector<8x1xf32>
    %536 = math.rsqrt %535 : vector<8x1xf32>
    %537 = vector.broadcast %526 : vector<8x1xf32> to vector<8x256xf32>
    %538 = arith.subf %518, %537 : vector<8x256xf32>
    %539 = vector.broadcast %536 : vector<8x1xf32> to vector<8x256xf32>
    %540 = arith.mulf %538, %539 : vector<8x256xf32>
    %541 = vector.broadcast %520 : vector<1x256xf32> to vector<8x256xf32>
    %542 = arith.mulf %540, %541 : vector<8x256xf32>
    %543 = vector.broadcast %522 : vector<1x256xf32> to vector<8x256xf32>
    %544 = arith.addf %542, %543 : vector<8x256xf32>
    %545 = arith.truncf %544 : vector<8x256xf32> to vector<8x256xbf16>
    %c2_269 = arith.constant 2 : index
    %c0_270 = arith.constant 0 : index
    %c0_271 = arith.constant 0 : index
    %546 = vector.load %arg11[%c2_269, %c0_270, %c0_271] : memref<3x1x256xf32, #tpu.memory_space<vmem>>, vector<1x1x256xf32>
    %547 = vector.shape_cast %546 : vector<1x1x256xf32> to vector<1x256xf32>
    %c2_272 = arith.constant 2 : index
    %c0_273 = arith.constant 0 : index
    %c0_274 = arith.constant 0 : index
    %c0_275 = arith.constant 0 : index
    %548 = vector.load %arg8[%c2_272, %c0_273, %c0_274, %c0_275] : memref<3x4x256x256xbf16, #tpu.memory_space<vmem>>, vector<1x1x256x256xbf16>
    %549 = vector.shape_cast %548 : vector<1x1x256x256xbf16> to vector<256x256xbf16>
    %cst_276 = arith.constant dense<0.000000e+00> : vector<8x256xf32>
    %550 = tpu.matmul %545, %549, %cst_276 {dimension_numbers = #tpu.dot_dimension_numbers<[1], [0], [0], [1], [0, 0, 1, 1], [], []>} : vector<8x256xbf16>, vector<256x256xbf16>, vector<8x256xf32> -> vector<8x256xf32>
    %c2_277 = arith.constant 2 : index
    %c0_278 = arith.constant 0 : index
    %c0_279 = arith.constant 0 : index
    %c0_280 = arith.constant 0 : index
    %551 = vector.load %arg9[%c2_277, %c0_278, %c0_279, %c0_280] : memref<3x4x1x256xf32, #tpu.memory_space<vmem>>, vector<1x1x1x256xf32>
    %552 = vector.shape_cast %551 : vector<1x1x1x256xf32> to vector<1x256xf32>
    %553 = vector.broadcast %552 : vector<1x256xf32> to vector<8x256xf32>
    %554 = arith.addf %550, %553 : vector<8x256xf32>
    %cst_281 = arith.constant 0.000000e+00 : f32
    %555 = vector.broadcast %cst_281 : f32 to vector<8x256xf32>
    %556 = arith.maximumf %554, %555 : vector<8x256xf32>
    %557 = arith.truncf %556 : vector<8x256xf32> to vector<8x256xbf16>
    %c2_282 = arith.constant 2 : index
    %c0_283 = arith.constant 0 : index
    %c0_284 = arith.constant 0 : index
    %c0_285 = arith.constant 0 : index
    %558 = vector.load %arg10[%c2_282, %c0_283, %c0_284, %c0_285] : memref<3x4x256x256xbf16, #tpu.memory_space<vmem>>, vector<1x1x256x256xbf16>
    %559 = vector.shape_cast %558 : vector<1x1x256x256xbf16> to vector<256x256xbf16>
    %cst_286 = arith.constant dense<0.000000e+00> : vector<8x256xf32>
    %560 = tpu.matmul %557, %559, %cst_286 {dimension_numbers = #tpu.dot_dimension_numbers<[1], [0], [0], [1], [0, 0, 1, 1], [], []>} : vector<8x256xbf16>, vector<256x256xbf16>, vector<8x256xf32> -> vector<8x256xf32>
    %561 = vector.broadcast %547 : vector<1x256xf32> to vector<8x256xf32>
    %562 = arith.addf %561, %560 : vector<8x256xf32>
    %c2_287 = arith.constant 2 : index
    %c1_288 = arith.constant 1 : index
    %c0_289 = arith.constant 0 : index
    %c0_290 = arith.constant 0 : index
    %563 = vector.load %arg8[%c2_287, %c1_288, %c0_289, %c0_290] : memref<3x4x256x256xbf16, #tpu.memory_space<vmem>>, vector<1x1x256x256xbf16>
    %564 = vector.shape_cast %563 : vector<1x1x256x256xbf16> to vector<256x256xbf16>
    %cst_291 = arith.constant dense<0.000000e+00> : vector<8x256xf32>
    %565 = tpu.matmul %545, %564, %cst_291 {dimension_numbers = #tpu.dot_dimension_numbers<[1], [0], [0], [1], [0, 0, 1, 1], [], []>} : vector<8x256xbf16>, vector<256x256xbf16>, vector<8x256xf32> -> vector<8x256xf32>
    %c2_292 = arith.constant 2 : index
    %c1_293 = arith.constant 1 : index
    %c0_294 = arith.constant 0 : index
    %c0_295 = arith.constant 0 : index
    %566 = vector.load %arg9[%c2_292, %c1_293, %c0_294, %c0_295] : memref<3x4x1x256xf32, #tpu.memory_space<vmem>>, vector<1x1x1x256xf32>
    %567 = vector.shape_cast %566 : vector<1x1x1x256xf32> to vector<1x256xf32>
    %568 = vector.broadcast %567 : vector<1x256xf32> to vector<8x256xf32>
    %569 = arith.addf %565, %568 : vector<8x256xf32>
    %cst_296 = arith.constant 0.000000e+00 : f32
    %570 = vector.broadcast %cst_296 : f32 to vector<8x256xf32>
    %571 = arith.maximumf %569, %570 : vector<8x256xf32>
    %572 = arith.truncf %571 : vector<8x256xf32> to vector<8x256xbf16>
    %c2_297 = arith.constant 2 : index
    %c1_298 = arith.constant 1 : index
    %c0_299 = arith.constant 0 : index
    %c0_300 = arith.constant 0 : index
    %573 = vector.load %arg10[%c2_297, %c1_298, %c0_299, %c0_300] : memref<3x4x256x256xbf16, #tpu.memory_space<vmem>>, vector<1x1x256x256xbf16>
    %574 = vector.shape_cast %573 : vector<1x1x256x256xbf16> to vector<256x256xbf16>
    %cst_301 = arith.constant dense<0.000000e+00> : vector<8x256xf32>
    %575 = tpu.matmul %572, %574, %cst_301 {dimension_numbers = #tpu.dot_dimension_numbers<[1], [0], [0], [1], [0, 0, 1, 1], [], []>} : vector<8x256xbf16>, vector<256x256xbf16>, vector<8x256xf32> -> vector<8x256xf32>
    %576 = arith.addf %562, %575 : vector<8x256xf32>
    %c2_302 = arith.constant 2 : index
    %c2_303 = arith.constant 2 : index
    %c0_304 = arith.constant 0 : index
    %c0_305 = arith.constant 0 : index
    %577 = vector.load %arg8[%c2_302, %c2_303, %c0_304, %c0_305] : memref<3x4x256x256xbf16, #tpu.memory_space<vmem>>, vector<1x1x256x256xbf16>
    %578 = vector.shape_cast %577 : vector<1x1x256x256xbf16> to vector<256x256xbf16>
    %cst_306 = arith.constant dense<0.000000e+00> : vector<8x256xf32>
    %579 = tpu.matmul %545, %578, %cst_306 {dimension_numbers = #tpu.dot_dimension_numbers<[1], [0], [0], [1], [0, 0, 1, 1], [], []>} : vector<8x256xbf16>, vector<256x256xbf16>, vector<8x256xf32> -> vector<8x256xf32>
    %c2_307 = arith.constant 2 : index
    %c2_308 = arith.constant 2 : index
    %c0_309 = arith.constant 0 : index
    %c0_310 = arith.constant 0 : index
    %580 = vector.load %arg9[%c2_307, %c2_308, %c0_309, %c0_310] : memref<3x4x1x256xf32, #tpu.memory_space<vmem>>, vector<1x1x1x256xf32>
    %581 = vector.shape_cast %580 : vector<1x1x1x256xf32> to vector<1x256xf32>
    %582 = vector.broadcast %581 : vector<1x256xf32> to vector<8x256xf32>
    %583 = arith.addf %579, %582 : vector<8x256xf32>
    %cst_311 = arith.constant 0.000000e+00 : f32
    %584 = vector.broadcast %cst_311 : f32 to vector<8x256xf32>
    %585 = arith.maximumf %583, %584 : vector<8x256xf32>
    %586 = arith.truncf %585 : vector<8x256xf32> to vector<8x256xbf16>
    %c2_312 = arith.constant 2 : index
    %c2_313 = arith.constant 2 : index
    %c0_314 = arith.constant 0 : index
    %c0_315 = arith.constant 0 : index
    %587 = vector.load %arg10[%c2_312, %c2_313, %c0_314, %c0_315] : memref<3x4x256x256xbf16, #tpu.memory_space<vmem>>, vector<1x1x256x256xbf16>
    %588 = vector.shape_cast %587 : vector<1x1x256x256xbf16> to vector<256x256xbf16>
    %cst_316 = arith.constant dense<0.000000e+00> : vector<8x256xf32>
    %589 = tpu.matmul %586, %588, %cst_316 {dimension_numbers = #tpu.dot_dimension_numbers<[1], [0], [0], [1], [0, 0, 1, 1], [], []>} : vector<8x256xbf16>, vector<256x256xbf16>, vector<8x256xf32> -> vector<8x256xf32>
    %590 = arith.addf %576, %589 : vector<8x256xf32>
    %c2_317 = arith.constant 2 : index
    %c3_318 = arith.constant 3 : index
    %c0_319 = arith.constant 0 : index
    %c0_320 = arith.constant 0 : index
    %591 = vector.load %arg8[%c2_317, %c3_318, %c0_319, %c0_320] : memref<3x4x256x256xbf16, #tpu.memory_space<vmem>>, vector<1x1x256x256xbf16>
    %592 = vector.shape_cast %591 : vector<1x1x256x256xbf16> to vector<256x256xbf16>
    %cst_321 = arith.constant dense<0.000000e+00> : vector<8x256xf32>
    %593 = tpu.matmul %545, %592, %cst_321 {dimension_numbers = #tpu.dot_dimension_numbers<[1], [0], [0], [1], [0, 0, 1, 1], [], []>} : vector<8x256xbf16>, vector<256x256xbf16>, vector<8x256xf32> -> vector<8x256xf32>
    %c2_322 = arith.constant 2 : index
    %c3_323 = arith.constant 3 : index
    %c0_324 = arith.constant 0 : index
    %c0_325 = arith.constant 0 : index
    %594 = vector.load %arg9[%c2_322, %c3_323, %c0_324, %c0_325] : memref<3x4x1x256xf32, #tpu.memory_space<vmem>>, vector<1x1x1x256xf32>
    %595 = vector.shape_cast %594 : vector<1x1x1x256xf32> to vector<1x256xf32>
    %596 = vector.broadcast %595 : vector<1x256xf32> to vector<8x256xf32>
    %597 = arith.addf %593, %596 : vector<8x256xf32>
    %cst_326 = arith.constant 0.000000e+00 : f32
    %598 = vector.broadcast %cst_326 : f32 to vector<8x256xf32>
    %599 = arith.maximumf %597, %598 : vector<8x256xf32>
    %600 = arith.truncf %599 : vector<8x256xf32> to vector<8x256xbf16>
    %c2_327 = arith.constant 2 : index
    %c3_328 = arith.constant 3 : index
    %c0_329 = arith.constant 0 : index
    %c0_330 = arith.constant 0 : index
    %601 = vector.load %arg10[%c2_327, %c3_328, %c0_329, %c0_330] : memref<3x4x256x256xbf16, #tpu.memory_space<vmem>>, vector<1x1x256x256xbf16>
    %602 = vector.shape_cast %601 : vector<1x1x256x256xbf16> to vector<256x256xbf16>
    %cst_331 = arith.constant dense<0.000000e+00> : vector<8x256xf32>
    %603 = tpu.matmul %600, %602, %cst_331 {dimension_numbers = #tpu.dot_dimension_numbers<[1], [0], [0], [1], [0, 0, 1, 1], [], []>} : vector<8x256xbf16>, vector<256x256xbf16>, vector<8x256xf32> -> vector<8x256xf32>
    %604 = arith.addf %590, %603 : vector<8x256xf32>
    %605 = arith.addf %544, %604 : vector<8x256xf32>
    %c2_332 = arith.constant 2 : index
    %c0_333 = arith.constant 0 : index
    %c0_334 = arith.constant 0 : index
    %606 = vector.load %arg12[%c2_332, %c0_333, %c0_334] : memref<3x1x256xf32, #tpu.memory_space<vmem>>, vector<1x1x256xf32>
    %607 = vector.shape_cast %606 : vector<1x1x256xf32> to vector<1x256xf32>
    %c2_335 = arith.constant 2 : index
    %c0_336 = arith.constant 0 : index
    %c0_337 = arith.constant 0 : index
    %608 = vector.load %arg13[%c2_335, %c0_336, %c0_337] : memref<3x1x256xf32, #tpu.memory_space<vmem>>, vector<1x1x256xf32>
    %609 = vector.shape_cast %608 : vector<1x1x256xf32> to vector<1x256xf32>
    %cst_338 = arith.constant dense<0.000000e+00> : vector<8xf32>
    %610 = vector.multi_reduction <add>, %605, %cst_338 [1] : vector<8x256xf32> to vector<8xf32>
    %611 = vector.shape_cast %610 : vector<8xf32> to vector<8x1xf32>
    %cst_339 = arith.constant 2.560000e+02 : f32
    %612 = vector.broadcast %cst_339 : f32 to vector<8x1xf32>
    %613 = arith.divf %611, %612 : vector<8x1xf32>
    %614 = vector.broadcast %613 : vector<8x1xf32> to vector<8x256xf32>
    %615 = arith.subf %605, %614 : vector<8x256xf32>
    %616 = arith.mulf %615, %615 : vector<8x256xf32>
    %cst_340 = arith.constant dense<0.000000e+00> : vector<8xf32>
    %617 = vector.multi_reduction <add>, %616, %cst_340 [1] : vector<8x256xf32> to vector<8xf32>
    %618 = vector.shape_cast %617 : vector<8xf32> to vector<8x1xf32>
    %cst_341 = arith.constant 2.560000e+02 : f32
    %619 = vector.broadcast %cst_341 : f32 to vector<8x1xf32>
    %620 = arith.divf %618, %619 : vector<8x1xf32>
    %cst_342 = arith.constant 9.99999974E-6 : f32
    %621 = vector.broadcast %cst_342 : f32 to vector<8x1xf32>
    %622 = arith.addf %620, %621 : vector<8x1xf32>
    %623 = math.rsqrt %622 : vector<8x1xf32>
    %624 = vector.broadcast %613 : vector<8x1xf32> to vector<8x256xf32>
    %625 = arith.subf %605, %624 : vector<8x256xf32>
    %626 = vector.broadcast %623 : vector<8x1xf32> to vector<8x256xf32>
    %627 = arith.mulf %625, %626 : vector<8x256xf32>
    %628 = vector.broadcast %607 : vector<1x256xf32> to vector<8x256xf32>
    %629 = arith.mulf %627, %628 : vector<8x256xf32>
    %630 = vector.broadcast %609 : vector<1x256xf32> to vector<8x256xf32>
    %631 = arith.addf %629, %630 : vector<8x256xf32>
    %c0_343 = arith.constant 0 : index
    %c0_344 = arith.constant 0 : index
    %c0_345 = arith.constant 0 : index
    %632 = vector.load %arg14[%c0_343, %c0_344, %c0_345] : memref<1x8x256xf32, #tpu.memory_space<vmem>>, vector<1x8x256xf32>
    %633 = vector.shape_cast %632 : vector<1x8x256xf32> to vector<8x256xf32>
    %634 = vector.shape_cast %631 : vector<8x256xf32> to vector<1x8x256xf32>
    tpu.vector_store %arg14[%c0_343, %c0_344, %c0_345], %634 {strides = array<i32>} : memref<1x8x256xf32, #tpu.memory_space<vmem>>, vector<1x8x256xf32>,
    return
  }
  func.func @transform_0(%arg0: i32) -> (i32, i32, i32) {
    %c0_i32 = arith.constant 0 : i32
    %c0_i32_0 = arith.constant 0 : i32
    %c0_i32_1 = arith.constant 0 : i32
    return %arg0, %c0_i32, %c0_i32_0 : i32, i32, i32
  }
  func.func @transform_1(%arg0: i32) -> (i32, i32, i32) {
    %c0_i32 = arith.constant 0 : i32
    %c0_i32_0 = arith.constant 0 : i32
    %c0_i32_1 = arith.constant 0 : i32
    %c0_i32_2 = arith.constant 0 : i32
    return %c0_i32, %c0_i32_0, %c0_i32_1 : i32, i32, i32
  }
  func.func @transform_2(%arg0: i32) -> (i32, i32, i32) {
    %c0_i32 = arith.constant 0 : i32
    %c0_i32_0 = arith.constant 0 : i32
    %c0_i32_1 = arith.constant 0 : i32
    %c0_i32_2 = arith.constant 0 : i32
    return %c0_i32, %c0_i32_0, %c0_i32_1 : i32, i32, i32
  }
  func.func @transform_3(%arg0: i32) -> (i32, i32, i32) {
    %c0_i32 = arith.constant 0 : i32
    %c0_i32_0 = arith.constant 0 : i32
    %c0_i32_1 = arith.constant 0 : i32
    %c0_i32_2 = arith.constant 0 : i32
    return %c0_i32, %c0_i32_0, %c0_i32_1 : i32, i32, i32
  }
  func.func @transform_4(%arg0: i32) -> (i32, i32, i32) {
    %c0_i32 = arith.constant 0 : i32
    %c0_i32_0 = arith.constant 0 : i32
    %c0_i32_1 = arith.constant 0 : i32
    %c0_i32_2 = arith.constant 0 : i32
    return %c0_i32, %c0_i32_0, %c0_i32_1 : i32, i32, i32
  }
  func.func @transform_5(%arg0: i32) -> (i32, i32, i32) {
    %c0_i32 = arith.constant 0 : i32
    %c0_i32_0 = arith.constant 0 : i32
    %c0_i32_1 = arith.constant 0 : i32
    %c0_i32_2 = arith.constant 0 : i32
    return %c0_i32, %c0_i32_0, %c0_i32_1 : i32, i32, i32
  }
  func.func @transform_6(%arg0: i32) -> (i32, i32, i32) {
    %c0_i32 = arith.constant 0 : i32
    %c0_i32_0 = arith.constant 0 : i32
    %c0_i32_1 = arith.constant 0 : i32
    %c0_i32_2 = arith.constant 0 : i32
    return %c0_i32, %c0_i32_0, %c0_i32_1 : i32, i32, i32
  }
  func.func @transform_7(%arg0: i32) -> (i32, i32, i32, i32) {
    %c0_i32 = arith.constant 0 : i32
    %c0_i32_0 = arith.constant 0 : i32
    %c0_i32_1 = arith.constant 0 : i32
    %c0_i32_2 = arith.constant 0 : i32
    %c0_i32_3 = arith.constant 0 : i32
    return %c0_i32, %c0_i32_0, %c0_i32_1, %c0_i32_2 : i32, i32, i32, i32
  }
  func.func @transform_8(%arg0: i32) -> (i32, i32, i32, i32) {
    %c0_i32 = arith.constant 0 : i32
    %c0_i32_0 = arith.constant 0 : i32
    %c0_i32_1 = arith.constant 0 : i32
    %c0_i32_2 = arith.constant 0 : i32
    %c0_i32_3 = arith.constant 0 : i32
    return %c0_i32, %c0_i32_0, %c0_i32_1, %c0_i32_2 : i32, i32, i32, i32
  }
  func.func @transform_9(%arg0: i32) -> (i32, i32, i32, i32) {
    %c0_i32 = arith.constant 0 : i32
    %c0_i32_0 = arith.constant 0 : i32
    %c0_i32_1 = arith.constant 0 : i32
    %c0_i32_2 = arith.constant 0 : i32
    %c0_i32_3 = arith.constant 0 : i32
    return %c0_i32, %c0_i32_0, %c0_i32_1, %c0_i32_2 : i32, i32, i32, i32
  }
  func.func @transform_10(%arg0: i32) -> (i32, i32, i32) {
    %c0_i32 = arith.constant 0 : i32
    %c0_i32_0 = arith.constant 0 : i32
    %c0_i32_1 = arith.constant 0 : i32
    %c0_i32_2 = arith.constant 0 : i32
    return %c0_i32, %c0_i32_0, %c0_i32_1 : i32, i32, i32
  }
  func.func @transform_11(%arg0: i32) -> (i32, i32, i32) {
    %c0_i32 = arith.constant 0 : i32
    %c0_i32_0 = arith.constant 0 : i32
    %c0_i32_1 = arith.constant 0 : i32
    %c0_i32_2 = arith.constant 0 : i32
    return %c0_i32, %c0_i32_0, %c0_i32_1 : i32, i32, i32
  }
  func.func @transform_12(%arg0: i32) -> (i32, i32, i32) {
    %c0_i32 = arith.constant 0 : i32
    %c0_i32_0 = arith.constant 0 : i32
    %c0_i32_1 = arith.constant 0 : i32
    %c0_i32_2 = arith.constant 0 : i32
    return %c0_i32, %c0_i32_0, %c0_i32_1 : i32, i32, i32
  }
  func.func @transform_13(%arg0: i32) -> (i32, i32, i32) {
    %c0_i32 = arith.constant 0 : i32
    %c0_i32_0 = arith.constant 0 : i32
    %c0_i32_1 = arith.constant 0 : i32
    return %arg0, %c0_i32, %c0_i32_0 : i32, i32, i32
  }
}

</mosaic_0001>

<llo_original>
// kernel: tpu_custom_call.1
$region0: #{tpu_custom_call.1}
  #allocation0 [shape = 'u32[]', space=smem, size = 0x4, offset = 0x4, fixed_abs, tag = 'smem constant byte address 0x4 - core index']
  #allocation1 [shape = 'u32[144,128]{1,0:T(1,128)}', space=vmem, size = 0x12000, scoped, tag = 'internal scratch']
  %s0 = inlined_call_operand.hbm [shape: f32[2,8,256], index: 0, kind: input, shape index: {}]
  %s1 = inlined_call_operand.hbm [shape: bf16[3,256,768], index: 1, kind: input, shape index: {}]
  %s2 = inlined_call_operand.hbm [shape: f32[3,1,768], index: 2, kind: input, shape index: {}]
  %s3 = inlined_call_operand.hbm [shape: bf16[3,256,256], index: 3, kind: input, shape index: {}]
  %s4 = inlined_call_operand.hbm [shape: f32[3,1,256], index: 4, kind: input, shape index: {}]
  %s5 = inlined_call_operand.hbm [shape: f32[3,1,256], index: 5, kind: input, shape index: {}]
  %s6 = inlined_call_operand.hbm [shape: f32[3,1,256], index: 6, kind: input, shape index: {}]
  %s7 = inlined_call_operand.hbm [shape: bf16[3,4,256,256], index: 7, kind: input, shape index: {}]
  %s8 = inlined_call_operand.hbm [shape: f32[3,4,1,256], index: 8, kind: input, shape index: {}]
  %s9 = inlined_call_operand.hbm [shape: bf16[3,4,256,256], index: 9, kind: input, shape index: {}]
  %s10 = inlined_call_operand.hbm [shape: f32[3,1,256], index: 10, kind: input, shape index: {}]
  %s11 = inlined_call_operand.hbm [shape: f32[3,1,256], index: 11, kind: input, shape index: {}]
  %s12 = inlined_call_operand.hbm [shape: f32[3,1,256], index: 12, kind: input, shape index: {}]
  %s13 = inlined_call_operand.hbm [shape: f32[2,8,256], index: 13, kind: output, shape index: {}]
  %s14 = sld [smem:[#allocation0]]
  $region137: #{tpu_custom_call.1} parent=0
    _
  %s16 = ssub.s32 1, %s14
  %s17 = scalar_select 0, %s16, %s14
  $region1: #{tpu_custom_call.1} parent=0
    #allocation2 [shape = 'u8[16384]{0}', space=vmem, size = 0x4000, scoped, tag = 'input window, operand 0']
    #allocation3 [shape = 's32[2]{0}', space=sflag, size = 0x8, scoped, tag = 'scoped memory for tpu_custom_call.1']
    #allocation4 [shape = 's32[2]{0}', space=sflag, size = 0x8, scoped, tag = 'scoped memory for tpu_custom_call.1']
    #allocation5 [shape = 'u8[1179648]{0}', space=vmem, size = 0x120000, scoped, tag = 'input window, operand 1, single buffered']
    #allocation6 [shape = 's32[1]{0}', space=sflag, size = 0x4, scoped, tag = 'scoped memory for tpu_custom_call.1']
    #allocation7 [shape = 'u8[9216]{0}', space=vmem, size = 0x2400, scoped, tag = 'input window, operand 2, single buffered']
    #allocation8 [shape = 'u8[393216]{0}', space=vmem, size = 0x60000, scoped, tag = 'input window, operand 3, single buffered']
    #allocation9 [shape = 's32[1]{0}', space=sflag, size = 0x4, scoped, tag = 'scoped memory for tpu_custom_call.1']
    #allocation10 [shape = 'u8[3072]{0}', space=vmem, size = 0xc00, scoped, tag = 'input window, operand 4, single buffered']
    #allocation11 [shape = 'u8[3072]{0}', space=vmem, size = 0xc00, scoped, tag = 'input window, operand 5, single buffered']
    #allocation12 [shape = 's32[1]{0}', space=sflag, size = 0x4, scoped, tag = 'scoped memory for tpu_custom_call.1']
    #allocation13 [shape = 'u8[3072]{0}', space=vmem, size = 0xc00, scoped, tag = 'input window, operand 6, single buffered']
    #allocation14 [shape = 'u8[1572864]{0}', space=vmem, size = 0x180000, scoped, tag = 'input window, operand 7, single buffered']
    #allocation15 [shape = 's32[1]{0}', space=sflag, size = 0x4, scoped, tag = 'scoped memory for tpu_custom_call.1']
    #allocation16 [shape = 'u8[12288]{0}', space=vmem, size = 0x3000, scoped, tag = 'input window, operand 8, single buffered']
    #allocation17 [shape = 'u8[1572864]{0}', space=vmem, size = 0x180000, scoped, tag = 'input window, operand 9, single buffered']
    #allocation18 [shape = 's32[1]{0}', space=sflag, size = 0x4, scoped, tag = 'scoped memory for tpu_custom_call.1']
    #allocation19 [shape = 'u8[3072]{0}', space=vmem, size = 0xc00, scoped, tag = 'input window, operand 10, single buffered']
    #allocation20 [shape = 'u8[3072]{0}', space=vmem, size = 0xc00, scoped, tag = 'input window, operand 11, single buffered']
    #allocation21 [shape = 's32[1]{0}', space=sflag, size = 0x4, scoped, tag = 'scoped memory for tpu_custom_call.1']
    #allocation22 [shape = 'u8[3072]{0}', space=vmem, size = 0xc00, scoped, tag = 'input window, operand 12, single buffered']
    #allocation23 [shape = 'u8[16384]{0}', space=vmem, size = 0x4000, scoped, tag = 'output window, operand 0']
    %18 = vsyncpa [#allocation3], 0
    %s19 = scalar_lea.sflag [#allocation3], 1
    %20 = vsyncpa %s19, 0
    %21 = vsyncpa [#allocation6], 0
    %22 = vsyncpa [#allocation9], 0
    %23 = vsyncpa [#allocation12], 0
    %24 = vsyncpa [#allocation15], 0
    %25 = vsyncpa [#allocation18], 0
    %26 = vsyncpa [#allocation21], 0
    %27 = vsyncpa [#allocation4], 0
    %s28 = scalar_lea.sflag [#allocation4], 1
    %29 = vsyncpa %s28, 0
    loop: start=0, step=1, limit=4
    $region2: #{tpu_custom_call.1} parent=1 // loop_pre_header
      _
    $region3: #{tpu_custom_call.1} parent=1 // loop_header
      %s31 = sphi 0, %s35
      %p32 = scmp.ge.s32.totalorder %s31, 4
      %s41 = sphi 0, %s43
      %s44 = sphi 0, %s41
      %s45 = sphi 0, %s44
      %s61 = sphi 0, %s45
      %s65 = sphi 0, %s65
      %s67 = sphi 0, %s65
      %s68 = sphi 0, %s67
      %s82 = sphi 0, %s68
      %s86 = sphi 0, %s86
      %s88 = sphi 0, %s86
      %s89 = sphi 0, %s88
      %s103 = sphi 0, %s89
      %s107 = sphi 0, %s107
      %s109 = sphi 0, %s107
      %s110 = sphi 0, %s109
      %s124 = sphi 0, %s110
      %s128 = sphi 0, %s128
      %s130 = sphi 0, %s128
      %s131 = sphi 0, %s130
      %s145 = sphi 0, %s131
      %s149 = sphi 0, %s149
      %s151 = sphi 0, %s149
      %s152 = sphi 0, %s151
      %s166 = sphi 0, %s152
      %s170 = sphi 0, %s170
      %s172 = sphi 0, %s170
      %s173 = sphi 0, %s172
      %s187 = sphi 0, %s173
      %s191 = sphi 0, %s191
      %s193 = sphi 0, %s191
      %s194 = sphi 0, %s193
      %s208 = sphi 0, %s194
      %s212 = sphi 0, %s212
      %s214 = sphi 0, %s212
      %s215 = sphi 0, %s214
      %s229 = sphi 0, %s215
      %s233 = sphi 0, %s233
      %s235 = sphi 0, %s233
      %s236 = sphi 0, %s235
      %s250 = sphi 0, %s236
      %s254 = sphi 0, %s254
      %s256 = sphi 0, %s254
      %s257 = sphi 0, %s256
      %s271 = sphi 0, %s257
      %s275 = sphi 0, %s275
      %s277 = sphi 0, %s275
      %s278 = sphi 0, %s277
      %s292 = sphi 0, %s278
      %s296 = sphi 0, %s296
      %s298 = sphi 0, %s296
      %s299 = sphi 0, %s298
      %s313 = sphi 0, %s299
      %s319 = sphi 0, %s321
      %s322 = sphi 0, %s319
      %s323 = sphi 0, %s322
      %s339 = sphi 0, %s323
    $region4: #{tpu_custom_call.1} parent=1 // loop_header_branch
      %34 = sbr.rel (%p32) target = $region8
    $region5: #{tpu_custom_call.1} parent=1 // loop_body
      %s36 = ssub.s32 %s31, 1
      %s37 = ssub.s32 %s31, 2
      %s38 = sadd.s32 %s31, 1
      %s39 = ssub.s32 %s31, %s38
      %p40 = scmp.eq.s32.totalorder %s39, 0
      %s42 = sadd.s32 %s41, 1
      %s43 = scalar_select %p40, %s41, %s42
      %p46 = pneg %p40
      %p47 = scmp.eq.s32.totalorder %s31, 1
      %p48 = por %p46, %p47
      %p49 = scmp.ne.s32.totalorder %s41, %s44
      %p50 = scmp.eq.s32.totalorder %s31, 0
      %p51 = por %p49, %p50
      %p52 = scmp.ne.s32.totalorder %s41, %s44
      %p53 = scmp.eq.s32.totalorder %s36, 1
      %p54 = por %p52, %p53
      %p55 = scmp.ne.s32.totalorder %s44, %s45
      %p56 = scmp.eq.s32.totalorder %s36, 0
      %p57 = por %p55, %p56
      %p58 = scmp.ne.s32.totalorder %s44, %s45
      %p59 = scmp.eq.s32.totalorder %s37, 1
      %p60 = por %p58, %p59
      %p62 = scmp.ne.s32.totalorder %s45, %s61
      %p63 = scmp.eq.s32.totalorder %s37, 0
      %p64 = por %p62, %p63
      %s66 = sadd.s32 %s65, 1
      %p69 = scmp.eq.s32.totalorder %s31, 1
      %p70 = scmp.ne.s32.totalorder %s65, %s67
      %p71 = scmp.eq.s32.totalorder %s31, 0
      %p72 = por %p70, %p71
      %p73 = scmp.ne.s32.totalorder %s65, %s67
      %p74 = scmp.eq.s32.totalorder %s36, 1
      %p75 = por %p73, %p74
      %p76 = scmp.ne.s32.totalorder %s67, %s68
      %p77 = scmp.eq.s32.totalorder %s36, 0
      %p78 = por %p76, %p77
      %p79 = scmp.ne.s32.totalorder %s67, %s68
      %p80 = scmp.eq.s32.totalorder %s37, 1
      %p81 = por %p79, %p80
      %p83 = scmp.ne.s32.totalorder %s68, %s82
      %p84 = scmp.eq.s32.totalorder %s37, 0
      %p85 = por %p83, %p84
      %s87 = sadd.s32 %s86, 1
      %p90 = scmp.eq.s32.totalorder %s31, 1
      %p91 = scmp.ne.s32.totalorder %s86, %s88
      %p92 = scmp.eq.s32.totalorder %s31, 0
      %p93 = por %p91, %p92
      %p94 = scmp.ne.s32.totalorder %s86, %s88
      %p95 = scmp.eq.s32.totalorder %s36, 1
      %p96 = por %p94, %p95
      %p97 = scmp.ne.s32.totalorder %s88, %s89
      %p98 = scmp.eq.s32.totalorder %s36, 0
      %p99 = por %p97, %p98
      %p100 = scmp.ne.s32.totalorder %s88, %s89
      %p101 = scmp.eq.s32.totalorder %s37, 1
      %p102 = por %p100, %p101
      %p104 = scmp.ne.s32.totalorder %s89, %s103
      %p105 = scmp.eq.s32.totalorder %s37, 0
      %p106 = por %p104, %p105
      %s108 = sadd.s32 %s107, 1
      %p111 = scmp.eq.s32.totalorder %s31, 1
      %p112 = scmp.ne.s32.totalorder %s107, %s109
      %p113 = scmp.eq.s32.totalorder %s31, 0
      %p114 = por %p112, %p113
      %p115 = scmp.ne.s32.totalorder %s107, %s109
      %p116 = scmp.eq.s32.totalorder %s36, 1
      %p117 = por %p115, %p116
      %p118 = scmp.ne.s32.totalorder %s109, %s110
      %p119 = scmp.eq.s32.totalorder %s36, 0
      %p120 = por %p118, %p119
      %p121 = scmp.ne.s32.totalorder %s109, %s110
      %p122 = scmp.eq.s32.totalorder %s37, 1
      %p123 = por %p121, %p122
      %p125 = scmp.ne.s32.totalorder %s110, %s124
      %p126 = scmp.eq.s32.totalorder %s37, 0
      %p127 = por %p125, %p126
      %s129 = sadd.s32 %s128, 1
      %p132 = scmp.eq.s32.totalorder %s31, 1
      %p133 = scmp.ne.s32.totalorder %s128, %s130
      %p134 = scmp.eq.s32.totalorder %s31, 0
      %p135 = por %p133, %p134
      %p136 = scmp.ne.s32.totalorder %s128, %s130
      %p137 = scmp.eq.s32.totalorder %s36, 1
      %p138 = por %p136, %p137
      %p139 = scmp.ne.s32.totalorder %s130, %s131
      %p140 = scmp.eq.s32.totalorder %s36, 0
      %p141 = por %p139, %p140
      %p142 = scmp.ne.s32.totalorder %s130, %s131
      %p143 = scmp.eq.s32.totalorder %s37, 1
      %p144 = por %p142, %p143
      %p146 = scmp.ne.s32.totalorder %s131, %s145
      %p147 = scmp.eq.s32.totalorder %s37, 0
      %p148 = por %p146, %p147
      %s150 = sadd.s32 %s149, 1
      %p153 = scmp.eq.s32.totalorder %s31, 1
      %p154 = scmp.ne.s32.totalorder %s149, %s151
      %p155 = scmp.eq.s32.totalorder %s31, 0
      %p156 = por %p154, %p155
      %p157 = scmp.ne.s32.totalorder %s149, %s151
      %p158 = scmp.eq.s32.totalorder %s36, 1
      %p159 = por %p157, %p158
      %p160 = scmp.ne.s32.totalorder %s151, %s152
      %p161 = scmp.eq.s32.totalorder %s36, 0
      %p162 = por %p160, %p161
      %p163 = scmp.ne.s32.totalorder %s151, %s152
      %p164 = scmp.eq.s32.totalorder %s37, 1
      %p165 = por %p163, %p164
      %p167 = scmp.ne.s32.totalorder %s152, %s166
      %p168 = scmp.eq.s32.totalorder %s37, 0
      %p169 = por %p167, %p168
      %s171 = sadd.s32 %s170, 1
      %p174 = scmp.eq.s32.totalorder %s31, 1
      %p175 = scmp.ne.s32.totalorder %s170, %s172
      %p176 = scmp.eq.s32.totalorder %s31, 0
      %p177 = por %p175, %p176
      %p178 = scmp.ne.s32.totalorder %s170, %s172
      %p179 = scmp.eq.s32.totalorder %s36, 1
      %p180 = por %p178, %p179
      %p181 = scmp.ne.s32.totalorder %s172, %s173
      %p182 = scmp.eq.s32.totalorder %s36, 0
      %p183 = por %p181, %p182
      %p184 = scmp.ne.s32.totalorder %s172, %s173
      %p185 = scmp.eq.s32.totalorder %s37, 1
      %p186 = por %p184, %p185
      %p188 = scmp.ne.s32.totalorder %s173, %s187
      %p189 = scmp.eq.s32.totalorder %s37, 0
      %p190 = por %p188, %p189
      %s192 = sadd.s32 %s191, 1
      %p195 = scmp.eq.s32.totalorder %s31, 1
      %p196 = scmp.ne.s32.totalorder %s191, %s193
      %p197 = scmp.eq.s32.totalorder %s31, 0
      %p198 = por %p196, %p197
      %p199 = scmp.ne.s32.totalorder %s191, %s193
      %p200 = scmp.eq.s32.totalorder %s36, 1
      %p201 = por %p199, %p200
      %p202 = scmp.ne.s32.totalorder %s193, %s194
      %p203 = scmp.eq.s32.totalorder %s36, 0
      %p204 = por %p202, %p203
      %p205 = scmp.ne.s32.totalorder %s193, %s194
      %p206 = scmp.eq.s32.totalorder %s37, 1
      %p207 = por %p205, %p206
      %p209 = scmp.ne.s32.totalorder %s194, %s208
      %p210 = scmp.eq.s32.totalorder %s37, 0
      %p211 = por %p209, %p210
      %s213 = sadd.s32 %s212, 1
      %p216 = scmp.eq.s32.totalorder %s31, 1
      %p217 = scmp.ne.s32.totalorder %s212, %s214
      %p218 = scmp.eq.s32.totalorder %s31, 0
      %p219 = por %p217, %p218
      %p220 = scmp.ne.s32.totalorder %s212, %s214
      %p221 = scmp.eq.s32.totalorder %s36, 1
      %p222 = por %p220, %p221
      %p223 = scmp.ne.s32.totalorder %s214, %s215
      %p224 = scmp.eq.s32.totalorder %s36, 0
      %p225 = por %p223, %p224
      %p226 = scmp.ne.s32.totalorder %s214, %s215
      %p227 = scmp.eq.s32.totalorder %s37, 1
      %p228 = por %p226, %p227
      %p230 = scmp.ne.s32.totalorder %s215, %s229
      %p231 = scmp.eq.s32.totalorder %s37, 0
      %p232 = por %p230, %p231
      %s234 = sadd.s32 %s233, 1
      %p237 = scmp.eq.s32.totalorder %s31, 1
      %p238 = scmp.ne.s32.totalorder %s233, %s235
      %p239 = scmp.eq.s32.totalorder %s31, 0
      %p240 = por %p238, %p239
      %p241 = scmp.ne.s32.totalorder %s233, %s235
      %p242 = scmp.eq.s32.totalorder %s36, 1
      %p243 = por %p241, %p242
      %p244 = scmp.ne.s32.totalorder %s235, %s236
      %p245 = scmp.eq.s32.totalorder %s36, 0
      %p246 = por %p244, %p245
      %p247 = scmp.ne.s32.totalorder %s235, %s236
      %p248 = scmp.eq.s32.totalorder %s37, 1
      %p249 = por %p247, %p248
      %p251 = scmp.ne.s32.totalorder %s236, %s250
      %p252 = scmp.eq.s32.totalorder %s37, 0
      %p253 = por %p251, %p252
      %s255 = sadd.s32 %s254, 1
      %p258 = scmp.eq.s32.totalorder %s31, 1
      %p259 = scmp.ne.s32.totalorder %s254, %s256
      %p260 = scmp.eq.s32.totalorder %s31, 0
      %p261 = por %p259, %p260
      %p262 = scmp.ne.s32.totalorder %s254, %s256
      %p263 = scmp.eq.s32.totalorder %s36, 1
      %p264 = por %p262, %p263
      %p265 = scmp.ne.s32.totalorder %s256, %s257
      %p266 = scmp.eq.s32.totalorder %s36, 0
      %p267 = por %p265, %p266
      %p268 = scmp.ne.s32.totalorder %s256, %s257
      %p269 = scmp.eq.s32.totalorder %s37, 1
      %p270 = por %p268, %p269
      %p272 = scmp.ne.s32.totalorder %s257, %s271
      %p273 = scmp.eq.s32.totalorder %s37, 0
      %p274 = por %p272, %p273
      %s276 = sadd.s32 %s275, 1
      %p279 = scmp.eq.s32.totalorder %s31, 1
      %p280 = scmp.ne.s32.totalorder %s275, %s277
      %p281 = scmp.eq.s32.totalorder %s31, 0
      %p282 = por %p280, %p281
      %p283 = scmp.ne.s32.totalorder %s275, %s277
      %p284 = scmp.eq.s32.totalorder %s36, 1
      %p285 = por %p283, %p284
      %p286 = scmp.ne.s32.totalorder %s277, %s278
      %p287 = scmp.eq.s32.totalorder %s36, 0
      %p288 = por %p286, %p287
      %p289 = scmp.ne.s32.totalorder %s277, %s278
      %p290 = scmp.eq.s32.totalorder %s37, 1
      %p291 = por %p289, %p290
      %p293 = scmp.ne.s32.totalorder %s278, %s292
      %p294 = scmp.eq.s32.totalorder %s37, 0
      %p295 = por %p293, %p294
      %s297 = sadd.s32 %s296, 1
      %p300 = scmp.eq.s32.totalorder %s31, 1
      %p301 = scmp.ne.s32.totalorder %s296, %s298
      %p302 = scmp.eq.s32.totalorder %s31, 0
      %p303 = por %p301, %p302
      %p304 = scmp.ne.s32.totalorder %s296, %s298
      %p305 = scmp.eq.s32.totalorder %s36, 1
      %p306 = por %p304, %p305
      %p307 = scmp.ne.s32.totalorder %s298, %s299
      %p308 = scmp.eq.s32.totalorder %s36, 0
      %p309 = por %p307, %p308
      %p310 = scmp.ne.s32.totalorder %s298, %s299
      %p311 = scmp.eq.s32.totalorder %s37, 1
      %p312 = por %p310, %p311
      %p314 = scmp.ne.s32.totalorder %s299, %s313
      %p315 = scmp.eq.s32.totalorder %s37, 0
      %p316 = por %p314, %p315
      %s317 = ssub.s32 %s31, %s38
      %p318 = scmp.eq.s32.totalorder %s317, 0
      %s320 = sadd.s32 %s319, 1
      %s321 = scalar_select %p318, %s319, %s320
      %p324 = pneg %p318
      %p325 = scmp.eq.s32.totalorder %s31, 1
      %p326 = por %p324, %p325
      %p327 = scmp.ne.s32.totalorder %s319, %s322
      %p328 = scmp.eq.s32.totalorder %s31, 0
      %p329 = por %p327, %p328
      %p330 = scmp.ne.s32.totalorder %s319, %s322
      %p331 = scmp.eq.s32.totalorder %s36, 1
      %p332 = por %p330, %p331
      %p333 = scmp.ne.s32.totalorder %s322, %s323
      %p334 = scmp.eq.s32.totalorder %s36, 0
      %p335 = por %p333, %p334
      %p336 = scmp.ne.s32.totalorder %s322, %s323
      %p337 = scmp.eq.s32.totalorder %s37, 1
      %p338 = por %p336, %p337
      %p340 = scmp.ne.s32.totalorder %s323, %s339
      %p341 = scmp.eq.s32.totalorder %s37, 0
      %p342 = por %p340, %p341
      %p343 = scmp.le.s32.totalorder 1, %s31
      %p344 = scmp.lt.s32.totalorder %s31, 3
      %p345 = pnand %p343, %p344
      %p346 = pneg %p345
      // Predicated region
      $region9: #{tpu_custom_call.1} parent=5 // pred_check
        _
      $region10: #{tpu_custom_call.1} parent=5 // pred_check_branch
        %348 = sbr.rel (%p345) target = $region12
      $region11: #{tpu_custom_call.1} parent=5 // pred_region
        %s349 = ssub.s32 %s31, 1
        // Predicated region
        $region13: #{tpu_custom_call.1} parent=11 // pred_check
          %p350 = pneg %p78
        $region14: #{tpu_custom_call.1} parent=11 // pred_check_branch
          %352 = sbr.rel (%p350) target = $region16
        $region15: #{tpu_custom_call.1} parent=11 // pred_region
          %s354 = ssub.s32 36864, 36864
          %355 = vsyncadd [#allocation6], %s354
          %s356 = sshll.u32 [#allocation5], 4
          %s357 = int_to_ptr.vmem [resolvable:$true] %s356
          %362 = dma.hbm_to_vmem [thread:$0]  %s1, 36864, %s357, [#allocation6], 384, 384, 24
        $region16: #{tpu_custom_call.1} parent=11 // pred_fallthru
          _
        // Predicated region
        $region17: #{tpu_custom_call.1} parent=11 // pred_check
          %p363 = pneg %p99
        $region18: #{tpu_custom_call.1} parent=11 // pred_check_branch
          %365 = sbr.rel (%p363) target = $region20
        $region19: #{tpu_custom_call.1} parent=11 // pred_region
          %s367 = ssub.s32 288, 288
          %368 = vsyncadd [#allocation6], %s367
          %s369 = sshll.u32 [#allocation7], 4
          %s370 = int_to_ptr.vmem [resolvable:$true] %s369
          %375 = dma.hbm_to_vmem [thread:$0]  %s2, 288, %s370, [#allocation6], 96, 96, 6
        $region20: #{tpu_custom_call.1} parent=11 // pred_fallthru
          _
        // Predicated region
        $region21: #{tpu_custom_call.1} parent=11 // pred_check
          %p376 = pneg %p120
        $region22: #{tpu_custom_call.1} parent=11 // pred_check_branch
          %378 = sbr.rel (%p376) target = $region24
        $region23: #{tpu_custom_call.1} parent=11 // pred_region
          %s380 = ssub.s32 12288, 12288
          %381 = vsyncadd [#allocation9], %s380
          %s382 = sshll.u32 [#allocation8], 4
          %s383 = int_to_ptr.vmem [resolvable:$true] %s382
          %388 = dma.hbm_to_vmem [thread:$0]  %s3, 12288, %s383, [#allocation9], 128, 128, 8
        $region24: #{tpu_custom_call.1} parent=11 // pred_fallthru
          _
        // Predicated region
        $region25: #{tpu_custom_call.1} parent=11 // pred_check
          %p389 = pneg %p141
        $region26: #{tpu_custom_call.1} parent=11 // pred_check_branch
          %391 = sbr.rel (%p389) target = $region28
        $region27: #{tpu_custom_call.1} parent=11 // pred_region
          %s393 = ssub.s32 96, 96
          %394 = vsyncadd [#allocation9], %s393
          %s395 = sshll.u32 [#allocation10], 4
          %s396 = int_to_ptr.vmem [resolvable:$true] %s395
          %401 = dma.hbm_to_vmem [thread:$0]  %s4, 96, %s396, [#allocation9], 32, 32, 2
        $region28: #{tpu_custom_call.1} parent=11 // pred_fallthru
          _
        // Predicated region
        $region29: #{tpu_custom_call.1} parent=11 // pred_check
          %p402 = pneg %p162
        $region30: #{tpu_custom_call.1} parent=11 // pred_check_branch
          %404 = sbr.rel (%p402) target = $region32
        $region31: #{tpu_custom_call.1} parent=11 // pred_region
          %s406 = ssub.s32 96, 96
          %407 = vsyncadd [#allocation12], %s406
          %s408 = sshll.u32 [#allocation11], 4
          %s409 = int_to_ptr.vmem [resolvable:$true] %s408
          %414 = dma.hbm_to_vmem [thread:$0]  %s5, 96, %s409, [#allocation12], 32, 32, 2
        $region32: #{tpu_custom_call.1} parent=11 // pred_fallthru
          _
        // Predicated region
        $region33: #{tpu_custom_call.1} parent=11 // pred_check
          %p415 = pneg %p183
        $region34: #{tpu_custom_call.1} parent=11 // pred_check_branch
          %417 = sbr.rel (%p415) target = $region36
        $region35: #{tpu_custom_call.1} parent=11 // pred_region
          %s419 = ssub.s32 96, 96
          %420 = vsyncadd [#allocation12], %s419
          %s421 = sshll.u32 [#allocation13], 4
          %s422 = int_to_ptr.vmem [resolvable:$true] %s421
          %427 = dma.hbm_to_vmem [thread:$0]  %s6, 96, %s422, [#allocation12], 32, 32, 2
        $region36: #{tpu_custom_call.1} parent=11 // pred_fallthru
          _
        // Predicated region
        $region37: #{tpu_custom_call.1} parent=11 // pred_check
          %p428 = pneg %p204
        $region38: #{tpu_custom_call.1} parent=11 // pred_check_branch
          %430 = sbr.rel (%p428) target = $region40
        $region39: #{tpu_custom_call.1} parent=11 // pred_region
          %s432 = ssub.s32 49152, 49152
          %433 = vsyncadd [#allocation15], %s432
          %s434 = sshll.u32 [#allocation14], 4
          %s435 = int_to_ptr.vmem [resolvable:$true] %s434
          %440 = dma.hbm_to_vmem [thread:$0]  %s7, 49152, %s435, [#allocation15], 128, 128, 8
        $region40: #{tpu_custom_call.1} parent=11 // pred_fallthru
          _
        // Predicated region
        $region41: #{tpu_custom_call.1} parent=11 // pred_check
          %p441 = pneg %p225
        $region42: #{tpu_custom_call.1} parent=11 // pred_check_branch
          %443 = sbr.rel (%p441) target = $region44
        $region43: #{tpu_custom_call.1} parent=11 // pred_region
          %s445 = ssub.s32 384, 384
          %446 = vsyncadd [#allocation15], %s445
          %s447 = sshll.u32 [#allocation16], 4
          %s448 = int_to_ptr.vmem [resolvable:$true] %s447
          %453 = dma.hbm_to_vmem [thread:$0]  %s8, 384, %s448, [#allocation15], 32, 32, 2
        $region44: #{tpu_custom_call.1} parent=11 // pred_fallthru
          _
        // Predicated region
        $region45: #{tpu_custom_call.1} parent=11 // pred_check
          %p454 = pneg %p246
        $region46: #{tpu_custom_call.1} parent=11 // pred_check_branch
          %456 = sbr.rel (%p454) target = $region48
        $region47: #{tpu_custom_call.1} parent=11 // pred_region
          %s458 = ssub.s32 49152, 49152
          %459 = vsyncadd [#allocation18], %s458
          %s460 = sshll.u32 [#allocation17], 4
          %s461 = int_to_ptr.vmem [resolvable:$true] %s460
          %466 = dma.hbm_to_vmem [thread:$0]  %s9, 49152, %s461, [#allocation18], 128, 128, 8
        $region48: #{tpu_custom_call.1} parent=11 // pred_fallthru
          _
        // Predicated region
        $region49: #{tpu_custom_call.1} parent=11 // pred_check
          %p467 = pneg %p267
        $region50: #{tpu_custom_call.1} parent=11 // pred_check_branch
          %469 = sbr.rel (%p467) target = $region52
        $region51: #{tpu_custom_call.1} parent=11 // pred_region
          %s471 = ssub.s32 96, 96
          %472 = vsyncadd [#allocation18], %s471
          %s473 = sshll.u32 [#allocation19], 4
          %s474 = int_to_ptr.vmem [resolvable:$true] %s473
          %479 = dma.hbm_to_vmem [thread:$0]  %s10, 96, %s474, [#allocation18], 32, 32, 2
        $region52: #{tpu_custom_call.1} parent=11 // pred_fallthru
          _
        // Predicated region
        $region53: #{tpu_custom_call.1} parent=11 // pred_check
          %p480 = pneg %p288
        $region54: #{tpu_custom_call.1} parent=11 // pred_check_branch
          %482 = sbr.rel (%p480) target = $region56
        $region55: #{tpu_custom_call.1} parent=11 // pred_region
          %s484 = ssub.s32 96, 96
          %485 = vsyncadd [#allocation21], %s484
          %s486 = sshll.u32 [#allocation20], 4
          %s487 = int_to_ptr.vmem [resolvable:$true] %s486
          %492 = dma.hbm_to_vmem [thread:$0]  %s11, 96, %s487, [#allocation21], 32, 32, 2
        $region56: #{tpu_custom_call.1} parent=11 // pred_fallthru
          _
        // Predicated region
        $region57: #{tpu_custom_call.1} parent=11 // pred_check
          %p493 = pneg %p309
        $region58: #{tpu_custom_call.1} parent=11 // pred_check_branch
          %495 = sbr.rel (%p493) target = $region60
        $region59: #{tpu_custom_call.1} parent=11 // pred_region
          %s497 = ssub.s32 96, 96
          %498 = vsyncadd [#allocation21], %s497
          %s499 = sshll.u32 [#allocation22], 4
          %s500 = int_to_ptr.vmem [resolvable:$true] %s499
          %505 = dma.hbm_to_vmem [thread:$0]  %s12, 96, %s500, [#allocation21], 32, 32, 2
        $region60: #{tpu_custom_call.1} parent=11 // pred_fallthru
          _
      $region12: #{tpu_custom_call.1} parent=5 // pred_fallthru
        _
      %p506 = scmp.lt.s32.totalorder %s31, 2
      // Predicated region
      $region61: #{tpu_custom_call.1} parent=5 // pred_check
        %p507 = pneg %p506
      $region62: #{tpu_custom_call.1} parent=5 // pred_check_branch
        %509 = sbr.rel (%p507) target = $region64
      $region63: #{tpu_custom_call.1} parent=5 // pred_region
        // Predicated region
        $region65: #{tpu_custom_call.1} parent=63 // pred_check
          %p510 = pneg %p51
        $region66: #{tpu_custom_call.1} parent=63 // pred_check_branch
          %512 = sbr.rel (%p510) target = $region68
        $region67: #{tpu_custom_call.1} parent=63 // pred_region
          %s513 = sand.u32 %s41, 1
          %s514 = scalar_lea.sflag [#allocation3], %s513
          %s515 = sand.u32 %s41, 1
          %s516 = smul.addr %s515, 16
          %s517 = scalar_lea.vmem [#allocation2], %s516
          %s519 = ssub.s32 256, 256
          %520 = vsyncadd %s514, %s519
          %s521 = smul.addr %s31, 2
          %s522 = smul.addr %s521, 128
          %s523 = scalar_lea.hbm %s0, %s522
          %s525 = sshll.u32 %s517, 4
          %s526 = int_to_ptr.vmem [resolvable:$true] %s525
          %528 = dma.hbm_to_vmem [thread:$0]  %s523, 256, %s526, %s514
        $region68: #{tpu_custom_call.1} parent=63 // pred_fallthru
          _
      $region64: #{tpu_custom_call.1} parent=5 // pred_fallthru
        _
      %p529 = scmp.le.s32.totalorder 1, %s31
      %p530 = scmp.lt.s32.totalorder %s31, 3
      %p531 = pnand %p529, %p530
      %p532 = pneg %p531
      // Predicated region
      $region69: #{tpu_custom_call.1} parent=5 // pred_check
        _
      $region70: #{tpu_custom_call.1} parent=5 // pred_check_branch
        %534 = sbr.rel (%p531) target = $region72
      $region71: #{tpu_custom_call.1} parent=5 // pred_region
        %s535 = ssub.s32 %s31, 1
        %s536 = sand.u32 %s44, 1
        %s537 = scalar_lea.sflag [#allocation3], %s536
        %s538 = sand.u32 %s44, 1
        %s539 = smul.addr %s538, 16
        %s540 = scalar_lea.vmem [#allocation2], %s539
        // Predicated region
        $region73: #{tpu_custom_call.1} parent=71 // pred_check
          %p541 = pneg %p57
        $region74: #{tpu_custom_call.1} parent=71 // pred_check_branch
          %543 = sbr.rel (%p541) target = $region76
        $region75: #{tpu_custom_call.1} parent=71 // pred_region
          %544 = dma.done %s537, 256
        $region76: #{tpu_custom_call.1} parent=71 // pred_fallthru
          _
        // Predicated region
        $region77: #{tpu_custom_call.1} parent=71 // pred_check
          %p545 = pneg %p78
        $region78: #{tpu_custom_call.1} parent=71 // pred_check_branch
          %547 = sbr.rel (%p545) target = $region80
        $region79: #{tpu_custom_call.1} parent=71 // pred_region
          %548 = dma.done [#allocation6], 36864
        $region80: #{tpu_custom_call.1} parent=71 // pred_fallthru
          _
        // Predicated region
        $region81: #{tpu_custom_call.1} parent=71 // pred_check
          %p549 = pneg %p99
        $region82: #{tpu_custom_call.1} parent=71 // pred_check_branch
          %551 = sbr.rel (%p549) target = $region84
        $region83: #{tpu_custom_call.1} parent=71 // pred_region
          %552 = dma.done [#allocation6], 288
        $region84: #{tpu_custom_call.1} parent=71 // pred_fallthru
          _
        // Predicated region
        $region85: #{tpu_custom_call.1} parent=71 // pred_check
          %p553 = pneg %p120
        $region86: #{tpu_custom_call.1} parent=71 // pred_check_branch
          %555 = sbr.rel (%p553) target = $region88
        $region87: #{tpu_custom_call.1} parent=71 // pred_region
          %556 = dma.done [#allocation9], 12288
        $region88: #{tpu_custom_call.1} parent=71 // pred_fallthru
          _
        // Predicated region
        $region89: #{tpu_custom_call.1} parent=71 // pred_check
          %p557 = pneg %p141
        $region90: #{tpu_custom_call.1} parent=71 // pred_check_branch
          %559 = sbr.rel (%p557) target = $region92
        $region91: #{tpu_custom_call.1} parent=71 // pred_region
          %560 = dma.done [#allocation9], 96
        $region92: #{tpu_custom_call.1} parent=71 // pred_fallthru
          _
        // Predicated region
        $region93: #{tpu_custom_call.1} parent=71 // pred_check
          %p561 = pneg %p162
        $region94: #{tpu_custom_call.1} parent=71 // pred_check_branch
          %563 = sbr.rel (%p561) target = $region96
        $region95: #{tpu_custom_call.1} parent=71 // pred_region
          %564 = dma.done [#allocation12], 96
        $region96: #{tpu_custom_call.1} parent=71 // pred_fallthru
          _
        // Predicated region
        $region97: #{tpu_custom_call.1} parent=71 // pred_check
          %p565 = pneg %p183
        $region98: #{tpu_custom_call.1} parent=71 // pred_check_branch
          %567 = sbr.rel (%p565) target = $region100
        $region99: #{tpu_custom_call.1} parent=71 // pred_region
          %568 = dma.done [#allocation12], 96
        $region100: #{tpu_custom_call.1} parent=71 // pred_fallthru
          _
        // Predicated region
        $region101: #{tpu_custom_call.1} parent=71 // pred_check
          %p569 = pneg %p204
        $region102: #{tpu_custom_call.1} parent=71 // pred_check_branch
          %571 = sbr.rel (%p569) target = $region104
        $region103: #{tpu_custom_call.1} parent=71 // pred_region
          %572 = dma.done [#allocation15], 49152
        $region104: #{tpu_custom_call.1} parent=71 // pred_fallthru
          _
        // Predicated region
        $region105: #{tpu_custom_call.1} parent=71 // pred_check
          %p573 = pneg %p225
        $region106: #{tpu_custom_call.1} parent=71 // pred_check_branch
          %575 = sbr.rel (%p573) target = $region108
        $region107: #{tpu_custom_call.1} parent=71 // pred_region
          %576 = dma.done [#allocation15], 384
        $region108: #{tpu_custom_call.1} parent=71 // pred_fallthru
          _
        // Predicated region
        $region109: #{tpu_custom_call.1} parent=71 // pred_check
          %p577 = pneg %p246
        $region110: #{tpu_custom_call.1} parent=71 // pred_check_branch
          %579 = sbr.rel (%p577) target = $region112
        $region111: #{tpu_custom_call.1} parent=71 // pred_region
          %580 = dma.done [#allocation18], 49152
        $region112: #{tpu_custom_call.1} parent=71 // pred_fallthru
          _
        // Predicated region
        $region113: #{tpu_custom_call.1} parent=71 // pred_check
          %p581 = pneg %p267
        $region114: #{tpu_custom_call.1} parent=71 // pred_check_branch
          %583 = sbr.rel (%p581) target = $region116
        $region115: #{tpu_custom_call.1} parent=71 // pred_region
          %584 = dma.done [#allocation18], 96
        $region116: #{tpu_custom_call.1} parent=71 // pred_fallthru
          _
        // Predicated region
        $region117: #{tpu_custom_call.1} parent=71 // pred_check
          %p585 = pneg %p288
        $region118: #{tpu_custom_call.1} parent=71 // pred_check_branch
          %587 = sbr.rel (%p585) target = $region120
        $region119: #{tpu_custom_call.1} parent=71 // pred_region
          %588 = dma.done [#allocation21], 96
        $region120: #{tpu_custom_call.1} parent=71 // pred_fallthru
          _
        // Predicated region
        $region121: #{tpu_custom_call.1} parent=71 // pred_check
          %p589 = pneg %p309
        $region122: #{tpu_custom_call.1} parent=71 // pred_check_branch
          %591 = sbr.rel (%p589) target = $region124
        $region123: #{tpu_custom_call.1} parent=71 // pred_region
          %592 = dma.done [#allocation21], 96
        $region124: #{tpu_custom_call.1} parent=71 // pred_fallthru
          _
        %s593 = sand.u32 %s44, 1
        %s594 = scalar_lea.sflag [#allocation3], %s593
        %s595 = sand.u32 %s44, 1
        %s596 = smul.addr %s595, 16
        %s597 = scalar_lea.vmem [#allocation2], %s596
        %p598 = pneg %p57
        %p599 = pneg %p54
        %p600 = pneg %p78
        %p601 = pneg %p75
        %p602 = pneg %p99
        %p603 = pneg %p96
        %p604 = pneg %p120
        %p605 = pneg %p117
        %p606 = pneg %p141
        %p607 = pneg %p138
        %p608 = pneg %p162
        %p609 = pneg %p159
        %p610 = pneg %p183
        %p611 = pneg %p180
        %p612 = pneg %p204
        %p613 = pneg %p201
        %p614 = pneg %p225
        %p615 = pneg %p222
        %p616 = pneg %p246
        %p617 = pneg %p243
        %p618 = pneg %p267
        %p619 = pneg %p264
        %p620 = pneg %p288
        %p621 = pneg %p285
        %p622 = pneg %p309
        %p623 = pneg %p306
        %p624 = pneg %p335
        %p625 = pneg %p332
        %s626 = sand.u32 %s322, 1
        %s627 = scalar_lea.sflag [#allocation4], %s626
        %s628 = sand.u32 %s322, 1
        %s629 = smul.addr %s628, 16
        %s630 = scalar_lea.vmem [#allocation23], %s629
        %v632 = vld [vmem:[%s540] sm:$0xff]
        %v633 = vld [vmem:[%s540 + $0x8] sm:$0xff]
        %v634 = vpack.c.bf16 %v632, %v632
        %v635 = vpack.c.bf16 %v633, %v633
        %v636 = vld [vmem:[#allocation5] sm:$0xff]
        %v637 = vld [vmem:[#allocation5 + $0x8] sm:$0xff]
        %v638 = vld [vmem:[#allocation5 + $0x10] sm:$0xff]
        %v639 = vld [vmem:[#allocation5 + $0x18] sm:$0xff]
        %v640 = vld [vmem:[#allocation5 + $0x20] sm:$0xff]
        %v641 = vld [vmem:[#allocation5 + $0x28] sm:$0xff]
        %v642 = vld [vmem:[#allocation5 + $0x30] sm:$0xff]
        %v643 = vld [vmem:[#allocation5 + $0x38] sm:$0xff]
        %v644 = vld [vmem:[#allocation5 + $0x40] sm:$0xff]
        %v645 = vld [vmem:[#allocation5 + $0x48] sm:$0xff]
        %v646 = vld [vmem:[#allocation5 + $0x50] sm:$0xff]
        %v647 = vld [vmem:[#allocation5 + $0x58] sm:$0xff]
        %v648 = vld [vmem:[#allocation5 + $0x60] sm:$0xff]
        %v649 = vld [vmem:[#allocation5 + $0x68] sm:$0xff]
        %v650 = vld [vmem:[#allocation5 + $0x70] sm:$0xff]
        %v651 = vld [vmem:[#allocation5 + $0x78] sm:$0xff]
        %v652 = vld [vmem:[#allocation5 + $0x80] sm:$0xff]
        %v653 = vld [vmem:[#allocation5 + $0x88] sm:$0xff]
        %v654 = vld [vmem:[#allocation5 + $0x90] sm:$0xff]
        %v655 = vld [vmem:[#allocation5 + $0x98] sm:$0xff]
        %v656 = vld [vmem:[#allocation5 + $0xa0] sm:$0xff]
        %v657 = vld [vmem:[#allocation5 + $0xa8] sm:$0xff]
        %v658 = vld [vmem:[#allocation5 + $0xb0] sm:$0xff]
        %v659 = vld [vmem:[#allocation5 + $0xb8] sm:$0xff]
        %v660 = vld [vmem:[#allocation5 + $0xc0] sm:$0xff]
        %v661 = vld [vmem:[#allocation5 + $0xc8] sm:$0xff]
        %v662 = vld [vmem:[#allocation5 + $0xd0] sm:$0xff]
        %v663 = vld [vmem:[#allocation5 + $0xd8] sm:$0xff]
        %v664 = vld [vmem:[#allocation5 + $0xe0] sm:$0xff]
        %v665 = vld [vmem:[#allocation5 + $0xe8] sm:$0xff]
        %v666 = vld [vmem:[#allocation5 + $0xf0] sm:$0xff]
        %v667 = vld [vmem:[#allocation5 + $0xf8] sm:$0xff]
        %v668 = vld [vmem:[#allocation5 + $0x100] sm:$0xff]
        %v669 = vld [vmem:[#allocation5 + $0x108] sm:$0xff]
        %v670 = vld [vmem:[#allocation5 + $0x110] sm:$0xff]
        %v671 = vld [vmem:[#allocation5 + $0x118] sm:$0xff]
        %v672 = vld [vmem:[#allocation5 + $0x120] sm:$0xff]
        %v673 = vld [vmem:[#allocation5 + $0x128] sm:$0xff]
        %v674 = vld [vmem:[#allocation5 + $0x130] sm:$0xff]
        %v675 = vld [vmem:[#allocation5 + $0x138] sm:$0xff]
        %v676 = vld [vmem:[#allocation5 + $0x140] sm:$0xff]
        %v677 = vld [vmem:[#allocation5 + $0x148] sm:$0xff]
        %v678 = vld [vmem:[#allocation5 + $0x150] sm:$0xff]
        %v679 = vld [vmem:[#allocation5 + $0x158] sm:$0xff]
        %v680 = vld [vmem:[#allocation5 + $0x160] sm:$0xff]
        %v681 = vld [vmem:[#allocation5 + $0x168] sm:$0xff]
        %v682 = vld [vmem:[#allocation5 + $0x170] sm:$0xff]
        %v683 = vld [vmem:[#allocation5 + $0x178] sm:$0xff]
        %v684 = vld [vmem:[#allocation5 + $0x180] sm:$0xff]
        %v685 = vld [vmem:[#allocation5 + $0x188] sm:$0xff]
        %v686 = vld [vmem:[#allocation5 + $0x190] sm:$0xff]
        %v687 = vld [vmem:[#allocation5 + $0x198] sm:$0xff]
        %v688 = vld [vmem:[#allocation5 + $0x1a0] sm:$0xff]
        %v689 = vld [vmem:[#allocation5 + $0x1a8] sm:$0xff]
        %v690 = vld [vmem:[#allocation5 + $0x1b0] sm:$0xff]
        %v691 = vld [vmem:[#allocation5 + $0x1b8] sm:$0xff]
        %v692 = vld [vmem:[#allocation5 + $0x1c0] sm:$0xff]
        %v693 = vld [vmem:[#allocation5 + $0x1c8] sm:$0xff]
        %v694 = vld [vmem:[#allocation5 + $0x1d0] sm:$0xff]
        %v695 = vld [vmem:[#allocation5 + $0x1d8] sm:$0xff]
        %v696 = vld [vmem:[#allocation5 + $0x1e0] sm:$0xff]
        %v697 = vld [vmem:[#allocation5 + $0x1e8] sm:$0xff]
        %v698 = vld [vmem:[#allocation5 + $0x1f0] sm:$0xff]
        %v699 = vld [vmem:[#allocation5 + $0x1f8] sm:$0xff]
        %v700 = vld [vmem:[#allocation5 + $0x200] sm:$0xff]
        %v701 = vld [vmem:[#allocation5 + $0x208] sm:$0xff]
        %v702 = vld [vmem:[#allocation5 + $0x210] sm:$0xff]
        %v703 = vld [vmem:[#allocation5 + $0x218] sm:$0xff]
        %v704 = vld [vmem:[#allocation5 + $0x220] sm:$0xff]
        %v705 = vld [vmem:[#allocation5 + $0x228] sm:$0xff]
        %v706 = vld [vmem:[#allocation5 + $0x230] sm:$0xff]
        %v707 = vld [vmem:[#allocation5 + $0x238] sm:$0xff]
        %v708 = vld [vmem:[#allocation5 + $0x240] sm:$0xff]
        %v709 = vld [vmem:[#allocation5 + $0x248] sm:$0xff]
        %v710 = vld [vmem:[#allocation5 + $0x250] sm:$0xff]
        %v711 = vld [vmem:[#allocation5 + $0x258] sm:$0xff]
        %v712 = vld [vmem:[#allocation5 + $0x260] sm:$0xff]
        %v713 = vld [vmem:[#allocation5 + $0x268] sm:$0xff]
        %v714 = vld [vmem:[#allocation5 + $0x270] sm:$0xff]
        %v715 = vld [vmem:[#allocation5 + $0x278] sm:$0xff]
        %v716 = vld [vmem:[#allocation5 + $0x280] sm:$0xff]
        %v717 = vld [vmem:[#allocation5 + $0x288] sm:$0xff]
        %v718 = vld [vmem:[#allocation5 + $0x290] sm:$0xff]
        %v719 = vld [vmem:[#allocation5 + $0x298] sm:$0xff]
        %v720 = vld [vmem:[#allocation5 + $0x2a0] sm:$0xff]
        %v721 = vld [vmem:[#allocation5 + $0x2a8] sm:$0xff]
        %v722 = vld [vmem:[#allocation5 + $0x2b0] sm:$0xff]
        %v723 = vld [vmem:[#allocation5 + $0x2b8] sm:$0xff]
        %v724 = vld [vmem:[#allocation5 + $0x2c0] sm:$0xff]
        %v725 = vld [vmem:[#allocation5 + $0x2c8] sm:$0xff]
        %v726 = vld [vmem:[#allocation5 + $0x2d0] sm:$0xff]
        %v727 = vld [vmem:[#allocation5 + $0x2d8] sm:$0xff]
        %v728 = vld [vmem:[#allocation5 + $0x2e0] sm:$0xff]
        %v729 = vld [vmem:[#allocation5 + $0x2e8] sm:$0xff]
        %v730 = vld [vmem:[#allocation5 + $0x2f0] sm:$0xff]
        %v731 = vld [vmem:[#allocation5 + $0x2f8] sm:$0xff]
        %v732 = vld [vmem:[#allocation7] sm:$0x3f]
        %v734 = vlaneseq
        %v735 = vshrl.u32 %v734, 7
        %v736 = vsub.s32 0, %v735
        %v737 = vrot.slane %v732, %v736
        %v738 = vlaneseq
        %v739 = vshrl.u32 %v738, 7
        %v740 = vsub.s32 1, %v739
        %v741 = vrot.slane %v732, %v740
        %v742 = vlaneseq
        %v743 = vshrl.u32 %v742, 7
        %v744 = vsub.s32 2, %v743
        %v745 = vrot.slane %v732, %v744
        %v746 = vlaneseq
        %v747 = vshrl.u32 %v746, 7
        %v748 = vsub.s32 3, %v747
        %v749 = vrot.slane %v732, %v748
        %v750 = vlaneseq
        %v751 = vshrl.u32 %v750, 7
        %v752 = vsub.s32 4, %v751
        %v753 = vrot.slane %v732, %v752
        %v754 = vlaneseq
        %v755 = vshrl.u32 %v754, 7
        %v756 = vsub.s32 5, %v755
        %v757 = vrot.slane %v732, %v756
        %v860 = vunpack.c.l.b16 %v636
        %v861 = vunpack.c.h.b16 %v636
        %v862 = vunpack.c.l.b16 %v637
        %v863 = vunpack.c.h.b16 %v637
        %v864 = vunpack.c.l.b16 %v638
        %v865 = vunpack.c.h.b16 %v638
        %v866 = vunpack.c.l.b16 %v639
        %v867 = vunpack.c.h.b16 %v639
        %v868 = vunpack.c.l.b16 %v640
        %v869 = vunpack.c.h.b16 %v640
        %v870 = vunpack.c.l.b16 %v641
        %v871 = vunpack.c.h.b16 %v641
        %v872 = vunpack.c.l.b16 %v642
        %v873 = vunpack.c.h.b16 %v642
        %v874 = vunpack.c.l.b16 %v643
        %v875 = vunpack.c.h.b16 %v643
        %v876 = vunpack.c.l.b16 %v644
        %v877 = vunpack.c.h.b16 %v644
        %v878 = vunpack.c.l.b16 %v645
        %v879 = vunpack.c.h.b16 %v645
        %v880 = vunpack.c.l.b16 %v646
        %v881 = vunpack.c.h.b16 %v646
        %v882 = vunpack.c.l.b16 %v647
        %v883 = vunpack.c.h.b16 %v647
        %v884 = vunpack.c.l.b16 %v648
        %v885 = vunpack.c.h.b16 %v648
        %v886 = vunpack.c.l.b16 %v649
        %v887 = vunpack.c.h.b16 %v649
        %v888 = vunpack.c.l.b16 %v650
        %v889 = vunpack.c.h.b16 %v650
        %v890 = vunpack.c.l.b16 %v651
        %v891 = vunpack.c.h.b16 %v651
        %v892 = vunpack.c.l.b16 %v652
        %v893 = vunpack.c.h.b16 %v652
        %v894 = vunpack.c.l.b16 %v653
        %v895 = vunpack.c.h.b16 %v653
        %v896 = vunpack.c.l.b16 %v654
        %v897 = vunpack.c.h.b16 %v654
        %v898 = vunpack.c.l.b16 %v655
        %v899 = vunpack.c.h.b16 %v655
        %v900 = vunpack.c.l.b16 %v656
        %v901 = vunpack.c.h.b16 %v656
        %v902 = vunpack.c.l.b16 %v657
        %v903 = vunpack.c.h.b16 %v657
        %v904 = vunpack.c.l.b16 %v658
        %v905 = vunpack.c.h.b16 %v658
        %v906 = vunpack.c.l.b16 %v659
        %v907 = vunpack.c.h.b16 %v659
        %v908 = vunpack.c.l.b16 %v660
        %v909 = vunpack.c.h.b16 %v660
        %v910 = vunpack.c.l.b16 %v661
        %v911 = vunpack.c.h.b16 %v661
        %v912 = vunpack.c.l.b16 %v662
        %v913 = vunpack.c.h.b16 %v662
        %v914 = vunpack.c.l.b16 %v663
        %v915 = vunpack.c.h.b16 %v663
        %v916 = vunpack.c.l.b16 %v664
        %v917 = vunpack.c.h.b16 %v664
        %v918 = vunpack.c.l.b16 %v665
        %v919 = vunpack.c.h.b16 %v665
        %v920 = vunpack.c.l.b16 %v666
        %v921 = vunpack.c.h.b16 %v666
        %v922 = vunpack.c.l.b16 %v667
        %v923 = vunpack.c.h.b16 %v667
        %v924 = vunpack.c.l.b16 %v668
        %v925 = vunpack.c.h.b16 %v668
        %v926 = vunpack.c.l.b16 %v669
        %v927 = vunpack.c.h.b16 %v669
        %v928 = vunpack.c.l.b16 %v670
        %v929 = vunpack.c.h.b16 %v670
        %v930 = vunpack.c.l.b16 %v671
        %v931 = vunpack.c.h.b16 %v671
        %v932 = vunpack.c.l.b16 %v672
        %v933 = vunpack.c.h.b16 %v672
        %v934 = vunpack.c.l.b16 %v673
        %v935 = vunpack.c.h.b16 %v673
        %v936 = vunpack.c.l.b16 %v674
        %v937 = vunpack.c.h.b16 %v674
        %v938 = vunpack.c.l.b16 %v675
        %v939 = vunpack.c.h.b16 %v675
        %v940 = vunpack.c.l.b16 %v676
        %v941 = vunpack.c.h.b16 %v676
        %v942 = vunpack.c.l.b16 %v677
        %v943 = vunpack.c.h.b16 %v677
        %v944 = vunpack.c.l.b16 %v678
        %v945 = vunpack.c.h.b16 %v678
        %v946 = vunpack.c.l.b16 %v679
        %v947 = vunpack.c.h.b16 %v679
        %v948 = vunpack.c.l.b16 %v680
        %v949 = vunpack.c.h.b16 %v680
        %v950 = vunpack.c.l.b16 %v681
        %v951 = vunpack.c.h.b16 %v681
        %v952 = vunpack.c.l.b16 %v682
        %v953 = vunpack.c.h.b16 %v682
        %v954 = vunpack.c.l.b16 %v683
        %v955 = vunpack.c.h.b16 %v683
        %v956 = vunpack.c.l.b16 %v684
        %v957 = vunpack.c.h.b16 %v684
        %v958 = vunpack.c.l.b16 %v685
        %v959 = vunpack.c.h.b16 %v685
        %v960 = vunpack.c.l.b16 %v686
        %v961 = vunpack.c.h.b16 %v686
        %v962 = vunpack.c.l.b16 %v687
        %v963 = vunpack.c.h.b16 %v687
        %v964 = vunpack.c.l.b16 %v688
        %v965 = vunpack.c.h.b16 %v688
        %v966 = vunpack.c.l.b16 %v689
        %v967 = vunpack.c.h.b16 %v689
        %v968 = vunpack.c.l.b16 %v690
        %v969 = vunpack.c.h.b16 %v690
        %v970 = vunpack.c.l.b16 %v691
        %v971 = vunpack.c.h.b16 %v691
        %v972 = vunpack.c.l.b16 %v692
        %v973 = vunpack.c.h.b16 %v692
        %v974 = vunpack.c.l.b16 %v693
        %v975 = vunpack.c.h.b16 %v693
        %v976 = vunpack.c.l.b16 %v694
        %v977 = vunpack.c.h.b16 %v694
        %v978 = vunpack.c.l.b16 %v695
        %v979 = vunpack.c.h.b16 %v695
        %v980 = vunpack.c.l.b16 %v696
        %v981 = vunpack.c.h.b16 %v696
        %v982 = vunpack.c.l.b16 %v697
        %v983 = vunpack.c.h.b16 %v697
        %v984 = vunpack.c.l.b16 %v698
        %v985 = vunpack.c.h.b16 %v698
        %v986 = vunpack.c.l.b16 %v699
        %v987 = vunpack.c.h.b16 %v699
        %v988 = vunpack.c.l.b16 %v700
        %v989 = vunpack.c.h.b16 %v700
        %v990 = vunpack.c.l.b16 %v701
        %v991 = vunpack.c.h.b16 %v701
        %v992 = vunpack.c.l.b16 %v702
        %v993 = vunpack.c.h.b16 %v702
        %v994 = vunpack.c.l.b16 %v703
        %v995 = vunpack.c.h.b16 %v703
        %v996 = vunpack.c.l.b16 %v704
        %v997 = vunpack.c.h.b16 %v704
        %v998 = vunpack.c.l.b16 %v705
        %v999 = vunpack.c.h.b16 %v705
        %v1000 = vunpack.c.l.b16 %v706
        %v1001 = vunpack.c.h.b16 %v706
        %v1002 = vunpack.c.l.b16 %v707
        %v1003 = vunpack.c.h.b16 %v707
        %v1004 = vunpack.c.l.b16 %v708
        %v1005 = vunpack.c.h.b16 %v708
        %v1006 = vunpack.c.l.b16 %v709
        %v1007 = vunpack.c.h.b16 %v709
        %v1008 = vunpack.c.l.b16 %v710
        %v1009 = vunpack.c.h.b16 %v710
        %v1010 = vunpack.c.l.b16 %v711
        %v1011 = vunpack.c.h.b16 %v711
        %v1012 = vunpack.c.l.b16 %v712
        %v1013 = vunpack.c.h.b16 %v712
        %v1014 = vunpack.c.l.b16 %v713
        %v1015 = vunpack.c.h.b16 %v713
        %v1016 = vunpack.c.l.b16 %v714
        %v1017 = vunpack.c.h.b16 %v714
        %v1018 = vunpack.c.l.b16 %v715
        %v1019 = vunpack.c.h.b16 %v715
        %v1020 = vunpack.c.l.b16 %v716
        %v1021 = vunpack.c.h.b16 %v716
        %v1022 = vunpack.c.l.b16 %v717
        %v1023 = vunpack.c.h.b16 %v717
        %v1024 = vunpack.c.l.b16 %v718
        %v1025 = vunpack.c.h.b16 %v718
        %v1026 = vunpack.c.l.b16 %v719
        %v1027 = vunpack.c.h.b16 %v719
        %v1028 = vunpack.c.l.b16 %v720
        %v1029 = vunpack.c.h.b16 %v720
        %v1030 = vunpack.c.l.b16 %v721
        %v1031 = vunpack.c.h.b16 %v721
        %v1032 = vunpack.c.l.b16 %v722
        %v1033 = vunpack.c.h.b16 %v722
        %v1034 = vunpack.c.l.b16 %v723
        %v1035 = vunpack.c.h.b16 %v723
        %v1036 = vunpack.c.l.b16 %v724
        %v1037 = vunpack.c.h.b16 %v724
        %v1038 = vunpack.c.l.b16 %v725
        %v1039 = vunpack.c.h.b16 %v725
        %v1040 = vunpack.c.l.b16 %v726
        %v1041 = vunpack.c.h.b16 %v726
        %v1042 = vunpack.c.l.b16 %v727
        %v1043 = vunpack.c.h.b16 %v727
        %v1044 = vunpack.c.l.b16 %v728
        %v1045 = vunpack.c.h.b16 %v728
        %v1046 = vunpack.c.l.b16 %v729
        %v1047 = vunpack.c.h.b16 %v729
        %v1048 = vunpack.c.l.b16 %v730
        %v1049 = vunpack.c.h.b16 %v730
        %v1050 = vunpack.c.l.b16 %v731
        %v1051 = vunpack.c.h.b16 %v731
        %v1052 = vpack.c.b16 %v866, %v860
        %v1053 = vpack.c.b16 %v867, %v861
        %v1054 = vpack.c.b16 %v868, %v862
        %v1055 = vpack.c.b16 %v869, %v863
        %v1056 = vpack.c.b16 %v870, %v864
        %v1057 = vpack.c.b16 %v871, %v865
        %v1058 = vpack.c.b16 %v878, %v872
        %v1059 = vpack.c.b16 %v879, %v873
        %v1060 = vpack.c.b16 %v880, %v874
        %v1061 = vpack.c.b16 %v881, %v875
        %v1062 = vpack.c.b16 %v882, %v876
        %v1063 = vpack.c.b16 %v883, %v877
        %v1064 = vpack.c.b16 %v890, %v884
        %v1065 = vpack.c.b16 %v891, %v885
        %v1066 = vpack.c.b16 %v892, %v886
        %v1067 = vpack.c.b16 %v893, %v887
        %v1068 = vpack.c.b16 %v894, %v888
        %v1069 = vpack.c.b16 %v895, %v889
        %v1070 = vpack.c.b16 %v902, %v896
        %v1071 = vpack.c.b16 %v903, %v897
        %v1072 = vpack.c.b16 %v904, %v898
        %v1073 = vpack.c.b16 %v905, %v899
        %v1074 = vpack.c.b16 %v906, %v900
        %v1075 = vpack.c.b16 %v907, %v901
        %v1076 = vpack.c.b16 %v914, %v908
        %v1077 = vpack.c.b16 %v915, %v909
        %v1078 = vpack.c.b16 %v916, %v910
        %v1079 = vpack.c.b16 %v917, %v911
        %v1080 = vpack.c.b16 %v918, %v912
        %v1081 = vpack.c.b16 %v919, %v913
        %v1082 = vpack.c.b16 %v926, %v920
        %v1083 = vpack.c.b16 %v927, %v921
        %v1084 = vpack.c.b16 %v928, %v922
        %v1085 = vpack.c.b16 %v929, %v923
        %v1086 = vpack.c.b16 %v930, %v924
        %v1087 = vpack.c.b16 %v931, %v925
        %v1088 = vpack.c.b16 %v938, %v932
        %v1089 = vpack.c.b16 %v939, %v933
        %v1090 = vpack.c.b16 %v940, %v934
        %v1091 = vpack.c.b16 %v941, %v935
        %v1092 = vpack.c.b16 %v942, %v936
        %v1093 = vpack.c.b16 %v943, %v937
        %v1094 = vpack.c.b16 %v950, %v944
        %v1095 = vpack.c.b16 %v951, %v945
        %v1096 = vpack.c.b16 %v952, %v946
        %v1097 = vpack.c.b16 %v953, %v947
        %v1098 = vpack.c.b16 %v954, %v948
        %v1099 = vpack.c.b16 %v955, %v949
        %v1100 = vpack.c.b16 %v962, %v956
        %v1101 = vpack.c.b16 %v963, %v957
        %v1102 = vpack.c.b16 %v964, %v958
        %v1103 = vpack.c.b16 %v965, %v959
        %v1104 = vpack.c.b16 %v966, %v960
        %v1105 = vpack.c.b16 %v967, %v961
        %v1106 = vpack.c.b16 %v974, %v968
        %v1107 = vpack.c.b16 %v975, %v969
        %v1108 = vpack.c.b16 %v976, %v970
        %v1109 = vpack.c.b16 %v977, %v971
        %v1110 = vpack.c.b16 %v978, %v972
        %v1111 = vpack.c.b16 %v979, %v973
        %v1112 = vpack.c.b16 %v986, %v980
        %v1113 = vpack.c.b16 %v987, %v981
        %v1114 = vpack.c.b16 %v988, %v982
        %v1115 = vpack.c.b16 %v989, %v983
        %v1116 = vpack.c.b16 %v990, %v984
        %v1117 = vpack.c.b16 %v991, %v985
        %v1118 = vpack.c.b16 %v998, %v992
        %v1119 = vpack.c.b16 %v999, %v993
        %v1120 = vpack.c.b16 %v1000, %v994
        %v1121 = vpack.c.b16 %v1001, %v995
        %v1122 = vpack.c.b16 %v1002, %v996
        %v1123 = vpack.c.b16 %v1003, %v997
        %v1124 = vpack.c.b16 %v1010, %v1004
        %v1125 = vpack.c.b16 %v1011, %v1005
        %v1126 = vpack.c.b16 %v1012, %v1006
        %v1127 = vpack.c.b16 %v1013, %v1007
        %v1128 = vpack.c.b16 %v1014, %v1008
        %v1129 = vpack.c.b16 %v1015, %v1009
        %v1130 = vpack.c.b16 %v1022, %v1016
        %v1131 = vpack.c.b16 %v1023, %v1017
        %v1132 = vpack.c.b16 %v1024, %v1018
        %v1133 = vpack.c.b16 %v1025, %v1019
        %v1134 = vpack.c.b16 %v1026, %v1020
        %v1135 = vpack.c.b16 %v1027, %v1021
        %v1136 = vpack.c.b16 %v1034, %v1028
        %v1137 = vpack.c.b16 %v1035, %v1029
        %v1138 = vpack.c.b16 %v1036, %v1030
        %v1139 = vpack.c.b16 %v1037, %v1031
        %v1140 = vpack.c.b16 %v1038, %v1032
        %v1141 = vpack.c.b16 %v1039, %v1033
        %v1142 = vpack.c.b16 %v1046, %v1040
        %v1143 = vpack.c.b16 %v1047, %v1041
        %v1144 = vpack.c.b16 %v1048, %v1042
        %v1145 = vpack.c.b16 %v1049, %v1043
        %v1146 = vpack.c.b16 %v1050, %v1044
        %v1147 = vpack.c.b16 %v1051, %v1045
        %1244 = vmatprep.subr.bf16.mxu0 %v1053
        %1245 = vmatpush1.bf16.msra.mxu0 %v1052
        %1246 = vmatprep.subr.bf16.mxu0 %v1059
        %1247 = vmatpush1.bf16.msra.mxu0 %v1058
        %1248 = vmatprep.subr.bf16.mxu0 %v1065
        %1249 = vmatpush1.bf16.msra.mxu0 %v1064
        %1250 = vmatprep.subr.bf16.mxu0 %v1071
        %1251 = vmatpush1.bf16.msra.mxu0 %v1070
        %1252 = vmatprep.subr.bf16.mxu0 %v1077
        %1253 = vmatpush1.bf16.msra.mxu0 %v1076
        %1254 = vmatprep.subr.bf16.mxu0 %v1083
        %1255 = vmatpush1.bf16.msra.mxu0 %v1082
        %1256 = vmatprep.subr.bf16.mxu0 %v1089
        %1257 = vmatpush1.bf16.msra.mxu0 %v1088
        %1258 = vmatprep.subr.bf16.mxu0 %v1095
        %1259 = vmatpush1.bf16.msra.mxu0 %v1094
        %1260 = vmatprep.subr.bf16.mxu0 %v1101
        %1261 = vmatpush1.bf16.msra.mxu0 %v1100
        %1262 = vmatprep.subr.bf16.mxu0 %v1107
        %1263 = vmatpush1.bf16.msra.mxu0 %v1106
        %1264 = vmatprep.subr.bf16.mxu0 %v1113
        %1265 = vmatpush1.bf16.msra.mxu0 %v1112
        %1266 = vmatprep.subr.bf16.mxu0 %v1119
        %1267 = vmatpush1.bf16.msra.mxu0 %v1118
        %1268 = vmatprep.subr.bf16.mxu0 %v1125
        %1269 = vmatpush1.bf16.msra.mxu0 %v1124
        %1270 = vmatprep.subr.bf16.mxu0 %v1131
        %1271 = vmatpush1.bf16.msra.mxu0 %v1130
        %1272 = vmatprep.subr.bf16.mxu0 %v1137
        %1273 = vmatpush1.bf16.msra.mxu0 %v1136
        %1274 = vmatprep.subr.bf16.mxu0 %v1143
        %1275 = vmatpush1.bf16.msra.mxu0 %v1142
        %1276 = vmatprep.mubr.bf16.mxu0 %v635
        %1277 = vmatmul.mubr.bf16.gmra.mrb[0].mxu0 %v634
        %v1278 = vpop.f32.mrb[0].mxu0
        %v1279 = vadd.f32 %v737, %v1278
        %v1280 = vpop.f32.mrb[0].mxu0
        %v1281 = vadd.f32 %v741, %v1280
        %v1282 = vpop.f32.mrb[0].mxu0
        %v1283 = vpop.f32.mrb[0].mxu0
        %1284 = vdwg.mxu0
        %1285 = vmatprep.subr.bf16.mxu0 %v1055
        %1286 = vmatpush1.bf16.msra.mxu0 %v1054
        %1287 = vmatprep.subr.bf16.mxu0 %v1061
        %1288 = vmatpush1.bf16.msra.mxu0 %v1060
        %1289 = vmatprep.subr.bf16.mxu0 %v1067
        %1290 = vmatpush1.bf16.msra.mxu0 %v1066
        %1291 = vmatprep.subr.bf16.mxu0 %v1073
        %1292 = vmatpush1.bf16.msra.mxu0 %v1072
        %1293 = vmatprep.subr.bf16.mxu0 %v1079
        %1294 = vmatpush1.bf16.msra.mxu0 %v1078
        %1295 = vmatprep.subr.bf16.mxu0 %v1085
        %1296 = vmatpush1.bf16.msra.mxu0 %v1084
        %1297 = vmatprep.subr.bf16.mxu0 %v1091
        %1298 = vmatpush1.bf16.msra.mxu0 %v1090
        %1299 = vmatprep.subr.bf16.mxu0 %v1097
        %1300 = vmatpush1.bf16.msra.mxu0 %v1096
        %1301 = vmatprep.subr.bf16.mxu0 %v1103
        %1302 = vmatpush1.bf16.msra.mxu0 %v1102
        %1303 = vmatprep.subr.bf16.mxu0 %v1109
        %1304 = vmatpush1.bf16.msra.mxu0 %v1108
        %1305 = vmatprep.subr.bf16.mxu0 %v1115
        %1306 = vmatpush1.bf16.msra.mxu0 %v1114
        %1307 = vmatprep.subr.bf16.mxu0 %v1121
        %1308 = vmatpush1.bf16.msra.mxu0 %v1120
        %1309 = vmatprep.subr.bf16.mxu0 %v1127
        %1310 = vmatpush1.bf16.msra.mxu0 %v1126
        %1311 = vmatprep.subr.bf16.mxu0 %v1133
        %1312 = vmatpush1.bf16.msra.mxu0 %v1132
        %1313 = vmatprep.subr.bf16.mxu0 %v1139
        %1314 = vmatpush1.bf16.msra.mxu0 %v1138
        %1315 = vmatprep.subr.bf16.mxu0 %v1145
        %1316 = vmatpush1.bf16.msra.mxu0 %v1144
        %1317 = vmatprep.mubr.bf16.mxu0 %v635
        %1318 = vmatmul.mubr.bf16.gmra.mrb[0].mxu0 %v634
        %v1319 = vpop.f32.mrb[0].mxu0
        %v1320 = vadd.f32 %v745, %v1319
        %v1321 = vpop.f32.mrb[0].mxu0
        %v1322 = vadd.f32 %v749, %v1321
        %v1323 = vpop.f32.mrb[0].mxu0
        %v1324 = vpop.f32.mrb[0].mxu0
        %1325 = vdwg.mxu0
        %1326 = vmatprep.subr.bf16.mxu0 %v1057
        %1327 = vmatpush1.bf16.msra.mxu0 %v1056
        %1328 = vmatprep.subr.bf16.mxu0 %v1063
        %1329 = vmatpush1.bf16.msra.mxu0 %v1062
        %1330 = vmatprep.subr.bf16.mxu0 %v1069
        %1331 = vmatpush1.bf16.msra.mxu0 %v1068
        %1332 = vmatprep.subr.bf16.mxu0 %v1075
        %1333 = vmatpush1.bf16.msra.mxu0 %v1074
        %1334 = vmatprep.subr.bf16.mxu0 %v1081
        %1335 = vmatpush1.bf16.msra.mxu0 %v1080
        %1336 = vmatprep.subr.bf16.mxu0 %v1087
        %1337 = vmatpush1.bf16.msra.mxu0 %v1086
        %1338 = vmatprep.subr.bf16.mxu0 %v1093
        %1339 = vmatpush1.bf16.msra.mxu0 %v1092
        %1340 = vmatprep.subr.bf16.mxu0 %v1099
        %1341 = vmatpush1.bf16.msra.mxu0 %v1098
        %1342 = vmatprep.subr.bf16.mxu0 %v1105
        %1343 = vmatpush1.bf16.msra.mxu0 %v1104
        %1344 = vmatprep.subr.bf16.mxu0 %v1111
        %1345 = vmatpush1.bf16.msra.mxu0 %v1110
        %1346 = vmatprep.subr.bf16.mxu0 %v1117
        %1347 = vmatpush1.bf16.msra.mxu0 %v1116
        %1348 = vmatprep.subr.bf16.mxu0 %v1123
        %1349 = vmatpush1.bf16.msra.mxu0 %v1122
        %1350 = vmatprep.subr.bf16.mxu0 %v1129
        %1351 = vmatpush1.bf16.msra.mxu0 %v1128
        %1352 = vmatprep.subr.bf16.mxu0 %v1135
        %1353 = vmatpush1.bf16.msra.mxu0 %v1134
        %1354 = vmatprep.subr.bf16.mxu0 %v1141
        %1355 = vmatpush1.bf16.msra.mxu0 %v1140
        %1356 = vmatprep.subr.bf16.mxu0 %v1147
        %1357 = vmatpush1.bf16.msra.mxu0 %v1146
        %1358 = vmatprep.mubr.bf16.mxu0 %v635
        %1359 = vmatmul.mubr.bf16.gmra.mrb[0].mxu0 %v634
        %v1360 = vpop.f32.mrb[0].mxu0
        %v1361 = vadd.f32 %v753, %v1360
        %v1362 = vpop.f32.mrb[0].mxu0
        %v1363 = vadd.f32 %v757, %v1362
        %v1364 = vpop.f32.mrb[0].mxu0
        %v1365 = vpop.f32.mrb[0].mxu0
        %1366 = vdwg.mxu0
        %v1367 = vpack.c.bf16 %v1279, %v1279
        %v1368 = vpack.c.bf16 %v1320, %v1320
        %v1369 = vpack.c.bf16 %v1361, %v1361
        %vm1370 = vcmask 523264
        %v1372 = vsel %vm1370, %v1367, 0
        %v1375 = vsel %vm1370, %v1368, 0
        %1377 = vmatprep.subr.bf16.mxu0 0
        %1378 = vmatpush1.bf16.xpose.msra.mxu0 %v1375
        %1379 = vmatprep.subr.bf16.mxu0 0
        %1380 = vmatpush1.bf16.xpose.msra.mxu0 0
        %1381 = vmatprep.subr.bf16.mxu0 0
        %1382 = vmatpush1.bf16.xpose.msra.mxu0 0
        %1383 = vmatprep.subr.bf16.mxu0 0
        %1384 = vmatpush1.bf16.xpose.msra.mxu0 0
        %1385 = vmatprep.subr.bf16.mxu0 0
        %1386 = vmatpush1.bf16.xpose.msra.mxu0 0
        %1387 = vmatprep.subr.bf16.mxu0 0
        %1388 = vmatpush1.bf16.xpose.msra.mxu0 0
        %1389 = vmatprep.subr.bf16.mxu0 0
        %1390 = vmatpush1.bf16.xpose.msra.mxu0 0
        %1391 = vmatprep.subr.bf16.mxu0 0
        %1392 = vmatpush1.bf16.xpose.msra.mxu0 0
        %1393 = vmatprep.subr.bf16.mxu0 0
        %1394 = vmatpush1.bf16.xpose.msra.mxu0 0
        %1395 = vmatprep.subr.bf16.mxu0 0
        %1396 = vmatpush1.bf16.xpose.msra.mxu0 0
        %1397 = vmatprep.subr.bf16.mxu0 0
        %1398 = vmatpush1.bf16.xpose.msra.mxu0 0
        %1399 = vmatprep.subr.bf16.mxu0 0
        %1400 = vmatpush1.bf16.xpose.msra.mxu0 0
        %1401 = vmatprep.subr.bf16.mxu0 0
        %1402 = vmatpush1.bf16.xpose.msra.mxu0 0
        %1403 = vmatprep.subr.bf16.mxu0 0
        %1404 = vmatpush1.bf16.xpose.msra.mxu0 0
        %1405 = vmatprep.subr.bf16.mxu0 0
        %1406 = vmatpush1.bf16.xpose.msra.mxu0 0
        %1407 = vmatprep.subr.bf16.mxu0 0
        %1408 = vmatpush1.bf16.xpose.msra.mxu0 0
        %1409 = vmatprep.mubr.bf16.mxu0 0
        %1410 = vmatmul.mubr.bf16.gmra.mrb[0].mxu0 %v1372
        %v1411 = vpop.f32.mrb[0].mxu0
        %v1412 = vadd.f32 0.0, %v1411
        %v1413 = vpop.f32.mrb[0].mxu0
        %v1414 = vpop.f32.mrb[0].mxu0
        %v1415 = vpop.f32.mrb[0].mxu0
        %1416 = vdwg.mxu0
        %vm1417 = vcmask 64512
        %v1418 = vsel %vm1417, %v1412, -inf
        %1419 = vmax.xlane.f32.xlu0 %v1418
        %v1420 = vpop.xlane.xlu0 %1419
        %v1421 = vsub.f32 %v1412, %v1420
        %v1422 = vmul.f32 %v1421, 1.442695
        %v1423 = vpow.pop %v1422
        %v1424 = vsel %vm1417, %v1423, 0.0
        %1425 = vadd.xlane.f32.xlu0 %v1424
        %v1426 = vpop.xlane.xlu0 %1425
        %v1427 = vrcp.pop %v1426
        %v1428 = vmul.f32 %v1423, %v1427
        %v1429 = vpack.c.bf16 %v1428, %v1428
        %v1431 = vsel %vm1417, %v1429, 0
        %vm1433 = vcmask 1043456
        %v1435 = vsel %vm1433, %v1369, 0
        %1437 = vmatprep.subr.bf16.mxu0 0
        %1438 = vmatpush1.bf16.msra.mxu0 %v1435
        %1439 = vmatprep.subr.bf16.mxu0 0
        %1440 = vmatpush1.bf16.msra.mxu0 0
        %1441 = vmatprep.subr.bf16.mxu0 0
        %1442 = vmatpush1.bf16.msra.mxu0 0
        %1443 = vmatprep.subr.bf16.mxu0 0
        %1444 = vmatpush1.bf16.msra.mxu0 0
        %1445 = vmatprep.subr.bf16.mxu0 0
        %1446 = vmatpush1.bf16.msra.mxu0 0
        %1447 = vmatprep.subr.bf16.mxu0 0
        %1448 = vmatpush1.bf16.msra.mxu0 0
        %1449 = vmatprep.subr.bf16.mxu0 0
        %1450 = vmatpush1.bf16.msra.mxu0 0
        %1451 = vmatprep.subr.bf16.mxu0 0
        %1452 = vmatpush1.bf16.msra.mxu0 0
        %1453 = vmatprep.subr.bf16.mxu0 0
        %1454 = vmatpush1.bf16.msra.mxu0 0
        %1455 = vmatprep.subr.bf16.mxu0 0
        %1456 = vmatpush1.bf16.msra.mxu0 0
        %1457 = vmatprep.subr.bf16.mxu0 0
        %1458 = vmatpush1.bf16.msra.mxu0 0
        %1459 = vmatprep.subr.bf16.mxu0 0
        %1460 = vmatpush1.bf16.msra.mxu0 0
        %1461 = vmatprep.subr.bf16.mxu0 0
        %1462 = vmatpush1.bf16.msra.mxu0 0
        %1463 = vmatprep.subr.bf16.mxu0 0
        %1464 = vmatpush1.bf16.msra.mxu0 0
        %1465 = vmatprep.subr.bf16.mxu0 0
        %1466 = vmatpush1.bf16.msra.mxu0 0
        %1467 = vmatprep.subr.bf16.mxu0 0
        %1468 = vmatpush1.bf16.msra.mxu0 0
        %1469 = vmatprep.mubr.bf16.mxu0 0
        %1470 = vmatmul.mubr.bf16.gmra.mrb[0].mxu0 %v1431
        %v1471 = vpop.f32.mrb[0].mxu0
        %v1472 = vadd.f32 0.0, %v1471
        %v1473 = vpop.f32.mrb[0].mxu0
        %v1474 = vpop.f32.mrb[0].mxu0
        %v1475 = vpop.f32.mrb[0].mxu0
        %1476 = vdwg.mxu0
        %v1477 = vpack.c.bf16 %v1472, %v1472
        %1479 = vrot.lane.b32.xlu0 %v1367, 64
        %v1480 = vpop.permute.xlu0 %1479
        %1482 = vrot.lane.b32.xlu0 %v1368, 64
        %v1483 = vpop.permute.xlu0 %1482
        %v1485 = vsel %vm1370, %v1480, 0
        %v1488 = vsel %vm1370, %v1483, 0
        %1490 = vmatprep.subr.bf16.mxu0 0
        %1491 = vmatpush1.bf16.xpose.msra.mxu0 %v1488
        %1492 = vmatprep.subr.bf16.mxu0 0
        %1493 = vmatpush1.bf16.xpose.msra.mxu0 0
        %1494 = vmatprep.subr.bf16.mxu0 0
        %1495 = vmatpush1.bf16.xpose.msra.mxu0 0
        %1496 = vmatprep.subr.bf16.mxu0 0
        %1497 = vmatpush1.bf16.xpose.msra.mxu0 0
        %1498 = vmatprep.subr.bf16.mxu0 0
        %1499 = vmatpush1.bf16.xpose.msra.mxu0 0
        %1500 = vmatprep.subr.bf16.mxu0 0
        %1501 = vmatpush1.bf16.xpose.msra.mxu0 0
        %1502 = vmatprep.subr.bf16.mxu0 0
        %1503 = vmatpush1.bf16.xpose.msra.mxu0 0
        %1504 = vmatprep.subr.bf16.mxu0 0
        %1505 = vmatpush1.bf16.xpose.msra.mxu0 0
        %1506 = vmatprep.subr.bf16.mxu0 0
        %1507 = vmatpush1.bf16.xpose.msra.mxu0 0
        %1508 = vmatprep.subr.bf16.mxu0 0
        %1509 = vmatpush1.bf16.xpose.msra.mxu0 0
        %1510 = vmatprep.subr.bf16.mxu0 0
        %1511 = vmatpush1.bf16.xpose.msra.mxu0 0
        %1512 = vmatprep.subr.bf16.mxu0 0
        %1513 = vmatpush1.bf16.xpose.msra.mxu0 0
        %1514 = vmatprep.subr.bf16.mxu0 0
        %1515 = vmatpush1.bf16.xpose.msra.mxu0 0
        %1516 = vmatprep.subr.bf16.mxu0 0
        %1517 = vmatpush1.bf16.xpose.msra.mxu0 0
        %1518 = vmatprep.subr.bf16.mxu0 0
        %1519 = vmatpush1.bf16.xpose.msra.mxu0 0
        %1520 = vmatprep.subr.bf16.mxu0 0
        %1521 = vmatpush1.bf16.xpose.msra.mxu0 0
        %1522 = vmatprep.mubr.bf16.mxu0 0
        %1523 = vmatmul.mubr.bf16.gmra.mrb[0].mxu0 %v1485
        %v1524 = vpop.f32.mrb[0].mxu0
        %v1525 = vadd.f32 0.0, %v1524
        %v1526 = vpop.f32.mrb[0].mxu0
        %v1527 = vpop.f32.mrb[0].mxu0
        %v1528 = vpop.f32.mrb[0].mxu0
        %1529 = vdwg.mxu0
        %v1530 = vsel %vm1417, %v1525, -inf
        %1531 = vmax.xlane.f32.xlu0 %v1530
        %v1532 = vpop.xlane.xlu0 %1531
        %v1533 = vsub.f32 %v1525, %v1532
        %v1534 = vmul.f32 %v1533, 1.442695
        %v1535 = vpow.pop %v1534
        %v1536 = vsel %vm1417, %v1535, 0.0
        %1537 = vadd.xlane.f32.xlu0 %v1536
        %v1538 = vpop.xlane.xlu0 %1537
        %v1539 = vrcp.pop %v1538
        %v1540 = vmul.f32 %v1535, %v1539
        %v1541 = vpack.c.bf16 %v1540, %v1540
        %1543 = vrot.lane.b32.xlu0 %v1369, 64
        %v1544 = vpop.permute.xlu0 %1543
        %v1546 = vsel %vm1417, %v1541, 0
        %v1549 = vsel %vm1433, %v1544, 0
        %1551 = vmatprep.subr.bf16.mxu0 0
        %1552 = vmatpush1.bf16.msra.mxu0 %v1549
        %1553 = vmatprep.subr.bf16.mxu0 0
        %1554 = vmatpush1.bf16.msra.mxu0 0
        %1555 = vmatprep.subr.bf16.mxu0 0
        %1556 = vmatpush1.bf16.msra.mxu0 0
        %1557 = vmatprep.subr.bf16.mxu0 0
        %1558 = vmatpush1.bf16.msra.mxu0 0
        %1559 = vmatprep.subr.bf16.mxu0 0
        %1560 = vmatpush1.bf16.msra.mxu0 0
        %1561 = vmatprep.subr.bf16.mxu0 0
        %1562 = vmatpush1.bf16.msra.mxu0 0
        %1563 = vmatprep.subr.bf16.mxu0 0
        %1564 = vmatpush1.bf16.msra.mxu0 0
        %1565 = vmatprep.subr.bf16.mxu0 0
        %1566 = vmatpush1.bf16.msra.mxu0 0
        %1567 = vmatprep.subr.bf16.mxu0 0
        %1568 = vmatpush1.bf16.msra.mxu0 0
        %1569 = vmatprep.subr.bf16.mxu0 0
        %1570 = vmatpush1.bf16.msra.mxu0 0
        %1571 = vmatprep.subr.bf16.mxu0 0
        %1572 = vmatpush1.bf16.msra.mxu0 0
        %1573 = vmatprep.subr.bf16.mxu0 0
        %1574 = vmatpush1.bf16.msra.mxu0 0
        %1575 = vmatprep.subr.bf16.mxu0 0
        %1576 = vmatpush1.bf16.msra.mxu0 0
        %1577 = vmatprep.subr.bf16.mxu0 0
        %1578 = vmatpush1.bf16.msra.mxu0 0
        %1579 = vmatprep.subr.bf16.mxu0 0
        %1580 = vmatpush1.bf16.msra.mxu0 0
        %1581 = vmatprep.subr.bf16.mxu0 0
        %1582 = vmatpush1.bf16.msra.mxu0 0
        %1583 = vmatprep.mubr.bf16.mxu0 0
        %1584 = vmatmul.mubr.bf16.gmra.mrb[0].mxu0 %v1546
        %v1585 = vpop.f32.mrb[0].mxu0
        %v1586 = vadd.f32 0.0, %v1585
        %v1587 = vpop.f32.mrb[0].mxu0
        %v1588 = vpop.f32.mrb[0].mxu0
        %v1589 = vpop.f32.mrb[0].mxu0
        %1590 = vdwg.mxu0
        %v1591 = vpack.c.bf16 %v1586, %v1586
        %v1592 = vpack.c.bf16 %v1281, %v1281
        %v1593 = vpack.c.bf16 %v1322, %v1322
        %v1594 = vpack.c.bf16 %v1363, %v1363
        %v1596 = vsel %vm1370, %v1592, 0
        %v1599 = vsel %vm1370, %v1593, 0
        %1601 = vmatprep.subr.bf16.mxu0 0
        %1602 = vmatpush1.bf16.xpose.msra.mxu0 %v1599
        %1603 = vmatprep.subr.bf16.mxu0 0
        %1604 = vmatpush1.bf16.xpose.msra.mxu0 0
        %1605 = vmatprep.subr.bf16.mxu0 0
        %1606 = vmatpush1.bf16.xpose.msra.mxu0 0
        %1607 = vmatprep.subr.bf16.mxu0 0
        %1608 = vmatpush1.bf16.xpose.msra.mxu0 0
        %1609 = vmatprep.subr.bf16.mxu0 0
        %1610 = vmatpush1.bf16.xpose.msra.mxu0 0
        %1611 = vmatprep.subr.bf16.mxu0 0
        %1612 = vmatpush1.bf16.xpose.msra.mxu0 0
        %1613 = vmatprep.subr.bf16.mxu0 0
        %1614 = vmatpush1.bf16.xpose.msra.mxu0 0
        %1615 = vmatprep.subr.bf16.mxu0 0
        %1616 = vmatpush1.bf16.xpose.msra.mxu0 0
        %1617 = vmatprep.subr.bf16.mxu0 0
        %1618 = vmatpush1.bf16.xpose.msra.mxu0 0
        %1619 = vmatprep.subr.bf16.mxu0 0
        %1620 = vmatpush1.bf16.xpose.msra.mxu0 0
        %1621 = vmatprep.subr.bf16.mxu0 0
        %1622 = vmatpush1.bf16.xpose.msra.mxu0 0
        %1623 = vmatprep.subr.bf16.mxu0 0
        %1624 = vmatpush1.bf16.xpose.msra.mxu0 0
        %1625 = vmatprep.subr.bf16.mxu0 0
        %1626 = vmatpush1.bf16.xpose.msra.mxu0 0
        %1627 = vmatprep.subr.bf16.mxu0 0
        %1628 = vmatpush1.bf16.xpose.msra.mxu0 0
        %1629 = vmatprep.subr.bf16.mxu0 0
        %1630 = vmatpush1.bf16.xpose.msra.mxu0 0
        %1631 = vmatprep.subr.bf16.mxu0 0
        %1632 = vmatpush1.bf16.xpose.msra.mxu0 0
        %1633 = vmatprep.mubr.bf16.mxu0 0
        %1634 = vmatmul.mubr.bf16.gmra.mrb[0].mxu0 %v1596
        %v1635 = vpop.f32.mrb[0].mxu0
        %v1636 = vadd.f32 0.0, %v1635
        %v1637 = vpop.f32.mrb[0].mxu0
        %v1638 = vpop.f32.mrb[0].mxu0
        %v1639 = vpop.f32.mrb[0].mxu0
        %1640 = vdwg.mxu0
        %v1641 = vsel %vm1417, %v1636, -inf
        %1642 = vmax.xlane.f32.xlu0 %v1641
        %v1643 = vpop.xlane.xlu0 %1642
        %v1644 = vsub.f32 %v1636, %v1643
        %v1645 = vmul.f32 %v1644, 1.442695
        %v1646 = vpow.pop %v1645
        %v1647 = vsel %vm1417, %v1646, 0.0
        %1648 = vadd.xlane.f32.xlu0 %v1647
        %v1649 = vpop.xlane.xlu0 %1648
        %v1650 = vrcp.pop %v1649
        %v1651 = vmul.f32 %v1646, %v1650
        %v1652 = vpack.c.bf16 %v1651, %v1651
        %v1654 = vsel %vm1417, %v1652, 0
        %v1657 = vsel %vm1433, %v1594, 0
        %1659 = vmatprep.subr.bf16.mxu0 0
        %1660 = vmatpush1.bf16.msra.mxu0 %v1657
        %1661 = vmatprep.subr.bf16.mxu0 0
        %1662 = vmatpush1.bf16.msra.mxu0 0
        %1663 = vmatprep.subr.bf16.mxu0 0
        %1664 = vmatpush1.bf16.msra.mxu0 0
        %1665 = vmatprep.subr.bf16.mxu0 0
        %1666 = vmatpush1.bf16.msra.mxu0 0
        %1667 = vmatprep.subr.bf16.mxu0 0
        %1668 = vmatpush1.bf16.msra.mxu0 0
        %1669 = vmatprep.subr.bf16.mxu0 0
        %1670 = vmatpush1.bf16.msra.mxu0 0
        %1671 = vmatprep.subr.bf16.mxu0 0
        %1672 = vmatpush1.bf16.msra.mxu0 0
        %1673 = vmatprep.subr.bf16.mxu0 0
        %1674 = vmatpush1.bf16.msra.mxu0 0
        %1675 = vmatprep.subr.bf16.mxu0 0
        %1676 = vmatpush1.bf16.msra.mxu0 0
        %1677 = vmatprep.subr.bf16.mxu0 0
        %1678 = vmatpush1.bf16.msra.mxu0 0
        %1679 = vmatprep.subr.bf16.mxu0 0
        %1680 = vmatpush1.bf16.msra.mxu0 0
        %1681 = vmatprep.subr.bf16.mxu0 0
        %1682 = vmatpush1.bf16.msra.mxu0 0
        %1683 = vmatprep.subr.bf16.mxu0 0
        %1684 = vmatpush1.bf16.msra.mxu0 0
        %1685 = vmatprep.subr.bf16.mxu0 0
        %1686 = vmatpush1.bf16.msra.mxu0 0
        %1687 = vmatprep.subr.bf16.mxu0 0
        %1688 = vmatpush1.bf16.msra.mxu0 0
        %1689 = vmatprep.subr.bf16.mxu0 0
        %1690 = vmatpush1.bf16.msra.mxu0 0
        %1691 = vmatprep.mubr.bf16.mxu0 0
        %1692 = vmatmul.mubr.bf16.gmra.mrb[0].mxu0 %v1654
        %v1693 = vpop.f32.mrb[0].mxu0
        %v1694 = vadd.f32 0.0, %v1693
        %v1695 = vpop.f32.mrb[0].mxu0
        %v1696 = vpop.f32.mrb[0].mxu0
        %v1697 = vpop.f32.mrb[0].mxu0
        %1698 = vdwg.mxu0
        %v1699 = vpack.c.bf16 %v1694, %v1694
        %1701 = vrot.lane.b32.xlu0 %v1592, 64
        %v1702 = vpop.permute.xlu0 %1701
        %1704 = vrot.lane.b32.xlu0 %v1593, 64
        %v1705 = vpop.permute.xlu0 %1704
        %v1707 = vsel %vm1370, %v1702, 0
        %v1710 = vsel %vm1370, %v1705, 0
        %1712 = vmatprep.subr.bf16.mxu0 0
        %1713 = vmatpush1.bf16.xpose.msra.mxu0 %v1710
        %1714 = vmatprep.subr.bf16.mxu0 0
        %1715 = vmatpush1.bf16.xpose.msra.mxu0 0
        %1716 = vmatprep.subr.bf16.mxu0 0
        %1717 = vmatpush1.bf16.xpose.msra.mxu0 0
        %1718 = vmatprep.subr.bf16.mxu0 0
        %1719 = vmatpush1.bf16.xpose.msra.mxu0 0
        %1720 = vmatprep.subr.bf16.mxu0 0
        %1721 = vmatpush1.bf16.xpose.msra.mxu0 0
        %1722 = vmatprep.subr.bf16.mxu0 0
        %1723 = vmatpush1.bf16.xpose.msra.mxu0 0
        %1724 = vmatprep.subr.bf16.mxu0 0
        %1725 = vmatpush1.bf16.xpose.msra.mxu0 0
        %1726 = vmatprep.subr.bf16.mxu0 0
        %1727 = vmatpush1.bf16.xpose.msra.mxu0 0
        %1728 = vmatprep.subr.bf16.mxu0 0
        %1729 = vmatpush1.bf16.xpose.msra.mxu0 0
        %1730 = vmatprep.subr.bf16.mxu0 0
        %1731 = vmatpush1.bf16.xpose.msra.mxu0 0
        %1732 = vmatprep.subr.bf16.mxu0 0
        %1733 = vmatpush1.bf16.xpose.msra.mxu0 0
        %1734 = vmatprep.subr.bf16.mxu0 0
        %1735 = vmatpush1.bf16.xpose.msra.mxu0 0
        %1736 = vmatprep.subr.bf16.mxu0 0
        %1737 = vmatpush1.bf16.xpose.msra.mxu0 0
        %1738 = vmatprep.subr.bf16.mxu0 0
        %1739 = vmatpush1.bf16.xpose.msra.mxu0 0
        %1740 = vmatprep.subr.bf16.mxu0 0
        %1741 = vmatpush1.bf16.xpose.msra.mxu0 0
        %1742 = vmatprep.subr.bf16.mxu0 0
        %1743 = vmatpush1.bf16.xpose.msra.mxu0 0
        %1744 = vmatprep.mubr.bf16.mxu0 0
        %1745 = vmatmul.mubr.bf16.gmra.mrb[0].mxu0 %v1707
        %v1746 = vpop.f32.mrb[0].mxu0
        %v1747 = vadd.f32 0.0, %v1746
        %v1748 = vpop.f32.mrb[0].mxu0
        %v1749 = vpop.f32.mrb[0].mxu0
        %v1750 = vpop.f32.mrb[0].mxu0
        %1751 = vdwg.mxu0
        %v1752 = vsel %vm1417, %v1747, -inf
        %1753 = vmax.xlane.f32.xlu0 %v1752
        %v1754 = vpop.xlane.xlu0 %1753
        %v1755 = vsub.f32 %v1747, %v1754
        %v1756 = vmul.f32 %v1755, 1.442695
        %v1757 = vpow.pop %v1756
        %v1758 = vsel %vm1417, %v1757, 0.0
        %1759 = vadd.xlane.f32.xlu0 %v1758
        %v1760 = vpop.xlane.xlu0 %1759
        %v1761 = vrcp.pop %v1760
        %v1762 = vmul.f32 %v1757, %v1761
        %v1763 = vpack.c.bf16 %v1762, %v1762
        %1765 = vrot.lane.b32.xlu0 %v1594, 64
        %v1766 = vpop.permute.xlu0 %1765
        %v1768 = vsel %vm1417, %v1763, 0
        %v1771 = vsel %vm1433, %v1766, 0
        %1773 = vmatprep.subr.bf16.mxu0 0
        %1774 = vmatpush1.bf16.msra.mxu0 %v1771
        %1775 = vmatprep.subr.bf16.mxu0 0
        %1776 = vmatpush1.bf16.msra.mxu0 0
        %1777 = vmatprep.subr.bf16.mxu0 0
        %1778 = vmatpush1.bf16.msra.mxu0 0
        %1779 = vmatprep.subr.bf16.mxu0 0
        %1780 = vmatpush1.bf16.msra.mxu0 0
        %1781 = vmatprep.subr.bf16.mxu0 0
        %1782 = vmatpush1.bf16.msra.mxu0 0
        %1783 = vmatprep.subr.bf16.mxu0 0
        %1784 = vmatpush1.bf16.msra.mxu0 0
        %1785 = vmatprep.subr.bf16.mxu0 0
        %1786 = vmatpush1.bf16.msra.mxu0 0
        %1787 = vmatprep.subr.bf16.mxu0 0
        %1788 = vmatpush1.bf16.msra.mxu0 0
        %1789 = vmatprep.subr.bf16.mxu0 0
        %1790 = vmatpush1.bf16.msra.mxu0 0
        %1791 = vmatprep.subr.bf16.mxu0 0
        %1792 = vmatpush1.bf16.msra.mxu0 0
        %1793 = vmatprep.subr.bf16.mxu0 0
        %1794 = vmatpush1.bf16.msra.mxu0 0
        %1795 = vmatprep.subr.bf16.mxu0 0
        %1796 = vmatpush1.bf16.msra.mxu0 0
        %1797 = vmatprep.subr.bf16.mxu0 0
        %1798 = vmatpush1.bf16.msra.mxu0 0
        %1799 = vmatprep.subr.bf16.mxu0 0
        %1800 = vmatpush1.bf16.msra.mxu0 0
        %1801 = vmatprep.subr.bf16.mxu0 0
        %1802 = vmatpush1.bf16.msra.mxu0 0
        %1803 = vmatprep.subr.bf16.mxu0 0
        %1804 = vmatpush1.bf16.msra.mxu0 0
        %1805 = vmatprep.mubr.bf16.mxu0 0
        %1806 = vmatmul.mubr.bf16.gmra.mrb[0].mxu0 %v1768
        %v1807 = vpop.f32.mrb[0].mxu0
        %v1808 = vadd.f32 0.0, %v1807
        %v1809 = vpop.f32.mrb[0].mxu0
        %v1810 = vpop.f32.mrb[0].mxu0
        %v1811 = vpop.f32.mrb[0].mxu0
        %1812 = vdwg.mxu0
        %v1813 = vpack.c.bf16 %v1808, %v1808
        %1815 = vrot.lane.b32.xlu0 %v1591, 64
        %v1816 = vpop.permute.xlu0 %1815
        %1818 = vrot.lane.b32.xlu0 %v1813, 64
        %v1819 = vpop.permute.xlu0 %1818
        %v1822 = vsel %vm1370, %v1477, %v1816
        %v1826 = vsel %vm1370, %v1699, %v1819
        %v1828 = vld [vmem:[#allocation8] sm:$0xff]
        %v1829 = vld [vmem:[#allocation8 + $0x8] sm:$0xff]
        %v1830 = vld [vmem:[#allocation8 + $0x10] sm:$0xff]
        %v1831 = vld [vmem:[#allocation8 + $0x18] sm:$0xff]
        %v1832 = vld [vmem:[#allocation8 + $0x20] sm:$0xff]
        %v1833 = vld [vmem:[#allocation8 + $0x28] sm:$0xff]
        %v1834 = vld [vmem:[#allocation8 + $0x30] sm:$0xff]
        %v1835 = vld [vmem:[#allocation8 + $0x38] sm:$0xff]
        %v1836 = vld [vmem:[#allocation8 + $0x40] sm:$0xff]
        %v1837 = vld [vmem:[#allocation8 + $0x48] sm:$0xff]
        %v1838 = vld [vmem:[#allocation8 + $0x50] sm:$0xff]
        %v1839 = vld [vmem:[#allocation8 + $0x58] sm:$0xff]
        %v1840 = vld [vmem:[#allocation8 + $0x60] sm:$0xff]
        %v1841 = vld [vmem:[#allocation8 + $0x68] sm:$0xff]
        %v1842 = vld [vmem:[#allocation8 + $0x70] sm:$0xff]
        %v1843 = vld [vmem:[#allocation8 + $0x78] sm:$0xff]
        %v1844 = vld [vmem:[#allocation8 + $0x80] sm:$0xff]
        %v1845 = vld [vmem:[#allocation8 + $0x88] sm:$0xff]
        %v1846 = vld [vmem:[#allocation8 + $0x90] sm:$0xff]
        %v1847 = vld [vmem:[#allocation8 + $0x98] sm:$0xff]
        %v1848 = vld [vmem:[#allocation8 + $0xa0] sm:$0xff]
        %v1849 = vld [vmem:[#allocation8 + $0xa8] sm:$0xff]
        %v1850 = vld [vmem:[#allocation8 + $0xb0] sm:$0xff]
        %v1851 = vld [vmem:[#allocation8 + $0xb8] sm:$0xff]
        %v1852 = vld [vmem:[#allocation8 + $0xc0] sm:$0xff]
        %v1853 = vld [vmem:[#allocation8 + $0xc8] sm:$0xff]
        %v1854 = vld [vmem:[#allocation8 + $0xd0] sm:$0xff]
        %v1855 = vld [vmem:[#allocation8 + $0xd8] sm:$0xff]
        %v1856 = vld [vmem:[#allocation8 + $0xe0] sm:$0xff]
        %v1857 = vld [vmem:[#allocation8 + $0xe8] sm:$0xff]
        %v1858 = vld [vmem:[#allocation8 + $0xf0] sm:$0xff]
        %v1859 = vld [vmem:[#allocation8 + $0xf8] sm:$0xff]
        %v1860 = vld [vmem:[#allocation10] sm:$0x3]
        %v1862 = vlaneseq
        %v1863 = vshrl.u32 %v1862, 7
        %v1864 = vsub.s32 0, %v1863
        %v1865 = vrot.slane %v1860, %v1864
        %v1866 = vlaneseq
        %v1867 = vshrl.u32 %v1866, 7
        %v1868 = vsub.s32 1, %v1867
        %v1869 = vrot.slane %v1860, %v1868
        %v1904 = vunpack.c.l.b16 %v1828
        %v1905 = vunpack.c.h.b16 %v1828
        %v1906 = vunpack.c.l.b16 %v1829
        %v1907 = vunpack.c.h.b16 %v1829
        %v1908 = vunpack.c.l.b16 %v1830
        %v1909 = vunpack.c.h.b16 %v1830
        %v1910 = vunpack.c.l.b16 %v1831
        %v1911 = vunpack.c.h.b16 %v1831
        %v1912 = vunpack.c.l.b16 %v1832
        %v1913 = vunpack.c.h.b16 %v1832
        %v1914 = vunpack.c.l.b16 %v1833
        %v1915 = vunpack.c.h.b16 %v1833
        %v1916 = vunpack.c.l.b16 %v1834
        %v1917 = vunpack.c.h.b16 %v1834
        %v1918 = vunpack.c.l.b16 %v1835
        %v1919 = vunpack.c.h.b16 %v1835
        %v1920 = vunpack.c.l.b16 %v1836
        %v1921 = vunpack.c.h.b16 %v1836
        %v1922 = vunpack.c.l.b16 %v1837
        %v1923 = vunpack.c.h.b16 %v1837
        %v1924 = vunpack.c.l.b16 %v1838
        %v1925 = vunpack.c.h.b16 %v1838
        %v1926 = vunpack.c.l.b16 %v1839
        %v1927 = vunpack.c.h.b16 %v1839
        %v1928 = vunpack.c.l.b16 %v1840
        %v1929 = vunpack.c.h.b16 %v1840
        %v1930 = vunpack.c.l.b16 %v1841
        %v1931 = vunpack.c.h.b16 %v1841
        %v1932 = vunpack.c.l.b16 %v1842
        %v1933 = vunpack.c.h.b16 %v1842
        %v1934 = vunpack.c.l.b16 %v1843
        %v1935 = vunpack.c.h.b16 %v1843
        %v1936 = vunpack.c.l.b16 %v1844
        %v1937 = vunpack.c.h.b16 %v1844
        %v1938 = vunpack.c.l.b16 %v1845
        %v1939 = vunpack.c.h.b16 %v1845
        %v1940 = vunpack.c.l.b16 %v1846
        %v1941 = vunpack.c.h.b16 %v1846
        %v1942 = vunpack.c.l.b16 %v1847
        %v1943 = vunpack.c.h.b16 %v1847
        %v1944 = vunpack.c.l.b16 %v1848
        %v1945 = vunpack.c.h.b16 %v1848
        %v1946 = vunpack.c.l.b16 %v1849
        %v1947 = vunpack.c.h.b16 %v1849
        %v1948 = vunpack.c.l.b16 %v1850
        %v1949 = vunpack.c.h.b16 %v1850
        %v1950 = vunpack.c.l.b16 %v1851
        %v1951 = vunpack.c.h.b16 %v1851
        %v1952 = vunpack.c.l.b16 %v1852
        %v1953 = vunpack.c.h.b16 %v1852
        %v1954 = vunpack.c.l.b16 %v1853
        %v1955 = vunpack.c.h.b16 %v1853
        %v1956 = vunpack.c.l.b16 %v1854
        %v1957 = vunpack.c.h.b16 %v1854
        %v1958 = vunpack.c.l.b16 %v1855
        %v1959 = vunpack.c.h.b16 %v1855
        %v1960 = vunpack.c.l.b16 %v1856
        %v1961 = vunpack.c.h.b16 %v1856
        %v1962 = vunpack.c.l.b16 %v1857
        %v1963 = vunpack.c.h.b16 %v1857
        %v1964 = vunpack.c.l.b16 %v1858
        %v1965 = vunpack.c.h.b16 %v1858
        %v1966 = vunpack.c.l.b16 %v1859
        %v1967 = vunpack.c.h.b16 %v1859
        %v1968 = vpack.c.b16 %v1906, %v1904
        %v1969 = vpack.c.b16 %v1907, %v1905
        %v1970 = vpack.c.b16 %v1910, %v1908
        %v1971 = vpack.c.b16 %v1911, %v1909
        %v1972 = vpack.c.b16 %v1914, %v1912
        %v1973 = vpack.c.b16 %v1915, %v1913
        %v1974 = vpack.c.b16 %v1918, %v1916
        %v1975 = vpack.c.b16 %v1919, %v1917
        %v1976 = vpack.c.b16 %v1922, %v1920
        %v1977 = vpack.c.b16 %v1923, %v1921
        %v1978 = vpack.c.b16 %v1926, %v1924
        %v1979 = vpack.c.b16 %v1927, %v1925
        %v1980 = vpack.c.b16 %v1930, %v1928
        %v1981 = vpack.c.b16 %v1931, %v1929
        %v1982 = vpack.c.b16 %v1934, %v1932
        %v1983 = vpack.c.b16 %v1935, %v1933
        %v1984 = vpack.c.b16 %v1938, %v1936
        %v1985 = vpack.c.b16 %v1939, %v1937
        %v1986 = vpack.c.b16 %v1942, %v1940
        %v1987 = vpack.c.b16 %v1943, %v1941
        %v1988 = vpack.c.b16 %v1946, %v1944
        %v1989 = vpack.c.b16 %v1947, %v1945
        %v1990 = vpack.c.b16 %v1950, %v1948
        %v1991 = vpack.c.b16 %v1951, %v1949
        %v1992 = vpack.c.b16 %v1954, %v1952
        %v1993 = vpack.c.b16 %v1955, %v1953
        %v1994 = vpack.c.b16 %v1958, %v1956
        %v1995 = vpack.c.b16 %v1959, %v1957
        %v1996 = vpack.c.b16 %v1962, %v1960
        %v1997 = vpack.c.b16 %v1963, %v1961
        %v1998 = vpack.c.b16 %v1966, %v1964
        %v1999 = vpack.c.b16 %v1967, %v1965
        %2032 = vmatprep.subr.bf16.mxu0 %v1969
        %2033 = vmatpush1.bf16.msra.mxu0 %v1968
        %2034 = vmatprep.subr.bf16.mxu0 %v1971
        %2035 = vmatpush1.bf16.msra.mxu0 %v1970
        %2036 = vmatprep.subr.bf16.mxu0 %v1973
        %2037 = vmatpush1.bf16.msra.mxu0 %v1972
        %2038 = vmatprep.subr.bf16.mxu0 %v1975
        %2039 = vmatpush1.bf16.msra.mxu0 %v1974
        %2040 = vmatprep.subr.bf16.mxu0 %v1977
        %2041 = vmatpush1.bf16.msra.mxu0 %v1976
        %2042 = vmatprep.subr.bf16.mxu0 %v1979
        %2043 = vmatpush1.bf16.msra.mxu0 %v1978
        %2044 = vmatprep.subr.bf16.mxu0 %v1981
        %2045 = vmatpush1.bf16.msra.mxu0 %v1980
        %2046 = vmatprep.subr.bf16.mxu0 %v1983
        %2047 = vmatpush1.bf16.msra.mxu0 %v1982
        %2048 = vmatprep.subr.bf16.mxu0 %v1985
        %2049 = vmatpush1.bf16.msra.mxu0 %v1984
        %2050 = vmatprep.subr.bf16.mxu0 %v1987
        %2051 = vmatpush1.bf16.msra.mxu0 %v1986
        %2052 = vmatprep.subr.bf16.mxu0 %v1989
        %2053 = vmatpush1.bf16.msra.mxu0 %v1988
        %2054 = vmatprep.subr.bf16.mxu0 %v1991
        %2055 = vmatpush1.bf16.msra.mxu0 %v1990
        %2056 = vmatprep.subr.bf16.mxu0 %v1993
        %2057 = vmatpush1.bf16.msra.mxu0 %v1992
        %2058 = vmatprep.subr.bf16.mxu0 %v1995
        %2059 = vmatpush1.bf16.msra.mxu0 %v1994
        %2060 = vmatprep.subr.bf16.mxu0 %v1997
        %2061 = vmatpush1.bf16.msra.mxu0 %v1996
        %2062 = vmatprep.subr.bf16.mxu0 %v1999
        %2063 = vmatpush1.bf16.msra.mxu0 %v1998
        %2064 = vmatprep.mubr.bf16.mxu0 %v1826
        %2065 = vmatmul.mubr.bf16.gmra.mrb[0].mxu0 %v1822
        %v2066 = vpop.f32.mrb[0].mxu0
        %v2067 = vadd.f32 %v1865, %v2066
        %v2068 = vpop.f32.mrb[0].mxu0
        %v2069 = vadd.f32 %v1869, %v2068
        %v2070 = vpop.f32.mrb[0].mxu0
        %v2071 = vpop.f32.mrb[0].mxu0
        %2072 = vdwg.mxu0
        %v2073 = vadd.f32 %v632, %v2067
        %v2074 = vadd.f32 %v633, %v2069
        %v2075 = vld [vmem:[#allocation11] sm:$0x3]
        %v2076 = vld [vmem:[#allocation13] sm:$0x3]
        %v2077 = vadd.f32 %v2073, %v2074
        %2078 = vadd.xlane.f32.xlu0 %v2077
        %v2079 = vpop.xlane.xlu0 %2078
        %v2080 = vrcp.pop 256.0
        %v2081 = vmul.f32 %v2079, %v2080
        %v2082 = vsub.f32 %v2073, %v2081
        %v2083 = vsub.f32 %v2074, %v2081
        %v2084 = vmul.f32 %v2082, %v2082
        %v2085 = vmul.f32 %v2083, %v2083
        %v2086 = vadd.f32 %v2084, %v2085
        %2087 = vadd.xlane.f32.xlu0 %v2086
        %v2088 = vpop.xlane.xlu0 %2087
        %v2089 = vmul.f32 %v2088, %v2080
        %v2090 = vadd.f32 %v2089, 1e-05
        %v2091 = vrsqrt.pop %v2090
        %v2092 = vmul.f32 %v2082, %v2091
        %v2093 = vmul.f32 %v2083, %v2091
        %v2095 = vlaneseq
        %v2096 = vshrl.u32 %v2095, 7
        %v2097 = vsub.s32 0, %v2096
        %v2098 = vrot.slane %v2075, %v2097
        %v2099 = vlaneseq
        %v2100 = vshrl.u32 %v2099, 7
        %v2101 = vsub.s32 1, %v2100
        %v2102 = vrot.slane %v2075, %v2101
        %v2105 = vmul.f32 %v2092, %v2098
        %v2106 = vmul.f32 %v2093, %v2102
        %v2108 = vlaneseq
        %v2109 = vshrl.u32 %v2108, 7
        %v2110 = vsub.s32 0, %v2109
        %v2111 = vrot.slane %v2076, %v2110
        %v2112 = vlaneseq
        %v2113 = vshrl.u32 %v2112, 7
        %v2114 = vsub.s32 1, %v2113
        %v2115 = vrot.slane %v2076, %v2114
        %v2118 = vadd.f32 %v2105, %v2111
        %v2119 = vadd.f32 %v2106, %v2115
        %v2120 = vpack.c.bf16 %v2118, %v2118
        %v2121 = vpack.c.bf16 %v2119, %v2119
        %v2122 = vld [vmem:[#allocation19] sm:$0x3]
        %v2123 = vld [vmem:[#allocation14] sm:$0xff]
        %v2124 = vld [vmem:[#allocation14 + $0x8] sm:$0xff]
        %v2125 = vld [vmem:[#allocation14 + $0x10] sm:$0xff]
        %v2126 = vld [vmem:[#allocation14 + $0x18] sm:$0xff]
        %v2127 = vld [vmem:[#allocation14 + $0x20] sm:$0xff]
        %v2128 = vld [vmem:[#allocation14 + $0x28] sm:$0xff]
        %v2129 = vld [vmem:[#allocation14 + $0x30] sm:$0xff]
        %v2130 = vld [vmem:[#allocation14 + $0x38] sm:$0xff]
        %v2131 = vld [vmem:[#allocation14 + $0x40] sm:$0xff]
        %v2132 = vld [vmem:[#allocation14 + $0x48] sm:$0xff]
        %v2133 = vld [vmem:[#allocation14 + $0x50] sm:$0xff]
        %v2134 = vld [vmem:[#allocation14 + $0x58] sm:$0xff]
        %v2135 = vld [vmem:[#allocation14 + $0x60] sm:$0xff]
        %v2136 = vld [vmem:[#allocation14 + $0x68] sm:$0xff]
        %v2137 = vld [vmem:[#allocation14 + $0x70] sm:$0xff]
        %v2138 = vld [vmem:[#allocation14 + $0x78] sm:$0xff]
        %v2139 = vld [vmem:[#allocation14 + $0x80] sm:$0xff]
        %v2140 = vld [vmem:[#allocation14 + $0x88] sm:$0xff]
        %v2141 = vld [vmem:[#allocation14 + $0x90] sm:$0xff]
        %v2142 = vld [vmem:[#allocation14 + $0x98] sm:$0xff]
        %v2143 = vld [vmem:[#allocation14 + $0xa0] sm:$0xff]
        %v2144 = vld [vmem:[#allocation14 + $0xa8] sm:$0xff]
        %v2145 = vld [vmem:[#allocation14 + $0xb0] sm:$0xff]
        %v2146 = vld [vmem:[#allocation14 + $0xb8] sm:$0xff]
        %v2147 = vld [vmem:[#allocation14 + $0xc0] sm:$0xff]
        %v2148 = vld [vmem:[#allocation14 + $0xc8] sm:$0xff]
        %v2149 = vld [vmem:[#allocation14 + $0xd0] sm:$0xff]
        %v2150 = vld [vmem:[#allocation14 + $0xd8] sm:$0xff]
        %v2151 = vld [vmem:[#allocation14 + $0xe0] sm:$0xff]
        %v2152 = vld [vmem:[#allocation14 + $0xe8] sm:$0xff]
        %v2153 = vld [vmem:[#allocation14 + $0xf0] sm:$0xff]
        %v2154 = vld [vmem:[#allocation14 + $0xf8] sm:$0xff]
        %v2155 = vld [vmem:[#allocation16] sm:$0x3]
        %v2157 = vlaneseq
        %v2158 = vshrl.u32 %v2157, 7
        %v2159 = vsub.s32 0, %v2158
        %v2160 = vrot.slane %v2155, %v2159
        %v2161 = vlaneseq
        %v2162 = vshrl.u32 %v2161, 7
        %v2163 = vsub.s32 1, %v2162
        %v2164 = vrot.slane %v2155, %v2163
        %v2199 = vunpack.c.l.b16 %v2123
        %v2200 = vunpack.c.h.b16 %v2123
        %v2201 = vunpack.c.l.b16 %v2124
        %v2202 = vunpack.c.h.b16 %v2124
        %v2203 = vunpack.c.l.b16 %v2125
        %v2204 = vunpack.c.h.b16 %v2125
        %v2205 = vunpack.c.l.b16 %v2126
        %v2206 = vunpack.c.h.b16 %v2126
        %v2207 = vunpack.c.l.b16 %v2127
        %v2208 = vunpack.c.h.b16 %v2127
        %v2209 = vunpack.c.l.b16 %v2128
        %v2210 = vunpack.c.h.b16 %v2128
        %v2211 = vunpack.c.l.b16 %v2129
        %v2212 = vunpack.c.h.b16 %v2129
        %v2213 = vunpack.c.l.b16 %v2130
        %v2214 = vunpack.c.h.b16 %v2130
        %v2215 = vunpack.c.l.b16 %v2131
        %v2216 = vunpack.c.h.b16 %v2131
        %v2217 = vunpack.c.l.b16 %v2132
        %v2218 = vunpack.c.h.b16 %v2132
        %v2219 = vunpack.c.l.b16 %v2133
        %v2220 = vunpack.c.h.b16 %v2133
        %v2221 = vunpack.c.l.b16 %v2134
        %v2222 = vunpack.c.h.b16 %v2134
        %v2223 = vunpack.c.l.b16 %v2135
        %v2224 = vunpack.c.h.b16 %v2135
        %v2225 = vunpack.c.l.b16 %v2136
        %v2226 = vunpack.c.h.b16 %v2136
        %v2227 = vunpack.c.l.b16 %v2137
        %v2228 = vunpack.c.h.b16 %v2137
        %v2229 = vunpack.c.l.b16 %v2138
        %v2230 = vunpack.c.h.b16 %v2138
        %v2231 = vunpack.c.l.b16 %v2139
        %v2232 = vunpack.c.h.b16 %v2139
        %v2233 = vunpack.c.l.b16 %v2140
        %v2234 = vunpack.c.h.b16 %v2140
        %v2235 = vunpack.c.l.b16 %v2141
        %v2236 = vunpack.c.h.b16 %v2141
        %v2237 = vunpack.c.l.b16 %v2142
        %v2238 = vunpack.c.h.b16 %v2142
        %v2239 = vunpack.c.l.b16 %v2143
        %v2240 = vunpack.c.h.b16 %v2143
        %v2241 = vunpack.c.l.b16 %v2144
        %v2242 = vunpack.c.h.b16 %v2144
        %v2243 = vunpack.c.l.b16 %v2145
        %v2244 = vunpack.c.h.b16 %v2145
        %v2245 = vunpack.c.l.b16 %v2146
        %v2246 = vunpack.c.h.b16 %v2146
        %v2247 = vunpack.c.l.b16 %v2147
        %v2248 = vunpack.c.h.b16 %v2147
        %v2249 = vunpack.c.l.b16 %v2148
        %v2250 = vunpack.c.h.b16 %v2148
        %v2251 = vunpack.c.l.b16 %v2149
        %v2252 = vunpack.c.h.b16 %v2149
        %v2253 = vunpack.c.l.b16 %v2150
        %v2254 = vunpack.c.h.b16 %v2150
        %v2255 = vunpack.c.l.b16 %v2151
        %v2256 = vunpack.c.h.b16 %v2151
        %v2257 = vunpack.c.l.b16 %v2152
        %v2258 = vunpack.c.h.b16 %v2152
        %v2259 = vunpack.c.l.b16 %v2153
        %v2260 = vunpack.c.h.b16 %v2153
        %v2261 = vunpack.c.l.b16 %v2154
        %v2262 = vunpack.c.h.b16 %v2154
        %v2263 = vpack.c.b16 %v2201, %v2199
        %v2264 = vpack.c.b16 %v2202, %v2200
        %v2265 = vpack.c.b16 %v2205, %v2203
        %v2266 = vpack.c.b16 %v2206, %v2204
        %v2267 = vpack.c.b16 %v2209, %v2207
        %v2268 = vpack.c.b16 %v2210, %v2208
        %v2269 = vpack.c.b16 %v2213, %v2211
        %v2270 = vpack.c.b16 %v2214, %v2212
        %v2271 = vpack.c.b16 %v2217, %v2215
        %v2272 = vpack.c.b16 %v2218, %v2216
        %v2273 = vpack.c.b16 %v2221, %v2219
        %v2274 = vpack.c.b16 %v2222, %v2220
        %v2275 = vpack.c.b16 %v2225, %v2223
        %v2276 = vpack.c.b16 %v2226, %v2224
        %v2277 = vpack.c.b16 %v2229, %v2227
        %v2278 = vpack.c.b16 %v2230, %v2228
        %v2279 = vpack.c.b16 %v2233, %v2231
        %v2280 = vpack.c.b16 %v2234, %v2232
        %v2281 = vpack.c.b16 %v2237, %v2235
        %v2282 = vpack.c.b16 %v2238, %v2236
        %v2283 = vpack.c.b16 %v2241, %v2239
        %v2284 = vpack.c.b16 %v2242, %v2240
        %v2285 = vpack.c.b16 %v2245, %v2243
        %v2286 = vpack.c.b16 %v2246, %v2244
        %v2287 = vpack.c.b16 %v2249, %v2247
        %v2288 = vpack.c.b16 %v2250, %v2248
        %v2289 = vpack.c.b16 %v2253, %v2251
        %v2290 = vpack.c.b16 %v2254, %v2252
        %v2291 = vpack.c.b16 %v2257, %v2255
        %v2292 = vpack.c.b16 %v2258, %v2256
        %v2293 = vpack.c.b16 %v2261, %v2259
        %v2294 = vpack.c.b16 %v2262, %v2260
        %2327 = vmatprep.subr.bf16.mxu0 %v2264
        %2328 = vmatpush1.bf16.msra.mxu0 %v2263
        %2329 = vmatprep.subr.bf16.mxu0 %v2266
        %2330 = vmatpush1.bf16.msra.mxu0 %v2265
        %2331 = vmatprep.subr.bf16.mxu0 %v2268
        %2332 = vmatpush1.bf16.msra.mxu0 %v2267
        %2333 = vmatprep.subr.bf16.mxu0 %v2270
        %2334 = vmatpush1.bf16.msra.mxu0 %v2269
        %2335 = vmatprep.subr.bf16.mxu0 %v2272
        %2336 = vmatpush1.bf16.msra.mxu0 %v2271
        %2337 = vmatprep.subr.bf16.mxu0 %v2274
        %2338 = vmatpush1.bf16.msra.mxu0 %v2273
        %2339 = vmatprep.subr.bf16.mxu0 %v2276
        %2340 = vmatpush1.bf16.msra.mxu0 %v2275
        %2341 = vmatprep.subr.bf16.mxu0 %v2278
        %2342 = vmatpush1.bf16.msra.mxu0 %v2277
        %2343 = vmatprep.subr.bf16.mxu0 %v2280
        %2344 = vmatpush1.bf16.msra.mxu0 %v2279
        %2345 = vmatprep.subr.bf16.mxu0 %v2282
        %2346 = vmatpush1.bf16.msra.mxu0 %v2281
        %2347 = vmatprep.subr.bf16.mxu0 %v2284
        %2348 = vmatpush1.bf16.msra.mxu0 %v2283
        %2349 = vmatprep.subr.bf16.mxu0 %v2286
        %2350 = vmatpush1.bf16.msra.mxu0 %v2285
        %2351 = vmatprep.subr.bf16.mxu0 %v2288
        %2352 = vmatpush1.bf16.msra.mxu0 %v2287
        %2353 = vmatprep.subr.bf16.mxu0 %v2290
        %2354 = vmatpush1.bf16.msra.mxu0 %v2289
        %2355 = vmatprep.subr.bf16.mxu0 %v2292
        %2356 = vmatpush1.bf16.msra.mxu0 %v2291
        %2357 = vmatprep.subr.bf16.mxu0 %v2294
        %2358 = vmatpush1.bf16.msra.mxu0 %v2293
        %2359 = vmatprep.mubr.bf16.mxu0 %v2121
        %2360 = vmatmul.mubr.bf16.gmra.mrb[0].mxu0 %v2120
        %v2361 = vpop.f32.mrb[0].mxu0
        %v2362 = vadd.f32 %v2160, %v2361
        %v2363 = vpop.f32.mrb[0].mxu0
        %v2364 = vadd.f32 %v2164, %v2363
        %v2365 = vpop.f32.mrb[0].mxu0
        %v2366 = vpop.f32.mrb[0].mxu0
        %2367 = vdwg.mxu0
        %v2368 = vmax.f32 %v2362, 0.0
        %v2369 = vmax.f32 %v2364, 0.0
        %v2370 = vpack.c.bf16 %v2368, %v2368
        %v2371 = vpack.c.bf16 %v2369, %v2369
        %v2372 = vld [vmem:[#allocation17] sm:$0xff]
        %v2373 = vld [vmem:[#allocation17 + $0x8] sm:$0xff]
        %v2374 = vld [vmem:[#allocation17 + $0x10] sm:$0xff]
        %v2375 = vld [vmem:[#allocation17 + $0x18] sm:$0xff]
        %v2376 = vld [vmem:[#allocation17 + $0x20] sm:$0xff]
        %v2377 = vld [vmem:[#allocation17 + $0x28] sm:$0xff]
        %v2378 = vld [vmem:[#allocation17 + $0x30] sm:$0xff]
        %v2379 = vld [vmem:[#allocation17 + $0x38] sm:$0xff]
        %v2380 = vld [vmem:[#allocation17 + $0x40] sm:$0xff]
        %v2381 = vld [vmem:[#allocation17 + $0x48] sm:$0xff]
        %v2382 = vld [vmem:[#allocation17 + $0x50] sm:$0xff]
        %v2383 = vld [vmem:[#allocation17 + $0x58] sm:$0xff]
        %v2384 = vld [vmem:[#allocation17 + $0x60] sm:$0xff]
        %v2385 = vld [vmem:[#allocation17 + $0x68] sm:$0xff]
        %v2386 = vld [vmem:[#allocation17 + $0x70] sm:$0xff]
        %v2387 = vld [vmem:[#allocation17 + $0x78] sm:$0xff]
        %v2388 = vld [vmem:[#allocation17 + $0x80] sm:$0xff]
        %v2389 = vld [vmem:[#allocation17 + $0x88] sm:$0xff]
        %v2390 = vld [vmem:[#allocation17 + $0x90] sm:$0xff]
        %v2391 = vld [vmem:[#allocation17 + $0x98] sm:$0xff]
        %v2392 = vld [vmem:[#allocation17 + $0xa0] sm:$0xff]
        %v2393 = vld [vmem:[#allocation17 + $0xa8] sm:$0xff]
        %v2394 = vld [vmem:[#allocation17 + $0xb0] sm:$0xff]
        %v2395 = vld [vmem:[#allocation17 + $0xb8] sm:$0xff]
        %v2396 = vld [vmem:[#allocation17 + $0xc0] sm:$0xff]
        %v2397 = vld [vmem:[#allocation17 + $0xc8] sm:$0xff]
        %v2398 = vld [vmem:[#allocation17 + $0xd0] sm:$0xff]
        %v2399 = vld [vmem:[#allocation17 + $0xd8] sm:$0xff]
        %v2400 = vld [vmem:[#allocation17 + $0xe0] sm:$0xff]
        %v2401 = vld [vmem:[#allocation17 + $0xe8] sm:$0xff]
        %v2402 = vld [vmem:[#allocation17 + $0xf0] sm:$0xff]
        %v2403 = vld [vmem:[#allocation17 + $0xf8] sm:$0xff]
        %v2436 = vunpack.c.l.b16 %v2372
        %v2437 = vunpack.c.h.b16 %v2372
        %v2438 = vunpack.c.l.b16 %v2373
        %v2439 = vunpack.c.h.b16 %v2373
        %v2440 = vunpack.c.l.b16 %v2374
        %v2441 = vunpack.c.h.b16 %v2374
        %v2442 = vunpack.c.l.b16 %v2375
        %v2443 = vunpack.c.h.b16 %v2375
        %v2444 = vunpack.c.l.b16 %v2376
        %v2445 = vunpack.c.h.b16 %v2376
        %v2446 = vunpack.c.l.b16 %v2377
        %v2447 = vunpack.c.h.b16 %v2377
        %v2448 = vunpack.c.l.b16 %v2378
        %v2449 = vunpack.c.h.b16 %v2378
        %v2450 = vunpack.c.l.b16 %v2379
        %v2451 = vunpack.c.h.b16 %v2379
        %v2452 = vunpack.c.l.b16 %v2380
        %v2453 = vunpack.c.h.b16 %v2380
        %v2454 = vunpack.c.l.b16 %v2381
        %v2455 = vunpack.c.h.b16 %v2381
        %v2456 = vunpack.c.l.b16 %v2382
        %v2457 = vunpack.c.h.b16 %v2382
        %v2458 = vunpack.c.l.b16 %v2383
        %v2459 = vunpack.c.h.b16 %v2383
        %v2460 = vunpack.c.l.b16 %v2384
        %v2461 = vunpack.c.h.b16 %v2384
        %v2462 = vunpack.c.l.b16 %v2385
        %v2463 = vunpack.c.h.b16 %v2385
        %v2464 = vunpack.c.l.b16 %v2386
        %v2465 = vunpack.c.h.b16 %v2386
        %v2466 = vunpack.c.l.b16 %v2387
        %v2467 = vunpack.c.h.b16 %v2387
        %v2468 = vunpack.c.l.b16 %v2388
        %v2469 = vunpack.c.h.b16 %v2388
        %v2470 = vunpack.c.l.b16 %v2389
        %v2471 = vunpack.c.h.b16 %v2389
        %v2472 = vunpack.c.l.b16 %v2390
        %v2473 = vunpack.c.h.b16 %v2390
        %v2474 = vunpack.c.l.b16 %v2391
        %v2475 = vunpack.c.h.b16 %v2391
        %v2476 = vunpack.c.l.b16 %v2392
        %v2477 = vunpack.c.h.b16 %v2392
        %v2478 = vunpack.c.l.b16 %v2393
        %v2479 = vunpack.c.h.b16 %v2393
        %v2480 = vunpack.c.l.b16 %v2394
        %v2481 = vunpack.c.h.b16 %v2394
        %v2482 = vunpack.c.l.b16 %v2395
        %v2483 = vunpack.c.h.b16 %v2395
        %v2484 = vunpack.c.l.b16 %v2396
        %v2485 = vunpack.c.h.b16 %v2396
        %v2486 = vunpack.c.l.b16 %v2397
        %v2487 = vunpack.c.h.b16 %v2397
        %v2488 = vunpack.c.l.b16 %v2398
        %v2489 = vunpack.c.h.b16 %v2398
        %v2490 = vunpack.c.l.b16 %v2399
        %v2491 = vunpack.c.h.b16 %v2399
        %v2492 = vunpack.c.l.b16 %v2400
        %v2493 = vunpack.c.h.b16 %v2400
        %v2494 = vunpack.c.l.b16 %v2401
        %v2495 = vunpack.c.h.b16 %v2401
        %v2496 = vunpack.c.l.b16 %v2402
        %v2497 = vunpack.c.h.b16 %v2402
        %v2498 = vunpack.c.l.b16 %v2403
        %v2499 = vunpack.c.h.b16 %v2403
        %v2500 = vpack.c.b16 %v2438, %v2436
        %v2501 = vpack.c.b16 %v2439, %v2437
        %v2502 = vpack.c.b16 %v2442, %v2440
        %v2503 = vpack.c.b16 %v2443, %v2441
        %v2504 = vpack.c.b16 %v2446, %v2444
        %v2505 = vpack.c.b16 %v2447, %v2445
        %v2506 = vpack.c.b16 %v2450, %v2448
        %v2507 = vpack.c.b16 %v2451, %v2449
        %v2508 = vpack.c.b16 %v2454, %v2452
        %v2509 = vpack.c.b16 %v2455, %v2453
        %v2510 = vpack.c.b16 %v2458, %v2456
        %v2511 = vpack.c.b16 %v2459, %v2457
        %v2512 = vpack.c.b16 %v2462, %v2460
        %v2513 = vpack.c.b16 %v2463, %v2461
        %v2514 = vpack.c.b16 %v2466, %v2464
        %v2515 = vpack.c.b16 %v2467, %v2465
        %v2516 = vpack.c.b16 %v2470, %v2468
        %v2517 = vpack.c.b16 %v2471, %v2469
        %v2518 = vpack.c.b16 %v2474, %v2472
        %v2519 = vpack.c.b16 %v2475, %v2473
        %v2520 = vpack.c.b16 %v2478, %v2476
        %v2521 = vpack.c.b16 %v2479, %v2477
        %v2522 = vpack.c.b16 %v2482, %v2480
        %v2523 = vpack.c.b16 %v2483, %v2481
        %v2524 = vpack.c.b16 %v2486, %v2484
        %v2525 = vpack.c.b16 %v2487, %v2485
        %v2526 = vpack.c.b16 %v2490, %v2488
        %v2527 = vpack.c.b16 %v2491, %v2489
        %v2528 = vpack.c.b16 %v2494, %v2492
        %v2529 = vpack.c.b16 %v2495, %v2493
        %v2530 = vpack.c.b16 %v2498, %v2496
        %v2531 = vpack.c.b16 %v2499, %v2497
        %2564 = vmatprep.subr.bf16.mxu0 %v2501
        %2565 = vmatpush1.bf16.msra.mxu0 %v2500
        %2566 = vmatprep.subr.bf16.mxu0 %v2503
        %2567 = vmatpush1.bf16.msra.mxu0 %v2502
        %2568 = vmatprep.subr.bf16.mxu0 %v2505
        %2569 = vmatpush1.bf16.msra.mxu0 %v2504
        %2570 = vmatprep.subr.bf16.mxu0 %v2507
        %2571 = vmatpush1.bf16.msra.mxu0 %v2506
        %2572 = vmatprep.subr.bf16.mxu0 %v2509
        %2573 = vmatpush1.bf16.msra.mxu0 %v2508
        %2574 = vmatprep.subr.bf16.mxu0 %v2511
        %2575 = vmatpush1.bf16.msra.mxu0 %v2510
        %2576 = vmatprep.subr.bf16.mxu0 %v2513
        %2577 = vmatpush1.bf16.msra.mxu0 %v2512
        %2578 = vmatprep.subr.bf16.mxu0 %v2515
        %2579 = vmatpush1.bf16.msra.mxu0 %v2514
        %2580 = vmatprep.subr.bf16.mxu0 %v2517
        %2581 = vmatpush1.bf16.msra.mxu0 %v2516
        %2582 = vmatprep.subr.bf16.mxu0 %v2519
        %2583 = vmatpush1.bf16.msra.mxu0 %v2518
        %2584 = vmatprep.subr.bf16.mxu0 %v2521
        %2585 = vmatpush1.bf16.msra.mxu0 %v2520
        %2586 = vmatprep.subr.bf16.mxu0 %v2523
        %2587 = vmatpush1.bf16.msra.mxu0 %v2522
        %2588 = vmatprep.subr.bf16.mxu0 %v2525
        %2589 = vmatpush1.bf16.msra.mxu0 %v2524
        %2590 = vmatprep.subr.bf16.mxu0 %v2527
        %2591 = vmatpush1.bf16.msra.mxu0 %v2526
        %2592 = vmatprep.subr.bf16.mxu0 %v2529
        %2593 = vmatpush1.bf16.msra.mxu0 %v2528
        %2594 = vmatprep.subr.bf16.mxu0 %v2531
        %2595 = vmatpush1.bf16.msra.mxu0 %v2530
        %2596 = vmatprep.mubr.bf16.mxu0 %v2371
        %2597 = vmatmul.mubr.bf16.gmra.mrb[0].mxu0 %v2370
        %v2598 = vpop.f32.mrb[0].mxu0
        %v2599 = vadd.f32 0.0, %v2598
        %v2600 = vpop.f32.mrb[0].mxu0
        %v2601 = vadd.f32 0.0, %v2600
        %v2602 = vpop.f32.mrb[0].mxu0
        %v2603 = vpop.f32.mrb[0].mxu0
        %2604 = vdwg.mxu0
        %v2606 = vlaneseq
        %v2607 = vshrl.u32 %v2606, 7
        %v2608 = vsub.s32 0, %v2607
        %v2609 = vrot.slane %v2122, %v2608
        %v2610 = vlaneseq
        %v2611 = vshrl.u32 %v2610, 7
        %v2612 = vsub.s32 1, %v2611
        %v2613 = vrot.slane %v2122, %v2612
        %v2616 = vadd.f32 %v2609, %v2599
        %v2617 = vadd.f32 %v2613, %v2601
        %s2618 = scalar_lea.vmem [#allocation14], 256
        %v2619 = vld [vmem:[%s2618] sm:$0xff]
        %v2620 = vld [vmem:[%s2618 + $0x8] sm:$0xff]
        %v2621 = vld [vmem:[%s2618 + $0x10] sm:$0xff]
        %v2622 = vld [vmem:[%s2618 + $0x18] sm:$0xff]
        %v2623 = vld [vmem:[%s2618 + $0x20] sm:$0xff]
        %v2624 = vld [vmem:[%s2618 + $0x28] sm:$0xff]
        %v2625 = vld [vmem:[%s2618 + $0x30] sm:$0xff]
        %v2626 = vld [vmem:[%s2618 + $0x38] sm:$0xff]
        %v2627 = vld [vmem:[%s2618 + $0x40] sm:$0xff]
        %v2628 = vld [vmem:[%s2618 + $0x48] sm:$0xff]
        %v2629 = vld [vmem:[%s2618 + $0x50] sm:$0xff]
        %v2630 = vld [vmem:[%s2618 + $0x58] sm:$0xff]
        %v2631 = vld [vmem:[%s2618 + $0x60] sm:$0xff]
        %v2632 = vld [vmem:[%s2618 + $0x68] sm:$0xff]
        %v2633 = vld [vmem:[%s2618 + $0x70] sm:$0xff]
        %v2634 = vld [vmem:[%s2618 + $0x78] sm:$0xff]
        %v2635 = vld [vmem:[%s2618 + $0x80] sm:$0xff]
        %v2636 = vld [vmem:[%s2618 + $0x88] sm:$0xff]
        %v2637 = vld [vmem:[%s2618 + $0x90] sm:$0xff]
        %v2638 = vld [vmem:[%s2618 + $0x98] sm:$0xff]
        %v2639 = vld [vmem:[%s2618 + $0xa0] sm:$0xff]
        %v2640 = vld [vmem:[%s2618 + $0xa8] sm:$0xff]
        %v2641 = vld [vmem:[%s2618 + $0xb0] sm:$0xff]
        %v2642 = vld [vmem:[%s2618 + $0xb8] sm:$0xff]
        %v2643 = vld [vmem:[%s2618 + $0xc0] sm:$0xff]
        %v2644 = vld [vmem:[%s2618 + $0xc8] sm:$0xff]
        %v2645 = vld [vmem:[%s2618 + $0xd0] sm:$0xff]
        %v2646 = vld [vmem:[%s2618 + $0xd8] sm:$0xff]
        %v2647 = vld [vmem:[%s2618 + $0xe0] sm:$0xff]
        %v2648 = vld [vmem:[%s2618 + $0xe8] sm:$0xff]
        %v2649 = vld [vmem:[%s2618 + $0xf0] sm:$0xff]
        %v2650 = vld [vmem:[%s2618 + $0xf8] sm:$0xff]
        %s2651 = scalar_lea.vmem [#allocation16], 2
        %v2652 = vld [vmem:[%s2651] sm:$0x3]
        %v2654 = vlaneseq
        %v2655 = vshrl.u32 %v2654, 7
        %v2656 = vsub.s32 0, %v2655
        %v2657 = vrot.slane %v2652, %v2656
        %v2658 = vlaneseq
        %v2659 = vshrl.u32 %v2658, 7
        %v2660 = vsub.s32 1, %v2659
        %v2661 = vrot.slane %v2652, %v2660
        %v2696 = vunpack.c.l.b16 %v2619
        %v2697 = vunpack.c.h.b16 %v2619
        %v2698 = vunpack.c.l.b16 %v2620
        %v2699 = vunpack.c.h.b16 %v2620
        %v2700 = vunpack.c.l.b16 %v2621
        %v2701 = vunpack.c.h.b16 %v2621
        %v2702 = vunpack.c.l.b16 %v2622
        %v2703 = vunpack.c.h.b16 %v2622
        %v2704 = vunpack.c.l.b16 %v2623
        %v2705 = vunpack.c.h.b16 %v2623
        %v2706 = vunpack.c.l.b16 %v2624
        %v2707 = vunpack.c.h.b16 %v2624
        %v2708 = vunpack.c.l.b16 %v2625
        %v2709 = vunpack.c.h.b16 %v2625
        %v2710 = vunpack.c.l.b16 %v2626
        %v2711 = vunpack.c.h.b16 %v2626
        %v2712 = vunpack.c.l.b16 %v2627
        %v2713 = vunpack.c.h.b16 %v2627
        %v2714 = vunpack.c.l.b16 %v2628
        %v2715 = vunpack.c.h.b16 %v2628
        %v2716 = vunpack.c.l.b16 %v2629
        %v2717 = vunpack.c.h.b16 %v2629
        %v2718 = vunpack.c.l.b16 %v2630
        %v2719 = vunpack.c.h.b16 %v2630
        %v2720 = vunpack.c.l.b16 %v2631
        %v2721 = vunpack.c.h.b16 %v2631
        %v2722 = vunpack.c.l.b16 %v2632
        %v2723 = vunpack.c.h.b16 %v2632
        %v2724 = vunpack.c.l.b16 %v2633
        %v2725 = vunpack.c.h.b16 %v2633
        %v2726 = vunpack.c.l.b16 %v2634
        %v2727 = vunpack.c.h.b16 %v2634
        %v2728 = vunpack.c.l.b16 %v2635
        %v2729 = vunpack.c.h.b16 %v2635
        %v2730 = vunpack.c.l.b16 %v2636
        %v2731 = vunpack.c.h.b16 %v2636
        %v2732 = vunpack.c.l.b16 %v2637
        %v2733 = vunpack.c.h.b16 %v2637
        %v2734 = vunpack.c.l.b16 %v2638
        %v2735 = vunpack.c.h.b16 %v2638
        %v2736 = vunpack.c.l.b16 %v2639
        %v2737 = vunpack.c.h.b16 %v2639
        %v2738 = vunpack.c.l.b16 %v2640
        %v2739 = vunpack.c.h.b16 %v2640
        %v2740 = vunpack.c.l.b16 %v2641
        %v2741 = vunpack.c.h.b16 %v2641
        %v2742 = vunpack.c.l.b16 %v2642
        %v2743 = vunpack.c.h.b16 %v2642
        %v2744 = vunpack.c.l.b16 %v2643
        %v2745 = vunpack.c.h.b16 %v2643
        %v2746 = vunpack.c.l.b16 %v2644
        %v2747 = vunpack.c.h.b16 %v2644
        %v2748 = vunpack.c.l.b16 %v2645
        %v2749 = vunpack.c.h.b16 %v2645
        %v2750 = vunpack.c.l.b16 %v2646
        %v2751 = vunpack.c.h.b16 %v2646
        %v2752 = vunpack.c.l.b16 %v2647
        %v2753 = vunpack.c.h.b16 %v2647
        %v2754 = vunpack.c.l.b16 %v2648
        %v2755 = vunpack.c.h.b16 %v2648
        %v2756 = vunpack.c.l.b16 %v2649
        %v2757 = vunpack.c.h.b16 %v2649
        %v2758 = vunpack.c.l.b16 %v2650
        %v2759 = vunpack.c.h.b16 %v2650
        %v2760 = vpack.c.b16 %v2698, %v2696
        %v2761 = vpack.c.b16 %v2699, %v2697
        %v2762 = vpack.c.b16 %v2702, %v2700
        %v2763 = vpack.c.b16 %v2703, %v2701
        %v2764 = vpack.c.b16 %v2706, %v2704
        %v2765 = vpack.c.b16 %v2707, %v2705
        %v2766 = vpack.c.b16 %v2710, %v2708
        %v2767 = vpack.c.b16 %v2711, %v2709
        %v2768 = vpack.c.b16 %v2714, %v2712
        %v2769 = vpack.c.b16 %v2715, %v2713
        %v2770 = vpack.c.b16 %v2718, %v2716
        %v2771 = vpack.c.b16 %v2719, %v2717
        %v2772 = vpack.c.b16 %v2722, %v2720
        %v2773 = vpack.c.b16 %v2723, %v2721
        %v2774 = vpack.c.b16 %v2726, %v2724
        %v2775 = vpack.c.b16 %v2727, %v2725
        %v2776 = vpack.c.b16 %v2730, %v2728
        %v2777 = vpack.c.b16 %v2731, %v2729
        %v2778 = vpack.c.b16 %v2734, %v2732
        %v2779 = vpack.c.b16 %v2735, %v2733
        %v2780 = vpack.c.b16 %v2738, %v2736
        %v2781 = vpack.c.b16 %v2739, %v2737
        %v2782 = vpack.c.b16 %v2742, %v2740
        %v2783 = vpack.c.b16 %v2743, %v2741
        %v2784 = vpack.c.b16 %v2746, %v2744
        %v2785 = vpack.c.b16 %v2747, %v2745
        %v2786 = vpack.c.b16 %v2750, %v2748
        %v2787 = vpack.c.b16 %v2751, %v2749
        %v2788 = vpack.c.b16 %v2754, %v2752
        %v2789 = vpack.c.b16 %v2755, %v2753
        %v2790 = vpack.c.b16 %v2758, %v2756
        %v2791 = vpack.c.b16 %v2759, %v2757
        %2824 = vmatprep.subr.bf16.mxu0 %v2761
        %2825 = vmatpush1.bf16.msra.mxu0 %v2760
        %2826 = vmatprep.subr.bf16.mxu0 %v2763
        %2827 = vmatpush1.bf16.msra.mxu0 %v2762
        %2828 = vmatprep.subr.bf16.mxu0 %v2765
        %2829 = vmatpush1.bf16.msra.mxu0 %v2764
        %2830 = vmatprep.subr.bf16.mxu0 %v2767
        %2831 = vmatpush1.bf16.msra.mxu0 %v2766
        %2832 = vmatprep.subr.bf16.mxu0 %v2769
        %2833 = vmatpush1.bf16.msra.mxu0 %v2768
        %2834 = vmatprep.subr.bf16.mxu0 %v2771
        %2835 = vmatpush1.bf16.msra.mxu0 %v2770
        %2836 = vmatprep.subr.bf16.mxu0 %v2773
        %2837 = vmatpush1.bf16.msra.mxu0 %v2772
        %2838 = vmatprep.subr.bf16.mxu0 %v2775
        %2839 = vmatpush1.bf16.msra.mxu0 %v2774
        %2840 = vmatprep.subr.bf16.mxu0 %v2777
        %2841 = vmatpush1.bf16.msra.mxu0 %v2776
        %2842 = vmatprep.subr.bf16.mxu0 %v2779
        %2843 = vmatpush1.bf16.msra.mxu0 %v2778
        %2844 = vmatprep.subr.bf16.mxu0 %v2781
        %2845 = vmatpush1.bf16.msra.mxu0 %v2780
        %2846 = vmatprep.subr.bf16.mxu0 %v2783
        %2847 = vmatpush1.bf16.msra.mxu0 %v2782
        %2848 = vmatprep.subr.bf16.mxu0 %v2785
        %2849 = vmatpush1.bf16.msra.mxu0 %v2784
        %2850 = vmatprep.subr.bf16.mxu0 %v2787
        %2851 = vmatpush1.bf16.msra.mxu0 %v2786
        %2852 = vmatprep.subr.bf16.mxu0 %v2789
        %2853 = vmatpush1.bf16.msra.mxu0 %v2788
        %2854 = vmatprep.subr.bf16.mxu0 %v2791
        %2855 = vmatpush1.bf16.msra.mxu0 %v2790
        %2856 = vmatprep.mubr.bf16.mxu0 %v2121
        %2857 = vmatmul.mubr.bf16.gmra.mrb[0].mxu0 %v2120
        %v2858 = vpop.f32.mrb[0].mxu0
        %v2859 = vadd.f32 %v2657, %v2858
        %v2860 = vpop.f32.mrb[0].mxu0
        %v2861 = vadd.f32 %v2661, %v2860
        %v2862 = vpop.f32.mrb[0].mxu0
        %v2863 = vpop.f32.mrb[0].mxu0
        %2864 = vdwg.mxu0
        %v2865 = vmax.f32 %v2859, 0.0
        %v2866 = vmax.f32 %v2861, 0.0
        %v2867 = vpack.c.bf16 %v2865, %v2865
        %v2868 = vpack.c.bf16 %v2866, %v2866
        %s2869 = scalar_lea.vmem [#allocation17], 256
        %v2870 = vld [vmem:[%s2869] sm:$0xff]
        %v2871 = vld [vmem:[%s2869 + $0x8] sm:$0xff]
        %v2872 = vld [vmem:[%s2869 + $0x10] sm:$0xff]
        %v2873 = vld [vmem:[%s2869 + $0x18] sm:$0xff]
        %v2874 = vld [vmem:[%s2869 + $0x20] sm:$0xff]
        %v2875 = vld [vmem:[%s2869 + $0x28] sm:$0xff]
        %v2876 = vld [vmem:[%s2869 + $0x30] sm:$0xff]
        %v2877 = vld [vmem:[%s2869 + $0x38] sm:$0xff]
        %v2878 = vld [vmem:[%s2869 + $0x40] sm:$0xff]
        %v2879 = vld [vmem:[%s2869 + $0x48] sm:$0xff]
        %v2880 = vld [vmem:[%s2869 + $0x50] sm:$0xff]
        %v2881 = vld [vmem:[%s2869 + $0x58] sm:$0xff]
        %v2882 = vld [vmem:[%s2869 + $0x60] sm:$0xff]
        %v2883 = vld [vmem:[%s2869 + $0x68] sm:$0xff]
        %v2884 = vld [vmem:[%s2869 + $0x70] sm:$0xff]
        %v2885 = vld [vmem:[%s2869 + $0x78] sm:$0xff]
        %v2886 = vld [vmem:[%s2869 + $0x80] sm:$0xff]
        %v2887 = vld [vmem:[%s2869 + $0x88] sm:$0xff]
        %v2888 = vld [vmem:[%s2869 + $0x90] sm:$0xff]
        %v2889 = vld [vmem:[%s2869 + $0x98] sm:$0xff]
        %v2890 = vld [vmem:[%s2869 + $0xa0] sm:$0xff]
        %v2891 = vld [vmem:[%s2869 + $0xa8] sm:$0xff]
        %v2892 = vld [vmem:[%s2869 + $0xb0] sm:$0xff]
        %v2893 = vld [vmem:[%s2869 + $0xb8] sm:$0xff]
        %v2894 = vld [vmem:[%s2869 + $0xc0] sm:$0xff]
        %v2895 = vld [vmem:[%s2869 + $0xc8] sm:$0xff]
        %v2896 = vld [vmem:[%s2869 + $0xd0] sm:$0xff]
        %v2897 = vld [vmem:[%s2869 + $0xd8] sm:$0xff]
        %v2898 = vld [vmem:[%s2869 + $0xe0] sm:$0xff]
        %v2899 = vld [vmem:[%s2869 + $0xe8] sm:$0xff]
        %v2900 = vld [vmem:[%s2869 + $0xf0] sm:$0xff]
        %v2901 = vld [vmem:[%s2869 + $0xf8] sm:$0xff]
        %v2934 = vunpack.c.l.b16 %v2870
        %v2935 = vunpack.c.h.b16 %v2870
        %v2936 = vunpack.c.l.b16 %v2871
        %v2937 = vunpack.c.h.b16 %v2871
        %v2938 = vunpack.c.l.b16 %v2872
        %v2939 = vunpack.c.h.b16 %v2872
        %v2940 = vunpack.c.l.b16 %v2873
        %v2941 = vunpack.c.h.b16 %v2873
        %v2942 = vunpack.c.l.b16 %v2874
        %v2943 = vunpack.c.h.b16 %v2874
        %v2944 = vunpack.c.l.b16 %v2875
        %v2945 = vunpack.c.h.b16 %v2875
        %v2946 = vunpack.c.l.b16 %v2876
        %v2947 = vunpack.c.h.b16 %v2876
        %v2948 = vunpack.c.l.b16 %v2877
        %v2949 = vunpack.c.h.b16 %v2877
        %v2950 = vunpack.c.l.b16 %v2878
        %v2951 = vunpack.c.h.b16 %v2878
        %v2952 = vunpack.c.l.b16 %v2879
        %v2953 = vunpack.c.h.b16 %v2879
        %v2954 = vunpack.c.l.b16 %v2880
        %v2955 = vunpack.c.h.b16 %v2880
        %v2956 = vunpack.c.l.b16 %v2881
        %v2957 = vunpack.c.h.b16 %v2881
        %v2958 = vunpack.c.l.b16 %v2882
        %v2959 = vunpack.c.h.b16 %v2882
        %v2960 = vunpack.c.l.b16 %v2883
        %v2961 = vunpack.c.h.b16 %v2883
        %v2962 = vunpack.c.l.b16 %v2884
        %v2963 = vunpack.c.h.b16 %v2884
        %v2964 = vunpack.c.l.b16 %v2885
        %v2965 = vunpack.c.h.b16 %v2885
        %v2966 = vunpack.c.l.b16 %v2886
        %v2967 = vunpack.c.h.b16 %v2886
        %v2968 = vunpack.c.l.b16 %v2887
        %v2969 = vunpack.c.h.b16 %v2887
        %v2970 = vunpack.c.l.b16 %v2888
        %v2971 = vunpack.c.h.b16 %v2888
        %v2972 = vunpack.c.l.b16 %v2889
        %v2973 = vunpack.c.h.b16 %v2889
        %v2974 = vunpack.c.l.b16 %v2890
        %v2975 = vunpack.c.h.b16 %v2890
        %v2976 = vunpack.c.l.b16 %v2891
        %v2977 = vunpack.c.h.b16 %v2891
        %v2978 = vunpack.c.l.b16 %v2892
        %v2979 = vunpack.c.h.b16 %v2892
        %v2980 = vunpack.c.l.b16 %v2893
        %v2981 = vunpack.c.h.b16 %v2893
        %v2982 = vunpack.c.l.b16 %v2894
        %v2983 = vunpack.c.h.b16 %v2894
        %v2984 = vunpack.c.l.b16 %v2895
        %v2985 = vunpack.c.h.b16 %v2895
        %v2986 = vunpack.c.l.b16 %v2896
        %v2987 = vunpack.c.h.b16 %v2896
        %v2988 = vunpack.c.l.b16 %v2897
        %v2989 = vunpack.c.h.b16 %v2897
        %v2990 = vunpack.c.l.b16 %v2898
        %v2991 = vunpack.c.h.b16 %v2898
        %v2992 = vunpack.c.l.b16 %v2899
        %v2993 = vunpack.c.h.b16 %v2899
        %v2994 = vunpack.c.l.b16 %v2900
        %v2995 = vunpack.c.h.b16 %v2900
        %v2996 = vunpack.c.l.b16 %v2901
        %v2997 = vunpack.c.h.b16 %v2901
        %v2998 = vpack.c.b16 %v2936, %v2934
        %v2999 = vpack.c.b16 %v2937, %v2935
        %v3000 = vpack.c.b16 %v2940, %v2938
        %v3001 = vpack.c.b16 %v2941, %v2939
        %v3002 = vpack.c.b16 %v2944, %v2942
        %v3003 = vpack.c.b16 %v2945, %v2943
        %v3004 = vpack.c.b16 %v2948, %v2946
        %v3005 = vpack.c.b16 %v2949, %v2947
        %v3006 = vpack.c.b16 %v2952, %v2950
        %v3007 = vpack.c.b16 %v2953, %v2951
        %v3008 = vpack.c.b16 %v2956, %v2954
        %v3009 = vpack.c.b16 %v2957, %v2955
        %v3010 = vpack.c.b16 %v2960, %v2958
        %v3011 = vpack.c.b16 %v2961, %v2959
        %v3012 = vpack.c.b16 %v2964, %v2962
        %v3013 = vpack.c.b16 %v2965, %v2963
        %v3014 = vpack.c.b16 %v2968, %v2966
        %v3015 = vpack.c.b16 %v2969, %v2967
        %v3016 = vpack.c.b16 %v2972, %v2970
        %v3017 = vpack.c.b16 %v2973, %v2971
        %v3018 = vpack.c.b16 %v2976, %v2974
        %v3019 = vpack.c.b16 %v2977, %v2975
        %v3020 = vpack.c.b16 %v2980, %v2978
        %v3021 = vpack.c.b16 %v2981, %v2979
        %v3022 = vpack.c.b16 %v2984, %v2982
        %v3023 = vpack.c.b16 %v2985, %v2983
        %v3024 = vpack.c.b16 %v2988, %v2986
        %v3025 = vpack.c.b16 %v2989, %v2987
        %v3026 = vpack.c.b16 %v2992, %v2990
        %v3027 = vpack.c.b16 %v2993, %v2991
        %v3028 = vpack.c.b16 %v2996, %v2994
        %v3029 = vpack.c.b16 %v2997, %v2995
        %3062 = vmatprep.subr.bf16.mxu0 %v2999
        %3063 = vmatpush1.bf16.msra.mxu0 %v2998
        %3064 = vmatprep.subr.bf16.mxu0 %v3001
        %3065 = vmatpush1.bf16.msra.mxu0 %v3000
        %3066 = vmatprep.subr.bf16.mxu0 %v3003
        %3067 = vmatpush1.bf16.msra.mxu0 %v3002
        %3068 = vmatprep.subr.bf16.mxu0 %v3005
        %3069 = vmatpush1.bf16.msra.mxu0 %v3004
        %3070 = vmatprep.subr.bf16.mxu0 %v3007
        %3071 = vmatpush1.bf16.msra.mxu0 %v3006
        %3072 = vmatprep.subr.bf16.mxu0 %v3009
        %3073 = vmatpush1.bf16.msra.mxu0 %v3008
        %3074 = vmatprep.subr.bf16.mxu0 %v3011
        %3075 = vmatpush1.bf16.msra.mxu0 %v3010
        %3076 = vmatprep.subr.bf16.mxu0 %v3013
        %3077 = vmatpush1.bf16.msra.mxu0 %v3012
        %3078 = vmatprep.subr.bf16.mxu0 %v3015
        %3079 = vmatpush1.bf16.msra.mxu0 %v3014
        %3080 = vmatprep.subr.bf16.mxu0 %v3017
        %3081 = vmatpush1.bf16.msra.mxu0 %v3016
        %3082 = vmatprep.subr.bf16.mxu0 %v3019
        %3083 = vmatpush1.bf16.msra.mxu0 %v3018
        %3084 = vmatprep.subr.bf16.mxu0 %v3021
        %3085 = vmatpush1.bf16.msra.mxu0 %v3020
        %3086 = vmatprep.subr.bf16.mxu0 %v3023
        %3087 = vmatpush1.bf16.msra.mxu0 %v3022
        %3088 = vmatprep.subr.bf16.mxu0 %v3025
        %3089 = vmatpush1.bf16.msra.mxu0 %v3024
        %3090 = vmatprep.subr.bf16.mxu0 %v3027
        %3091 = vmatpush1.bf16.msra.mxu0 %v3026
        %3092 = vmatprep.subr.bf16.mxu0 %v3029
        %3093 = vmatpush1.bf16.msra.mxu0 %v3028
        %3094 = vmatprep.mubr.bf16.mxu0 %v2868
        %3095 = vmatmul.mubr.bf16.gmra.mrb[0].mxu0 %v2867
        %v3096 = vpop.f32.mrb[0].mxu0
        %v3097 = vadd.f32 0.0, %v3096
        %v3098 = vpop.f32.mrb[0].mxu0
        %v3099 = vadd.f32 0.0, %v3098
        %v3100 = vpop.f32.mrb[0].mxu0
        %v3101 = vpop.f32.mrb[0].mxu0
        %3102 = vdwg.mxu0
        %v3103 = vadd.f32 %v2616, %v3097
        %v3104 = vadd.f32 %v2617, %v3099
        %s3105 = scalar_lea.vmem [#allocation14], 512
        %v3106 = vld [vmem:[%s3105] sm:$0xff]
        %v3107 = vld [vmem:[%s3105 + $0x8] sm:$0xff]
        %v3108 = vld [vmem:[%s3105 + $0x10] sm:$0xff]
        %v3109 = vld [vmem:[%s3105 + $0x18] sm:$0xff]
        %v3110 = vld [vmem:[%s3105 + $0x20] sm:$0xff]
        %v3111 = vld [vmem:[%s3105 + $0x28] sm:$0xff]
        %v3112 = vld [vmem:[%s3105 + $0x30] sm:$0xff]
        %v3113 = vld [vmem:[%s3105 + $0x38] sm:$0xff]
        %v3114 = vld [vmem:[%s3105 + $0x40] sm:$0xff]
        %v3115 = vld [vmem:[%s3105 + $0x48] sm:$0xff]
        %v3116 = vld [vmem:[%s3105 + $0x50] sm:$0xff]
        %v3117 = vld [vmem:[%s3105 + $0x58] sm:$0xff]
        %v3118 = vld [vmem:[%s3105 + $0x60] sm:$0xff]
        %v3119 = vld [vmem:[%s3105 + $0x68] sm:$0xff]
        %v3120 = vld [vmem:[%s3105 + $0x70] sm:$0xff]
        %v3121 = vld [vmem:[%s3105 + $0x78] sm:$0xff]
        %v3122 = vld [vmem:[%s3105 + $0x80] sm:$0xff]
        %v3123 = vld [vmem:[%s3105 + $0x88] sm:$0xff]
        %v3124 = vld [vmem:[%s3105 + $0x90] sm:$0xff]
        %v3125 = vld [vmem:[%s3105 + $0x98] sm:$0xff]
        %v3126 = vld [vmem:[%s3105 + $0xa0] sm:$0xff]
        %v3127 = vld [vmem:[%s3105 + $0xa8] sm:$0xff]
        %v3128 = vld [vmem:[%s3105 + $0xb0] sm:$0xff]
        %v3129 = vld [vmem:[%s3105 + $0xb8] sm:$0xff]
        %v3130 = vld [vmem:[%s3105 + $0xc0] sm:$0xff]
        %v3131 = vld [vmem:[%s3105 + $0xc8] sm:$0xff]
        %v3132 = vld [vmem:[%s3105 + $0xd0] sm:$0xff]
        %v3133 = vld [vmem:[%s3105 + $0xd8] sm:$0xff]
        %v3134 = vld [vmem:[%s3105 + $0xe0] sm:$0xff]
        %v3135 = vld [vmem:[%s3105 + $0xe8] sm:$0xff]
        %v3136 = vld [vmem:[%s3105 + $0xf0] sm:$0xff]
        %v3137 = vld [vmem:[%s3105 + $0xf8] sm:$0xff]
        %s3138 = scalar_lea.vmem [#allocation16], 4
        %v3139 = vld [vmem:[%s3138] sm:$0x3]
        %v3141 = vlaneseq
        %v3142 = vshrl.u32 %v3141, 7
        %v3143 = vsub.s32 0, %v3142
        %v3144 = vrot.slane %v3139, %v3143
        %v3145 = vlaneseq
        %v3146 = vshrl.u32 %v3145, 7
        %v3147 = vsub.s32 1, %v3146
        %v3148 = vrot.slane %v3139, %v3147
        %v3183 = vunpack.c.l.b16 %v3106
        %v3184 = vunpack.c.h.b16 %v3106
        %v3185 = vunpack.c.l.b16 %v3107
        %v3186 = vunpack.c.h.b16 %v3107
        %v3187 = vunpack.c.l.b16 %v3108
        %v3188 = vunpack.c.h.b16 %v3108
        %v3189 = vunpack.c.l.b16 %v3109
        %v3190 = vunpack.c.h.b16 %v3109
        %v3191 = vunpack.c.l.b16 %v3110
        %v3192 = vunpack.c.h.b16 %v3110
        %v3193 = vunpack.c.l.b16 %v3111
        %v3194 = vunpack.c.h.b16 %v3111
        %v3195 = vunpack.c.l.b16 %v3112
        %v3196 = vunpack.c.h.b16 %v3112
        %v3197 = vunpack.c.l.b16 %v3113
        %v3198 = vunpack.c.h.b16 %v3113
        %v3199 = vunpack.c.l.b16 %v3114
        %v3200 = vunpack.c.h.b16 %v3114
        %v3201 = vunpack.c.l.b16 %v3115
        %v3202 = vunpack.c.h.b16 %v3115
        %v3203 = vunpack.c.l.b16 %v3116
        %v3204 = vunpack.c.h.b16 %v3116
        %v3205 = vunpack.c.l.b16 %v3117
        %v3206 = vunpack.c.h.b16 %v3117
        %v3207 = vunpack.c.l.b16 %v3118
        %v3208 = vunpack.c.h.b16 %v3118
        %v3209 = vunpack.c.l.b16 %v3119
        %v3210 = vunpack.c.h.b16 %v3119
        %v3211 = vunpack.c.l.b16 %v3120
        %v3212 = vunpack.c.h.b16 %v3120
        %v3213 = vunpack.c.l.b16 %v3121
        %v3214 = vunpack.c.h.b16 %v3121
        %v3215 = vunpack.c.l.b16 %v3122
        %v3216 = vunpack.c.h.b16 %v3122
        %v3217 = vunpack.c.l.b16 %v3123
        %v3218 = vunpack.c.h.b16 %v3123
        %v3219 = vunpack.c.l.b16 %v3124
        %v3220 = vunpack.c.h.b16 %v3124
        %v3221 = vunpack.c.l.b16 %v3125
        %v3222 = vunpack.c.h.b16 %v3125
        %v3223 = vunpack.c.l.b16 %v3126
        %v3224 = vunpack.c.h.b16 %v3126
        %v3225 = vunpack.c.l.b16 %v3127
        %v3226 = vunpack.c.h.b16 %v3127
        %v3227 = vunpack.c.l.b16 %v3128
        %v3228 = vunpack.c.h.b16 %v3128
        %v3229 = vunpack.c.l.b16 %v3129
        %v3230 = vunpack.c.h.b16 %v3129
        %v3231 = vunpack.c.l.b16 %v3130
        %v3232 = vunpack.c.h.b16 %v3130
        %v3233 = vunpack.c.l.b16 %v3131
        %v3234 = vunpack.c.h.b16 %v3131
        %v3235 = vunpack.c.l.b16 %v3132
        %v3236 = vunpack.c.h.b16 %v3132
        %v3237 = vunpack.c.l.b16 %v3133
        %v3238 = vunpack.c.h.b16 %v3133
        %v3239 = vunpack.c.l.b16 %v3134
        %v3240 = vunpack.c.h.b16 %v3134
        %v3241 = vunpack.c.l.b16 %v3135
        %v3242 = vunpack.c.h.b16 %v3135
        %v3243 = vunpack.c.l.b16 %v3136
        %v3244 = vunpack.c.h.b16 %v3136
        %v3245 = vunpack.c.l.b16 %v3137
        %v3246 = vunpack.c.h.b16 %v3137
        %v3247 = vpack.c.b16 %v3185, %v3183
        %v3248 = vpack.c.b16 %v3186, %v3184
        %v3249 = vpack.c.b16 %v3189, %v3187
        %v3250 = vpack.c.b16 %v3190, %v3188
        %v3251 = vpack.c.b16 %v3193, %v3191
        %v3252 = vpack.c.b16 %v3194, %v3192
        %v3253 = vpack.c.b16 %v3197, %v3195
        %v3254 = vpack.c.b16 %v3198, %v3196
        %v3255 = vpack.c.b16 %v3201, %v3199
        %v3256 = vpack.c.b16 %v3202, %v3200
        %v3257 = vpack.c.b16 %v3205, %v3203
        %v3258 = vpack.c.b16 %v3206, %v3204
        %v3259 = vpack.c.b16 %v3209, %v3207
        %v3260 = vpack.c.b16 %v3210, %v3208
        %v3261 = vpack.c.b16 %v3213, %v3211
        %v3262 = vpack.c.b16 %v3214, %v3212
        %v3263 = vpack.c.b16 %v3217, %v3215
        %v3264 = vpack.c.b16 %v3218, %v3216
        %v3265 = vpack.c.b16 %v3221, %v3219
        %v3266 = vpack.c.b16 %v3222, %v3220
        %v3267 = vpack.c.b16 %v3225, %v3223
        %v3268 = vpack.c.b16 %v3226, %v3224
        %v3269 = vpack.c.b16 %v3229, %v3227
        %v3270 = vpack.c.b16 %v3230, %v3228
        %v3271 = vpack.c.b16 %v3233, %v3231
        %v3272 = vpack.c.b16 %v3234, %v3232
        %v3273 = vpack.c.b16 %v3237, %v3235
        %v3274 = vpack.c.b16 %v3238, %v3236
        %v3275 = vpack.c.b16 %v3241, %v3239
        %v3276 = vpack.c.b16 %v3242, %v3240
        %v3277 = vpack.c.b16 %v3245, %v3243
        %v3278 = vpack.c.b16 %v3246, %v3244
        %3311 = vmatprep.subr.bf16.mxu0 %v3248
        %3312 = vmatpush1.bf16.msra.mxu0 %v3247
        %3313 = vmatprep.subr.bf16.mxu0 %v3250
        %3314 = vmatpush1.bf16.msra.mxu0 %v3249
        %3315 = vmatprep.subr.bf16.mxu0 %v3252
        %3316 = vmatpush1.bf16.msra.mxu0 %v3251
        %3317 = vmatprep.subr.bf16.mxu0 %v3254
        %3318 = vmatpush1.bf16.msra.mxu0 %v3253
        %3319 = vmatprep.subr.bf16.mxu0 %v3256
        %3320 = vmatpush1.bf16.msra.mxu0 %v3255
        %3321 = vmatprep.subr.bf16.mxu0 %v3258
        %3322 = vmatpush1.bf16.msra.mxu0 %v3257
        %3323 = vmatprep.subr.bf16.mxu0 %v3260
        %3324 = vmatpush1.bf16.msra.mxu0 %v3259
        %3325 = vmatprep.subr.bf16.mxu0 %v3262
        %3326 = vmatpush1.bf16.msra.mxu0 %v3261
        %3327 = vmatprep.subr.bf16.mxu0 %v3264
        %3328 = vmatpush1.bf16.msra.mxu0 %v3263
        %3329 = vmatprep.subr.bf16.mxu0 %v3266
        %3330 = vmatpush1.bf16.msra.mxu0 %v3265
        %3331 = vmatprep.subr.bf16.mxu0 %v3268
        %3332 = vmatpush1.bf16.msra.mxu0 %v3267
        %3333 = vmatprep.subr.bf16.mxu0 %v3270
        %3334 = vmatpush1.bf16.msra.mxu0 %v3269
        %3335 = vmatprep.subr.bf16.mxu0 %v3272
        %3336 = vmatpush1.bf16.msra.mxu0 %v3271
        %3337 = vmatprep.subr.bf16.mxu0 %v3274
        %3338 = vmatpush1.bf16.msra.mxu0 %v3273
        %3339 = vmatprep.subr.bf16.mxu0 %v3276
        %3340 = vmatpush1.bf16.msra.mxu0 %v3275
        %3341 = vmatprep.subr.bf16.mxu0 %v3278
        %3342 = vmatpush1.bf16.msra.mxu0 %v3277
        %3343 = vmatprep.mubr.bf16.mxu0 %v2121
        %3344 = vmatmul.mubr.bf16.gmra.mrb[0].mxu0 %v2120
        %v3345 = vpop.f32.mrb[0].mxu0
        %v3346 = vadd.f32 %v3144, %v3345
        %v3347 = vpop.f32.mrb[0].mxu0
        %v3348 = vadd.f32 %v3148, %v3347
        %v3349 = vpop.f32.mrb[0].mxu0
        %v3350 = vpop.f32.mrb[0].mxu0
        %3351 = vdwg.mxu0
        %v3352 = vmax.f32 %v3346, 0.0
        %v3353 = vmax.f32 %v3348, 0.0
        %v3354 = vpack.c.bf16 %v3352, %v3352
        %v3355 = vpack.c.bf16 %v3353, %v3353
        %s3356 = scalar_lea.vmem [#allocation17], 512
        %v3357 = vld [vmem:[%s3356] sm:$0xff]
        %v3358 = vld [vmem:[%s3356 + $0x8] sm:$0xff]
        %v3359 = vld [vmem:[%s3356 + $0x10] sm:$0xff]
        %v3360 = vld [vmem:[%s3356 + $0x18] sm:$0xff]
        %v3361 = vld [vmem:[%s3356 + $0x20] sm:$0xff]
        %v3362 = vld [vmem:[%s3356 + $0x28] sm:$0xff]
        %v3363 = vld [vmem:[%s3356 + $0x30] sm:$0xff]
        %v3364 = vld [vmem:[%s3356 + $0x38] sm:$0xff]
        %v3365 = vld [vmem:[%s3356 + $0x40] sm:$0xff]
        %v3366 = vld [vmem:[%s3356 + $0x48] sm:$0xff]
        %v3367 = vld [vmem:[%s3356 + $0x50] sm:$0xff]
        %v3368 = vld [vmem:[%s3356 + $0x58] sm:$0xff]
        %v3369 = vld [vmem:[%s3356 + $0x60] sm:$0xff]
        %v3370 = vld [vmem:[%s3356 + $0x68] sm:$0xff]
        %v3371 = vld [vmem:[%s3356 + $0x70] sm:$0xff]
        %v3372 = vld [vmem:[%s3356 + $0x78] sm:$0xff]
        %v3373 = vld [vmem:[%s3356 + $0x80] sm:$0xff]
        %v3374 = vld [vmem:[%s3356 + $0x88] sm:$0xff]
        %v3375 = vld [vmem:[%s3356 + $0x90] sm:$0xff]
        %v3376 = vld [vmem:[%s3356 + $0x98] sm:$0xff]
        %v3377 = vld [vmem:[%s3356 + $0xa0] sm:$0xff]
        %v3378 = vld [vmem:[%s3356 + $0xa8] sm:$0xff]
        %v3379 = vld [vmem:[%s3356 + $0xb0] sm:$0xff]
        %v3380 = vld [vmem:[%s3356 + $0xb8] sm:$0xff]
        %v3381 = vld [vmem:[%s3356 + $0xc0] sm:$0xff]
        %v3382 = vld [vmem:[%s3356 + $0xc8] sm:$0xff]
        %v3383 = vld [vmem:[%s3356 + $0xd0] sm:$0xff]
        %v3384 = vld [vmem:[%s3356 + $0xd8] sm:$0xff]
        %v3385 = vld [vmem:[%s3356 + $0xe0] sm:$0xff]
        %v3386 = vld [vmem:[%s3356 + $0xe8] sm:$0xff]
        %v3387 = vld [vmem:[%s3356 + $0xf0] sm:$0xff]
        %v3388 = vld [vmem:[%s3356 + $0xf8] sm:$0xff]
        %v3421 = vunpack.c.l.b16 %v3357
        %v3422 = vunpack.c.h.b16 %v3357
        %v3423 = vunpack.c.l.b16 %v3358
        %v3424 = vunpack.c.h.b16 %v3358
        %v3425 = vunpack.c.l.b16 %v3359
        %v3426 = vunpack.c.h.b16 %v3359
        %v3427 = vunpack.c.l.b16 %v3360
        %v3428 = vunpack.c.h.b16 %v3360
        %v3429 = vunpack.c.l.b16 %v3361
        %v3430 = vunpack.c.h.b16 %v3361
        %v3431 = vunpack.c.l.b16 %v3362
        %v3432 = vunpack.c.h.b16 %v3362
        %v3433 = vunpack.c.l.b16 %v3363
        %v3434 = vunpack.c.h.b16 %v3363
        %v3435 = vunpack.c.l.b16 %v3364
        %v3436 = vunpack.c.h.b16 %v3364
        %v3437 = vunpack.c.l.b16 %v3365
        %v3438 = vunpack.c.h.b16 %v3365
        %v3439 = vunpack.c.l.b16 %v3366
        %v3440 = vunpack.c.h.b16 %v3366
        %v3441 = vunpack.c.l.b16 %v3367
        %v3442 = vunpack.c.h.b16 %v3367
        %v3443 = vunpack.c.l.b16 %v3368
        %v3444 = vunpack.c.h.b16 %v3368
        %v3445 = vunpack.c.l.b16 %v3369
        %v3446 = vunpack.c.h.b16 %v3369
        %v3447 = vunpack.c.l.b16 %v3370
        %v3448 = vunpack.c.h.b16 %v3370
        %v3449 = vunpack.c.l.b16 %v3371
        %v3450 = vunpack.c.h.b16 %v3371
        %v3451 = vunpack.c.l.b16 %v3372
        %v3452 = vunpack.c.h.b16 %v3372
        %v3453 = vunpack.c.l.b16 %v3373
        %v3454 = vunpack.c.h.b16 %v3373
        %v3455 = vunpack.c.l.b16 %v3374
        %v3456 = vunpack.c.h.b16 %v3374
        %v3457 = vunpack.c.l.b16 %v3375
        %v3458 = vunpack.c.h.b16 %v3375
        %v3459 = vunpack.c.l.b16 %v3376
        %v3460 = vunpack.c.h.b16 %v3376
        %v3461 = vunpack.c.l.b16 %v3377
        %v3462 = vunpack.c.h.b16 %v3377
        %v3463 = vunpack.c.l.b16 %v3378
        %v3464 = vunpack.c.h.b16 %v3378
        %v3465 = vunpack.c.l.b16 %v3379
        %v3466 = vunpack.c.h.b16 %v3379
        %v3467 = vunpack.c.l.b16 %v3380
        %v3468 = vunpack.c.h.b16 %v3380
        %v3469 = vunpack.c.l.b16 %v3381
        %v3470 = vunpack.c.h.b16 %v3381
        %v3471 = vunpack.c.l.b16 %v3382
        %v3472 = vunpack.c.h.b16 %v3382
        %v3473 = vunpack.c.l.b16 %v3383
        %v3474 = vunpack.c.h.b16 %v3383
        %v3475 = vunpack.c.l.b16 %v3384
        %v3476 = vunpack.c.h.b16 %v3384
        %v3477 = vunpack.c.l.b16 %v3385
        %v3478 = vunpack.c.h.b16 %v3385
        %v3479 = vunpack.c.l.b16 %v3386
        %v3480 = vunpack.c.h.b16 %v3386
        %v3481 = vunpack.c.l.b16 %v3387
        %v3482 = vunpack.c.h.b16 %v3387
        %v3483 = vunpack.c.l.b16 %v3388
        %v3484 = vunpack.c.h.b16 %v3388
        %v3485 = vpack.c.b16 %v3423, %v3421
        %v3486 = vpack.c.b16 %v3424, %v3422
        %v3487 = vpack.c.b16 %v3427, %v3425
        %v3488 = vpack.c.b16 %v3428, %v3426
        %v3489 = vpack.c.b16 %v3431, %v3429
        %v3490 = vpack.c.b16 %v3432, %v3430
        %v3491 = vpack.c.b16 %v3435, %v3433
        %v3492 = vpack.c.b16 %v3436, %v3434
        %v3493 = vpack.c.b16 %v3439, %v3437
        %v3494 = vpack.c.b16 %v3440, %v3438
        %v3495 = vpack.c.b16 %v3443, %v3441
        %v3496 = vpack.c.b16 %v3444, %v3442
        %v3497 = vpack.c.b16 %v3447, %v3445
        %v3498 = vpack.c.b16 %v3448, %v3446
        %v3499 = vpack.c.b16 %v3451, %v3449
        %v3500 = vpack.c.b16 %v3452, %v3450
        %v3501 = vpack.c.b16 %v3455, %v3453
        %v3502 = vpack.c.b16 %v3456, %v3454
        %v3503 = vpack.c.b16 %v3459, %v3457
        %v3504 = vpack.c.b16 %v3460, %v3458
        %v3505 = vpack.c.b16 %v3463, %v3461
        %v3506 = vpack.c.b16 %v3464, %v3462
        %v3507 = vpack.c.b16 %v3467, %v3465
        %v3508 = vpack.c.b16 %v3468, %v3466
        %v3509 = vpack.c.b16 %v3471, %v3469
        %v3510 = vpack.c.b16 %v3472, %v3470
        %v3511 = vpack.c.b16 %v3475, %v3473
        %v3512 = vpack.c.b16 %v3476, %v3474
        %v3513 = vpack.c.b16 %v3479, %v3477
        %v3514 = vpack.c.b16 %v3480, %v3478
        %v3515 = vpack.c.b16 %v3483, %v3481
        %v3516 = vpack.c.b16 %v3484, %v3482
        %3549 = vmatprep.subr.bf16.mxu0 %v3486
        %3550 = vmatpush1.bf16.msra.mxu0 %v3485
        %3551 = vmatprep.subr.bf16.mxu0 %v3488
        %3552 = vmatpush1.bf16.msra.mxu0 %v3487
        %3553 = vmatprep.subr.bf16.mxu0 %v3490
        %3554 = vmatpush1.bf16.msra.mxu0 %v3489
        %3555 = vmatprep.subr.bf16.mxu0 %v3492
        %3556 = vmatpush1.bf16.msra.mxu0 %v3491
        %3557 = vmatprep.subr.bf16.mxu0 %v3494
        %3558 = vmatpush1.bf16.msra.mxu0 %v3493
        %3559 = vmatprep.subr.bf16.mxu0 %v3496
        %3560 = vmatpush1.bf16.msra.mxu0 %v3495
        %3561 = vmatprep.subr.bf16.mxu0 %v3498
        %3562 = vmatpush1.bf16.msra.mxu0 %v3497
        %3563 = vmatprep.subr.bf16.mxu0 %v3500
        %3564 = vmatpush1.bf16.msra.mxu0 %v3499
        %3565 = vmatprep.subr.bf16.mxu0 %v3502
        %3566 = vmatpush1.bf16.msra.mxu0 %v3501
        %3567 = vmatprep.subr.bf16.mxu0 %v3504
        %3568 = vmatpush1.bf16.msra.mxu0 %v3503
        %3569 = vmatprep.subr.bf16.mxu0 %v3506
        %3570 = vmatpush1.bf16.msra.mxu0 %v3505
        %3571 = vmatprep.subr.bf16.mxu0 %v3508
        %3572 = vmatpush1.bf16.msra.mxu0 %v3507
        %3573 = vmatprep.subr.bf16.mxu0 %v3510
        %3574 = vmatpush1.bf16.msra.mxu0 %v3509
        %3575 = vmatprep.subr.bf16.mxu0 %v3512
        %3576 = vmatpush1.bf16.msra.mxu0 %v3511
        %3577 = vmatprep.subr.bf16.mxu0 %v3514
        %3578 = vmatpush1.bf16.msra.mxu0 %v3513
        %3579 = vmatprep.subr.bf16.mxu0 %v3516
        %3580 = vmatpush1.bf16.msra.mxu0 %v3515
        %3581 = vmatprep.mubr.bf16.mxu0 %v3355
        %3582 = vmatmul.mubr.bf16.gmra.mrb[0].mxu0 %v3354
        %v3583 = vpop.f32.mrb[0].mxu0
        %v3584 = vadd.f32 0.0, %v3583
        %v3585 = vpop.f32.mrb[0].mxu0
        %v3586 = vadd.f32 0.0, %v3585
        %v3587 = vpop.f32.mrb[0].mxu0
        %v3588 = vpop.f32.mrb[0].mxu0
        %3589 = vdwg.mxu0
        %v3590 = vadd.f32 %v3103, %v3584
        %v3591 = vadd.f32 %v3104, %v3586
        %s3592 = scalar_lea.vmem [#allocation14], 768
        %v3593 = vld [vmem:[%s3592] sm:$0xff]
        %v3594 = vld [vmem:[%s3592 + $0x8] sm:$0xff]
        %v3595 = vld [vmem:[%s3592 + $0x10] sm:$0xff]
        %v3596 = vld [vmem:[%s3592 + $0x18] sm:$0xff]
        %v3597 = vld [vmem:[%s3592 + $0x20] sm:$0xff]
        %v3598 = vld [vmem:[%s3592 + $0x28] sm:$0xff]
        %v3599 = vld [vmem:[%s3592 + $0x30] sm:$0xff]
        %v3600 = vld [vmem:[%s3592 + $0x38] sm:$0xff]
        %v3601 = vld [vmem:[%s3592 + $0x40] sm:$0xff]
        %v3602 = vld [vmem:[%s3592 + $0x48] sm:$0xff]
        %v3603 = vld [vmem:[%s3592 + $0x50] sm:$0xff]
        %v3604 = vld [vmem:[%s3592 + $0x58] sm:$0xff]
        %v3605 = vld [vmem:[%s3592 + $0x60] sm:$0xff]
        %v3606 = vld [vmem:[%s3592 + $0x68] sm:$0xff]
        %v3607 = vld [vmem:[%s3592 + $0x70] sm:$0xff]
        %v3608 = vld [vmem:[%s3592 + $0x78] sm:$0xff]
        %v3609 = vld [vmem:[%s3592 + $0x80] sm:$0xff]
        %v3610 = vld [vmem:[%s3592 + $0x88] sm:$0xff]
        %v3611 = vld [vmem:[%s3592 + $0x90] sm:$0xff]
        %v3612 = vld [vmem:[%s3592 + $0x98] sm:$0xff]
        %v3613 = vld [vmem:[%s3592 + $0xa0] sm:$0xff]
        %v3614 = vld [vmem:[%s3592 + $0xa8] sm:$0xff]
        %v3615 = vld [vmem:[%s3592 + $0xb0] sm:$0xff]
        %v3616 = vld [vmem:[%s3592 + $0xb8] sm:$0xff]
        %v3617 = vld [vmem:[%s3592 + $0xc0] sm:$0xff]
        %v3618 = vld [vmem:[%s3592 + $0xc8] sm:$0xff]
        %v3619 = vld [vmem:[%s3592 + $0xd0] sm:$0xff]
        %v3620 = vld [vmem:[%s3592 + $0xd8] sm:$0xff]
        %v3621 = vld [vmem:[%s3592 + $0xe0] sm:$0xff]
        %v3622 = vld [vmem:[%s3592 + $0xe8] sm:$0xff]
        %v3623 = vld [vmem:[%s3592 + $0xf0] sm:$0xff]
        %v3624 = vld [vmem:[%s3592 + $0xf8] sm:$0xff]
        %s3625 = scalar_lea.vmem [#allocation16], 6
        %v3626 = vld [vmem:[%s3625] sm:$0x3]
        %v3628 = vlaneseq
        %v3629 = vshrl.u32 %v3628, 7
        %v3630 = vsub.s32 0, %v3629
        %v3631 = vrot.slane %v3626, %v3630
        %v3632 = vlaneseq
        %v3633 = vshrl.u32 %v3632, 7
        %v3634 = vsub.s32 1, %v3633
        %v3635 = vrot.slane %v3626, %v3634
        %v3670 = vunpack.c.l.b16 %v3593
        %v3671 = vunpack.c.h.b16 %v3593
        %v3672 = vunpack.c.l.b16 %v3594
        %v3673 = vunpack.c.h.b16 %v3594
        %v3674 = vunpack.c.l.b16 %v3595
        %v3675 = vunpack.c.h.b16 %v3595
        %v3676 = vunpack.c.l.b16 %v3596
        %v3677 = vunpack.c.h.b16 %v3596
        %v3678 = vunpack.c.l.b16 %v3597
        %v3679 = vunpack.c.h.b16 %v3597
        %v3680 = vunpack.c.l.b16 %v3598
        %v3681 = vunpack.c.h.b16 %v3598
        %v3682 = vunpack.c.l.b16 %v3599
        %v3683 = vunpack.c.h.b16 %v3599
        %v3684 = vunpack.c.l.b16 %v3600
        %v3685 = vunpack.c.h.b16 %v3600
        %v3686 = vunpack.c.l.b16 %v3601
        %v3687 = vunpack.c.h.b16 %v3601
        %v3688 = vunpack.c.l.b16 %v3602
        %v3689 = vunpack.c.h.b16 %v3602
        %v3690 = vunpack.c.l.b16 %v3603
        %v3691 = vunpack.c.h.b16 %v3603
        %v3692 = vunpack.c.l.b16 %v3604
        %v3693 = vunpack.c.h.b16 %v3604
        %v3694 = vunpack.c.l.b16 %v3605
        %v3695 = vunpack.c.h.b16 %v3605
        %v3696 = vunpack.c.l.b16 %v3606
        %v3697 = vunpack.c.h.b16 %v3606
        %v3698 = vunpack.c.l.b16 %v3607
        %v3699 = vunpack.c.h.b16 %v3607
        %v3700 = vunpack.c.l.b16 %v3608
        %v3701 = vunpack.c.h.b16 %v3608
        %v3702 = vunpack.c.l.b16 %v3609
        %v3703 = vunpack.c.h.b16 %v3609
        %v3704 = vunpack.c.l.b16 %v3610
        %v3705 = vunpack.c.h.b16 %v3610
        %v3706 = vunpack.c.l.b16 %v3611
        %v3707 = vunpack.c.h.b16 %v3611
        %v3708 = vunpack.c.l.b16 %v3612
        %v3709 = vunpack.c.h.b16 %v3612
        %v3710 = vunpack.c.l.b16 %v3613
        %v3711 = vunpack.c.h.b16 %v3613
        %v3712 = vunpack.c.l.b16 %v3614
        %v3713 = vunpack.c.h.b16 %v3614
        %v3714 = vunpack.c.l.b16 %v3615
        %v3715 = vunpack.c.h.b16 %v3615
        %v3716 = vunpack.c.l.b16 %v3616
        %v3717 = vunpack.c.h.b16 %v3616
        %v3718 = vunpack.c.l.b16 %v3617
        %v3719 = vunpack.c.h.b16 %v3617
        %v3720 = vunpack.c.l.b16 %v3618
        %v3721 = vunpack.c.h.b16 %v3618
        %v3722 = vunpack.c.l.b16 %v3619
        %v3723 = vunpack.c.h.b16 %v3619
        %v3724 = vunpack.c.l.b16 %v3620
        %v3725 = vunpack.c.h.b16 %v3620
        %v3726 = vunpack.c.l.b16 %v3621
        %v3727 = vunpack.c.h.b16 %v3621
        %v3728 = vunpack.c.l.b16 %v3622
        %v3729 = vunpack.c.h.b16 %v3622
        %v3730 = vunpack.c.l.b16 %v3623
        %v3731 = vunpack.c.h.b16 %v3623
        %v3732 = vunpack.c.l.b16 %v3624
        %v3733 = vunpack.c.h.b16 %v3624
        %v3734 = vpack.c.b16 %v3672, %v3670
        %v3735 = vpack.c.b16 %v3673, %v3671
        %v3736 = vpack.c.b16 %v3676, %v3674
        %v3737 = vpack.c.b16 %v3677, %v3675
        %v3738 = vpack.c.b16 %v3680, %v3678
        %v3739 = vpack.c.b16 %v3681, %v3679
        %v3740 = vpack.c.b16 %v3684, %v3682
        %v3741 = vpack.c.b16 %v3685, %v3683
        %v3742 = vpack.c.b16 %v3688, %v3686
        %v3743 = vpack.c.b16 %v3689, %v3687
        %v3744 = vpack.c.b16 %v3692, %v3690
        %v3745 = vpack.c.b16 %v3693, %v3691
        %v3746 = vpack.c.b16 %v3696, %v3694
        %v3747 = vpack.c.b16 %v3697, %v3695
        %v3748 = vpack.c.b16 %v3700, %v3698
        %v3749 = vpack.c.b16 %v3701, %v3699
        %v3750 = vpack.c.b16 %v3704, %v3702
        %v3751 = vpack.c.b16 %v3705, %v3703
        %v3752 = vpack.c.b16 %v3708, %v3706
        %v3753 = vpack.c.b16 %v3709, %v3707
        %v3754 = vpack.c.b16 %v3712, %v3710
        %v3755 = vpack.c.b16 %v3713, %v3711
        %v3756 = vpack.c.b16 %v3716, %v3714
        %v3757 = vpack.c.b16 %v3717, %v3715
        %v3758 = vpack.c.b16 %v3720, %v3718
        %v3759 = vpack.c.b16 %v3721, %v3719
        %v3760 = vpack.c.b16 %v3724, %v3722
        %v3761 = vpack.c.b16 %v3725, %v3723
        %v3762 = vpack.c.b16 %v3728, %v3726
        %v3763 = vpack.c.b16 %v3729, %v3727
        %v3764 = vpack.c.b16 %v3732, %v3730
        %v3765 = vpack.c.b16 %v3733, %v3731
        %3798 = vmatprep.subr.bf16.mxu0 %v3735
        %3799 = vmatpush1.bf16.msra.mxu0 %v3734
        %3800 = vmatprep.subr.bf16.mxu0 %v3737
        %3801 = vmatpush1.bf16.msra.mxu0 %v3736
        %3802 = vmatprep.subr.bf16.mxu0 %v3739
        %3803 = vmatpush1.bf16.msra.mxu0 %v3738
        %3804 = vmatprep.subr.bf16.mxu0 %v3741
        %3805 = vmatpush1.bf16.msra.mxu0 %v3740
        %3806 = vmatprep.subr.bf16.mxu0 %v3743
        %3807 = vmatpush1.bf16.msra.mxu0 %v3742
        %3808 = vmatprep.subr.bf16.mxu0 %v3745
        %3809 = vmatpush1.bf16.msra.mxu0 %v3744
        %3810 = vmatprep.subr.bf16.mxu0 %v3747
        %3811 = vmatpush1.bf16.msra.mxu0 %v3746
        %3812 = vmatprep.subr.bf16.mxu0 %v3749
        %3813 = vmatpush1.bf16.msra.mxu0 %v3748
        %3814 = vmatprep.subr.bf16.mxu0 %v3751
        %3815 = vmatpush1.bf16.msra.mxu0 %v3750
        %3816 = vmatprep.subr.bf16.mxu0 %v3753
        %3817 = vmatpush1.bf16.msra.mxu0 %v3752
        %3818 = vmatprep.subr.bf16.mxu0 %v3755
        %3819 = vmatpush1.bf16.msra.mxu0 %v3754
        %3820 = vmatprep.subr.bf16.mxu0 %v3757
        %3821 = vmatpush1.bf16.msra.mxu0 %v3756
        %3822 = vmatprep.subr.bf16.mxu0 %v3759
        %3823 = vmatpush1.bf16.msra.mxu0 %v3758
        %3824 = vmatprep.subr.bf16.mxu0 %v3761
        %3825 = vmatpush1.bf16.msra.mxu0 %v3760
        %3826 = vmatprep.subr.bf16.mxu0 %v3763
        %3827 = vmatpush1.bf16.msra.mxu0 %v3762
        %3828 = vmatprep.subr.bf16.mxu0 %v3765
        %3829 = vmatpush1.bf16.msra.mxu0 %v3764
        %3830 = vmatprep.mubr.bf16.mxu0 %v2121
        %3831 = vmatmul.mubr.bf16.gmra.mrb[0].mxu0 %v2120
        %v3832 = vpop.f32.mrb[0].mxu0
        %v3833 = vadd.f32 %v3631, %v3832
        %v3834 = vpop.f32.mrb[0].mxu0
        %v3835 = vadd.f32 %v3635, %v3834
        %v3836 = vpop.f32.mrb[0].mxu0
        %v3837 = vpop.f32.mrb[0].mxu0
        %3838 = vdwg.mxu0
        %v3839 = vmax.f32 %v3833, 0.0
        %v3840 = vmax.f32 %v3835, 0.0
        %v3841 = vpack.c.bf16 %v3839, %v3839
        %v3842 = vpack.c.bf16 %v3840, %v3840
        %s3843 = scalar_lea.vmem [#allocation17], 768
        %v3844 = vld [vmem:[%s3843] sm:$0xff]
        %v3845 = vld [vmem:[%s3843 + $0x8] sm:$0xff]
        %v3846 = vld [vmem:[%s3843 + $0x10] sm:$0xff]
        %v3847 = vld [vmem:[%s3843 + $0x18] sm:$0xff]
        %v3848 = vld [vmem:[%s3843 + $0x20] sm:$0xff]
        %v3849 = vld [vmem:[%s3843 + $0x28] sm:$0xff]
        %v3850 = vld [vmem:[%s3843 + $0x30] sm:$0xff]
        %v3851 = vld [vmem:[%s3843 + $0x38] sm:$0xff]
        %v3852 = vld [vmem:[%s3843 + $0x40] sm:$0xff]
        %v3853 = vld [vmem:[%s3843 + $0x48] sm:$0xff]
        %v3854 = vld [vmem:[%s3843 + $0x50] sm:$0xff]
        %v3855 = vld [vmem:[%s3843 + $0x58] sm:$0xff]
        %v3856 = vld [vmem:[%s3843 + $0x60] sm:$0xff]
        %v3857 = vld [vmem:[%s3843 + $0x68] sm:$0xff]
        %v3858 = vld [vmem:[%s3843 + $0x70] sm:$0xff]
        %v3859 = vld [vmem:[%s3843 + $0x78] sm:$0xff]
        %v3860 = vld [vmem:[%s3843 + $0x80] sm:$0xff]
        %v3861 = vld [vmem:[%s3843 + $0x88] sm:$0xff]
        %v3862 = vld [vmem:[%s3843 + $0x90] sm:$0xff]
        %v3863 = vld [vmem:[%s3843 + $0x98] sm:$0xff]
        %v3864 = vld [vmem:[%s3843 + $0xa0] sm:$0xff]
        %v3865 = vld [vmem:[%s3843 + $0xa8] sm:$0xff]
        %v3866 = vld [vmem:[%s3843 + $0xb0] sm:$0xff]
        %v3867 = vld [vmem:[%s3843 + $0xb8] sm:$0xff]
        %v3868 = vld [vmem:[%s3843 + $0xc0] sm:$0xff]
        %v3869 = vld [vmem:[%s3843 + $0xc8] sm:$0xff]
        %v3870 = vld [vmem:[%s3843 + $0xd0] sm:$0xff]
        %v3871 = vld [vmem:[%s3843 + $0xd8] sm:$0xff]
        %v3872 = vld [vmem:[%s3843 + $0xe0] sm:$0xff]
        %v3873 = vld [vmem:[%s3843 + $0xe8] sm:$0xff]
        %v3874 = vld [vmem:[%s3843 + $0xf0] sm:$0xff]
        %v3875 = vld [vmem:[%s3843 + $0xf8] sm:$0xff]
        %v3908 = vunpack.c.l.b16 %v3844
        %v3909 = vunpack.c.h.b16 %v3844
        %v3910 = vunpack.c.l.b16 %v3845
        %v3911 = vunpack.c.h.b16 %v3845
        %v3912 = vunpack.c.l.b16 %v3846
        %v3913 = vunpack.c.h.b16 %v3846
        %v3914 = vunpack.c.l.b16 %v3847
        %v3915 = vunpack.c.h.b16 %v3847
        %v3916 = vunpack.c.l.b16 %v3848
        %v3917 = vunpack.c.h.b16 %v3848
        %v3918 = vunpack.c.l.b16 %v3849
        %v3919 = vunpack.c.h.b16 %v3849
        %v3920 = vunpack.c.l.b16 %v3850
        %v3921 = vunpack.c.h.b16 %v3850
        %v3922 = vunpack.c.l.b16 %v3851
        %v3923 = vunpack.c.h.b16 %v3851
        %v3924 = vunpack.c.l.b16 %v3852
        %v3925 = vunpack.c.h.b16 %v3852
        %v3926 = vunpack.c.l.b16 %v3853
        %v3927 = vunpack.c.h.b16 %v3853
        %v3928 = vunpack.c.l.b16 %v3854
        %v3929 = vunpack.c.h.b16 %v3854
        %v3930 = vunpack.c.l.b16 %v3855
        %v3931 = vunpack.c.h.b16 %v3855
        %v3932 = vunpack.c.l.b16 %v3856
        %v3933 = vunpack.c.h.b16 %v3856
        %v3934 = vunpack.c.l.b16 %v3857
        %v3935 = vunpack.c.h.b16 %v3857
        %v3936 = vunpack.c.l.b16 %v3858
        %v3937 = vunpack.c.h.b16 %v3858
        %v3938 = vunpack.c.l.b16 %v3859
        %v3939 = vunpack.c.h.b16 %v3859
        %v3940 = vunpack.c.l.b16 %v3860
        %v3941 = vunpack.c.h.b16 %v3860
        %v3942 = vunpack.c.l.b16 %v3861
        %v3943 = vunpack.c.h.b16 %v3861
        %v3944 = vunpack.c.l.b16 %v3862
        %v3945 = vunpack.c.h.b16 %v3862
        %v3946 = vunpack.c.l.b16 %v3863
        %v3947 = vunpack.c.h.b16 %v3863
        %v3948 = vunpack.c.l.b16 %v3864
        %v3949 = vunpack.c.h.b16 %v3864
        %v3950 = vunpack.c.l.b16 %v3865
        %v3951 = vunpack.c.h.b16 %v3865
        %v3952 = vunpack.c.l.b16 %v3866
        %v3953 = vunpack.c.h.b16 %v3866
        %v3954 = vunpack.c.l.b16 %v3867
        %v3955 = vunpack.c.h.b16 %v3867
        %v3956 = vunpack.c.l.b16 %v3868
        %v3957 = vunpack.c.h.b16 %v3868
        %v3958 = vunpack.c.l.b16 %v3869
        %v3959 = vunpack.c.h.b16 %v3869
        %v3960 = vunpack.c.l.b16 %v3870
        %v3961 = vunpack.c.h.b16 %v3870
        %v3962 = vunpack.c.l.b16 %v3871
        %v3963 = vunpack.c.h.b16 %v3871
        %v3964 = vunpack.c.l.b16 %v3872
        %v3965 = vunpack.c.h.b16 %v3872
        %v3966 = vunpack.c.l.b16 %v3873
        %v3967 = vunpack.c.h.b16 %v3873
        %v3968 = vunpack.c.l.b16 %v3874
        %v3969 = vunpack.c.h.b16 %v3874
        %v3970 = vunpack.c.l.b16 %v3875
        %v3971 = vunpack.c.h.b16 %v3875
        %v3972 = vpack.c.b16 %v3910, %v3908
        %v3973 = vpack.c.b16 %v3911, %v3909
        %v3974 = vpack.c.b16 %v3914, %v3912
        %v3975 = vpack.c.b16 %v3915, %v3913
        %v3976 = vpack.c.b16 %v3918, %v3916
        %v3977 = vpack.c.b16 %v3919, %v3917
        %v3978 = vpack.c.b16 %v3922, %v3920
        %v3979 = vpack.c.b16 %v3923, %v3921
        %v3980 = vpack.c.b16 %v3926, %v3924
        %v3981 = vpack.c.b16 %v3927, %v3925
        %v3982 = vpack.c.b16 %v3930, %v3928
        %v3983 = vpack.c.b16 %v3931, %v3929
        %v3984 = vpack.c.b16 %v3934, %v3932
        %v3985 = vpack.c.b16 %v3935, %v3933
        %v3986 = vpack.c.b16 %v3938, %v3936
        %v3987 = vpack.c.b16 %v3939, %v3937
        %v3988 = vpack.c.b16 %v3942, %v3940
        %v3989 = vpack.c.b16 %v3943, %v3941
        %v3990 = vpack.c.b16 %v3946, %v3944
        %v3991 = vpack.c.b16 %v3947, %v3945
        %v3992 = vpack.c.b16 %v3950, %v3948
        %v3993 = vpack.c.b16 %v3951, %v3949
        %v3994 = vpack.c.b16 %v3954, %v3952
        %v3995 = vpack.c.b16 %v3955, %v3953
        %v3996 = vpack.c.b16 %v3958, %v3956
        %v3997 = vpack.c.b16 %v3959, %v3957
        %v3998 = vpack.c.b16 %v3962, %v3960
        %v3999 = vpack.c.b16 %v3963, %v3961
        %v4000 = vpack.c.b16 %v3966, %v3964
        %v4001 = vpack.c.b16 %v3967, %v3965
        %v4002 = vpack.c.b16 %v3970, %v3968
        %v4003 = vpack.c.b16 %v3971, %v3969
        %4036 = vmatprep.subr.bf16.mxu0 %v3973
        %4037 = vmatpush1.bf16.msra.mxu0 %v3972
        %4038 = vmatprep.subr.bf16.mxu0 %v3975
        %4039 = vmatpush1.bf16.msra.mxu0 %v3974
        %4040 = vmatprep.subr.bf16.mxu0 %v3977
        %4041 = vmatpush1.bf16.msra.mxu0 %v3976
        %4042 = vmatprep.subr.bf16.mxu0 %v3979
        %4043 = vmatpush1.bf16.msra.mxu0 %v3978
        %4044 = vmatprep.subr.bf16.mxu0 %v3981
        %4045 = vmatpush1.bf16.msra.mxu0 %v3980
        %4046 = vmatprep.subr.bf16.mxu0 %v3983
        %4047 = vmatpush1.bf16.msra.mxu0 %v3982
        %4048 = vmatprep.subr.bf16.mxu0 %v3985
        %4049 = vmatpush1.bf16.msra.mxu0 %v3984
        %4050 = vmatprep.subr.bf16.mxu0 %v3987
        %4051 = vmatpush1.bf16.msra.mxu0 %v3986
        %4052 = vmatprep.subr.bf16.mxu0 %v3989
        %4053 = vmatpush1.bf16.msra.mxu0 %v3988
        %4054 = vmatprep.subr.bf16.mxu0 %v3991
        %4055 = vmatpush1.bf16.msra.mxu0 %v3990
        %4056 = vmatprep.subr.bf16.mxu0 %v3993
        %4057 = vmatpush1.bf16.msra.mxu0 %v3992
        %4058 = vmatprep.subr.bf16.mxu0 %v3995
        %4059 = vmatpush1.bf16.msra.mxu0 %v3994
        %4060 = vmatprep.subr.bf16.mxu0 %v3997
        %4061 = vmatpush1.bf16.msra.mxu0 %v3996
        %4062 = vmatprep.subr.bf16.mxu0 %v3999
        %4063 = vmatpush1.bf16.msra.mxu0 %v3998
        %4064 = vmatprep.subr.bf16.mxu0 %v4001
        %4065 = vmatpush1.bf16.msra.mxu0 %v4000
        %4066 = vmatprep.subr.bf16.mxu0 %v4003
        %4067 = vmatpush1.bf16.msra.mxu0 %v4002
        %4068 = vmatprep.mubr.bf16.mxu0 %v3842
        %4069 = vmatmul.mubr.bf16.gmra.mrb[0].mxu0 %v3841
        %v4070 = vpop.f32.mrb[0].mxu0
        %v4071 = vadd.f32 0.0, %v4070
        %v4072 = vpop.f32.mrb[0].mxu0
        %v4073 = vadd.f32 0.0, %v4072
        %v4074 = vpop.f32.mrb[0].mxu0
        %v4075 = vpop.f32.mrb[0].mxu0
        %4076 = vdwg.mxu0
        %v4077 = vadd.f32 %v3590, %v4071
        %v4078 = vadd.f32 %v3591, %v4073
        %v4079 = vadd.f32 %v2118, %v4077
        %v4080 = vadd.f32 %v2119, %v4078
        %v4081 = vld [vmem:[#allocation20] sm:$0x3]
        %v4082 = vld [vmem:[#allocation22] sm:$0x3]
        %v4083 = vadd.f32 %v4079, %v4080
        %4084 = vadd.xlane.f32.xlu0 %v4083
        %v4085 = vpop.xlane.xlu0 %4084
        %v4086 = vmul.f32 %v4085, %v2080
        %v4087 = vsub.f32 %v4079, %v4086
        %v4088 = vsub.f32 %v4080, %v4086
        %v4089 = vmul.f32 %v4087, %v4087
        %v4090 = vmul.f32 %v4088, %v4088
        %v4091 = vadd.f32 %v4089, %v4090
        %4092 = vadd.xlane.f32.xlu0 %v4091
        %v4093 = vpop.xlane.xlu0 %4092
        %v4094 = vmul.f32 %v4093, %v2080
        %v4095 = vadd.f32 %v4094, 1e-05
        %v4096 = vrsqrt.pop %v4095
        %v4097 = vmul.f32 %v4087, %v4096
        %v4098 = vmul.f32 %v4088, %v4096
        %v4100 = vlaneseq
        %v4101 = vshrl.u32 %v4100, 7
        %v4102 = vsub.s32 0, %v4101
        %v4103 = vrot.slane %v4081, %v4102
        %v4104 = vlaneseq
        %v4105 = vshrl.u32 %v4104, 7
        %v4106 = vsub.s32 1, %v4105
        %v4107 = vrot.slane %v4081, %v4106
        %v4110 = vmul.f32 %v4097, %v4103
        %v4111 = vmul.f32 %v4098, %v4107
        %v4113 = vlaneseq
        %v4114 = vshrl.u32 %v4113, 7
        %v4115 = vsub.s32 0, %v4114
        %v4116 = vrot.slane %v4082, %v4115
        %v4117 = vlaneseq
        %v4118 = vshrl.u32 %v4117, 7
        %v4119 = vsub.s32 1, %v4118
        %v4120 = vrot.slane %v4082, %v4119
        %v4123 = vadd.f32 %v4110, %v4116
        %v4124 = vadd.f32 %v4111, %v4120
        %v4125 = vpack.c.bf16 %v4123, %v4123
        %v4126 = vpack.c.bf16 %v4124, %v4124
        %s4127 = scalar_lea.vmem [#allocation5], 768
        %v4128 = vld [vmem:[%s4127] sm:$0xff]
        %v4129 = vld [vmem:[%s4127 + $0x8] sm:$0xff]
        %v4130 = vld [vmem:[%s4127 + $0x10] sm:$0xff]
        %v4131 = vld [vmem:[%s4127 + $0x18] sm:$0xff]
        %v4132 = vld [vmem:[%s4127 + $0x20] sm:$0xff]
        %v4133 = vld [vmem:[%s4127 + $0x28] sm:$0xff]
        %v4134 = vld [vmem:[%s4127 + $0x30] sm:$0xff]
        %v4135 = vld [vmem:[%s4127 + $0x38] sm:$0xff]
        %v4136 = vld [vmem:[%s4127 + $0x40] sm:$0xff]
        %v4137 = vld [vmem:[%s4127 + $0x48] sm:$0xff]
        %v4138 = vld [vmem:[%s4127 + $0x50] sm:$0xff]
        %v4139 = vld [vmem:[%s4127 + $0x58] sm:$0xff]
        %v4140 = vld [vmem:[%s4127 + $0x60] sm:$0xff]
        %v4141 = vld [vmem:[%s4127 + $0x68] sm:$0xff]
        %v4142 = vld [vmem:[%s4127 + $0x70] sm:$0xff]
        %v4143 = vld [vmem:[%s4127 + $0x78] sm:$0xff]
        %v4144 = vld [vmem:[%s4127 + $0x80] sm:$0xff]
        %v4145 = vld [vmem:[%s4127 + $0x88] sm:$0xff]
        %v4146 = vld [vmem:[%s4127 + $0x90] sm:$0xff]
        %v4147 = vld [vmem:[%s4127 + $0x98] sm:$0xff]
        %v4148 = vld [vmem:[%s4127 + $0xa0] sm:$0xff]
        %v4149 = vld [vmem:[%s4127 + $0xa8] sm:$0xff]
        %v4150 = vld [vmem:[%s4127 + $0xb0] sm:$0xff]
        %v4151 = vld [vmem:[%s4127 + $0xb8] sm:$0xff]
        %v4152 = vld [vmem:[%s4127 + $0xc0] sm:$0xff]
        %v4153 = vld [vmem:[%s4127 + $0xc8] sm:$0xff]
        %v4154 = vld [vmem:[%s4127 + $0xd0] sm:$0xff]
        %v4155 = vld [vmem:[%s4127 + $0xd8] sm:$0xff]
        %v4156 = vld [vmem:[%s4127 + $0xe0] sm:$0xff]
        %v4157 = vld [vmem:[%s4127 + $0xe8] sm:$0xff]
        %v4158 = vld [vmem:[%s4127 + $0xf0] sm:$0xff]
        %v4159 = vld [vmem:[%s4127 + $0xf8] sm:$0xff]
        %v4160 = vld [vmem:[%s4127 + $0x100] sm:$0xff]
        %v4161 = vld [vmem:[%s4127 + $0x108] sm:$0xff]
        %v4162 = vld [vmem:[%s4127 + $0x110] sm:$0xff]
        %v4163 = vld [vmem:[%s4127 + $0x118] sm:$0xff]
        %v4164 = vld [vmem:[%s4127 + $0x120] sm:$0xff]
        %v4165 = vld [vmem:[%s4127 + $0x128] sm:$0xff]
        %v4166 = vld [vmem:[%s4127 + $0x130] sm:$0xff]
        %v4167 = vld [vmem:[%s4127 + $0x138] sm:$0xff]
        %v4168 = vld [vmem:[%s4127 + $0x140] sm:$0xff]
        %v4169 = vld [vmem:[%s4127 + $0x148] sm:$0xff]
        %v4170 = vld [vmem:[%s4127 + $0x150] sm:$0xff]
        %v4171 = vld [vmem:[%s4127 + $0x158] sm:$0xff]
        %v4172 = vld [vmem:[%s4127 + $0x160] sm:$0xff]
        %v4173 = vld [vmem:[%s4127 + $0x168] sm:$0xff]
        %v4174 = vld [vmem:[%s4127 + $0x170] sm:$0xff]
        %v4175 = vld [vmem:[%s4127 + $0x178] sm:$0xff]
        %v4176 = vld [vmem:[%s4127 + $0x180] sm:$0xff]
        %v4177 = vld [vmem:[%s4127 + $0x188] sm:$0xff]
        %v4178 = vld [vmem:[%s4127 + $0x190] sm:$0xff]
        %v4179 = vld [vmem:[%s4127 + $0x198] sm:$0xff]
        %v4180 = vld [vmem:[%s4127 + $0x1a0] sm:$0xff]
        %v4181 = vld [vmem:[%s4127 + $0x1a8] sm:$0xff]
        %v4182 = vld [vmem:[%s4127 + $0x1b0] sm:$0xff]
        %v4183 = vld [vmem:[%s4127 + $0x1b8] sm:$0xff]
        %v4184 = vld [vmem:[%s4127 + $0x1c0] sm:$0xff]
        %v4185 = vld [vmem:[%s4127 + $0x1c8] sm:$0xff]
        %v4186 = vld [vmem:[%s4127 + $0x1d0] sm:$0xff]
        %v4187 = vld [vmem:[%s4127 + $0x1d8] sm:$0xff]
        %v4188 = vld [vmem:[%s4127 + $0x1e0] sm:$0xff]
        %v4189 = vld [vmem:[%s4127 + $0x1e8] sm:$0xff]
        %v4190 = vld [vmem:[%s4127 + $0x1f0] sm:$0xff]
        %v4191 = vld [vmem:[%s4127 + $0x1f8] sm:$0xff]
        %v4192 = vld [vmem:[%s4127 + $0x200] sm:$0xff]
        %v4193 = vld [vmem:[%s4127 + $0x208] sm:$0xff]
        %v4194 = vld [vmem:[%s4127 + $0x210] sm:$0xff]
        %v4195 = vld [vmem:[%s4127 + $0x218] sm:$0xff]
        %v4196 = vld [vmem:[%s4127 + $0x220] sm:$0xff]
        %v4197 = vld [vmem:[%s4127 + $0x228] sm:$0xff]
        %v4198 = vld [vmem:[%s4127 + $0x230] sm:$0xff]
        %v4199 = vld [vmem:[%s4127 + $0x238] sm:$0xff]
        %v4200 = vld [vmem:[%s4127 + $0x240] sm:$0xff]
        %v4201 = vld [vmem:[%s4127 + $0x248] sm:$0xff]
        %v4202 = vld [vmem:[%s4127 + $0x250] sm:$0xff]
        %v4203 = vld [vmem:[%s4127 + $0x258] sm:$0xff]
        %v4204 = vld [vmem:[%s4127 + $0x260] sm:$0xff]
        %v4205 = vld [vmem:[%s4127 + $0x268] sm:$0xff]
        %v4206 = vld [vmem:[%s4127 + $0x270] sm:$0xff]
        %v4207 = vld [vmem:[%s4127 + $0x278] sm:$0xff]
        %v4208 = vld [vmem:[%s4127 + $0x280] sm:$0xff]
        %v4209 = vld [vmem:[%s4127 + $0x288] sm:$0xff]
        %v4210 = vld [vmem:[%s4127 + $0x290] sm:$0xff]
        %v4211 = vld [vmem:[%s4127 + $0x298] sm:$0xff]
        %v4212 = vld [vmem:[%s4127 + $0x2a0] sm:$0xff]
        %v4213 = vld [vmem:[%s4127 + $0x2a8] sm:$0xff]
        %v4214 = vld [vmem:[%s4127 + $0x2b0] sm:$0xff]
        %v4215 = vld [vmem:[%s4127 + $0x2b8] sm:$0xff]
        %v4216 = vld [vmem:[%s4127 + $0x2c0] sm:$0xff]
        %v4217 = vld [vmem:[%s4127 + $0x2c8] sm:$0xff]
        %v4218 = vld [vmem:[%s4127 + $0x2d0] sm:$0xff]
        %v4219 = vld [vmem:[%s4127 + $0x2d8] sm:$0xff]
        %v4220 = vld [vmem:[%s4127 + $0x2e0] sm:$0xff]
        %v4221 = vld [vmem:[%s4127 + $0x2e8] sm:$0xff]
        %v4222 = vld [vmem:[%s4127 + $0x2f0] sm:$0xff]
        %v4223 = vld [vmem:[%s4127 + $0x2f8] sm:$0xff]
        %s4224 = scalar_lea.vmem [#allocation7], 6
        %v4225 = vld [vmem:[%s4224] sm:$0x3f]
        %v4227 = vlaneseq
        %v4228 = vshrl.u32 %v4227, 7
        %v4229 = vsub.s32 0, %v4228
        %v4230 = vrot.slane %v4225, %v4229
        %v4231 = vlaneseq
        %v4232 = vshrl.u32 %v4231, 7
        %v4233 = vsub.s32 1, %v4232
        %v4234 = vrot.slane %v4225, %v4233
        %v4235 = vlaneseq
        %v4236 = vshrl.u32 %v4235, 7
        %v4237 = vsub.s32 2, %v4236
        %v4238 = vrot.slane %v4225, %v4237
        %v4239 = vlaneseq
        %v4240 = vshrl.u32 %v4239, 7
        %v4241 = vsub.s32 3, %v4240
        %v4242 = vrot.slane %v4225, %v4241
        %v4243 = vlaneseq
        %v4244 = vshrl.u32 %v4243, 7
        %v4245 = vsub.s32 4, %v4244
        %v4246 = vrot.slane %v4225, %v4245
        %v4247 = vlaneseq
        %v4248 = vshrl.u32 %v4247, 7
        %v4249 = vsub.s32 5, %v4248
        %v4250 = vrot.slane %v4225, %v4249
        %v4353 = vunpack.c.l.b16 %v4128
        %v4354 = vunpack.c.h.b16 %v4128
        %v4355 = vunpack.c.l.b16 %v4129
        %v4356 = vunpack.c.h.b16 %v4129
        %v4357 = vunpack.c.l.b16 %v4130
        %v4358 = vunpack.c.h.b16 %v4130
        %v4359 = vunpack.c.l.b16 %v4131
        %v4360 = vunpack.c.h.b16 %v4131
        %v4361 = vunpack.c.l.b16 %v4132
        %v4362 = vunpack.c.h.b16 %v4132
        %v4363 = vunpack.c.l.b16 %v4133
        %v4364 = vunpack.c.h.b16 %v4133
        %v4365 = vunpack.c.l.b16 %v4134
        %v4366 = vunpack.c.h.b16 %v4134
        %v4367 = vunpack.c.l.b16 %v4135
        %v4368 = vunpack.c.h.b16 %v4135
        %v4369 = vunpack.c.l.b16 %v4136
        %v4370 = vunpack.c.h.b16 %v4136
        %v4371 = vunpack.c.l.b16 %v4137
        %v4372 = vunpack.c.h.b16 %v4137
        %v4373 = vunpack.c.l.b16 %v4138
        %v4374 = vunpack.c.h.b16 %v4138
        %v4375 = vunpack.c.l.b16 %v4139
        %v4376 = vunpack.c.h.b16 %v4139
        %v4377 = vunpack.c.l.b16 %v4140
        %v4378 = vunpack.c.h.b16 %v4140
        %v4379 = vunpack.c.l.b16 %v4141
        %v4380 = vunpack.c.h.b16 %v4141
        %v4381 = vunpack.c.l.b16 %v4142
        %v4382 = vunpack.c.h.b16 %v4142
        %v4383 = vunpack.c.l.b16 %v4143
        %v4384 = vunpack.c.h.b16 %v4143
        %v4385 = vunpack.c.l.b16 %v4144
        %v4386 = vunpack.c.h.b16 %v4144
        %v4387 = vunpack.c.l.b16 %v4145
        %v4388 = vunpack.c.h.b16 %v4145
        %v4389 = vunpack.c.l.b16 %v4146
        %v4390 = vunpack.c.h.b16 %v4146
        %v4391 = vunpack.c.l.b16 %v4147
        %v4392 = vunpack.c.h.b16 %v4147
        %v4393 = vunpack.c.l.b16 %v4148
        %v4394 = vunpack.c.h.b16 %v4148
        %v4395 = vunpack.c.l.b16 %v4149
        %v4396 = vunpack.c.h.b16 %v4149
        %v4397 = vunpack.c.l.b16 %v4150
        %v4398 = vunpack.c.h.b16 %v4150
        %v4399 = vunpack.c.l.b16 %v4151
        %v4400 = vunpack.c.h.b16 %v4151
        %v4401 = vunpack.c.l.b16 %v4152
        %v4402 = vunpack.c.h.b16 %v4152
        %v4403 = vunpack.c.l.b16 %v4153
        %v4404 = vunpack.c.h.b16 %v4153
        %v4405 = vunpack.c.l.b16 %v4154
        %v4406 = vunpack.c.h.b16 %v4154
        %v4407 = vunpack.c.l.b16 %v4155
        %v4408 = vunpack.c.h.b16 %v4155
        %v4409 = vunpack.c.l.b16 %v4156
        %v4410 = vunpack.c.h.b16 %v4156
        %v4411 = vunpack.c.l.b16 %v4157
        %v4412 = vunpack.c.h.b16 %v4157
        %v4413 = vunpack.c.l.b16 %v4158
        %v4414 = vunpack.c.h.b16 %v4158
        %v4415 = vunpack.c.l.b16 %v4159
        %v4416 = vunpack.c.h.b16 %v4159
        %v4417 = vunpack.c.l.b16 %v4160
        %v4418 = vunpack.c.h.b16 %v4160
        %v4419 = vunpack.c.l.b16 %v4161
        %v4420 = vunpack.c.h.b16 %v4161
        %v4421 = vunpack.c.l.b16 %v4162
        %v4422 = vunpack.c.h.b16 %v4162
        %v4423 = vunpack.c.l.b16 %v4163
        %v4424 = vunpack.c.h.b16 %v4163
        %v4425 = vunpack.c.l.b16 %v4164
        %v4426 = vunpack.c.h.b16 %v4164
        %v4427 = vunpack.c.l.b16 %v4165
        %v4428 = vunpack.c.h.b16 %v4165
        %v4429 = vunpack.c.l.b16 %v4166
        %v4430 = vunpack.c.h.b16 %v4166
        %v4431 = vunpack.c.l.b16 %v4167
        %v4432 = vunpack.c.h.b16 %v4167
        %v4433 = vunpack.c.l.b16 %v4168
        %v4434 = vunpack.c.h.b16 %v4168
        %v4435 = vunpack.c.l.b16 %v4169
        %v4436 = vunpack.c.h.b16 %v4169
        %v4437 = vunpack.c.l.b16 %v4170
        %v4438 = vunpack.c.h.b16 %v4170
        %v4439 = vunpack.c.l.b16 %v4171
        %v4440 = vunpack.c.h.b16 %v4171
        %v4441 = vunpack.c.l.b16 %v4172
        %v4442 = vunpack.c.h.b16 %v4172
        %v4443 = vunpack.c.l.b16 %v4173
        %v4444 = vunpack.c.h.b16 %v4173
        %v4445 = vunpack.c.l.b16 %v4174
        %v4446 = vunpack.c.h.b16 %v4174
        %v4447 = vunpack.c.l.b16 %v4175
        %v4448 = vunpack.c.h.b16 %v4175
        %v4449 = vunpack.c.l.b16 %v4176
        %v4450 = vunpack.c.h.b16 %v4176
        %v4451 = vunpack.c.l.b16 %v4177
        %v4452 = vunpack.c.h.b16 %v4177
        %v4453 = vunpack.c.l.b16 %v4178
        %v4454 = vunpack.c.h.b16 %v4178
        %v4455 = vunpack.c.l.b16 %v4179
        %v4456 = vunpack.c.h.b16 %v4179
        %v4457 = vunpack.c.l.b16 %v4180
        %v4458 = vunpack.c.h.b16 %v4180
        %v4459 = vunpack.c.l.b16 %v4181
        %v4460 = vunpack.c.h.b16 %v4181
        %v4461 = vunpack.c.l.b16 %v4182
        %v4462 = vunpack.c.h.b16 %v4182
        %v4463 = vunpack.c.l.b16 %v4183
        %v4464 = vunpack.c.h.b16 %v4183
        %v4465 = vunpack.c.l.b16 %v4184
        %v4466 = vunpack.c.h.b16 %v4184
        %v4467 = vunpack.c.l.b16 %v4185
        %v4468 = vunpack.c.h.b16 %v4185
        %v4469 = vunpack.c.l.b16 %v4186
        %v4470 = vunpack.c.h.b16 %v4186
        %v4471 = vunpack.c.l.b16 %v4187
        %v4472 = vunpack.c.h.b16 %v4187
        %v4473 = vunpack.c.l.b16 %v4188
        %v4474 = vunpack.c.h.b16 %v4188
        %v4475 = vunpack.c.l.b16 %v4189
        %v4476 = vunpack.c.h.b16 %v4189
        %v4477 = vunpack.c.l.b16 %v4190
        %v4478 = vunpack.c.h.b16 %v4190
        %v4479 = vunpack.c.l.b16 %v4191
        %v4480 = vunpack.c.h.b16 %v4191
        %v4481 = vunpack.c.l.b16 %v4192
        %v4482 = vunpack.c.h.b16 %v4192
        %v4483 = vunpack.c.l.b16 %v4193
        %v4484 = vunpack.c.h.b16 %v4193
        %v4485 = vunpack.c.l.b16 %v4194
        %v4486 = vunpack.c.h.b16 %v4194
        %v4487 = vunpack.c.l.b16 %v4195
        %v4488 = vunpack.c.h.b16 %v4195
        %v4489 = vunpack.c.l.b16 %v4196
        %v4490 = vunpack.c.h.b16 %v4196
        %v4491 = vunpack.c.l.b16 %v4197
        %v4492 = vunpack.c.h.b16 %v4197
        %v4493 = vunpack.c.l.b16 %v4198
        %v4494 = vunpack.c.h.b16 %v4198
        %v4495 = vunpack.c.l.b16 %v4199
        %v4496 = vunpack.c.h.b16 %v4199
        %v4497 = vunpack.c.l.b16 %v4200
        %v4498 = vunpack.c.h.b16 %v4200
        %v4499 = vunpack.c.l.b16 %v4201
        %v4500 = vunpack.c.h.b16 %v4201
        %v4501 = vunpack.c.l.b16 %v4202
        %v4502 = vunpack.c.h.b16 %v4202
        %v4503 = vunpack.c.l.b16 %v4203
        %v4504 = vunpack.c.h.b16 %v4203
        %v4505 = vunpack.c.l.b16 %v4204
        %v4506 = vunpack.c.h.b16 %v4204
        %v4507 = vunpack.c.l.b16 %v4205
        %v4508 = vunpack.c.h.b16 %v4205
        %v4509 = vunpack.c.l.b16 %v4206
        %v4510 = vunpack.c.h.b16 %v4206
        %v4511 = vunpack.c.l.b16 %v4207
        %v4512 = vunpack.c.h.b16 %v4207
        %v4513 = vunpack.c.l.b16 %v4208
        %v4514 = vunpack.c.h.b16 %v4208
        %v4515 = vunpack.c.l.b16 %v4209
        %v4516 = vunpack.c.h.b16 %v4209
        %v4517 = vunpack.c.l.b16 %v4210
        %v4518 = vunpack.c.h.b16 %v4210
        %v4519 = vunpack.c.l.b16 %v4211
        %v4520 = vunpack.c.h.b16 %v4211
        %v4521 = vunpack.c.l.b16 %v4212
        %v4522 = vunpack.c.h.b16 %v4212
        %v4523 = vunpack.c.l.b16 %v4213
        %v4524 = vunpack.c.h.b16 %v4213
        %v4525 = vunpack.c.l.b16 %v4214
        %v4526 = vunpack.c.h.b16 %v4214
        %v4527 = vunpack.c.l.b16 %v4215
        %v4528 = vunpack.c.h.b16 %v4215
        %v4529 = vunpack.c.l.b16 %v4216
        %v4530 = vunpack.c.h.b16 %v4216
        %v4531 = vunpack.c.l.b16 %v4217
        %v4532 = vunpack.c.h.b16 %v4217
        %v4533 = vunpack.c.l.b16 %v4218
        %v4534 = vunpack.c.h.b16 %v4218
        %v4535 = vunpack.c.l.b16 %v4219
        %v4536 = vunpack.c.h.b16 %v4219
        %v4537 = vunpack.c.l.b16 %v4220
        %v4538 = vunpack.c.h.b16 %v4220
        %v4539 = vunpack.c.l.b16 %v4221
        %v4540 = vunpack.c.h.b16 %v4221
        %v4541 = vunpack.c.l.b16 %v4222
        %v4542 = vunpack.c.h.b16 %v4222
        %v4543 = vunpack.c.l.b16 %v4223
        %v4544 = vunpack.c.h.b16 %v4223
        %v4545 = vpack.c.b16 %v4359, %v4353
        %v4546 = vpack.c.b16 %v4360, %v4354
        %v4547 = vpack.c.b16 %v4361, %v4355
        %v4548 = vpack.c.b16 %v4362, %v4356
        %v4549 = vpack.c.b16 %v4363, %v4357
        %v4550 = vpack.c.b16 %v4364, %v4358
        %v4551 = vpack.c.b16 %v4371, %v4365
        %v4552 = vpack.c.b16 %v4372, %v4366
        %v4553 = vpack.c.b16 %v4373, %v4367
        %v4554 = vpack.c.b16 %v4374, %v4368
        %v4555 = vpack.c.b16 %v4375, %v4369
        %v4556 = vpack.c.b16 %v4376, %v4370
        %v4557 = vpack.c.b16 %v4383, %v4377
        %v4558 = vpack.c.b16 %v4384, %v4378
        %v4559 = vpack.c.b16 %v4385, %v4379
        %v4560 = vpack.c.b16 %v4386, %v4380
        %v4561 = vpack.c.b16 %v4387, %v4381
        %v4562 = vpack.c.b16 %v4388, %v4382
        %v4563 = vpack.c.b16 %v4395, %v4389
        %v4564 = vpack.c.b16 %v4396, %v4390
        %v4565 = vpack.c.b16 %v4397, %v4391
        %v4566 = vpack.c.b16 %v4398, %v4392
        %v4567 = vpack.c.b16 %v4399, %v4393
        %v4568 = vpack.c.b16 %v4400, %v4394
        %v4569 = vpack.c.b16 %v4407, %v4401
        %v4570 = vpack.c.b16 %v4408, %v4402
        %v4571 = vpack.c.b16 %v4409, %v4403
        %v4572 = vpack.c.b16 %v4410, %v4404
        %v4573 = vpack.c.b16 %v4411, %v4405
        %v4574 = vpack.c.b16 %v4412, %v4406
        %v4575 = vpack.c.b16 %v4419, %v4413
        %v4576 = vpack.c.b16 %v4420, %v4414
        %v4577 = vpack.c.b16 %v4421, %v4415
        %v4578 = vpack.c.b16 %v4422, %v4416
        %v4579 = vpack.c.b16 %v4423, %v4417
        %v4580 = vpack.c.b16 %v4424, %v4418
        %v4581 = vpack.c.b16 %v4431, %v4425
        %v4582 = vpack.c.b16 %v4432, %v4426
        %v4583 = vpack.c.b16 %v4433, %v4427
        %v4584 = vpack.c.b16 %v4434, %v4428
        %v4585 = vpack.c.b16 %v4435, %v4429
        %v4586 = vpack.c.b16 %v4436, %v4430
        %v4587 = vpack.c.b16 %v4443, %v4437
        %v4588 = vpack.c.b16 %v4444, %v4438
        %v4589 = vpack.c.b16 %v4445, %v4439
        %v4590 = vpack.c.b16 %v4446, %v4440
        %v4591 = vpack.c.b16 %v4447, %v4441
        %v4592 = vpack.c.b16 %v4448, %v4442
        %v4593 = vpack.c.b16 %v4455, %v4449
        %v4594 = vpack.c.b16 %v4456, %v4450
        %v4595 = vpack.c.b16 %v4457, %v4451
        %v4596 = vpack.c.b16 %v4458, %v4452
        %v4597 = vpack.c.b16 %v4459, %v4453
        %v4598 = vpack.c.b16 %v4460, %v4454
        %v4599 = vpack.c.b16 %v4467, %v4461
        %v4600 = vpack.c.b16 %v4468, %v4462
        %v4601 = vpack.c.b16 %v4469, %v4463
        %v4602 = vpack.c.b16 %v4470, %v4464
        %v4603 = vpack.c.b16 %v4471, %v4465
        %v4604 = vpack.c.b16 %v4472, %v4466
        %v4605 = vpack.c.b16 %v4479, %v4473
        %v4606 = vpack.c.b16 %v4480, %v4474
        %v4607 = vpack.c.b16 %v4481, %v4475
        %v4608 = vpack.c.b16 %v4482, %v4476
        %v4609 = vpack.c.b16 %v4483, %v4477
        %v4610 = vpack.c.b16 %v4484, %v4478
        %v4611 = vpack.c.b16 %v4491, %v4485
        %v4612 = vpack.c.b16 %v4492, %v4486
        %v4613 = vpack.c.b16 %v4493, %v4487
        %v4614 = vpack.c.b16 %v4494, %v4488
        %v4615 = vpack.c.b16 %v4495, %v4489
        %v4616 = vpack.c.b16 %v4496, %v4490
        %v4617 = vpack.c.b16 %v4503, %v4497
        %v4618 = vpack.c.b16 %v4504, %v4498
        %v4619 = vpack.c.b16 %v4505, %v4499
        %v4620 = vpack.c.b16 %v4506, %v4500
        %v4621 = vpack.c.b16 %v4507, %v4501
        %v4622 = vpack.c.b16 %v4508, %v4502
        %v4623 = vpack.c.b16 %v4515, %v4509
        %v4624 = vpack.c.b16 %v4516, %v4510
        %v4625 = vpack.c.b16 %v4517, %v4511
        %v4626 = vpack.c.b16 %v4518, %v4512
        %v4627 = vpack.c.b16 %v4519, %v4513
        %v4628 = vpack.c.b16 %v4520, %v4514
        %v4629 = vpack.c.b16 %v4527, %v4521
        %v4630 = vpack.c.b16 %v4528, %v4522
        %v4631 = vpack.c.b16 %v4529, %v4523
        %v4632 = vpack.c.b16 %v4530, %v4524
        %v4633 = vpack.c.b16 %v4531, %v4525
        %v4634 = vpack.c.b16 %v4532, %v4526
        %v4635 = vpack.c.b16 %v4539, %v4533
        %v4636 = vpack.c.b16 %v4540, %v4534
        %v4637 = vpack.c.b16 %v4541, %v4535
        %v4638 = vpack.c.b16 %v4542, %v4536
        %v4639 = vpack.c.b16 %v4543, %v4537
        %v4640 = vpack.c.b16 %v4544, %v4538
        %4737 = vmatprep.subr.bf16.mxu0 %v4546
        %4738 = vmatpush1.bf16.msra.mxu0 %v4545
        %4739 = vmatprep.subr.bf16.mxu0 %v4552
        %4740 = vmatpush1.bf16.msra.mxu0 %v4551
        %4741 = vmatprep.subr.bf16.mxu0 %v4558
        %4742 = vmatpush1.bf16.msra.mxu0 %v4557
        %4743 = vmatprep.subr.bf16.mxu0 %v4564
        %4744 = vmatpush1.bf16.msra.mxu0 %v4563
        %4745 = vmatprep.subr.bf16.mxu0 %v4570
        %4746 = vmatpush1.bf16.msra.mxu0 %v4569
        %4747 = vmatprep.subr.bf16.mxu0 %v4576
        %4748 = vmatpush1.bf16.msra.mxu0 %v4575
        %4749 = vmatprep.subr.bf16.mxu0 %v4582
        %4750 = vmatpush1.bf16.msra.mxu0 %v4581
        %4751 = vmatprep.subr.bf16.mxu0 %v4588
        %4752 = vmatpush1.bf16.msra.mxu0 %v4587
        %4753 = vmatprep.subr.bf16.mxu0 %v4594
        %4754 = vmatpush1.bf16.msra.mxu0 %v4593
        %4755 = vmatprep.subr.bf16.mxu0 %v4600
        %4756 = vmatpush1.bf16.msra.mxu0 %v4599
        %4757 = vmatprep.subr.bf16.mxu0 %v4606
        %4758 = vmatpush1.bf16.msra.mxu0 %v4605
        %4759 = vmatprep.subr.bf16.mxu0 %v4612
        %4760 = vmatpush1.bf16.msra.mxu0 %v4611
        %4761 = vmatprep.subr.bf16.mxu0 %v4618
        %4762 = vmatpush1.bf16.msra.mxu0 %v4617
        %4763 = vmatprep.subr.bf16.mxu0 %v4624
        %4764 = vmatpush1.bf16.msra.mxu0 %v4623
        %4765 = vmatprep.subr.bf16.mxu0 %v4630
        %4766 = vmatpush1.bf16.msra.mxu0 %v4629
        %4767 = vmatprep.subr.bf16.mxu0 %v4636
        %4768 = vmatpush1.bf16.msra.mxu0 %v4635
        %4769 = vmatprep.mubr.bf16.mxu0 %v4126
        %4770 = vmatmul.mubr.bf16.gmra.mrb[0].mxu0 %v4125
        %v4771 = vpop.f32.mrb[0].mxu0
        %v4772 = vadd.f32 %v4230, %v4771
        %v4773 = vpop.f32.mrb[0].mxu0
        %v4774 = vadd.f32 %v4234, %v4773
        %v4775 = vpop.f32.mrb[0].mxu0
        %v4776 = vpop.f32.mrb[0].mxu0
        %4777 = vdwg.mxu0
        %4778 = vmatprep.subr.bf16.mxu0 %v4548
        %4779 = vmatpush1.bf16.msra.mxu0 %v4547
        %4780 = vmatprep.subr.bf16.mxu0 %v4554
        %4781 = vmatpush1.bf16.msra.mxu0 %v4553
        %4782 = vmatprep.subr.bf16.mxu0 %v4560
        %4783 = vmatpush1.bf16.msra.mxu0 %v4559
        %4784 = vmatprep.subr.bf16.mxu0 %v4566
        %4785 = vmatpush1.bf16.msra.mxu0 %v4565
        %4786 = vmatprep.subr.bf16.mxu0 %v4572
        %4787 = vmatpush1.bf16.msra.mxu0 %v4571
        %4788 = vmatprep.subr.bf16.mxu0 %v4578
        %4789 = vmatpush1.bf16.msra.mxu0 %v4577
        %4790 = vmatprep.subr.bf16.mxu0 %v4584
        %4791 = vmatpush1.bf16.msra.mxu0 %v4583
        %4792 = vmatprep.subr.bf16.mxu0 %v4590
        %4793 = vmatpush1.bf16.msra.mxu0 %v4589
        %4794 = vmatprep.subr.bf16.mxu0 %v4596
        %4795 = vmatpush1.bf16.msra.mxu0 %v4595
        %4796 = vmatprep.subr.bf16.mxu0 %v4602
        %4797 = vmatpush1.bf16.msra.mxu0 %v4601
        %4798 = vmatprep.subr.bf16.mxu0 %v4608
        %4799 = vmatpush1.bf16.msra.mxu0 %v4607
        %4800 = vmatprep.subr.bf16.mxu0 %v4614
        %4801 = vmatpush1.bf16.msra.mxu0 %v4613
        %4802 = vmatprep.subr.bf16.mxu0 %v4620
        %4803 = vmatpush1.bf16.msra.mxu0 %v4619
        %4804 = vmatprep.subr.bf16.mxu0 %v4626
        %4805 = vmatpush1.bf16.msra.mxu0 %v4625
        %4806 = vmatprep.subr.bf16.mxu0 %v4632
        %4807 = vmatpush1.bf16.msra.mxu0 %v4631
        %4808 = vmatprep.subr.bf16.mxu0 %v4638
        %4809 = vmatpush1.bf16.msra.mxu0 %v4637
        %4810 = vmatprep.mubr.bf16.mxu0 %v4126
        %4811 = vmatmul.mubr.bf16.gmra.mrb[0].mxu0 %v4125
        %v4812 = vpop.f32.mrb[0].mxu0
        %v4813 = vadd.f32 %v4238, %v4812
        %v4814 = vpop.f32.mrb[0].mxu0
        %v4815 = vadd.f32 %v4242, %v4814
        %v4816 = vpop.f32.mrb[0].mxu0
        %v4817 = vpop.f32.mrb[0].mxu0
        %4818 = vdwg.mxu0
        %4819 = vmatprep.subr.bf16.mxu0 %v4550
        %4820 = vmatpush1.bf16.msra.mxu0 %v4549
        %4821 = vmatprep.subr.bf16.mxu0 %v4556
        %4822 = vmatpush1.bf16.msra.mxu0 %v4555
        %4823 = vmatprep.subr.bf16.mxu0 %v4562
        %4824 = vmatpush1.bf16.msra.mxu0 %v4561
        %4825 = vmatprep.subr.bf16.mxu0 %v4568
        %4826 = vmatpush1.bf16.msra.mxu0 %v4567
        %4827 = vmatprep.subr.bf16.mxu0 %v4574
        %4828 = vmatpush1.bf16.msra.mxu0 %v4573
        %4829 = vmatprep.subr.bf16.mxu0 %v4580
        %4830 = vmatpush1.bf16.msra.mxu0 %v4579
        %4831 = vmatprep.subr.bf16.mxu0 %v4586
        %4832 = vmatpush1.bf16.msra.mxu0 %v4585
        %4833 = vmatprep.subr.bf16.mxu0 %v4592
        %4834 = vmatpush1.bf16.msra.mxu0 %v4591
        %4835 = vmatprep.subr.bf16.mxu0 %v4598
        %4836 = vmatpush1.bf16.msra.mxu0 %v4597
        %4837 = vmatprep.subr.bf16.mxu0 %v4604
        %4838 = vmatpush1.bf16.msra.mxu0 %v4603
        %4839 = vmatprep.subr.bf16.mxu0 %v4610
        %4840 = vmatpush1.bf16.msra.mxu0 %v4609
        %4841 = vmatprep.subr.bf16.mxu0 %v4616
        %4842 = vmatpush1.bf16.msra.mxu0 %v4615
        %4843 = vmatprep.subr.bf16.mxu0 %v4622
        %4844 = vmatpush1.bf16.msra.mxu0 %v4621
        %4845 = vmatprep.subr.bf16.mxu0 %v4628
        %4846 = vmatpush1.bf16.msra.mxu0 %v4627
        %4847 = vmatprep.subr.bf16.mxu0 %v4634
        %4848 = vmatpush1.bf16.msra.mxu0 %v4633
        %4849 = vmatprep.subr.bf16.mxu0 %v4640
        %4850 = vmatpush1.bf16.msra.mxu0 %v4639
        %4851 = vmatprep.mubr.bf16.mxu0 %v4126
        %4852 = vmatmul.mubr.bf16.gmra.mrb[0].mxu0 %v4125
        %v4853 = vpop.f32.mrb[0].mxu0
        %v4854 = vadd.f32 %v4246, %v4853
        %v4855 = vpop.f32.mrb[0].mxu0
        %v4856 = vadd.f32 %v4250, %v4855
        %v4857 = vpop.f32.mrb[0].mxu0
        %v4858 = vpop.f32.mrb[0].mxu0
        %4859 = vdwg.mxu0
        %v4860 = vpack.c.bf16 %v4772, %v4772
        %v4861 = vpack.c.bf16 %v4813, %v4813
        %v4862 = vpack.c.bf16 %v4854, %v4854
        %v4864 = vsel %vm1370, %v4860, 0
        %v4867 = vsel %vm1370, %v4861, 0
        %4869 = vmatprep.subr.bf16.mxu0 0
        %4870 = vmatpush1.bf16.xpose.msra.mxu0 %v4867
        %4871 = vmatprep.subr.bf16.mxu0 0
        %4872 = vmatpush1.bf16.xpose.msra.mxu0 0
        %4873 = vmatprep.subr.bf16.mxu0 0
        %4874 = vmatpush1.bf16.xpose.msra.mxu0 0
        %4875 = vmatprep.subr.bf16.mxu0 0
        %4876 = vmatpush1.bf16.xpose.msra.mxu0 0
        %4877 = vmatprep.subr.bf16.mxu0 0
        %4878 = vmatpush1.bf16.xpose.msra.mxu0 0
        %4879 = vmatprep.subr.bf16.mxu0 0
        %4880 = vmatpush1.bf16.xpose.msra.mxu0 0
        %4881 = vmatprep.subr.bf16.mxu0 0
        %4882 = vmatpush1.bf16.xpose.msra.mxu0 0
        %4883 = vmatprep.subr.bf16.mxu0 0
        %4884 = vmatpush1.bf16.xpose.msra.mxu0 0
        %4885 = vmatprep.subr.bf16.mxu0 0
        %4886 = vmatpush1.bf16.xpose.msra.mxu0 0
        %4887 = vmatprep.subr.bf16.mxu0 0
        %4888 = vmatpush1.bf16.xpose.msra.mxu0 0
        %4889 = vmatprep.subr.bf16.mxu0 0
        %4890 = vmatpush1.bf16.xpose.msra.mxu0 0
        %4891 = vmatprep.subr.bf16.mxu0 0
        %4892 = vmatpush1.bf16.xpose.msra.mxu0 0
        %4893 = vmatprep.subr.bf16.mxu0 0
        %4894 = vmatpush1.bf16.xpose.msra.mxu0 0
        %4895 = vmatprep.subr.bf16.mxu0 0
        %4896 = vmatpush1.bf16.xpose.msra.mxu0 0
        %4897 = vmatprep.subr.bf16.mxu0 0
        %4898 = vmatpush1.bf16.xpose.msra.mxu0 0
        %4899 = vmatprep.subr.bf16.mxu0 0
        %4900 = vmatpush1.bf16.xpose.msra.mxu0 0
        %4901 = vmatprep.mubr.bf16.mxu0 0
        %4902 = vmatmul.mubr.bf16.gmra.mrb[0].mxu0 %v4864
        %v4903 = vpop.f32.mrb[0].mxu0
        %v4904 = vadd.f32 0.0, %v4903
        %v4905 = vpop.f32.mrb[0].mxu0
        %v4906 = vpop.f32.mrb[0].mxu0
        %v4907 = vpop.f32.mrb[0].mxu0
        %4908 = vdwg.mxu0
        %v4909 = vsel %vm1417, %v4904, -inf
        %4910 = vmax.xlane.f32.xlu0 %v4909
        %v4911 = vpop.xlane.xlu0 %4910
        %v4912 = vsub.f32 %v4904, %v4911
        %v4913 = vmul.f32 %v4912, 1.442695
        %v4914 = vpow.pop %v4913
        %v4915 = vsel %vm1417, %v4914, 0.0
        %4916 = vadd.xlane.f32.xlu0 %v4915
        %v4917 = vpop.xlane.xlu0 %4916
        %v4918 = vrcp.pop %v4917
        %v4919 = vmul.f32 %v4914, %v4918
        %v4920 = vpack.c.bf16 %v4919, %v4919
        %v4922 = vsel %vm1417, %v4920, 0
        %v4925 = vsel %vm1433, %v4862, 0
        %4927 = vmatprep.subr.bf16.mxu0 0
        %4928 = vmatpush1.bf16.msra.mxu0 %v4925
        %4929 = vmatprep.subr.bf16.mxu0 0
        %4930 = vmatpush1.bf16.msra.mxu0 0
        %4931 = vmatprep.subr.bf16.mxu0 0
        %4932 = vmatpush1.bf16.msra.mxu0 0
        %4933 = vmatprep.subr.bf16.mxu0 0
        %4934 = vmatpush1.bf16.msra.mxu0 0
        %4935 = vmatprep.subr.bf16.mxu0 0
        %4936 = vmatpush1.bf16.msra.mxu0 0
        %4937 = vmatprep.subr.bf16.mxu0 0
        %4938 = vmatpush1.bf16.msra.mxu0 0
        %4939 = vmatprep.subr.bf16.mxu0 0
        %4940 = vmatpush1.bf16.msra.mxu0 0
        %4941 = vmatprep.subr.bf16.mxu0 0
        %4942 = vmatpush1.bf16.msra.mxu0 0
        %4943 = vmatprep.subr.bf16.mxu0 0
        %4944 = vmatpush1.bf16.msra.mxu0 0
        %4945 = vmatprep.subr.bf16.mxu0 0
        %4946 = vmatpush1.bf16.msra.mxu0 0
        %4947 = vmatprep.subr.bf16.mxu0 0
        %4948 = vmatpush1.bf16.msra.mxu0 0
        %4949 = vmatprep.subr.bf16.mxu0 0
        %4950 = vmatpush1.bf16.msra.mxu0 0
        %4951 = vmatprep.subr.bf16.mxu0 0
        %4952 = vmatpush1.bf16.msra.mxu0 0
        %4953 = vmatprep.subr.bf16.mxu0 0
        %4954 = vmatpush1.bf16.msra.mxu0 0
        %4955 = vmatprep.subr.bf16.mxu0 0
        %4956 = vmatpush1.bf16.msra.mxu0 0
        %4957 = vmatprep.subr.bf16.mxu0 0
        %4958 = vmatpush1.bf16.msra.mxu0 0
        %4959 = vmatprep.mubr.bf16.mxu0 0
        %4960 = vmatmul.mubr.bf16.gmra.mrb[0].mxu0 %v4922
        %v4961 = vpop.f32.mrb[0].mxu0
        %v4962 = vadd.f32 0.0, %v4961
        %v4963 = vpop.f32.mrb[0].mxu0
        %v4964 = vpop.f32.mrb[0].mxu0
        %v4965 = vpop.f32.mrb[0].mxu0
        %4966 = vdwg.mxu0
        %v4967 = vpack.c.bf16 %v4962, %v4962
        %4969 = vrot.lane.b32.xlu0 %v4860, 64
        %v4970 = vpop.permute.xlu0 %4969
        %4972 = vrot.lane.b32.xlu0 %v4861, 64
        %v4973 = vpop.permute.xlu0 %4972
        %v4975 = vsel %vm1370, %v4970, 0
        %v4978 = vsel %vm1370, %v4973, 0
        %4980 = vmatprep.subr.bf16.mxu0 0
        %4981 = vmatpush1.bf16.xpose.msra.mxu0 %v4978
        %4982 = vmatprep.subr.bf16.mxu0 0
        %4983 = vmatpush1.bf16.xpose.msra.mxu0 0
        %4984 = vmatprep.subr.bf16.mxu0 0
        %4985 = vmatpush1.bf16.xpose.msra.mxu0 0
        %4986 = vmatprep.subr.bf16.mxu0 0
        %4987 = vmatpush1.bf16.xpose.msra.mxu0 0
        %4988 = vmatprep.subr.bf16.mxu0 0
        %4989 = vmatpush1.bf16.xpose.msra.mxu0 0
        %4990 = vmatprep.subr.bf16.mxu0 0
        %4991 = vmatpush1.bf16.xpose.msra.mxu0 0
        %4992 = vmatprep.subr.bf16.mxu0 0
        %4993 = vmatpush1.bf16.xpose.msra.mxu0 0
        %4994 = vmatprep.subr.bf16.mxu0 0
        %4995 = vmatpush1.bf16.xpose.msra.mxu0 0
        %4996 = vmatprep.subr.bf16.mxu0 0
        %4997 = vmatpush1.bf16.xpose.msra.mxu0 0
        %4998 = vmatprep.subr.bf16.mxu0 0
        %4999 = vmatpush1.bf16.xpose.msra.mxu0 0
        %5000 = vmatprep.subr.bf16.mxu0 0
        %5001 = vmatpush1.bf16.xpose.msra.mxu0 0
        %5002 = vmatprep.subr.bf16.mxu0 0
        %5003 = vmatpush1.bf16.xpose.msra.mxu0 0
        %5004 = vmatprep.subr.bf16.mxu0 0
        %5005 = vmatpush1.bf16.xpose.msra.mxu0 0
        %5006 = vmatprep.subr.bf16.mxu0 0
        %5007 = vmatpush1.bf16.xpose.msra.mxu0 0
        %5008 = vmatprep.subr.bf16.mxu0 0
        %5009 = vmatpush1.bf16.xpose.msra.mxu0 0
        %5010 = vmatprep.subr.bf16.mxu0 0
        %5011 = vmatpush1.bf16.xpose.msra.mxu0 0
        %5012 = vmatprep.mubr.bf16.mxu0 0
        %5013 = vmatmul.mubr.bf16.gmra.mrb[0].mxu0 %v4975
        %v5014 = vpop.f32.mrb[0].mxu0
        %v5015 = vadd.f32 0.0, %v5014
        %v5016 = vpop.f32.mrb[0].mxu0
        %v5017 = vpop.f32.mrb[0].mxu0
        %v5018 = vpop.f32.mrb[0].mxu0
        %5019 = vdwg.mxu0
        %v5020 = vsel %vm1417, %v5015, -inf
        %5021 = vmax.xlane.f32.xlu0 %v5020
        %v5022 = vpop.xlane.xlu0 %5021
        %v5023 = vsub.f32 %v5015, %v5022
        %v5024 = vmul.f32 %v5023, 1.442695
        %v5025 = vpow.pop %v5024
        %v5026 = vsel %vm1417, %v5025, 0.0
        %5027 = vadd.xlane.f32.xlu0 %v5026
        %v5028 = vpop.xlane.xlu0 %5027
        %v5029 = vrcp.pop %v5028
        %v5030 = vmul.f32 %v5025, %v5029
        %v5031 = vpack.c.bf16 %v5030, %v5030
        %5033 = vrot.lane.b32.xlu0 %v4862, 64
        %v5034 = vpop.permute.xlu0 %5033
        %v5036 = vsel %vm1417, %v5031, 0
        %v5039 = vsel %vm1433, %v5034, 0
        %5041 = vmatprep.subr.bf16.mxu0 0
        %5042 = vmatpush1.bf16.msra.mxu0 %v5039
        %5043 = vmatprep.subr.bf16.mxu0 0
        %5044 = vmatpush1.bf16.msra.mxu0 0
        %5045 = vmatprep.subr.bf16.mxu0 0
        %5046 = vmatpush1.bf16.msra.mxu0 0
        %5047 = vmatprep.subr.bf16.mxu0 0
        %5048 = vmatpush1.bf16.msra.mxu0 0
        %5049 = vmatprep.subr.bf16.mxu0 0
        %5050 = vmatpush1.bf16.msra.mxu0 0
        %5051 = vmatprep.subr.bf16.mxu0 0
        %5052 = vmatpush1.bf16.msra.mxu0 0
        %5053 = vmatprep.subr.bf16.mxu0 0
        %5054 = vmatpush1.bf16.msra.mxu0 0
        %5055 = vmatprep.subr.bf16.mxu0 0
        %5056 = vmatpush1.bf16.msra.mxu0 0
        %5057 = vmatprep.subr.bf16.mxu0 0
        %5058 = vmatpush1.bf16.msra.mxu0 0
        %5059 = vmatprep.subr.bf16.mxu0 0
        %5060 = vmatpush1.bf16.msra.mxu0 0
        %5061 = vmatprep.subr.bf16.mxu0 0
        %5062 = vmatpush1.bf16.msra.mxu0 0
        %5063 = vmatprep.subr.bf16.mxu0 0
        %5064 = vmatpush1.bf16.msra.mxu0 0
        %5065 = vmatprep.subr.bf16.mxu0 0
        %5066 = vmatpush1.bf16.msra.mxu0 0
        %5067 = vmatprep.subr.bf16.mxu0 0
        %5068 = vmatpush1.bf16.msra.mxu0 0
        %5069 = vmatprep.subr.bf16.mxu0 0
        %5070 = vmatpush1.bf16.msra.mxu0 0
        %5071 = vmatprep.subr.bf16.mxu0 0
        %5072 = vmatpush1.bf16.msra.mxu0 0
        %5073 = vmatprep.mubr.bf16.mxu0 0
        %5074 = vmatmul.mubr.bf16.gmra.mrb[0].mxu0 %v5036
        %v5075 = vpop.f32.mrb[0].mxu0
        %v5076 = vadd.f32 0.0, %v5075
        %v5077 = vpop.f32.mrb[0].mxu0
        %v5078 = vpop.f32.mrb[0].mxu0
        %v5079 = vpop.f32.mrb[0].mxu0
        %5080 = vdwg.mxu0
        %v5081 = vpack.c.bf16 %v5076, %v5076
        %v5082 = vpack.c.bf16 %v4774, %v4774
        %v5083 = vpack.c.bf16 %v4815, %v4815
        %v5084 = vpack.c.bf16 %v4856, %v4856
        %v5086 = vsel %vm1370, %v5082, 0
        %v5089 = vsel %vm1370, %v5083, 0
        %5091 = vmatprep.subr.bf16.mxu0 0
        %5092 = vmatpush1.bf16.xpose.msra.mxu0 %v5089
        %5093 = vmatprep.subr.bf16.mxu0 0
        %5094 = vmatpush1.bf16.xpose.msra.mxu0 0
        %5095 = vmatprep.subr.bf16.mxu0 0
        %5096 = vmatpush1.bf16.xpose.msra.mxu0 0
        %5097 = vmatprep.subr.bf16.mxu0 0
        %5098 = vmatpush1.bf16.xpose.msra.mxu0 0
        %5099 = vmatprep.subr.bf16.mxu0 0
        %5100 = vmatpush1.bf16.xpose.msra.mxu0 0
        %5101 = vmatprep.subr.bf16.mxu0 0
        %5102 = vmatpush1.bf16.xpose.msra.mxu0 0
        %5103 = vmatprep.subr.bf16.mxu0 0
        %5104 = vmatpush1.bf16.xpose.msra.mxu0 0
        %5105 = vmatprep.subr.bf16.mxu0 0
        %5106 = vmatpush1.bf16.xpose.msra.mxu0 0
        %5107 = vmatprep.subr.bf16.mxu0 0
        %5108 = vmatpush1.bf16.xpose.msra.mxu0 0
        %5109 = vmatprep.subr.bf16.mxu0 0
        %5110 = vmatpush1.bf16.xpose.msra.mxu0 0
        %5111 = vmatprep.subr.bf16.mxu0 0
        %5112 = vmatpush1.bf16.xpose.msra.mxu0 0
        %5113 = vmatprep.subr.bf16.mxu0 0
        %5114 = vmatpush1.bf16.xpose.msra.mxu0 0
        %5115 = vmatprep.subr.bf16.mxu0 0
        %5116 = vmatpush1.bf16.xpose.msra.mxu0 0
        %5117 = vmatprep.subr.bf16.mxu0 0
        %5118 = vmatpush1.bf16.xpose.msra.mxu0 0
        %5119 = vmatprep.subr.bf16.mxu0 0
        %5120 = vmatpush1.bf16.xpose.msra.mxu0 0
        %5121 = vmatprep.subr.bf16.mxu0 0
        %5122 = vmatpush1.bf16.xpose.msra.mxu0 0
        %5123 = vmatprep.mubr.bf16.mxu0 0
        %5124 = vmatmul.mubr.bf16.gmra.mrb[0].mxu0 %v5086
        %v5125 = vpop.f32.mrb[0].mxu0
        %v5126 = vadd.f32 0.0, %v5125
        %v5127 = vpop.f32.mrb[0].mxu0
        %v5128 = vpop.f32.mrb[0].mxu0
        %v5129 = vpop.f32.mrb[0].mxu0
        %5130 = vdwg.mxu0
        %v5131 = vsel %vm1417, %v5126, -inf
        %5132 = vmax.xlane.f32.xlu0 %v5131
        %v5133 = vpop.xlane.xlu0 %5132
        %v5134 = vsub.f32 %v5126, %v5133
        %v5135 = vmul.f32 %v5134, 1.442695
        %v5136 = vpow.pop %v5135
        %v5137 = vsel %vm1417, %v5136, 0.0
        %5138 = vadd.xlane.f32.xlu0 %v5137
        %v5139 = vpop.xlane.xlu0 %5138
        %v5140 = vrcp.pop %v5139
        %v5141 = vmul.f32 %v5136, %v5140
        %v5142 = vpack.c.bf16 %v5141, %v5141
        %v5144 = vsel %vm1417, %v5142, 0
        %v5147 = vsel %vm1433, %v5084, 0
        %5149 = vmatprep.subr.bf16.mxu0 0
        %5150 = vmatpush1.bf16.msra.mxu0 %v5147
        %5151 = vmatprep.subr.bf16.mxu0 0
        %5152 = vmatpush1.bf16.msra.mxu0 0
        %5153 = vmatprep.subr.bf16.mxu0 0
        %5154 = vmatpush1.bf16.msra.mxu0 0
        %5155 = vmatprep.subr.bf16.mxu0 0
        %5156 = vmatpush1.bf16.msra.mxu0 0
        %5157 = vmatprep.subr.bf16.mxu0 0
        %5158 = vmatpush1.bf16.msra.mxu0 0
        %5159 = vmatprep.subr.bf16.mxu0 0
        %5160 = vmatpush1.bf16.msra.mxu0 0
        %5161 = vmatprep.subr.bf16.mxu0 0
        %5162 = vmatpush1.bf16.msra.mxu0 0
        %5163 = vmatprep.subr.bf16.mxu0 0
        %5164 = vmatpush1.bf16.msra.mxu0 0
        %5165 = vmatprep.subr.bf16.mxu0 0
        %5166 = vmatpush1.bf16.msra.mxu0 0
        %5167 = vmatprep.subr.bf16.mxu0 0
        %5168 = vmatpush1.bf16.msra.mxu0 0
        %5169 = vmatprep.subr.bf16.mxu0 0
        %5170 = vmatpush1.bf16.msra.mxu0 0
        %5171 = vmatprep.subr.bf16.mxu0 0
        %5172 = vmatpush1.bf16.msra.mxu0 0
        %5173 = vmatprep.subr.bf16.mxu0 0
        %5174 = vmatpush1.bf16.msra.mxu0 0
        %5175 = vmatprep.subr.bf16.mxu0 0
        %5176 = vmatpush1.bf16.msra.mxu0 0
        %5177 = vmatprep.subr.bf16.mxu0 0
        %5178 = vmatpush1.bf16.msra.mxu0 0
        %5179 = vmatprep.subr.bf16.mxu0 0
        %5180 = vmatpush1.bf16.msra.mxu0 0
        %5181 = vmatprep.mubr.bf16.mxu0 0
        %5182 = vmatmul.mubr.bf16.gmra.mrb[0].mxu0 %v5144
        %v5183 = vpop.f32.mrb[0].mxu0
        %v5184 = vadd.f32 0.0, %v5183
        %v5185 = vpop.f32.mrb[0].mxu0
        %v5186 = vpop.f32.mrb[0].mxu0
        %v5187 = vpop.f32.mrb[0].mxu0
        %5188 = vdwg.mxu0
        %v5189 = vpack.c.bf16 %v5184, %v5184
        %5191 = vrot.lane.b32.xlu0 %v5082, 64
        %v5192 = vpop.permute.xlu0 %5191
        %5194 = vrot.lane.b32.xlu0 %v5083, 64
        %v5195 = vpop.permute.xlu0 %5194
        %v5197 = vsel %vm1370, %v5192, 0
        %v5200 = vsel %vm1370, %v5195, 0
        %5202 = vmatprep.subr.bf16.mxu0 0
        %5203 = vmatpush1.bf16.xpose.msra.mxu0 %v5200
        %5204 = vmatprep.subr.bf16.mxu0 0
        %5205 = vmatpush1.bf16.xpose.msra.mxu0 0
        %5206 = vmatprep.subr.bf16.mxu0 0
        %5207 = vmatpush1.bf16.xpose.msra.mxu0 0
        %5208 = vmatprep.subr.bf16.mxu0 0
        %5209 = vmatpush1.bf16.xpose.msra.mxu0 0
        %5210 = vmatprep.subr.bf16.mxu0 0
        %5211 = vmatpush1.bf16.xpose.msra.mxu0 0
        %5212 = vmatprep.subr.bf16.mxu0 0
        %5213 = vmatpush1.bf16.xpose.msra.mxu0 0
        %5214 = vmatprep.subr.bf16.mxu0 0
        %5215 = vmatpush1.bf16.xpose.msra.mxu0 0
        %5216 = vmatprep.subr.bf16.mxu0 0
        %5217 = vmatpush1.bf16.xpose.msra.mxu0 0
        %5218 = vmatprep.subr.bf16.mxu0 0
        %5219 = vmatpush1.bf16.xpose.msra.mxu0 0
        %5220 = vmatprep.subr.bf16.mxu0 0
        %5221 = vmatpush1.bf16.xpose.msra.mxu0 0
        %5222 = vmatprep.subr.bf16.mxu0 0
        %5223 = vmatpush1.bf16.xpose.msra.mxu0 0
        %5224 = vmatprep.subr.bf16.mxu0 0
        %5225 = vmatpush1.bf16.xpose.msra.mxu0 0
        %5226 = vmatprep.subr.bf16.mxu0 0
        %5227 = vmatpush1.bf16.xpose.msra.mxu0 0
        %5228 = vmatprep.subr.bf16.mxu0 0
        %5229 = vmatpush1.bf16.xpose.msra.mxu0 0
        %5230 = vmatprep.subr.bf16.mxu0 0
        %5231 = vmatpush1.bf16.xpose.msra.mxu0 0
        %5232 = vmatprep.subr.bf16.mxu0 0
        %5233 = vmatpush1.bf16.xpose.msra.mxu0 0
        %5234 = vmatprep.mubr.bf16.mxu0 0
        %5235 = vmatmul.mubr.bf16.gmra.mrb[0].mxu0 %v5197
        %v5236 = vpop.f32.mrb[0].mxu0
        %v5237 = vadd.f32 0.0, %v5236
        %v5238 = vpop.f32.mrb[0].mxu0
        %v5239 = vpop.f32.mrb[0].mxu0
        %v5240 = vpop.f32.mrb[0].mxu0
        %5241 = vdwg.mxu0
        %v5242 = vsel %vm1417, %v5237, -inf
        %5243 = vmax.xlane.f32.xlu0 %v5242
        %v5244 = vpop.xlane.xlu0 %5243
        %v5245 = vsub.f32 %v5237, %v5244
        %v5246 = vmul.f32 %v5245, 1.442695
        %v5247 = vpow.pop %v5246
        %v5248 = vsel %vm1417, %v5247, 0.0
        %5249 = vadd.xlane.f32.xlu0 %v5248
        %v5250 = vpop.xlane.xlu0 %5249
        %v5251 = vrcp.pop %v5250
        %v5252 = vmul.f32 %v5247, %v5251
        %v5253 = vpack.c.bf16 %v5252, %v5252
        %5255 = vrot.lane.b32.xlu0 %v5084, 64
        %v5256 = vpop.permute.xlu0 %5255
        %v5258 = vsel %vm1417, %v5253, 0
        %v5261 = vsel %vm1433, %v5256, 0
        %5263 = vmatprep.subr.bf16.mxu0 0
        %5264 = vmatpush1.bf16.msra.mxu0 %v5261
        %5265 = vmatprep.subr.bf16.mxu0 0
        %5266 = vmatpush1.bf16.msra.mxu0 0
        %5267 = vmatprep.subr.bf16.mxu0 0
        %5268 = vmatpush1.bf16.msra.mxu0 0
        %5269 = vmatprep.subr.bf16.mxu0 0
        %5270 = vmatpush1.bf16.msra.mxu0 0
        %5271 = vmatprep.subr.bf16.mxu0 0
        %5272 = vmatpush1.bf16.msra.mxu0 0
        %5273 = vmatprep.subr.bf16.mxu0 0
        %5274 = vmatpush1.bf16.msra.mxu0 0
        %5275 = vmatprep.subr.bf16.mxu0 0
        %5276 = vmatpush1.bf16.msra.mxu0 0
        %5277 = vmatprep.subr.bf16.mxu0 0
        %5278 = vmatpush1.bf16.msra.mxu0 0
        %5279 = vmatprep.subr.bf16.mxu0 0
        %5280 = vmatpush1.bf16.msra.mxu0 0
        %5281 = vmatprep.subr.bf16.mxu0 0
        %5282 = vmatpush1.bf16.msra.mxu0 0
        %5283 = vmatprep.subr.bf16.mxu0 0
        %5284 = vmatpush1.bf16.msra.mxu0 0
        %5285 = vmatprep.subr.bf16.mxu0 0
        %5286 = vmatpush1.bf16.msra.mxu0 0
        %5287 = vmatprep.subr.bf16.mxu0 0
        %5288 = vmatpush1.bf16.msra.mxu0 0
        %5289 = vmatprep.subr.bf16.mxu0 0
        %5290 = vmatpush1.bf16.msra.mxu0 0
        %5291 = vmatprep.subr.bf16.mxu0 0
        %5292 = vmatpush1.bf16.msra.mxu0 0
        %5293 = vmatprep.subr.bf16.mxu0 0
        %5294 = vmatpush1.bf16.msra.mxu0 0
        %5295 = vmatprep.mubr.bf16.mxu0 0
        %5296 = vmatmul.mubr.bf16.gmra.mrb[0].mxu0 %v5258
        %v5297 = vpop.f32.mrb[0].mxu0
        %v5298 = vadd.f32 0.0, %v5297
        %v5299 = vpop.f32.mrb[0].mxu0
        %v5300 = vpop.f32.mrb[0].mxu0
        %v5301 = vpop.f32.mrb[0].mxu0
        %5302 = vdwg.mxu0
        %v5303 = vpack.c.bf16 %v5298, %v5298
        %5305 = vrot.lane.b32.xlu0 %v5081, 64
        %v5306 = vpop.permute.xlu0 %5305
        %5308 = vrot.lane.b32.xlu0 %v5303, 64
        %v5309 = vpop.permute.xlu0 %5308
        %v5312 = vsel %vm1370, %v4967, %v5306
        %v5316 = vsel %vm1370, %v5189, %v5309
        %s5318 = scalar_lea.vmem [#allocation8], 256
        %v5319 = vld [vmem:[%s5318] sm:$0xff]
        %v5320 = vld [vmem:[%s5318 + $0x8] sm:$0xff]
        %v5321 = vld [vmem:[%s5318 + $0x10] sm:$0xff]
        %v5322 = vld [vmem:[%s5318 + $0x18] sm:$0xff]
        %v5323 = vld [vmem:[%s5318 + $0x20] sm:$0xff]
        %v5324 = vld [vmem:[%s5318 + $0x28] sm:$0xff]
        %v5325 = vld [vmem:[%s5318 + $0x30] sm:$0xff]
        %v5326 = vld [vmem:[%s5318 + $0x38] sm:$0xff]
        %v5327 = vld [vmem:[%s5318 + $0x40] sm:$0xff]
        %v5328 = vld [vmem:[%s5318 + $0x48] sm:$0xff]
        %v5329 = vld [vmem:[%s5318 + $0x50] sm:$0xff]
        %v5330 = vld [vmem:[%s5318 + $0x58] sm:$0xff]
        %v5331 = vld [vmem:[%s5318 + $0x60] sm:$0xff]
        %v5332 = vld [vmem:[%s5318 + $0x68] sm:$0xff]
        %v5333 = vld [vmem:[%s5318 + $0x70] sm:$0xff]
        %v5334 = vld [vmem:[%s5318 + $0x78] sm:$0xff]
        %v5335 = vld [vmem:[%s5318 + $0x80] sm:$0xff]
        %v5336 = vld [vmem:[%s5318 + $0x88] sm:$0xff]
        %v5337 = vld [vmem:[%s5318 + $0x90] sm:$0xff]
        %v5338 = vld [vmem:[%s5318 + $0x98] sm:$0xff]
        %v5339 = vld [vmem:[%s5318 + $0xa0] sm:$0xff]
        %v5340 = vld [vmem:[%s5318 + $0xa8] sm:$0xff]
        %v5341 = vld [vmem:[%s5318 + $0xb0] sm:$0xff]
        %v5342 = vld [vmem:[%s5318 + $0xb8] sm:$0xff]
        %v5343 = vld [vmem:[%s5318 + $0xc0] sm:$0xff]
        %v5344 = vld [vmem:[%s5318 + $0xc8] sm:$0xff]
        %v5345 = vld [vmem:[%s5318 + $0xd0] sm:$0xff]
        %v5346 = vld [vmem:[%s5318 + $0xd8] sm:$0xff]
        %v5347 = vld [vmem:[%s5318 + $0xe0] sm:$0xff]
        %v5348 = vld [vmem:[%s5318 + $0xe8] sm:$0xff]
        %v5349 = vld [vmem:[%s5318 + $0xf0] sm:$0xff]
        %v5350 = vld [vmem:[%s5318 + $0xf8] sm:$0xff]
        %s5351 = scalar_lea.vmem [#allocation10], 2
        %v5352 = vld [vmem:[%s5351] sm:$0x3]
        %v5354 = vlaneseq
        %v5355 = vshrl.u32 %v5354, 7
        %v5356 = vsub.s32 0, %v5355
        %v5357 = vrot.slane %v5352, %v5356
        %v5358 = vlaneseq
        %v5359 = vshrl.u32 %v5358, 7
        %v5360 = vsub.s32 1, %v5359
        %v5361 = vrot.slane %v5352, %v5360
        %v5396 = vunpack.c.l.b16 %v5319
        %v5397 = vunpack.c.h.b16 %v5319
        %v5398 = vunpack.c.l.b16 %v5320
        %v5399 = vunpack.c.h.b16 %v5320
        %v5400 = vunpack.c.l.b16 %v5321
        %v5401 = vunpack.c.h.b16 %v5321
        %v5402 = vunpack.c.l.b16 %v5322
        %v5403 = vunpack.c.h.b16 %v5322
        %v5404 = vunpack.c.l.b16 %v5323
        %v5405 = vunpack.c.h.b16 %v5323
        %v5406 = vunpack.c.l.b16 %v5324
        %v5407 = vunpack.c.h.b16 %v5324
        %v5408 = vunpack.c.l.b16 %v5325
        %v5409 = vunpack.c.h.b16 %v5325
        %v5410 = vunpack.c.l.b16 %v5326
        %v5411 = vunpack.c.h.b16 %v5326
        %v5412 = vunpack.c.l.b16 %v5327
        %v5413 = vunpack.c.h.b16 %v5327
        %v5414 = vunpack.c.l.b16 %v5328
        %v5415 = vunpack.c.h.b16 %v5328
        %v5416 = vunpack.c.l.b16 %v5329
        %v5417 = vunpack.c.h.b16 %v5329
        %v5418 = vunpack.c.l.b16 %v5330
        %v5419 = vunpack.c.h.b16 %v5330
        %v5420 = vunpack.c.l.b16 %v5331
        %v5421 = vunpack.c.h.b16 %v5331
        %v5422 = vunpack.c.l.b16 %v5332
        %v5423 = vunpack.c.h.b16 %v5332
        %v5424 = vunpack.c.l.b16 %v5333
        %v5425 = vunpack.c.h.b16 %v5333
        %v5426 = vunpack.c.l.b16 %v5334
        %v5427 = vunpack.c.h.b16 %v5334
        %v5428 = vunpack.c.l.b16 %v5335
        %v5429 = vunpack.c.h.b16 %v5335
        %v5430 = vunpack.c.l.b16 %v5336
        %v5431 = vunpack.c.h.b16 %v5336
        %v5432 = vunpack.c.l.b16 %v5337
        %v5433 = vunpack.c.h.b16 %v5337
        %v5434 = vunpack.c.l.b16 %v5338
        %v5435 = vunpack.c.h.b16 %v5338
        %v5436 = vunpack.c.l.b16 %v5339
        %v5437 = vunpack.c.h.b16 %v5339
        %v5438 = vunpack.c.l.b16 %v5340
        %v5439 = vunpack.c.h.b16 %v5340
        %v5440 = vunpack.c.l.b16 %v5341
        %v5441 = vunpack.c.h.b16 %v5341
        %v5442 = vunpack.c.l.b16 %v5342
        %v5443 = vunpack.c.h.b16 %v5342
        %v5444 = vunpack.c.l.b16 %v5343
        %v5445 = vunpack.c.h.b16 %v5343
        %v5446 = vunpack.c.l.b16 %v5344
        %v5447 = vunpack.c.h.b16 %v5344
        %v5448 = vunpack.c.l.b16 %v5345
        %v5449 = vunpack.c.h.b16 %v5345
        %v5450 = vunpack.c.l.b16 %v5346
        %v5451 = vunpack.c.h.b16 %v5346
        %v5452 = vunpack.c.l.b16 %v5347
        %v5453 = vunpack.c.h.b16 %v5347
        %v5454 = vunpack.c.l.b16 %v5348
        %v5455 = vunpack.c.h.b16 %v5348
        %v5456 = vunpack.c.l.b16 %v5349
        %v5457 = vunpack.c.h.b16 %v5349
        %v5458 = vunpack.c.l.b16 %v5350
        %v5459 = vunpack.c.h.b16 %v5350
        %v5460 = vpack.c.b16 %v5398, %v5396
        %v5461 = vpack.c.b16 %v5399, %v5397
        %v5462 = vpack.c.b16 %v5402, %v5400
        %v5463 = vpack.c.b16 %v5403, %v5401
        %v5464 = vpack.c.b16 %v5406, %v5404
        %v5465 = vpack.c.b16 %v5407, %v5405
        %v5466 = vpack.c.b16 %v5410, %v5408
        %v5467 = vpack.c.b16 %v5411, %v5409
        %v5468 = vpack.c.b16 %v5414, %v5412
        %v5469 = vpack.c.b16 %v5415, %v5413
        %v5470 = vpack.c.b16 %v5418, %v5416
        %v5471 = vpack.c.b16 %v5419, %v5417
        %v5472 = vpack.c.b16 %v5422, %v5420
        %v5473 = vpack.c.b16 %v5423, %v5421
        %v5474 = vpack.c.b16 %v5426, %v5424
        %v5475 = vpack.c.b16 %v5427, %v5425
        %v5476 = vpack.c.b16 %v5430, %v5428
        %v5477 = vpack.c.b16 %v5431, %v5429
        %v5478 = vpack.c.b16 %v5434, %v5432
        %v5479 = vpack.c.b16 %v5435, %v5433
        %v5480 = vpack.c.b16 %v5438, %v5436
        %v5481 = vpack.c.b16 %v5439, %v5437
        %v5482 = vpack.c.b16 %v5442, %v5440
        %v5483 = vpack.c.b16 %v5443, %v5441
        %v5484 = vpack.c.b16 %v5446, %v5444
        %v5485 = vpack.c.b16 %v5447, %v5445
        %v5486 = vpack.c.b16 %v5450, %v5448
        %v5487 = vpack.c.b16 %v5451, %v5449
        %v5488 = vpack.c.b16 %v5454, %v5452
        %v5489 = vpack.c.b16 %v5455, %v5453
        %v5490 = vpack.c.b16 %v5458, %v5456
        %v5491 = vpack.c.b16 %v5459, %v5457
        %5524 = vmatprep.subr.bf16.mxu0 %v5461
        %5525 = vmatpush1.bf16.msra.mxu0 %v5460
        %5526 = vmatprep.subr.bf16.mxu0 %v5463
        %5527 = vmatpush1.bf16.msra.mxu0 %v5462
        %5528 = vmatprep.subr.bf16.mxu0 %v5465
        %5529 = vmatpush1.bf16.msra.mxu0 %v5464
        %5530 = vmatprep.subr.bf16.mxu0 %v5467
        %5531 = vmatpush1.bf16.msra.mxu0 %v5466
        %5532 = vmatprep.subr.bf16.mxu0 %v5469
        %5533 = vmatpush1.bf16.msra.mxu0 %v5468
        %5534 = vmatprep.subr.bf16.mxu0 %v5471
        %5535 = vmatpush1.bf16.msra.mxu0 %v5470
        %5536 = vmatprep.subr.bf16.mxu0 %v5473
        %5537 = vmatpush1.bf16.msra.mxu0 %v5472
        %5538 = vmatprep.subr.bf16.mxu0 %v5475
        %5539 = vmatpush1.bf16.msra.mxu0 %v5474
        %5540 = vmatprep.subr.bf16.mxu0 %v5477
        %5541 = vmatpush1.bf16.msra.mxu0 %v5476
        %5542 = vmatprep.subr.bf16.mxu0 %v5479
        %5543 = vmatpush1.bf16.msra.mxu0 %v5478
        %5544 = vmatprep.subr.bf16.mxu0 %v5481
        %5545 = vmatpush1.bf16.msra.mxu0 %v5480
        %5546 = vmatprep.subr.bf16.mxu0 %v5483
        %5547 = vmatpush1.bf16.msra.mxu0 %v5482
        %5548 = vmatprep.subr.bf16.mxu0 %v5485
        %5549 = vmatpush1.bf16.msra.mxu0 %v5484
        %5550 = vmatprep.subr.bf16.mxu0 %v5487
        %5551 = vmatpush1.bf16.msra.mxu0 %v5486
        %5552 = vmatprep.subr.bf16.mxu0 %v5489
        %5553 = vmatpush1.bf16.msra.mxu0 %v5488
        %5554 = vmatprep.subr.bf16.mxu0 %v5491
        %5555 = vmatpush1.bf16.msra.mxu0 %v5490
        %5556 = vmatprep.mubr.bf16.mxu0 %v5316
        %5557 = vmatmul.mubr.bf16.gmra.mrb[0].mxu0 %v5312
        %v5558 = vpop.f32.mrb[0].mxu0
        %v5559 = vadd.f32 %v5357, %v5558
        %v5560 = vpop.f32.mrb[0].mxu0
        %v5561 = vadd.f32 %v5361, %v5560
        %v5562 = vpop.f32.mrb[0].mxu0
        %v5563 = vpop.f32.mrb[0].mxu0
        %5564 = vdwg.mxu0
        %v5565 = vadd.f32 %v4123, %v5559
        %v5566 = vadd.f32 %v4124, %v5561
        %s5567 = scalar_lea.vmem [#allocation11], 2
        %v5568 = vld [vmem:[%s5567] sm:$0x3]
        %s5569 = scalar_lea.vmem [#allocation13], 2
        %v5570 = vld [vmem:[%s5569] sm:$0x3]
        %v5571 = vadd.f32 %v5565, %v5566
        %5572 = vadd.xlane.f32.xlu0 %v5571
        %v5573 = vpop.xlane.xlu0 %5572
        %v5574 = vmul.f32 %v5573, %v2080
        %v5575 = vsub.f32 %v5565, %v5574
        %v5576 = vsub.f32 %v5566, %v5574
        %v5577 = vmul.f32 %v5575, %v5575
        %v5578 = vmul.f32 %v5576, %v5576
        %v5579 = vadd.f32 %v5577, %v5578
        %5580 = vadd.xlane.f32.xlu0 %v5579
        %v5581 = vpop.xlane.xlu0 %5580
        %v5582 = vmul.f32 %v5581, %v2080
        %v5583 = vadd.f32 %v5582, 1e-05
        %v5584 = vrsqrt.pop %v5583
        %v5585 = vmul.f32 %v5575, %v5584
        %v5586 = vmul.f32 %v5576, %v5584
        %v5588 = vlaneseq
        %v5589 = vshrl.u32 %v5588, 7
        %v5590 = vsub.s32 0, %v5589
        %v5591 = vrot.slane %v5568, %v5590
        %v5592 = vlaneseq
        %v5593 = vshrl.u32 %v5592, 7
        %v5594 = vsub.s32 1, %v5593
        %v5595 = vrot.slane %v5568, %v5594
        %v5598 = vmul.f32 %v5585, %v5591
        %v5599 = vmul.f32 %v5586, %v5595
        %v5601 = vlaneseq
        %v5602 = vshrl.u32 %v5601, 7
        %v5603 = vsub.s32 0, %v5602
        %v5604 = vrot.slane %v5570, %v5603
        %v5605 = vlaneseq
        %v5606 = vshrl.u32 %v5605, 7
        %v5607 = vsub.s32 1, %v5606
        %v5608 = vrot.slane %v5570, %v5607
        %v5611 = vadd.f32 %v5598, %v5604
        %v5612 = vadd.f32 %v5599, %v5608
        %v5613 = vpack.c.bf16 %v5611, %v5611
        %v5614 = vpack.c.bf16 %v5612, %v5612
        %s5615 = scalar_lea.vmem [#allocation19], 2
        %v5616 = vld [vmem:[%s5615] sm:$0x3]
        %s5617 = scalar_lea.vmem [#allocation14], 1024
        %v5618 = vld [vmem:[%s5617] sm:$0xff]
        %v5619 = vld [vmem:[%s5617 + $0x8] sm:$0xff]
        %v5620 = vld [vmem:[%s5617 + $0x10] sm:$0xff]
        %v5621 = vld [vmem:[%s5617 + $0x18] sm:$0xff]
        %v5622 = vld [vmem:[%s5617 + $0x20] sm:$0xff]
        %v5623 = vld [vmem:[%s5617 + $0x28] sm:$0xff]
        %v5624 = vld [vmem:[%s5617 + $0x30] sm:$0xff]
        %v5625 = vld [vmem:[%s5617 + $0x38] sm:$0xff]
        %v5626 = vld [vmem:[%s5617 + $0x40] sm:$0xff]
        %v5627 = vld [vmem:[%s5617 + $0x48] sm:$0xff]
        %v5628 = vld [vmem:[%s5617 + $0x50] sm:$0xff]
        %v5629 = vld [vmem:[%s5617 + $0x58] sm:$0xff]
        %v5630 = vld [vmem:[%s5617 + $0x60] sm:$0xff]
        %v5631 = vld [vmem:[%s5617 + $0x68] sm:$0xff]
        %v5632 = vld [vmem:[%s5617 + $0x70] sm:$0xff]
        %v5633 = vld [vmem:[%s5617 + $0x78] sm:$0xff]
        %v5634 = vld [vmem:[%s5617 + $0x80] sm:$0xff]
        %v5635 = vld [vmem:[%s5617 + $0x88] sm:$0xff]
        %v5636 = vld [vmem:[%s5617 + $0x90] sm:$0xff]
        %v5637 = vld [vmem:[%s5617 + $0x98] sm:$0xff]
        %v5638 = vld [vmem:[%s5617 + $0xa0] sm:$0xff]
        %v5639 = vld [vmem:[%s5617 + $0xa8] sm:$0xff]
        %v5640 = vld [vmem:[%s5617 + $0xb0] sm:$0xff]
        %v5641 = vld [vmem:[%s5617 + $0xb8] sm:$0xff]
        %v5642 = vld [vmem:[%s5617 + $0xc0] sm:$0xff]
        %v5643 = vld [vmem:[%s5617 + $0xc8] sm:$0xff]
        %v5644 = vld [vmem:[%s5617 + $0xd0] sm:$0xff]
        %v5645 = vld [vmem:[%s5617 + $0xd8] sm:$0xff]
        %v5646 = vld [vmem:[%s5617 + $0xe0] sm:$0xff]
        %v5647 = vld [vmem:[%s5617 + $0xe8] sm:$0xff]
        %v5648 = vld [vmem:[%s5617 + $0xf0] sm:$0xff]
        %v5649 = vld [vmem:[%s5617 + $0xf8] sm:$0xff]
        %s5650 = scalar_lea.vmem [#allocation16], 8
        %v5651 = vld [vmem:[%s5650] sm:$0x3]
        %v5653 = vlaneseq
        %v5654 = vshrl.u32 %v5653, 7
        %v5655 = vsub.s32 0, %v5654
        %v5656 = vrot.slane %v5651, %v5655
        %v5657 = vlaneseq
        %v5658 = vshrl.u32 %v5657, 7
        %v5659 = vsub.s32 1, %v5658
        %v5660 = vrot.slane %v5651, %v5659
        %v5695 = vunpack.c.l.b16 %v5618
        %v5696 = vunpack.c.h.b16 %v5618
        %v5697 = vunpack.c.l.b16 %v5619
        %v5698 = vunpack.c.h.b16 %v5619
        %v5699 = vunpack.c.l.b16 %v5620
        %v5700 = vunpack.c.h.b16 %v5620
        %v5701 = vunpack.c.l.b16 %v5621
        %v5702 = vunpack.c.h.b16 %v5621
        %v5703 = vunpack.c.l.b16 %v5622
        %v5704 = vunpack.c.h.b16 %v5622
        %v5705 = vunpack.c.l.b16 %v5623
        %v5706 = vunpack.c.h.b16 %v5623
        %v5707 = vunpack.c.l.b16 %v5624
        %v5708 = vunpack.c.h.b16 %v5624
        %v5709 = vunpack.c.l.b16 %v5625
        %v5710 = vunpack.c.h.b16 %v5625
        %v5711 = vunpack.c.l.b16 %v5626
        %v5712 = vunpack.c.h.b16 %v5626
        %v5713 = vunpack.c.l.b16 %v5627
        %v5714 = vunpack.c.h.b16 %v5627
        %v5715 = vunpack.c.l.b16 %v5628
        %v5716 = vunpack.c.h.b16 %v5628
        %v5717 = vunpack.c.l.b16 %v5629
        %v5718 = vunpack.c.h.b16 %v5629
        %v5719 = vunpack.c.l.b16 %v5630
        %v5720 = vunpack.c.h.b16 %v5630
        %v5721 = vunpack.c.l.b16 %v5631
        %v5722 = vunpack.c.h.b16 %v5631
        %v5723 = vunpack.c.l.b16 %v5632
        %v5724 = vunpack.c.h.b16 %v5632
        %v5725 = vunpack.c.l.b16 %v5633
        %v5726 = vunpack.c.h.b16 %v5633
        %v5727 = vunpack.c.l.b16 %v5634
        %v5728 = vunpack.c.h.b16 %v5634
        %v5729 = vunpack.c.l.b16 %v5635
        %v5730 = vunpack.c.h.b16 %v5635
        %v5731 = vunpack.c.l.b16 %v5636
        %v5732 = vunpack.c.h.b16 %v5636
        %v5733 = vunpack.c.l.b16 %v5637
        %v5734 = vunpack.c.h.b16 %v5637
        %v5735 = vunpack.c.l.b16 %v5638
        %v5736 = vunpack.c.h.b16 %v5638
        %v5737 = vunpack.c.l.b16 %v5639
        %v5738 = vunpack.c.h.b16 %v5639
        %v5739 = vunpack.c.l.b16 %v5640
        %v5740 = vunpack.c.h.b16 %v5640
        %v5741 = vunpack.c.l.b16 %v5641
        %v5742 = vunpack.c.h.b16 %v5641
        %v5743 = vunpack.c.l.b16 %v5642
        %v5744 = vunpack.c.h.b16 %v5642
        %v5745 = vunpack.c.l.b16 %v5643
        %v5746 = vunpack.c.h.b16 %v5643
        %v5747 = vunpack.c.l.b16 %v5644
        %v5748 = vunpack.c.h.b16 %v5644
        %v5749 = vunpack.c.l.b16 %v5645
        %v5750 = vunpack.c.h.b16 %v5645
        %v5751 = vunpack.c.l.b16 %v5646
        %v5752 = vunpack.c.h.b16 %v5646
        %v5753 = vunpack.c.l.b16 %v5647
        %v5754 = vunpack.c.h.b16 %v5647
        %v5755 = vunpack.c.l.b16 %v5648
        %v5756 = vunpack.c.h.b16 %v5648
        %v5757 = vunpack.c.l.b16 %v5649
        %v5758 = vunpack.c.h.b16 %v5649
        %v5759 = vpack.c.b16 %v5697, %v5695
        %v5760 = vpack.c.b16 %v5698, %v5696
        %v5761 = vpack.c.b16 %v5701, %v5699
        %v5762 = vpack.c.b16 %v5702, %v5700
        %v5763 = vpack.c.b16 %v5705, %v5703
        %v5764 = vpack.c.b16 %v5706, %v5704
        %v5765 = vpack.c.b16 %v5709, %v5707
        %v5766 = vpack.c.b16 %v5710, %v5708
        %v5767 = vpack.c.b16 %v5713, %v5711
        %v5768 = vpack.c.b16 %v5714, %v5712
        %v5769 = vpack.c.b16 %v5717, %v5715
        %v5770 = vpack.c.b16 %v5718, %v5716
        %v5771 = vpack.c.b16 %v5721, %v5719
        %v5772 = vpack.c.b16 %v5722, %v5720
        %v5773 = vpack.c.b16 %v5725, %v5723
        %v5774 = vpack.c.b16 %v5726, %v5724
        %v5775 = vpack.c.b16 %v5729, %v5727
        %v5776 = vpack.c.b16 %v5730, %v5728
        %v5777 = vpack.c.b16 %v5733, %v5731
        %v5778 = vpack.c.b16 %v5734, %v5732
        %v5779 = vpack.c.b16 %v5737, %v5735
        %v5780 = vpack.c.b16 %v5738, %v5736
        %v5781 = vpack.c.b16 %v5741, %v5739
        %v5782 = vpack.c.b16 %v5742, %v5740
        %v5783 = vpack.c.b16 %v5745, %v5743
        %v5784 = vpack.c.b16 %v5746, %v5744
        %v5785 = vpack.c.b16 %v5749, %v5747
        %v5786 = vpack.c.b16 %v5750, %v5748
        %v5787 = vpack.c.b16 %v5753, %v5751
        %v5788 = vpack.c.b16 %v5754, %v5752
        %v5789 = vpack.c.b16 %v5757, %v5755
        %v5790 = vpack.c.b16 %v5758, %v5756
        %5823 = vmatprep.subr.bf16.mxu0 %v5760
        %5824 = vmatpush1.bf16.msra.mxu0 %v5759
        %5825 = vmatprep.subr.bf16.mxu0 %v5762
        %5826 = vmatpush1.bf16.msra.mxu0 %v5761
        %5827 = vmatprep.subr.bf16.mxu0 %v5764
        %5828 = vmatpush1.bf16.msra.mxu0 %v5763
        %5829 = vmatprep.subr.bf16.mxu0 %v5766
        %5830 = vmatpush1.bf16.msra.mxu0 %v5765
        %5831 = vmatprep.subr.bf16.mxu0 %v5768
        %5832 = vmatpush1.bf16.msra.mxu0 %v5767
        %5833 = vmatprep.subr.bf16.mxu0 %v5770
        %5834 = vmatpush1.bf16.msra.mxu0 %v5769
        %5835 = vmatprep.subr.bf16.mxu0 %v5772
        %5836 = vmatpush1.bf16.msra.mxu0 %v5771
        %5837 = vmatprep.subr.bf16.mxu0 %v5774
        %5838 = vmatpush1.bf16.msra.mxu0 %v5773
        %5839 = vmatprep.subr.bf16.mxu0 %v5776
        %5840 = vmatpush1.bf16.msra.mxu0 %v5775
        %5841 = vmatprep.subr.bf16.mxu0 %v5778
        %5842 = vmatpush1.bf16.msra.mxu0 %v5777
        %5843 = vmatprep.subr.bf16.mxu0 %v5780
        %5844 = vmatpush1.bf16.msra.mxu0 %v5779
        %5845 = vmatprep.subr.bf16.mxu0 %v5782
        %5846 = vmatpush1.bf16.msra.mxu0 %v5781
        %5847 = vmatprep.subr.bf16.mxu0 %v5784
        %5848 = vmatpush1.bf16.msra.mxu0 %v5783
        %5849 = vmatprep.subr.bf16.mxu0 %v5786
        %5850 = vmatpush1.bf16.msra.mxu0 %v5785
        %5851 = vmatprep.subr.bf16.mxu0 %v5788
        %5852 = vmatpush1.bf16.msra.mxu0 %v5787
        %5853 = vmatprep.subr.bf16.mxu0 %v5790
        %5854 = vmatpush1.bf16.msra.mxu0 %v5789
        %5855 = vmatprep.mubr.bf16.mxu0 %v5614
        %5856 = vmatmul.mubr.bf16.gmra.mrb[0].mxu0 %v5613
        %v5857 = vpop.f32.mrb[0].mxu0
        %v5858 = vadd.f32 %v5656, %v5857
        %v5859 = vpop.f32.mrb[0].mxu0
        %v5860 = vadd.f32 %v5660, %v5859
        %v5861 = vpop.f32.mrb[0].mxu0
        %v5862 = vpop.f32.mrb[0].mxu0
        %5863 = vdwg.mxu0
        %v5864 = vmax.f32 %v5858, 0.0
        %v5865 = vmax.f32 %v5860, 0.0
        %v5866 = vpack.c.bf16 %v5864, %v5864
        %v5867 = vpack.c.bf16 %v5865, %v5865
        %s5868 = scalar_lea.vmem [#allocation17], 1024
        %v5869 = vld [vmem:[%s5868] sm:$0xff]
        %v5870 = vld [vmem:[%s5868 + $0x8] sm:$0xff]
        %v5871 = vld [vmem:[%s5868 + $0x10] sm:$0xff]
        %v5872 = vld [vmem:[%s5868 + $0x18] sm:$0xff]
        %v5873 = vld [vmem:[%s5868 + $0x20] sm:$0xff]
        %v5874 = vld [vmem:[%s5868 + $0x28] sm:$0xff]
        %v5875 = vld [vmem:[%s5868 + $0x30] sm:$0xff]
        %v5876 = vld [vmem:[%s5868 + $0x38] sm:$0xff]
        %v5877 = vld [vmem:[%s5868 + $0x40] sm:$0xff]
        %v5878 = vld [vmem:[%s5868 + $0x48] sm:$0xff]
        %v5879 = vld [vmem:[%s5868 + $0x50] sm:$0xff]
        %v5880 = vld [vmem:[%s5868 + $0x58] sm:$0xff]
        %v5881 = vld [vmem:[%s5868 + $0x60] sm:$0xff]
        %v5882 = vld [vmem:[%s5868 + $0x68] sm:$0xff]
        %v5883 = vld [vmem:[%s5868 + $0x70] sm:$0xff]
        %v5884 = vld [vmem:[%s5868 + $0x78] sm:$0xff]
        %v5885 = vld [vmem:[%s5868 + $0x80] sm:$0xff]
        %v5886 = vld [vmem:[%s5868 + $0x88] sm:$0xff]
        %v5887 = vld [vmem:[%s5868 + $0x90] sm:$0xff]
        %v5888 = vld [vmem:[%s5868 + $0x98] sm:$0xff]
        %v5889 = vld [vmem:[%s5868 + $0xa0] sm:$0xff]
        %v5890 = vld [vmem:[%s5868 + $0xa8] sm:$0xff]
        %v5891 = vld [vmem:[%s5868 + $0xb0] sm:$0xff]
        %v5892 = vld [vmem:[%s5868 + $0xb8] sm:$0xff]
        %v5893 = vld [vmem:[%s5868 + $0xc0] sm:$0xff]
        %v5894 = vld [vmem:[%s5868 + $0xc8] sm:$0xff]
        %v5895 = vld [vmem:[%s5868 + $0xd0] sm:$0xff]
        %v5896 = vld [vmem:[%s5868 + $0xd8] sm:$0xff]
        %v5897 = vld [vmem:[%s5868 + $0xe0] sm:$0xff]
        %v5898 = vld [vmem:[%s5868 + $0xe8] sm:$0xff]
        %v5899 = vld [vmem:[%s5868 + $0xf0] sm:$0xff]
        %v5900 = vld [vmem:[%s5868 + $0xf8] sm:$0xff]
        %v5933 = vunpack.c.l.b16 %v5869
        %v5934 = vunpack.c.h.b16 %v5869
        %v5935 = vunpack.c.l.b16 %v5870
        %v5936 = vunpack.c.h.b16 %v5870
        %v5937 = vunpack.c.l.b16 %v5871
        %v5938 = vunpack.c.h.b16 %v5871
        %v5939 = vunpack.c.l.b16 %v5872
        %v5940 = vunpack.c.h.b16 %v5872
        %v5941 = vunpack.c.l.b16 %v5873
        %v5942 = vunpack.c.h.b16 %v5873
        %v5943 = vunpack.c.l.b16 %v5874
        %v5944 = vunpack.c.h.b16 %v5874
        %v5945 = vunpack.c.l.b16 %v5875
        %v5946 = vunpack.c.h.b16 %v5875
        %v5947 = vunpack.c.l.b16 %v5876
        %v5948 = vunpack.c.h.b16 %v5876
        %v5949 = vunpack.c.l.b16 %v5877
        %v5950 = vunpack.c.h.b16 %v5877
        %v5951 = vunpack.c.l.b16 %v5878
        %v5952 = vunpack.c.h.b16 %v5878
        %v5953 = vunpack.c.l.b16 %v5879
        %v5954 = vunpack.c.h.b16 %v5879
        %v5955 = vunpack.c.l.b16 %v5880
        %v5956 = vunpack.c.h.b16 %v5880
        %v5957 = vunpack.c.l.b16 %v5881
        %v5958 = vunpack.c.h.b16 %v5881
        %v5959 = vunpack.c.l.b16 %v5882
        %v5960 = vunpack.c.h.b16 %v5882
        %v5961 = vunpack.c.l.b16 %v5883
        %v5962 = vunpack.c.h.b16 %v5883
        %v5963 = vunpack.c.l.b16 %v5884
        %v5964 = vunpack.c.h.b16 %v5884
        %v5965 = vunpack.c.l.b16 %v5885
        %v5966 = vunpack.c.h.b16 %v5885
        %v5967 = vunpack.c.l.b16 %v5886
        %v5968 = vunpack.c.h.b16 %v5886
        %v5969 = vunpack.c.l.b16 %v5887
        %v5970 = vunpack.c.h.b16 %v5887
        %v5971 = vunpack.c.l.b16 %v5888
        %v5972 = vunpack.c.h.b16 %v5888
        %v5973 = vunpack.c.l.b16 %v5889
        %v5974 = vunpack.c.h.b16 %v5889
        %v5975 = vunpack.c.l.b16 %v5890
        %v5976 = vunpack.c.h.b16 %v5890
        %v5977 = vunpack.c.l.b16 %v5891
        %v5978 = vunpack.c.h.b16 %v5891
        %v5979 = vunpack.c.l.b16 %v5892
        %v5980 = vunpack.c.h.b16 %v5892
        %v5981 = vunpack.c.l.b16 %v5893
        %v5982 = vunpack.c.h.b16 %v5893
        %v5983 = vunpack.c.l.b16 %v5894
        %v5984 = vunpack.c.h.b16 %v5894
        %v5985 = vunpack.c.l.b16 %v5895
        %v5986 = vunpack.c.h.b16 %v5895
        %v5987 = vunpack.c.l.b16 %v5896
        %v5988 = vunpack.c.h.b16 %v5896
        %v5989 = vunpack.c.l.b16 %v5897
        %v5990 = vunpack.c.h.b16 %v5897
        %v5991 = vunpack.c.l.b16 %v5898
        %v5992 = vunpack.c.h.b16 %v5898
        %v5993 = vunpack.c.l.b16 %v5899
        %v5994 = vunpack.c.h.b16 %v5899
        %v5995 = vunpack.c.l.b16 %v5900
        %v5996 = vunpack.c.h.b16 %v5900
        %v5997 = vpack.c.b16 %v5935, %v5933
        %v5998 = vpack.c.b16 %v5936, %v5934
        %v5999 = vpack.c.b16 %v5939, %v5937
        %v6000 = vpack.c.b16 %v5940, %v5938
        %v6001 = vpack.c.b16 %v5943, %v5941
        %v6002 = vpack.c.b16 %v5944, %v5942
        %v6003 = vpack.c.b16 %v5947, %v5945
        %v6004 = vpack.c.b16 %v5948, %v5946
        %v6005 = vpack.c.b16 %v5951, %v5949
        %v6006 = vpack.c.b16 %v5952, %v5950
        %v6007 = vpack.c.b16 %v5955, %v5953
        %v6008 = vpack.c.b16 %v5956, %v5954
        %v6009 = vpack.c.b16 %v5959, %v5957
        %v6010 = vpack.c.b16 %v5960, %v5958
        %v6011 = vpack.c.b16 %v5963, %v5961
        %v6012 = vpack.c.b16 %v5964, %v5962
        %v6013 = vpack.c.b16 %v5967, %v5965
        %v6014 = vpack.c.b16 %v5968, %v5966
        %v6015 = vpack.c.b16 %v5971, %v5969
        %v6016 = vpack.c.b16 %v5972, %v5970
        %v6017 = vpack.c.b16 %v5975, %v5973
        %v6018 = vpack.c.b16 %v5976, %v5974
        %v6019 = vpack.c.b16 %v5979, %v5977
        %v6020 = vpack.c.b16 %v5980, %v5978
        %v6021 = vpack.c.b16 %v5983, %v5981
        %v6022 = vpack.c.b16 %v5984, %v5982
        %v6023 = vpack.c.b16 %v5987, %v5985
        %v6024 = vpack.c.b16 %v5988, %v5986
        %v6025 = vpack.c.b16 %v5991, %v5989
        %v6026 = vpack.c.b16 %v5992, %v5990
        %v6027 = vpack.c.b16 %v5995, %v5993
        %v6028 = vpack.c.b16 %v5996, %v5994
        %6061 = vmatprep.subr.bf16.mxu0 %v5998
        %6062 = vmatpush1.bf16.msra.mxu0 %v5997
        %6063 = vmatprep.subr.bf16.mxu0 %v6000
        %6064 = vmatpush1.bf16.msra.mxu0 %v5999
        %6065 = vmatprep.subr.bf16.mxu0 %v6002
        %6066 = vmatpush1.bf16.msra.mxu0 %v6001
        %6067 = vmatprep.subr.bf16.mxu0 %v6004
        %6068 = vmatpush1.bf16.msra.mxu0 %v6003
        %6069 = vmatprep.subr.bf16.mxu0 %v6006
        %6070 = vmatpush1.bf16.msra.mxu0 %v6005
        %6071 = vmatprep.subr.bf16.mxu0 %v6008
        %6072 = vmatpush1.bf16.msra.mxu0 %v6007
        %6073 = vmatprep.subr.bf16.mxu0 %v6010
        %6074 = vmatpush1.bf16.msra.mxu0 %v6009
        %6075 = vmatprep.subr.bf16.mxu0 %v6012
        %6076 = vmatpush1.bf16.msra.mxu0 %v6011
        %6077 = vmatprep.subr.bf16.mxu0 %v6014
        %6078 = vmatpush1.bf16.msra.mxu0 %v6013
        %6079 = vmatprep.subr.bf16.mxu0 %v6016
        %6080 = vmatpush1.bf16.msra.mxu0 %v6015
        %6081 = vmatprep.subr.bf16.mxu0 %v6018
        %6082 = vmatpush1.bf16.msra.mxu0 %v6017
        %6083 = vmatprep.subr.bf16.mxu0 %v6020
        %6084 = vmatpush1.bf16.msra.mxu0 %v6019
        %6085 = vmatprep.subr.bf16.mxu0 %v6022
        %6086 = vmatpush1.bf16.msra.mxu0 %v6021
        %6087 = vmatprep.subr.bf16.mxu0 %v6024
        %6088 = vmatpush1.bf16.msra.mxu0 %v6023
        %6089 = vmatprep.subr.bf16.mxu0 %v6026
        %6090 = vmatpush1.bf16.msra.mxu0 %v6025
        %6091 = vmatprep.subr.bf16.mxu0 %v6028
        %6092 = vmatpush1.bf16.msra.mxu0 %v6027
        %6093 = vmatprep.mubr.bf16.mxu0 %v5867
        %6094 = vmatmul.mubr.bf16.gmra.mrb[0].mxu0 %v5866
        %v6095 = vpop.f32.mrb[0].mxu0
        %v6096 = vadd.f32 0.0, %v6095
        %v6097 = vpop.f32.mrb[0].mxu0
        %v6098 = vadd.f32 0.0, %v6097
        %v6099 = vpop.f32.mrb[0].mxu0
        %v6100 = vpop.f32.mrb[0].mxu0
        %6101 = vdwg.mxu0
        %v6103 = vlaneseq
        %v6104 = vshrl.u32 %v6103, 7
        %v6105 = vsub.s32 0, %v6104
        %v6106 = vrot.slane %v5616, %v6105
        %v6107 = vlaneseq
        %v6108 = vshrl.u32 %v6107, 7
        %v6109 = vsub.s32 1, %v6108
        %v6110 = vrot.slane %v5616, %v6109
        %v6113 = vadd.f32 %v6106, %v6096
        %v6114 = vadd.f32 %v6110, %v6098
        %s6115 = scalar_lea.vmem [#allocation14], 1280
        %v6116 = vld [vmem:[%s6115] sm:$0xff]
        %v6117 = vld [vmem:[%s6115 + $0x8] sm:$0xff]
        %v6118 = vld [vmem:[%s6115 + $0x10] sm:$0xff]
        %v6119 = vld [vmem:[%s6115 + $0x18] sm:$0xff]
        %v6120 = vld [vmem:[%s6115 + $0x20] sm:$0xff]
        %v6121 = vld [vmem:[%s6115 + $0x28] sm:$0xff]
        %v6122 = vld [vmem:[%s6115 + $0x30] sm:$0xff]
        %v6123 = vld [vmem:[%s6115 + $0x38] sm:$0xff]
        %v6124 = vld [vmem:[%s6115 + $0x40] sm:$0xff]
        %v6125 = vld [vmem:[%s6115 + $0x48] sm:$0xff]
        %v6126 = vld [vmem:[%s6115 + $0x50] sm:$0xff]
        %v6127 = vld [vmem:[%s6115 + $0x58] sm:$0xff]
        %v6128 = vld [vmem:[%s6115 + $0x60] sm:$0xff]
        %v6129 = vld [vmem:[%s6115 + $0x68] sm:$0xff]
        %v6130 = vld [vmem:[%s6115 + $0x70] sm:$0xff]
        %v6131 = vld [vmem:[%s6115 + $0x78] sm:$0xff]
        %v6132 = vld [vmem:[%s6115 + $0x80] sm:$0xff]
        %v6133 = vld [vmem:[%s6115 + $0x88] sm:$0xff]
        %v6134 = vld [vmem:[%s6115 + $0x90] sm:$0xff]
        %v6135 = vld [vmem:[%s6115 + $0x98] sm:$0xff]
        %v6136 = vld [vmem:[%s6115 + $0xa0] sm:$0xff]
        %v6137 = vld [vmem:[%s6115 + $0xa8] sm:$0xff]
        %v6138 = vld [vmem:[%s6115 + $0xb0] sm:$0xff]
        %v6139 = vld [vmem:[%s6115 + $0xb8] sm:$0xff]
        %v6140 = vld [vmem:[%s6115 + $0xc0] sm:$0xff]
        %v6141 = vld [vmem:[%s6115 + $0xc8] sm:$0xff]
        %v6142 = vld [vmem:[%s6115 + $0xd0] sm:$0xff]
        %v6143 = vld [vmem:[%s6115 + $0xd8] sm:$0xff]
        %v6144 = vld [vmem:[%s6115 + $0xe0] sm:$0xff]
        %v6145 = vld [vmem:[%s6115 + $0xe8] sm:$0xff]
        %v6146 = vld [vmem:[%s6115 + $0xf0] sm:$0xff]
        %v6147 = vld [vmem:[%s6115 + $0xf8] sm:$0xff]
        %s6148 = scalar_lea.vmem [#allocation16], 10
        %v6149 = vld [vmem:[%s6148] sm:$0x3]
        %v6151 = vlaneseq
        %v6152 = vshrl.u32 %v6151, 7
        %v6153 = vsub.s32 0, %v6152
        %v6154 = vrot.slane %v6149, %v6153
        %v6155 = vlaneseq
        %v6156 = vshrl.u32 %v6155, 7
        %v6157 = vsub.s32 1, %v6156
        %v6158 = vrot.slane %v6149, %v6157
        %v6193 = vunpack.c.l.b16 %v6116
        %v6194 = vunpack.c.h.b16 %v6116
        %v6195 = vunpack.c.l.b16 %v6117
        %v6196 = vunpack.c.h.b16 %v6117
        %v6197 = vunpack.c.l.b16 %v6118
        %v6198 = vunpack.c.h.b16 %v6118
        %v6199 = vunpack.c.l.b16 %v6119
        %v6200 = vunpack.c.h.b16 %v6119
        %v6201 = vunpack.c.l.b16 %v6120
        %v6202 = vunpack.c.h.b16 %v6120
        %v6203 = vunpack.c.l.b16 %v6121
        %v6204 = vunpack.c.h.b16 %v6121
        %v6205 = vunpack.c.l.b16 %v6122
        %v6206 = vunpack.c.h.b16 %v6122
        %v6207 = vunpack.c.l.b16 %v6123
        %v6208 = vunpack.c.h.b16 %v6123
        %v6209 = vunpack.c.l.b16 %v6124
        %v6210 = vunpack.c.h.b16 %v6124
        %v6211 = vunpack.c.l.b16 %v6125
        %v6212 = vunpack.c.h.b16 %v6125
        %v6213 = vunpack.c.l.b16 %v6126
        %v6214 = vunpack.c.h.b16 %v6126
        %v6215 = vunpack.c.l.b16 %v6127
        %v6216 = vunpack.c.h.b16 %v6127
        %v6217 = vunpack.c.l.b16 %v6128
        %v6218 = vunpack.c.h.b16 %v6128
        %v6219 = vunpack.c.l.b16 %v6129
        %v6220 = vunpack.c.h.b16 %v6129
        %v6221 = vunpack.c.l.b16 %v6130
        %v6222 = vunpack.c.h.b16 %v6130
        %v6223 = vunpack.c.l.b16 %v6131
        %v6224 = vunpack.c.h.b16 %v6131
        %v6225 = vunpack.c.l.b16 %v6132
        %v6226 = vunpack.c.h.b16 %v6132
        %v6227 = vunpack.c.l.b16 %v6133
        %v6228 = vunpack.c.h.b16 %v6133
        %v6229 = vunpack.c.l.b16 %v6134
        %v6230 = vunpack.c.h.b16 %v6134
        %v6231 = vunpack.c.l.b16 %v6135
        %v6232 = vunpack.c.h.b16 %v6135
        %v6233 = vunpack.c.l.b16 %v6136
        %v6234 = vunpack.c.h.b16 %v6136
        %v6235 = vunpack.c.l.b16 %v6137
        %v6236 = vunpack.c.h.b16 %v6137
        %v6237 = vunpack.c.l.b16 %v6138
        %v6238 = vunpack.c.h.b16 %v6138
        %v6239 = vunpack.c.l.b16 %v6139
        %v6240 = vunpack.c.h.b16 %v6139
        %v6241 = vunpack.c.l.b16 %v6140
        %v6242 = vunpack.c.h.b16 %v6140
        %v6243 = vunpack.c.l.b16 %v6141
        %v6244 = vunpack.c.h.b16 %v6141
        %v6245 = vunpack.c.l.b16 %v6142
        %v6246 = vunpack.c.h.b16 %v6142
        %v6247 = vunpack.c.l.b16 %v6143
        %v6248 = vunpack.c.h.b16 %v6143
        %v6249 = vunpack.c.l.b16 %v6144
        %v6250 = vunpack.c.h.b16 %v6144
        %v6251 = vunpack.c.l.b16 %v6145
        %v6252 = vunpack.c.h.b16 %v6145
        %v6253 = vunpack.c.l.b16 %v6146
        %v6254 = vunpack.c.h.b16 %v6146
        %v6255 = vunpack.c.l.b16 %v6147
        %v6256 = vunpack.c.h.b16 %v6147
        %v6257 = vpack.c.b16 %v6195, %v6193
        %v6258 = vpack.c.b16 %v6196, %v6194
        %v6259 = vpack.c.b16 %v6199, %v6197
        %v6260 = vpack.c.b16 %v6200, %v6198
        %v6261 = vpack.c.b16 %v6203, %v6201
        %v6262 = vpack.c.b16 %v6204, %v6202
        %v6263 = vpack.c.b16 %v6207, %v6205
        %v6264 = vpack.c.b16 %v6208, %v6206
        %v6265 = vpack.c.b16 %v6211, %v6209
        %v6266 = vpack.c.b16 %v6212, %v6210
        %v6267 = vpack.c.b16 %v6215, %v6213
        %v6268 = vpack.c.b16 %v6216, %v6214
        %v6269 = vpack.c.b16 %v6219, %v6217
        %v6270 = vpack.c.b16 %v6220, %v6218
        %v6271 = vpack.c.b16 %v6223, %v6221
        %v6272 = vpack.c.b16 %v6224, %v6222
        %v6273 = vpack.c.b16 %v6227, %v6225
        %v6274 = vpack.c.b16 %v6228, %v6226
        %v6275 = vpack.c.b16 %v6231, %v6229
        %v6276 = vpack.c.b16 %v6232, %v6230
        %v6277 = vpack.c.b16 %v6235, %v6233
        %v6278 = vpack.c.b16 %v6236, %v6234
        %v6279 = vpack.c.b16 %v6239, %v6237
        %v6280 = vpack.c.b16 %v6240, %v6238
        %v6281 = vpack.c.b16 %v6243, %v6241
        %v6282 = vpack.c.b16 %v6244, %v6242
        %v6283 = vpack.c.b16 %v6247, %v6245
        %v6284 = vpack.c.b16 %v6248, %v6246
        %v6285 = vpack.c.b16 %v6251, %v6249
        %v6286 = vpack.c.b16 %v6252, %v6250
        %v6287 = vpack.c.b16 %v6255, %v6253
        %v6288 = vpack.c.b16 %v6256, %v6254
        %6321 = vmatprep.subr.bf16.mxu0 %v6258
        %6322 = vmatpush1.bf16.msra.mxu0 %v6257
        %6323 = vmatprep.subr.bf16.mxu0 %v6260
        %6324 = vmatpush1.bf16.msra.mxu0 %v6259
        %6325 = vmatprep.subr.bf16.mxu0 %v6262
        %6326 = vmatpush1.bf16.msra.mxu0 %v6261
        %6327 = vmatprep.subr.bf16.mxu0 %v6264
        %6328 = vmatpush1.bf16.msra.mxu0 %v6263
        %6329 = vmatprep.subr.bf16.mxu0 %v6266
        %6330 = vmatpush1.bf16.msra.mxu0 %v6265
        %6331 = vmatprep.subr.bf16.mxu0 %v6268
        %6332 = vmatpush1.bf16.msra.mxu0 %v6267
        %6333 = vmatprep.subr.bf16.mxu0 %v6270
        %6334 = vmatpush1.bf16.msra.mxu0 %v6269
        %6335 = vmatprep.subr.bf16.mxu0 %v6272
        %6336 = vmatpush1.bf16.msra.mxu0 %v6271
        %6337 = vmatprep.subr.bf16.mxu0 %v6274
        %6338 = vmatpush1.bf16.msra.mxu0 %v6273
        %6339 = vmatprep.subr.bf16.mxu0 %v6276
        %6340 = vmatpush1.bf16.msra.mxu0 %v6275
        %6341 = vmatprep.subr.bf16.mxu0 %v6278
        %6342 = vmatpush1.bf16.msra.mxu0 %v6277
        %6343 = vmatprep.subr.bf16.mxu0 %v6280
        %6344 = vmatpush1.bf16.msra.mxu0 %v6279
        %6345 = vmatprep.subr.bf16.mxu0 %v6282
        %6346 = vmatpush1.bf16.msra.mxu0 %v6281
        %6347 = vmatprep.subr.bf16.mxu0 %v6284
        %6348 = vmatpush1.bf16.msra.mxu0 %v6283
        %6349 = vmatprep.subr.bf16.mxu0 %v6286
        %6350 = vmatpush1.bf16.msra.mxu0 %v6285
        %6351 = vmatprep.subr.bf16.mxu0 %v6288
        %6352 = vmatpush1.bf16.msra.mxu0 %v6287
        %6353 = vmatprep.mubr.bf16.mxu0 %v5614
        %6354 = vmatmul.mubr.bf16.gmra.mrb[0].mxu0 %v5613
        %v6355 = vpop.f32.mrb[0].mxu0
        %v6356 = vadd.f32 %v6154, %v6355
        %v6357 = vpop.f32.mrb[0].mxu0
        %v6358 = vadd.f32 %v6158, %v6357
        %v6359 = vpop.f32.mrb[0].mxu0
        %v6360 = vpop.f32.mrb[0].mxu0
        %6361 = vdwg.mxu0
        %v6362 = vmax.f32 %v6356, 0.0
        %v6363 = vmax.f32 %v6358, 0.0
        %v6364 = vpack.c.bf16 %v6362, %v6362
        %v6365 = vpack.c.bf16 %v6363, %v6363
        %s6366 = scalar_lea.vmem [#allocation17], 1280
        %v6367 = vld [vmem:[%s6366] sm:$0xff]
        %v6368 = vld [vmem:[%s6366 + $0x8] sm:$0xff]
        %v6369 = vld [vmem:[%s6366 + $0x10] sm:$0xff]
        %v6370 = vld [vmem:[%s6366 + $0x18] sm:$0xff]
        %v6371 = vld [vmem:[%s6366 + $0x20] sm:$0xff]
        %v6372 = vld [vmem:[%s6366 + $0x28] sm:$0xff]
        %v6373 = vld [vmem:[%s6366 + $0x30] sm:$0xff]
        %v6374 = vld [vmem:[%s6366 + $0x38] sm:$0xff]
        %v6375 = vld [vmem:[%s6366 + $0x40] sm:$0xff]
        %v6376 = vld [vmem:[%s6366 + $0x48] sm:$0xff]
        %v6377 = vld [vmem:[%s6366 + $0x50] sm:$0xff]
        %v6378 = vld [vmem:[%s6366 + $0x58] sm:$0xff]
        %v6379 = vld [vmem:[%s6366 + $0x60] sm:$0xff]
        %v6380 = vld [vmem:[%s6366 + $0x68] sm:$0xff]
        %v6381 = vld [vmem:[%s6366 + $0x70] sm:$0xff]
        %v6382 = vld [vmem:[%s6366 + $0x78] sm:$0xff]
        %v6383 = vld [vmem:[%s6366 + $0x80] sm:$0xff]
        %v6384 = vld [vmem:[%s6366 + $0x88] sm:$0xff]
        %v6385 = vld [vmem:[%s6366 + $0x90] sm:$0xff]
        %v6386 = vld [vmem:[%s6366 + $0x98] sm:$0xff]
        %v6387 = vld [vmem:[%s6366 + $0xa0] sm:$0xff]
        %v6388 = vld [vmem:[%s6366 + $0xa8] sm:$0xff]
        %v6389 = vld [vmem:[%s6366 + $0xb0] sm:$0xff]
        %v6390 = vld [vmem:[%s6366 + $0xb8] sm:$0xff]
        %v6391 = vld [vmem:[%s6366 + $0xc0] sm:$0xff]
        %v6392 = vld [vmem:[%s6366 + $0xc8] sm:$0xff]
        %v6393 = vld [vmem:[%s6366 + $0xd0] sm:$0xff]
        %v6394 = vld [vmem:[%s6366 + $0xd8] sm:$0xff]
        %v6395 = vld [vmem:[%s6366 + $0xe0] sm:$0xff]
        %v6396 = vld [vmem:[%s6366 + $0xe8] sm:$0xff]
        %v6397 = vld [vmem:[%s6366 + $0xf0] sm:$0xff]
        %v6398 = vld [vmem:[%s6366 + $0xf8] sm:$0xff]
        %v6431 = vunpack.c.l.b16 %v6367
        %v6432 = vunpack.c.h.b16 %v6367
        %v6433 = vunpack.c.l.b16 %v6368
        %v6434 = vunpack.c.h.b16 %v6368
        %v6435 = vunpack.c.l.b16 %v6369
        %v6436 = vunpack.c.h.b16 %v6369
        %v6437 = vunpack.c.l.b16 %v6370
        %v6438 = vunpack.c.h.b16 %v6370
        %v6439 = vunpack.c.l.b16 %v6371
        %v6440 = vunpack.c.h.b16 %v6371
        %v6441 = vunpack.c.l.b16 %v6372
        %v6442 = vunpack.c.h.b16 %v6372
        %v6443 = vunpack.c.l.b16 %v6373
        %v6444 = vunpack.c.h.b16 %v6373
        %v6445 = vunpack.c.l.b16 %v6374
        %v6446 = vunpack.c.h.b16 %v6374
        %v6447 = vunpack.c.l.b16 %v6375
        %v6448 = vunpack.c.h.b16 %v6375
        %v6449 = vunpack.c.l.b16 %v6376
        %v6450 = vunpack.c.h.b16 %v6376
        %v6451 = vunpack.c.l.b16 %v6377
        %v6452 = vunpack.c.h.b16 %v6377
        %v6453 = vunpack.c.l.b16 %v6378
        %v6454 = vunpack.c.h.b16 %v6378
        %v6455 = vunpack.c.l.b16 %v6379
        %v6456 = vunpack.c.h.b16 %v6379
        %v6457 = vunpack.c.l.b16 %v6380
        %v6458 = vunpack.c.h.b16 %v6380
        %v6459 = vunpack.c.l.b16 %v6381
        %v6460 = vunpack.c.h.b16 %v6381
        %v6461 = vunpack.c.l.b16 %v6382
        %v6462 = vunpack.c.h.b16 %v6382
        %v6463 = vunpack.c.l.b16 %v6383
        %v6464 = vunpack.c.h.b16 %v6383
        %v6465 = vunpack.c.l.b16 %v6384
        %v6466 = vunpack.c.h.b16 %v6384
        %v6467 = vunpack.c.l.b16 %v6385
        %v6468 = vunpack.c.h.b16 %v6385
        %v6469 = vunpack.c.l.b16 %v6386
        %v6470 = vunpack.c.h.b16 %v6386
        %v6471 = vunpack.c.l.b16 %v6387
        %v6472 = vunpack.c.h.b16 %v6387
        %v6473 = vunpack.c.l.b16 %v6388
        %v6474 = vunpack.c.h.b16 %v6388
        %v6475 = vunpack.c.l.b16 %v6389
        %v6476 = vunpack.c.h.b16 %v6389
        %v6477 = vunpack.c.l.b16 %v6390
        %v6478 = vunpack.c.h.b16 %v6390
        %v6479 = vunpack.c.l.b16 %v6391
        %v6480 = vunpack.c.h.b16 %v6391
        %v6481 = vunpack.c.l.b16 %v6392
        %v6482 = vunpack.c.h.b16 %v6392
        %v6483 = vunpack.c.l.b16 %v6393
        %v6484 = vunpack.c.h.b16 %v6393
        %v6485 = vunpack.c.l.b16 %v6394
        %v6486 = vunpack.c.h.b16 %v6394
        %v6487 = vunpack.c.l.b16 %v6395
        %v6488 = vunpack.c.h.b16 %v6395
        %v6489 = vunpack.c.l.b16 %v6396
        %v6490 = vunpack.c.h.b16 %v6396
        %v6491 = vunpack.c.l.b16 %v6397
        %v6492 = vunpack.c.h.b16 %v6397
        %v6493 = vunpack.c.l.b16 %v6398
        %v6494 = vunpack.c.h.b16 %v6398
        %v6495 = vpack.c.b16 %v6433, %v6431
        %v6496 = vpack.c.b16 %v6434, %v6432
        %v6497 = vpack.c.b16 %v6437, %v6435
        %v6498 = vpack.c.b16 %v6438, %v6436
        %v6499 = vpack.c.b16 %v6441, %v6439
        %v6500 = vpack.c.b16 %v6442, %v6440
        %v6501 = vpack.c.b16 %v6445, %v6443
        %v6502 = vpack.c.b16 %v6446, %v6444
        %v6503 = vpack.c.b16 %v6449, %v6447
        %v6504 = vpack.c.b16 %v6450, %v6448
        %v6505 = vpack.c.b16 %v6453, %v6451
        %v6506 = vpack.c.b16 %v6454, %v6452
        %v6507 = vpack.c.b16 %v6457, %v6455
        %v6508 = vpack.c.b16 %v6458, %v6456
        %v6509 = vpack.c.b16 %v6461, %v6459
        %v6510 = vpack.c.b16 %v6462, %v6460
        %v6511 = vpack.c.b16 %v6465, %v6463
        %v6512 = vpack.c.b16 %v6466, %v6464
        %v6513 = vpack.c.b16 %v6469, %v6467
        %v6514 = vpack.c.b16 %v6470, %v6468
        %v6515 = vpack.c.b16 %v6473, %v6471
        %v6516 = vpack.c.b16 %v6474, %v6472
        %v6517 = vpack.c.b16 %v6477, %v6475
        %v6518 = vpack.c.b16 %v6478, %v6476
        %v6519 = vpack.c.b16 %v6481, %v6479
        %v6520 = vpack.c.b16 %v6482, %v6480
        %v6521 = vpack.c.b16 %v6485, %v6483
        %v6522 = vpack.c.b16 %v6486, %v6484
        %v6523 = vpack.c.b16 %v6489, %v6487
        %v6524 = vpack.c.b16 %v6490, %v6488
        %v6525 = vpack.c.b16 %v6493, %v6491
        %v6526 = vpack.c.b16 %v6494, %v6492
        %6559 = vmatprep.subr.bf16.mxu0 %v6496
        %6560 = vmatpush1.bf16.msra.mxu0 %v6495
        %6561 = vmatprep.subr.bf16.mxu0 %v6498
        %6562 = vmatpush1.bf16.msra.mxu0 %v6497
        %6563 = vmatprep.subr.bf16.mxu0 %v6500
        %6564 = vmatpush1.bf16.msra.mxu0 %v6499
        %6565 = vmatprep.subr.bf16.mxu0 %v6502
        %6566 = vmatpush1.bf16.msra.mxu0 %v6501
        %6567 = vmatprep.subr.bf16.mxu0 %v6504
        %6568 = vmatpush1.bf16.msra.mxu0 %v6503
        %6569 = vmatprep.subr.bf16.mxu0 %v6506
        %6570 = vmatpush1.bf16.msra.mxu0 %v6505
        %6571 = vmatprep.subr.bf16.mxu0 %v6508
        %6572 = vmatpush1.bf16.msra.mxu0 %v6507
        %6573 = vmatprep.subr.bf16.mxu0 %v6510
        %6574 = vmatpush1.bf16.msra.mxu0 %v6509
        %6575 = vmatprep.subr.bf16.mxu0 %v6512
        %6576 = vmatpush1.bf16.msra.mxu0 %v6511
        %6577 = vmatprep.subr.bf16.mxu0 %v6514
        %6578 = vmatpush1.bf16.msra.mxu0 %v6513
        %6579 = vmatprep.subr.bf16.mxu0 %v6516
        %6580 = vmatpush1.bf16.msra.mxu0 %v6515
        %6581 = vmatprep.subr.bf16.mxu0 %v6518
        %6582 = vmatpush1.bf16.msra.mxu0 %v6517
        %6583 = vmatprep.subr.bf16.mxu0 %v6520
        %6584 = vmatpush1.bf16.msra.mxu0 %v6519
        %6585 = vmatprep.subr.bf16.mxu0 %v6522
        %6586 = vmatpush1.bf16.msra.mxu0 %v6521
        %6587 = vmatprep.subr.bf16.mxu0 %v6524
        %6588 = vmatpush1.bf16.msra.mxu0 %v6523
        %6589 = vmatprep.subr.bf16.mxu0 %v6526
        %6590 = vmatpush1.bf16.msra.mxu0 %v6525
        %6591 = vmatprep.mubr.bf16.mxu0 %v6365
        %6592 = vmatmul.mubr.bf16.gmra.mrb[0].mxu0 %v6364
        %v6593 = vpop.f32.mrb[0].mxu0
        %v6594 = vadd.f32 0.0, %v6593
        %v6595 = vpop.f32.mrb[0].mxu0
        %v6596 = vadd.f32 0.0, %v6595
        %v6597 = vpop.f32.mrb[0].mxu0
        %v6598 = vpop.f32.mrb[0].mxu0
        %6599 = vdwg.mxu0
        %v6600 = vadd.f32 %v6113, %v6594
        %v6601 = vadd.f32 %v6114, %v6596
        %s6602 = scalar_lea.vmem [#allocation14], 1536
        %v6603 = vld [vmem:[%s6602] sm:$0xff]
        %v6604 = vld [vmem:[%s6602 + $0x8] sm:$0xff]
        %v6605 = vld [vmem:[%s6602 + $0x10] sm:$0xff]
        %v6606 = vld [vmem:[%s6602 + $0x18] sm:$0xff]
        %v6607 = vld [vmem:[%s6602 + $0x20] sm:$0xff]
        %v6608 = vld [vmem:[%s6602 + $0x28] sm:$0xff]
        %v6609 = vld [vmem:[%s6602 + $0x30] sm:$0xff]
        %v6610 = vld [vmem:[%s6602 + $0x38] sm:$0xff]
        %v6611 = vld [vmem:[%s6602 + $0x40] sm:$0xff]
        %v6612 = vld [vmem:[%s6602 + $0x48] sm:$0xff]
        %v6613 = vld [vmem:[%s6602 + $0x50] sm:$0xff]
        %v6614 = vld [vmem:[%s6602 + $0x58] sm:$0xff]
        %v6615 = vld [vmem:[%s6602 + $0x60] sm:$0xff]
        %v6616 = vld [vmem:[%s6602 + $0x68] sm:$0xff]
        %v6617 = vld [vmem:[%s6602 + $0x70] sm:$0xff]
        %v6618 = vld [vmem:[%s6602 + $0x78] sm:$0xff]
        %v6619 = vld [vmem:[%s6602 + $0x80] sm:$0xff]
        %v6620 = vld [vmem:[%s6602 + $0x88] sm:$0xff]
        %v6621 = vld [vmem:[%s6602 + $0x90] sm:$0xff]
        %v6622 = vld [vmem:[%s6602 + $0x98] sm:$0xff]
        %v6623 = vld [vmem:[%s6602 + $0xa0] sm:$0xff]
        %v6624 = vld [vmem:[%s6602 + $0xa8] sm:$0xff]
        %v6625 = vld [vmem:[%s6602 + $0xb0] sm:$0xff]
        %v6626 = vld [vmem:[%s6602 + $0xb8] sm:$0xff]
        %v6627 = vld [vmem:[%s6602 + $0xc0] sm:$0xff]
        %v6628 = vld [vmem:[%s6602 + $0xc8] sm:$0xff]
        %v6629 = vld [vmem:[%s6602 + $0xd0] sm:$0xff]
        %v6630 = vld [vmem:[%s6602 + $0xd8] sm:$0xff]
        %v6631 = vld [vmem:[%s6602 + $0xe0] sm:$0xff]
        %v6632 = vld [vmem:[%s6602 + $0xe8] sm:$0xff]
        %v6633 = vld [vmem:[%s6602 + $0xf0] sm:$0xff]
        %v6634 = vld [vmem:[%s6602 + $0xf8] sm:$0xff]
        %s6635 = scalar_lea.vmem [#allocation16], 12
        %v6636 = vld [vmem:[%s6635] sm:$0x3]
        %v6638 = vlaneseq
        %v6639 = vshrl.u32 %v6638, 7
        %v6640 = vsub.s32 0, %v6639
        %v6641 = vrot.slane %v6636, %v6640
        %v6642 = vlaneseq
        %v6643 = vshrl.u32 %v6642, 7
        %v6644 = vsub.s32 1, %v6643
        %v6645 = vrot.slane %v6636, %v6644
        %v6680 = vunpack.c.l.b16 %v6603
        %v6681 = vunpack.c.h.b16 %v6603
        %v6682 = vunpack.c.l.b16 %v6604
        %v6683 = vunpack.c.h.b16 %v6604
        %v6684 = vunpack.c.l.b16 %v6605
        %v6685 = vunpack.c.h.b16 %v6605
        %v6686 = vunpack.c.l.b16 %v6606
        %v6687 = vunpack.c.h.b16 %v6606
        %v6688 = vunpack.c.l.b16 %v6607
        %v6689 = vunpack.c.h.b16 %v6607
        %v6690 = vunpack.c.l.b16 %v6608
        %v6691 = vunpack.c.h.b16 %v6608
        %v6692 = vunpack.c.l.b16 %v6609
        %v6693 = vunpack.c.h.b16 %v6609
        %v6694 = vunpack.c.l.b16 %v6610
        %v6695 = vunpack.c.h.b16 %v6610
        %v6696 = vunpack.c.l.b16 %v6611
        %v6697 = vunpack.c.h.b16 %v6611
        %v6698 = vunpack.c.l.b16 %v6612
        %v6699 = vunpack.c.h.b16 %v6612
        %v6700 = vunpack.c.l.b16 %v6613
        %v6701 = vunpack.c.h.b16 %v6613
        %v6702 = vunpack.c.l.b16 %v6614
        %v6703 = vunpack.c.h.b16 %v6614
        %v6704 = vunpack.c.l.b16 %v6615
        %v6705 = vunpack.c.h.b16 %v6615
        %v6706 = vunpack.c.l.b16 %v6616
        %v6707 = vunpack.c.h.b16 %v6616
        %v6708 = vunpack.c.l.b16 %v6617
        %v6709 = vunpack.c.h.b16 %v6617
        %v6710 = vunpack.c.l.b16 %v6618
        %v6711 = vunpack.c.h.b16 %v6618
        %v6712 = vunpack.c.l.b16 %v6619
        %v6713 = vunpack.c.h.b16 %v6619
        %v6714 = vunpack.c.l.b16 %v6620
        %v6715 = vunpack.c.h.b16 %v6620
        %v6716 = vunpack.c.l.b16 %v6621
        %v6717 = vunpack.c.h.b16 %v6621
        %v6718 = vunpack.c.l.b16 %v6622
        %v6719 = vunpack.c.h.b16 %v6622
        %v6720 = vunpack.c.l.b16 %v6623
        %v6721 = vunpack.c.h.b16 %v6623
        %v6722 = vunpack.c.l.b16 %v6624
        %v6723 = vunpack.c.h.b16 %v6624
        %v6724 = vunpack.c.l.b16 %v6625
        %v6725 = vunpack.c.h.b16 %v6625
        %v6726 = vunpack.c.l.b16 %v6626
        %v6727 = vunpack.c.h.b16 %v6626
        %v6728 = vunpack.c.l.b16 %v6627
        %v6729 = vunpack.c.h.b16 %v6627
        %v6730 = vunpack.c.l.b16 %v6628
        %v6731 = vunpack.c.h.b16 %v6628
        %v6732 = vunpack.c.l.b16 %v6629
        %v6733 = vunpack.c.h.b16 %v6629
        %v6734 = vunpack.c.l.b16 %v6630
        %v6735 = vunpack.c.h.b16 %v6630
        %v6736 = vunpack.c.l.b16 %v6631
        %v6737 = vunpack.c.h.b16 %v6631
        %v6738 = vunpack.c.l.b16 %v6632
        %v6739 = vunpack.c.h.b16 %v6632
        %v6740 = vunpack.c.l.b16 %v6633
        %v6741 = vunpack.c.h.b16 %v6633
        %v6742 = vunpack.c.l.b16 %v6634
        %v6743 = vunpack.c.h.b16 %v6634
        %v6744 = vpack.c.b16 %v6682, %v6680
        %v6745 = vpack.c.b16 %v6683, %v6681
        %v6746 = vpack.c.b16 %v6686, %v6684
        %v6747 = vpack.c.b16 %v6687, %v6685
        %v6748 = vpack.c.b16 %v6690, %v6688
        %v6749 = vpack.c.b16 %v6691, %v6689
        %v6750 = vpack.c.b16 %v6694, %v6692
        %v6751 = vpack.c.b16 %v6695, %v6693
        %v6752 = vpack.c.b16 %v6698, %v6696
        %v6753 = vpack.c.b16 %v6699, %v6697
        %v6754 = vpack.c.b16 %v6702, %v6700
        %v6755 = vpack.c.b16 %v6703, %v6701
        %v6756 = vpack.c.b16 %v6706, %v6704
        %v6757 = vpack.c.b16 %v6707, %v6705
        %v6758 = vpack.c.b16 %v6710, %v6708
        %v6759 = vpack.c.b16 %v6711, %v6709
        %v6760 = vpack.c.b16 %v6714, %v6712
        %v6761 = vpack.c.b16 %v6715, %v6713
        %v6762 = vpack.c.b16 %v6718, %v6716
        %v6763 = vpack.c.b16 %v6719, %v6717
        %v6764 = vpack.c.b16 %v6722, %v6720
        %v6765 = vpack.c.b16 %v6723, %v6721
        %v6766 = vpack.c.b16 %v6726, %v6724
        %v6767 = vpack.c.b16 %v6727, %v6725
        %v6768 = vpack.c.b16 %v6730, %v6728
        %v6769 = vpack.c.b16 %v6731, %v6729
        %v6770 = vpack.c.b16 %v6734, %v6732
        %v6771 = vpack.c.b16 %v6735, %v6733
        %v6772 = vpack.c.b16 %v6738, %v6736
        %v6773 = vpack.c.b16 %v6739, %v6737
        %v6774 = vpack.c.b16 %v6742, %v6740
        %v6775 = vpack.c.b16 %v6743, %v6741
        %6808 = vmatprep.subr.bf16.mxu0 %v6745
        %6809 = vmatpush1.bf16.msra.mxu0 %v6744
        %6810 = vmatprep.subr.bf16.mxu0 %v6747
        %6811 = vmatpush1.bf16.msra.mxu0 %v6746
        %6812 = vmatprep.subr.bf16.mxu0 %v6749
        %6813 = vmatpush1.bf16.msra.mxu0 %v6748
        %6814 = vmatprep.subr.bf16.mxu0 %v6751
        %6815 = vmatpush1.bf16.msra.mxu0 %v6750
        %6816 = vmatprep.subr.bf16.mxu0 %v6753
        %6817 = vmatpush1.bf16.msra.mxu0 %v6752
        %6818 = vmatprep.subr.bf16.mxu0 %v6755
        %6819 = vmatpush1.bf16.msra.mxu0 %v6754
        %6820 = vmatprep.subr.bf16.mxu0 %v6757
        %6821 = vmatpush1.bf16.msra.mxu0 %v6756
        %6822 = vmatprep.subr.bf16.mxu0 %v6759
        %6823 = vmatpush1.bf16.msra.mxu0 %v6758
        %6824 = vmatprep.subr.bf16.mxu0 %v6761
        %6825 = vmatpush1.bf16.msra.mxu0 %v6760
        %6826 = vmatprep.subr.bf16.mxu0 %v6763
        %6827 = vmatpush1.bf16.msra.mxu0 %v6762
        %6828 = vmatprep.subr.bf16.mxu0 %v6765
        %6829 = vmatpush1.bf16.msra.mxu0 %v6764
        %6830 = vmatprep.subr.bf16.mxu0 %v6767
        %6831 = vmatpush1.bf16.msra.mxu0 %v6766
        %6832 = vmatprep.subr.bf16.mxu0 %v6769
        %6833 = vmatpush1.bf16.msra.mxu0 %v6768
        %6834 = vmatprep.subr.bf16.mxu0 %v6771
        %6835 = vmatpush1.bf16.msra.mxu0 %v6770
        %6836 = vmatprep.subr.bf16.mxu0 %v6773
        %6837 = vmatpush1.bf16.msra.mxu0 %v6772
        %6838 = vmatprep.subr.bf16.mxu0 %v6775
        %6839 = vmatpush1.bf16.msra.mxu0 %v6774
        %6840 = vmatprep.mubr.bf16.mxu0 %v5614
        %6841 = vmatmul.mubr.bf16.gmra.mrb[0].mxu0 %v5613
        %v6842 = vpop.f32.mrb[0].mxu0
        %v6843 = vadd.f32 %v6641, %v6842
        %v6844 = vpop.f32.mrb[0].mxu0
        %v6845 = vadd.f32 %v6645, %v6844
        %v6846 = vpop.f32.mrb[0].mxu0
        %v6847 = vpop.f32.mrb[0].mxu0
        %6848 = vdwg.mxu0
        %v6849 = vmax.f32 %v6843, 0.0
        %v6850 = vmax.f32 %v6845, 0.0
        %v6851 = vpack.c.bf16 %v6849, %v6849
        %v6852 = vpack.c.bf16 %v6850, %v6850
        %s6853 = scalar_lea.vmem [#allocation17], 1536
        %v6854 = vld [vmem:[%s6853] sm:$0xff]
        %v6855 = vld [vmem:[%s6853 + $0x8] sm:$0xff]
        %v6856 = vld [vmem:[%s6853 + $0x10] sm:$0xff]
        %v6857 = vld [vmem:[%s6853 + $0x18] sm:$0xff]
        %v6858 = vld [vmem:[%s6853 + $0x20] sm:$0xff]
        %v6859 = vld [vmem:[%s6853 + $0x28] sm:$0xff]
        %v6860 = vld [vmem:[%s6853 + $0x30] sm:$0xff]
        %v6861 = vld [vmem:[%s6853 + $0x38] sm:$0xff]
        %v6862 = vld [vmem:[%s6853 + $0x40] sm:$0xff]
        %v6863 = vld [vmem:[%s6853 + $0x48] sm:$0xff]
        %v6864 = vld [vmem:[%s6853 + $0x50] sm:$0xff]
        %v6865 = vld [vmem:[%s6853 + $0x58] sm:$0xff]
        %v6866 = vld [vmem:[%s6853 + $0x60] sm:$0xff]
        %v6867 = vld [vmem:[%s6853 + $0x68] sm:$0xff]
        %v6868 = vld [vmem:[%s6853 + $0x70] sm:$0xff]
        %v6869 = vld [vmem:[%s6853 + $0x78] sm:$0xff]
        %v6870 = vld [vmem:[%s6853 + $0x80] sm:$0xff]
        %v6871 = vld [vmem:[%s6853 + $0x88] sm:$0xff]
        %v6872 = vld [vmem:[%s6853 + $0x90] sm:$0xff]
        %v6873 = vld [vmem:[%s6853 + $0x98] sm:$0xff]
        %v6874 = vld [vmem:[%s6853 + $0xa0] sm:$0xff]
        %v6875 = vld [vmem:[%s6853 + $0xa8] sm:$0xff]
        %v6876 = vld [vmem:[%s6853 + $0xb0] sm:$0xff]
        %v6877 = vld [vmem:[%s6853 + $0xb8] sm:$0xff]
        %v6878 = vld [vmem:[%s6853 + $0xc0] sm:$0xff]
        %v6879 = vld [vmem:[%s6853 + $0xc8] sm:$0xff]
        %v6880 = vld [vmem:[%s6853 + $0xd0] sm:$0xff]
        %v6881 = vld [vmem:[%s6853 + $0xd8] sm:$0xff]
        %v6882 = vld [vmem:[%s6853 + $0xe0] sm:$0xff]
        %v6883 = vld [vmem:[%s6853 + $0xe8] sm:$0xff]
        %v6884 = vld [vmem:[%s6853 + $0xf0] sm:$0xff]
        %v6885 = vld [vmem:[%s6853 + $0xf8] sm:$0xff]
        %v6918 = vunpack.c.l.b16 %v6854
        %v6919 = vunpack.c.h.b16 %v6854
        %v6920 = vunpack.c.l.b16 %v6855
        %v6921 = vunpack.c.h.b16 %v6855
        %v6922 = vunpack.c.l.b16 %v6856
        %v6923 = vunpack.c.h.b16 %v6856
        %v6924 = vunpack.c.l.b16 %v6857
        %v6925 = vunpack.c.h.b16 %v6857
        %v6926 = vunpack.c.l.b16 %v6858
        %v6927 = vunpack.c.h.b16 %v6858
        %v6928 = vunpack.c.l.b16 %v6859
        %v6929 = vunpack.c.h.b16 %v6859
        %v6930 = vunpack.c.l.b16 %v6860
        %v6931 = vunpack.c.h.b16 %v6860
        %v6932 = vunpack.c.l.b16 %v6861
        %v6933 = vunpack.c.h.b16 %v6861
        %v6934 = vunpack.c.l.b16 %v6862
        %v6935 = vunpack.c.h.b16 %v6862
        %v6936 = vunpack.c.l.b16 %v6863
        %v6937 = vunpack.c.h.b16 %v6863
        %v6938 = vunpack.c.l.b16 %v6864
        %v6939 = vunpack.c.h.b16 %v6864
        %v6940 = vunpack.c.l.b16 %v6865
        %v6941 = vunpack.c.h.b16 %v6865
        %v6942 = vunpack.c.l.b16 %v6866
        %v6943 = vunpack.c.h.b16 %v6866
        %v6944 = vunpack.c.l.b16 %v6867
        %v6945 = vunpack.c.h.b16 %v6867
        %v6946 = vunpack.c.l.b16 %v6868
        %v6947 = vunpack.c.h.b16 %v6868
        %v6948 = vunpack.c.l.b16 %v6869
        %v6949 = vunpack.c.h.b16 %v6869
        %v6950 = vunpack.c.l.b16 %v6870
        %v6951 = vunpack.c.h.b16 %v6870
        %v6952 = vunpack.c.l.b16 %v6871
        %v6953 = vunpack.c.h.b16 %v6871
        %v6954 = vunpack.c.l.b16 %v6872
        %v6955 = vunpack.c.h.b16 %v6872
        %v6956 = vunpack.c.l.b16 %v6873
        %v6957 = vunpack.c.h.b16 %v6873
        %v6958 = vunpack.c.l.b16 %v6874
        %v6959 = vunpack.c.h.b16 %v6874
        %v6960 = vunpack.c.l.b16 %v6875
        %v6961 = vunpack.c.h.b16 %v6875
        %v6962 = vunpack.c.l.b16 %v6876
        %v6963 = vunpack.c.h.b16 %v6876
        %v6964 = vunpack.c.l.b16 %v6877
        %v6965 = vunpack.c.h.b16 %v6877
        %v6966 = vunpack.c.l.b16 %v6878
        %v6967 = vunpack.c.h.b16 %v6878
        %v6968 = vunpack.c.l.b16 %v6879
        %v6969 = vunpack.c.h.b16 %v6879
        %v6970 = vunpack.c.l.b16 %v6880
        %v6971 = vunpack.c.h.b16 %v6880
        %v6972 = vunpack.c.l.b16 %v6881
        %v6973 = vunpack.c.h.b16 %v6881
        %v6974 = vunpack.c.l.b16 %v6882
        %v6975 = vunpack.c.h.b16 %v6882
        %v6976 = vunpack.c.l.b16 %v6883
        %v6977 = vunpack.c.h.b16 %v6883
        %v6978 = vunpack.c.l.b16 %v6884
        %v6979 = vunpack.c.h.b16 %v6884
        %v6980 = vunpack.c.l.b16 %v6885
        %v6981 = vunpack.c.h.b16 %v6885
        %v6982 = vpack.c.b16 %v6920, %v6918
        %v6983 = vpack.c.b16 %v6921, %v6919
        %v6984 = vpack.c.b16 %v6924, %v6922
        %v6985 = vpack.c.b16 %v6925, %v6923
        %v6986 = vpack.c.b16 %v6928, %v6926
        %v6987 = vpack.c.b16 %v6929, %v6927
        %v6988 = vpack.c.b16 %v6932, %v6930
        %v6989 = vpack.c.b16 %v6933, %v6931
        %v6990 = vpack.c.b16 %v6936, %v6934
        %v6991 = vpack.c.b16 %v6937, %v6935
        %v6992 = vpack.c.b16 %v6940, %v6938
        %v6993 = vpack.c.b16 %v6941, %v6939
        %v6994 = vpack.c.b16 %v6944, %v6942
        %v6995 = vpack.c.b16 %v6945, %v6943
        %v6996 = vpack.c.b16 %v6948, %v6946
        %v6997 = vpack.c.b16 %v6949, %v6947
        %v6998 = vpack.c.b16 %v6952, %v6950
        %v6999 = vpack.c.b16 %v6953, %v6951
        %v7000 = vpack.c.b16 %v6956, %v6954
        %v7001 = vpack.c.b16 %v6957, %v6955
        %v7002 = vpack.c.b16 %v6960, %v6958
        %v7003 = vpack.c.b16 %v6961, %v6959
        %v7004 = vpack.c.b16 %v6964, %v6962
        %v7005 = vpack.c.b16 %v6965, %v6963
        %v7006 = vpack.c.b16 %v6968, %v6966
        %v7007 = vpack.c.b16 %v6969, %v6967
        %v7008 = vpack.c.b16 %v6972, %v6970
        %v7009 = vpack.c.b16 %v6973, %v6971
        %v7010 = vpack.c.b16 %v6976, %v6974
        %v7011 = vpack.c.b16 %v6977, %v6975
        %v7012 = vpack.c.b16 %v6980, %v6978
        %v7013 = vpack.c.b16 %v6981, %v6979
        %7046 = vmatprep.subr.bf16.mxu0 %v6983
        %7047 = vmatpush1.bf16.msra.mxu0 %v6982
        %7048 = vmatprep.subr.bf16.mxu0 %v6985
        %7049 = vmatpush1.bf16.msra.mxu0 %v6984
        %7050 = vmatprep.subr.bf16.mxu0 %v6987
        %7051 = vmatpush1.bf16.msra.mxu0 %v6986
        %7052 = vmatprep.subr.bf16.mxu0 %v6989
        %7053 = vmatpush1.bf16.msra.mxu0 %v6988
        %7054 = vmatprep.subr.bf16.mxu0 %v6991
        %7055 = vmatpush1.bf16.msra.mxu0 %v6990
        %7056 = vmatprep.subr.bf16.mxu0 %v6993
        %7057 = vmatpush1.bf16.msra.mxu0 %v6992
        %7058 = vmatprep.subr.bf16.mxu0 %v6995
        %7059 = vmatpush1.bf16.msra.mxu0 %v6994
        %7060 = vmatprep.subr.bf16.mxu0 %v6997
        %7061 = vmatpush1.bf16.msra.mxu0 %v6996
        %7062 = vmatprep.subr.bf16.mxu0 %v6999
        %7063 = vmatpush1.bf16.msra.mxu0 %v6998
        %7064 = vmatprep.subr.bf16.mxu0 %v7001
        %7065 = vmatpush1.bf16.msra.mxu0 %v7000
        %7066 = vmatprep.subr.bf16.mxu0 %v7003
        %7067 = vmatpush1.bf16.msra.mxu0 %v7002
        %7068 = vmatprep.subr.bf16.mxu0 %v7005
        %7069 = vmatpush1.bf16.msra.mxu0 %v7004
        %7070 = vmatprep.subr.bf16.mxu0 %v7007
        %7071 = vmatpush1.bf16.msra.mxu0 %v7006
        %7072 = vmatprep.subr.bf16.mxu0 %v7009
        %7073 = vmatpush1.bf16.msra.mxu0 %v7008
        %7074 = vmatprep.subr.bf16.mxu0 %v7011
        %7075 = vmatpush1.bf16.msra.mxu0 %v7010
        %7076 = vmatprep.subr.bf16.mxu0 %v7013
        %7077 = vmatpush1.bf16.msra.mxu0 %v7012
        %7078 = vmatprep.mubr.bf16.mxu0 %v6852
        %7079 = vmatmul.mubr.bf16.gmra.mrb[0].mxu0 %v6851
        %v7080 = vpop.f32.mrb[0].mxu0
        %v7081 = vadd.f32 0.0, %v7080
        %v7082 = vpop.f32.mrb[0].mxu0
        %v7083 = vadd.f32 0.0, %v7082
        %v7084 = vpop.f32.mrb[0].mxu0
        %v7085 = vpop.f32.mrb[0].mxu0
        %7086 = vdwg.mxu0
        %v7087 = vadd.f32 %v6600, %v7081
        %v7088 = vadd.f32 %v6601, %v7083
        %s7089 = scalar_lea.vmem [#allocation14], 1792
        %v7090 = vld [vmem:[%s7089] sm:$0xff]
        %v7091 = vld [vmem:[%s7089 + $0x8] sm:$0xff]
        %v7092 = vld [vmem:[%s7089 + $0x10] sm:$0xff]
        %v7093 = vld [vmem:[%s7089 + $0x18] sm:$0xff]
        %v7094 = vld [vmem:[%s7089 + $0x20] sm:$0xff]
        %v7095 = vld [vmem:[%s7089 + $0x28] sm:$0xff]
        %v7096 = vld [vmem:[%s7089 + $0x30] sm:$0xff]
        %v7097 = vld [vmem:[%s7089 + $0x38] sm:$0xff]
        %v7098 = vld [vmem:[%s7089 + $0x40] sm:$0xff]
        %v7099 = vld [vmem:[%s7089 + $0x48] sm:$0xff]
        %v7100 = vld [vmem:[%s7089 + $0x50] sm:$0xff]
        %v7101 = vld [vmem:[%s7089 + $0x58] sm:$0xff]
        %v7102 = vld [vmem:[%s7089 + $0x60] sm:$0xff]
        %v7103 = vld [vmem:[%s7089 + $0x68] sm:$0xff]
        %v7104 = vld [vmem:[%s7089 + $0x70] sm:$0xff]
        %v7105 = vld [vmem:[%s7089 + $0x78] sm:$0xff]
        %v7106 = vld [vmem:[%s7089 + $0x80] sm:$0xff]
        %v7107 = vld [vmem:[%s7089 + $0x88] sm:$0xff]
        %v7108 = vld [vmem:[%s7089 + $0x90] sm:$0xff]
        %v7109 = vld [vmem:[%s7089 + $0x98] sm:$0xff]
        %v7110 = vld [vmem:[%s7089 + $0xa0] sm:$0xff]
        %v7111 = vld [vmem:[%s7089 + $0xa8] sm:$0xff]
        %v7112 = vld [vmem:[%s7089 + $0xb0] sm:$0xff]
        %v7113 = vld [vmem:[%s7089 + $0xb8] sm:$0xff]
        %v7114 = vld [vmem:[%s7089 + $0xc0] sm:$0xff]
        %v7115 = vld [vmem:[%s7089 + $0xc8] sm:$0xff]
        %v7116 = vld [vmem:[%s7089 + $0xd0] sm:$0xff]
        %v7117 = vld [vmem:[%s7089 + $0xd8] sm:$0xff]
        %v7118 = vld [vmem:[%s7089 + $0xe0] sm:$0xff]
        %v7119 = vld [vmem:[%s7089 + $0xe8] sm:$0xff]
        %v7120 = vld [vmem:[%s7089 + $0xf0] sm:$0xff]
        %v7121 = vld [vmem:[%s7089 + $0xf8] sm:$0xff]
        %s7122 = scalar_lea.vmem [#allocation16], 14
        %v7123 = vld [vmem:[%s7122] sm:$0x3]
        %v7125 = vlaneseq
        %v7126 = vshrl.u32 %v7125, 7
        %v7127 = vsub.s32 0, %v7126
        %v7128 = vrot.slane %v7123, %v7127
        %v7129 = vlaneseq
        %v7130 = vshrl.u32 %v7129, 7
        %v7131 = vsub.s32 1, %v7130
        %v7132 = vrot.slane %v7123, %v7131
        %v7167 = vunpack.c.l.b16 %v7090
        %v7168 = vunpack.c.h.b16 %v7090
        %v7169 = vunpack.c.l.b16 %v7091
        %v7170 = vunpack.c.h.b16 %v7091
        %v7171 = vunpack.c.l.b16 %v7092
        %v7172 = vunpack.c.h.b16 %v7092
        %v7173 = vunpack.c.l.b16 %v7093
        %v7174 = vunpack.c.h.b16 %v7093
        %v7175 = vunpack.c.l.b16 %v7094
        %v7176 = vunpack.c.h.b16 %v7094
        %v7177 = vunpack.c.l.b16 %v7095
        %v7178 = vunpack.c.h.b16 %v7095
        %v7179 = vunpack.c.l.b16 %v7096
        %v7180 = vunpack.c.h.b16 %v7096
        %v7181 = vunpack.c.l.b16 %v7097
        %v7182 = vunpack.c.h.b16 %v7097
        %v7183 = vunpack.c.l.b16 %v7098
        %v7184 = vunpack.c.h.b16 %v7098
        %v7185 = vunpack.c.l.b16 %v7099
        %v7186 = vunpack.c.h.b16 %v7099
        %v7187 = vunpack.c.l.b16 %v7100
        %v7188 = vunpack.c.h.b16 %v7100
        %v7189 = vunpack.c.l.b16 %v7101
        %v7190 = vunpack.c.h.b16 %v7101
        %v7191 = vunpack.c.l.b16 %v7102
        %v7192 = vunpack.c.h.b16 %v7102
        %v7193 = vunpack.c.l.b16 %v7103
        %v7194 = vunpack.c.h.b16 %v7103
        %v7195 = vunpack.c.l.b16 %v7104
        %v7196 = vunpack.c.h.b16 %v7104
        %v7197 = vunpack.c.l.b16 %v7105
        %v7198 = vunpack.c.h.b16 %v7105
        %v7199 = vunpack.c.l.b16 %v7106
        %v7200 = vunpack.c.h.b16 %v7106
        %v7201 = vunpack.c.l.b16 %v7107
        %v7202 = vunpack.c.h.b16 %v7107
        %v7203 = vunpack.c.l.b16 %v7108
        %v7204 = vunpack.c.h.b16 %v7108
        %v7205 = vunpack.c.l.b16 %v7109
        %v7206 = vunpack.c.h.b16 %v7109
        %v7207 = vunpack.c.l.b16 %v7110
        %v7208 = vunpack.c.h.b16 %v7110
        %v7209 = vunpack.c.l.b16 %v7111
        %v7210 = vunpack.c.h.b16 %v7111
        %v7211 = vunpack.c.l.b16 %v7112
        %v7212 = vunpack.c.h.b16 %v7112
        %v7213 = vunpack.c.l.b16 %v7113
        %v7214 = vunpack.c.h.b16 %v7113
        %v7215 = vunpack.c.l.b16 %v7114
        %v7216 = vunpack.c.h.b16 %v7114
        %v7217 = vunpack.c.l.b16 %v7115
        %v7218 = vunpack.c.h.b16 %v7115
        %v7219 = vunpack.c.l.b16 %v7116
        %v7220 = vunpack.c.h.b16 %v7116
        %v7221 = vunpack.c.l.b16 %v7117
        %v7222 = vunpack.c.h.b16 %v7117
        %v7223 = vunpack.c.l.b16 %v7118
        %v7224 = vunpack.c.h.b16 %v7118
        %v7225 = vunpack.c.l.b16 %v7119
        %v7226 = vunpack.c.h.b16 %v7119
        %v7227 = vunpack.c.l.b16 %v7120
        %v7228 = vunpack.c.h.b16 %v7120
        %v7229 = vunpack.c.l.b16 %v7121
        %v7230 = vunpack.c.h.b16 %v7121
        %v7231 = vpack.c.b16 %v7169, %v7167
        %v7232 = vpack.c.b16 %v7170, %v7168
        %v7233 = vpack.c.b16 %v7173, %v7171
        %v7234 = vpack.c.b16 %v7174, %v7172
        %v7235 = vpack.c.b16 %v7177, %v7175
        %v7236 = vpack.c.b16 %v7178, %v7176
        %v7237 = vpack.c.b16 %v7181, %v7179
        %v7238 = vpack.c.b16 %v7182, %v7180
        %v7239 = vpack.c.b16 %v7185, %v7183
        %v7240 = vpack.c.b16 %v7186, %v7184
        %v7241 = vpack.c.b16 %v7189, %v7187
        %v7242 = vpack.c.b16 %v7190, %v7188
        %v7243 = vpack.c.b16 %v7193, %v7191
        %v7244 = vpack.c.b16 %v7194, %v7192
        %v7245 = vpack.c.b16 %v7197, %v7195
        %v7246 = vpack.c.b16 %v7198, %v7196
        %v7247 = vpack.c.b16 %v7201, %v7199
        %v7248 = vpack.c.b16 %v7202, %v7200
        %v7249 = vpack.c.b16 %v7205, %v7203
        %v7250 = vpack.c.b16 %v7206, %v7204
        %v7251 = vpack.c.b16 %v7209, %v7207
        %v7252 = vpack.c.b16 %v7210, %v7208
        %v7253 = vpack.c.b16 %v7213, %v7211
        %v7254 = vpack.c.b16 %v7214, %v7212
        %v7255 = vpack.c.b16 %v7217, %v7215
        %v7256 = vpack.c.b16 %v7218, %v7216
        %v7257 = vpack.c.b16 %v7221, %v7219
        %v7258 = vpack.c.b16 %v7222, %v7220
        %v7259 = vpack.c.b16 %v7225, %v7223
        %v7260 = vpack.c.b16 %v7226, %v7224
        %v7261 = vpack.c.b16 %v7229, %v7227
        %v7262 = vpack.c.b16 %v7230, %v7228
        %7295 = vmatprep.subr.bf16.mxu0 %v7232
        %7296 = vmatpush1.bf16.msra.mxu0 %v7231
        %7297 = vmatprep.subr.bf16.mxu0 %v7234
        %7298 = vmatpush1.bf16.msra.mxu0 %v7233
        %7299 = vmatprep.subr.bf16.mxu0 %v7236
        %7300 = vmatpush1.bf16.msra.mxu0 %v7235
        %7301 = vmatprep.subr.bf16.mxu0 %v7238
        %7302 = vmatpush1.bf16.msra.mxu0 %v7237
        %7303 = vmatprep.subr.bf16.mxu0 %v7240
        %7304 = vmatpush1.bf16.msra.mxu0 %v7239
        %7305 = vmatprep.subr.bf16.mxu0 %v7242
        %7306 = vmatpush1.bf16.msra.mxu0 %v7241
        %7307 = vmatprep.subr.bf16.mxu0 %v7244
        %7308 = vmatpush1.bf16.msra.mxu0 %v7243
        %7309 = vmatprep.subr.bf16.mxu0 %v7246
        %7310 = vmatpush1.bf16.msra.mxu0 %v7245
        %7311 = vmatprep.subr.bf16.mxu0 %v7248
        %7312 = vmatpush1.bf16.msra.mxu0 %v7247
        %7313 = vmatprep.subr.bf16.mxu0 %v7250
        %7314 = vmatpush1.bf16.msra.mxu0 %v7249
        %7315 = vmatprep.subr.bf16.mxu0 %v7252
        %7316 = vmatpush1.bf16.msra.mxu0 %v7251
        %7317 = vmatprep.subr.bf16.mxu0 %v7254
        %7318 = vmatpush1.bf16.msra.mxu0 %v7253
        %7319 = vmatprep.subr.bf16.mxu0 %v7256
        %7320 = vmatpush1.bf16.msra.mxu0 %v7255
        %7321 = vmatprep.subr.bf16.mxu0 %v7258
        %7322 = vmatpush1.bf16.msra.mxu0 %v7257
        %7323 = vmatprep.subr.bf16.mxu0 %v7260
        %7324 = vmatpush1.bf16.msra.mxu0 %v7259
        %7325 = vmatprep.subr.bf16.mxu0 %v7262
        %7326 = vmatpush1.bf16.msra.mxu0 %v7261
        %7327 = vmatprep.mubr.bf16.mxu0 %v5614
        %7328 = vmatmul.mubr.bf16.gmra.mrb[0].mxu0 %v5613
        %v7329 = vpop.f32.mrb[0].mxu0
        %v7330 = vadd.f32 %v7128, %v7329
        %v7331 = vpop.f32.mrb[0].mxu0
        %v7332 = vadd.f32 %v7132, %v7331
        %v7333 = vpop.f32.mrb[0].mxu0
        %v7334 = vpop.f32.mrb[0].mxu0
        %7335 = vdwg.mxu0
        %v7336 = vmax.f32 %v7330, 0.0
        %v7337 = vmax.f32 %v7332, 0.0
        %v7338 = vpack.c.bf16 %v7336, %v7336
        %v7339 = vpack.c.bf16 %v7337, %v7337
        %s7340 = scalar_lea.vmem [#allocation17], 1792
        %v7341 = vld [vmem:[%s7340] sm:$0xff]
        %v7342 = vld [vmem:[%s7340 + $0x8] sm:$0xff]
        %v7343 = vld [vmem:[%s7340 + $0x10] sm:$0xff]
        %v7344 = vld [vmem:[%s7340 + $0x18] sm:$0xff]
        %v7345 = vld [vmem:[%s7340 + $0x20] sm:$0xff]
        %v7346 = vld [vmem:[%s7340 + $0x28] sm:$0xff]
        %v7347 = vld [vmem:[%s7340 + $0x30] sm:$0xff]
        %v7348 = vld [vmem:[%s7340 + $0x38] sm:$0xff]
        %v7349 = vld [vmem:[%s7340 + $0x40] sm:$0xff]
        %v7350 = vld [vmem:[%s7340 + $0x48] sm:$0xff]
        %v7351 = vld [vmem:[%s7340 + $0x50] sm:$0xff]
        %v7352 = vld [vmem:[%s7340 + $0x58] sm:$0xff]
        %v7353 = vld [vmem:[%s7340 + $0x60] sm:$0xff]
        %v7354 = vld [vmem:[%s7340 + $0x68] sm:$0xff]
        %v7355 = vld [vmem:[%s7340 + $0x70] sm:$0xff]
        %v7356 = vld [vmem:[%s7340 + $0x78] sm:$0xff]
        %v7357 = vld [vmem:[%s7340 + $0x80] sm:$0xff]
        %v7358 = vld [vmem:[%s7340 + $0x88] sm:$0xff]
        %v7359 = vld [vmem:[%s7340 + $0x90] sm:$0xff]
        %v7360 = vld [vmem:[%s7340 + $0x98] sm:$0xff]
        %v7361 = vld [vmem:[%s7340 + $0xa0] sm:$0xff]
        %v7362 = vld [vmem:[%s7340 + $0xa8] sm:$0xff]
        %v7363 = vld [vmem:[%s7340 + $0xb0] sm:$0xff]
        %v7364 = vld [vmem:[%s7340 + $0xb8] sm:$0xff]
        %v7365 = vld [vmem:[%s7340 + $0xc0] sm:$0xff]
        %v7366 = vld [vmem:[%s7340 + $0xc8] sm:$0xff]
        %v7367 = vld [vmem:[%s7340 + $0xd0] sm:$0xff]
        %v7368 = vld [vmem:[%s7340 + $0xd8] sm:$0xff]
        %v7369 = vld [vmem:[%s7340 + $0xe0] sm:$0xff]
        %v7370 = vld [vmem:[%s7340 + $0xe8] sm:$0xff]
        %v7371 = vld [vmem:[%s7340 + $0xf0] sm:$0xff]
        %v7372 = vld [vmem:[%s7340 + $0xf8] sm:$0xff]
        %v7405 = vunpack.c.l.b16 %v7341
        %v7406 = vunpack.c.h.b16 %v7341
        %v7407 = vunpack.c.l.b16 %v7342
        %v7408 = vunpack.c.h.b16 %v7342
        %v7409 = vunpack.c.l.b16 %v7343
        %v7410 = vunpack.c.h.b16 %v7343
        %v7411 = vunpack.c.l.b16 %v7344
        %v7412 = vunpack.c.h.b16 %v7344
        %v7413 = vunpack.c.l.b16 %v7345
        %v7414 = vunpack.c.h.b16 %v7345
        %v7415 = vunpack.c.l.b16 %v7346
        %v7416 = vunpack.c.h.b16 %v7346
        %v7417 = vunpack.c.l.b16 %v7347
        %v7418 = vunpack.c.h.b16 %v7347
        %v7419 = vunpack.c.l.b16 %v7348
        %v7420 = vunpack.c.h.b16 %v7348
        %v7421 = vunpack.c.l.b16 %v7349
        %v7422 = vunpack.c.h.b16 %v7349
        %v7423 = vunpack.c.l.b16 %v7350
        %v7424 = vunpack.c.h.b16 %v7350
        %v7425 = vunpack.c.l.b16 %v7351
        %v7426 = vunpack.c.h.b16 %v7351
        %v7427 = vunpack.c.l.b16 %v7352
        %v7428 = vunpack.c.h.b16 %v7352
        %v7429 = vunpack.c.l.b16 %v7353
        %v7430 = vunpack.c.h.b16 %v7353
        %v7431 = vunpack.c.l.b16 %v7354
        %v7432 = vunpack.c.h.b16 %v7354
        %v7433 = vunpack.c.l.b16 %v7355
        %v7434 = vunpack.c.h.b16 %v7355
        %v7435 = vunpack.c.l.b16 %v7356
        %v7436 = vunpack.c.h.b16 %v7356
        %v7437 = vunpack.c.l.b16 %v7357
        %v7438 = vunpack.c.h.b16 %v7357
        %v7439 = vunpack.c.l.b16 %v7358
        %v7440 = vunpack.c.h.b16 %v7358
        %v7441 = vunpack.c.l.b16 %v7359
        %v7442 = vunpack.c.h.b16 %v7359
        %v7443 = vunpack.c.l.b16 %v7360
        %v7444 = vunpack.c.h.b16 %v7360
        %v7445 = vunpack.c.l.b16 %v7361
        %v7446 = vunpack.c.h.b16 %v7361
        %v7447 = vunpack.c.l.b16 %v7362
        %v7448 = vunpack.c.h.b16 %v7362
        %v7449 = vunpack.c.l.b16 %v7363
        %v7450 = vunpack.c.h.b16 %v7363
        %v7451 = vunpack.c.l.b16 %v7364
        %v7452 = vunpack.c.h.b16 %v7364
        %v7453 = vunpack.c.l.b16 %v7365
        %v7454 = vunpack.c.h.b16 %v7365
        %v7455 = vunpack.c.l.b16 %v7366
        %v7456 = vunpack.c.h.b16 %v7366
        %v7457 = vunpack.c.l.b16 %v7367
        %v7458 = vunpack.c.h.b16 %v7367
        %v7459 = vunpack.c.l.b16 %v7368
        %v7460 = vunpack.c.h.b16 %v7368
        %v7461 = vunpack.c.l.b16 %v7369
        %v7462 = vunpack.c.h.b16 %v7369
        %v7463 = vunpack.c.l.b16 %v7370
        %v7464 = vunpack.c.h.b16 %v7370
        %v7465 = vunpack.c.l.b16 %v7371
        %v7466 = vunpack.c.h.b16 %v7371
        %v7467 = vunpack.c.l.b16 %v7372
        %v7468 = vunpack.c.h.b16 %v7372
        %v7469 = vpack.c.b16 %v7407, %v7405
        %v7470 = vpack.c.b16 %v7408, %v7406
        %v7471 = vpack.c.b16 %v7411, %v7409
        %v7472 = vpack.c.b16 %v7412, %v7410
        %v7473 = vpack.c.b16 %v7415, %v7413
        %v7474 = vpack.c.b16 %v7416, %v7414
        %v7475 = vpack.c.b16 %v7419, %v7417
        %v7476 = vpack.c.b16 %v7420, %v7418
        %v7477 = vpack.c.b16 %v7423, %v7421
        %v7478 = vpack.c.b16 %v7424, %v7422
        %v7479 = vpack.c.b16 %v7427, %v7425
        %v7480 = vpack.c.b16 %v7428, %v7426
        %v7481 = vpack.c.b16 %v7431, %v7429
        %v7482 = vpack.c.b16 %v7432, %v7430
        %v7483 = vpack.c.b16 %v7435, %v7433
        %v7484 = vpack.c.b16 %v7436, %v7434
        %v7485 = vpack.c.b16 %v7439, %v7437
        %v7486 = vpack.c.b16 %v7440, %v7438
        %v7487 = vpack.c.b16 %v7443, %v7441
        %v7488 = vpack.c.b16 %v7444, %v7442
        %v7489 = vpack.c.b16 %v7447, %v7445
        %v7490 = vpack.c.b16 %v7448, %v7446
        %v7491 = vpack.c.b16 %v7451, %v7449
        %v7492 = vpack.c.b16 %v7452, %v7450
        %v7493 = vpack.c.b16 %v7455, %v7453
        %v7494 = vpack.c.b16 %v7456, %v7454
        %v7495 = vpack.c.b16 %v7459, %v7457
        %v7496 = vpack.c.b16 %v7460, %v7458
        %v7497 = vpack.c.b16 %v7463, %v7461
        %v7498 = vpack.c.b16 %v7464, %v7462
        %v7499 = vpack.c.b16 %v7467, %v7465
        %v7500 = vpack.c.b16 %v7468, %v7466
        %7533 = vmatprep.subr.bf16.mxu0 %v7470
        %7534 = vmatpush1.bf16.msra.mxu0 %v7469
        %7535 = vmatprep.subr.bf16.mxu0 %v7472
        %7536 = vmatpush1.bf16.msra.mxu0 %v7471
        %7537 = vmatprep.subr.bf16.mxu0 %v7474
        %7538 = vmatpush1.bf16.msra.mxu0 %v7473
        %7539 = vmatprep.subr.bf16.mxu0 %v7476
        %7540 = vmatpush1.bf16.msra.mxu0 %v7475
        %7541 = vmatprep.subr.bf16.mxu0 %v7478
        %7542 = vmatpush1.bf16.msra.mxu0 %v7477
        %7543 = vmatprep.subr.bf16.mxu0 %v7480
        %7544 = vmatpush1.bf16.msra.mxu0 %v7479
        %7545 = vmatprep.subr.bf16.mxu0 %v7482
        %7546 = vmatpush1.bf16.msra.mxu0 %v7481
        %7547 = vmatprep.subr.bf16.mxu0 %v7484
        %7548 = vmatpush1.bf16.msra.mxu0 %v7483
        %7549 = vmatprep.subr.bf16.mxu0 %v7486
        %7550 = vmatpush1.bf16.msra.mxu0 %v7485
        %7551 = vmatprep.subr.bf16.mxu0 %v7488
        %7552 = vmatpush1.bf16.msra.mxu0 %v7487
        %7553 = vmatprep.subr.bf16.mxu0 %v7490
        %7554 = vmatpush1.bf16.msra.mxu0 %v7489
        %7555 = vmatprep.subr.bf16.mxu0 %v7492
        %7556 = vmatpush1.bf16.msra.mxu0 %v7491
        %7557 = vmatprep.subr.bf16.mxu0 %v7494
        %7558 = vmatpush1.bf16.msra.mxu0 %v7493
        %7559 = vmatprep.subr.bf16.mxu0 %v7496
        %7560 = vmatpush1.bf16.msra.mxu0 %v7495
        %7561 = vmatprep.subr.bf16.mxu0 %v7498
        %7562 = vmatpush1.bf16.msra.mxu0 %v7497
        %7563 = vmatprep.subr.bf16.mxu0 %v7500
        %7564 = vmatpush1.bf16.msra.mxu0 %v7499
        %7565 = vmatprep.mubr.bf16.mxu0 %v7339
        %7566 = vmatmul.mubr.bf16.gmra.mrb[0].mxu0 %v7338
        %v7567 = vpop.f32.mrb[0].mxu0
        %v7568 = vadd.f32 0.0, %v7567
        %v7569 = vpop.f32.mrb[0].mxu0
        %v7570 = vadd.f32 0.0, %v7569
        %v7571 = vpop.f32.mrb[0].mxu0
        %v7572 = vpop.f32.mrb[0].mxu0
        %7573 = vdwg.mxu0
        %v7574 = vadd.f32 %v7087, %v7568
        %v7575 = vadd.f32 %v7088, %v7570
        %v7576 = vadd.f32 %v5611, %v7574
        %v7577 = vadd.f32 %v5612, %v7575
        %s7578 = scalar_lea.vmem [#allocation20], 2
        %v7579 = vld [vmem:[%s7578] sm:$0x3]
        %s7580 = scalar_lea.vmem [#allocation22], 2
        %v7581 = vld [vmem:[%s7580] sm:$0x3]
        %v7582 = vadd.f32 %v7576, %v7577
        %7583 = vadd.xlane.f32.xlu0 %v7582
        %v7584 = vpop.xlane.xlu0 %7583
        %v7585 = vmul.f32 %v7584, %v2080
        %v7586 = vsub.f32 %v7576, %v7585
        %v7587 = vsub.f32 %v7577, %v7585
        %v7588 = vmul.f32 %v7586, %v7586
        %v7589 = vmul.f32 %v7587, %v7587
        %v7590 = vadd.f32 %v7588, %v7589
        %7591 = vadd.xlane.f32.xlu0 %v7590
        %v7592 = vpop.xlane.xlu0 %7591
        %v7593 = vmul.f32 %v7592, %v2080
        %v7594 = vadd.f32 %v7593, 1e-05
        %v7595 = vrsqrt.pop %v7594
        %v7596 = vmul.f32 %v7586, %v7595
        %v7597 = vmul.f32 %v7587, %v7595
        %v7599 = vlaneseq
        %v7600 = vshrl.u32 %v7599, 7
        %v7601 = vsub.s32 0, %v7600
        %v7602 = vrot.slane %v7579, %v7601
        %v7603 = vlaneseq
        %v7604 = vshrl.u32 %v7603, 7
        %v7605 = vsub.s32 1, %v7604
        %v7606 = vrot.slane %v7579, %v7605
        %v7609 = vmul.f32 %v7596, %v7602
        %v7610 = vmul.f32 %v7597, %v7606
        %v7612 = vlaneseq
        %v7613 = vshrl.u32 %v7612, 7
        %v7614 = vsub.s32 0, %v7613
        %v7615 = vrot.slane %v7581, %v7614
        %v7616 = vlaneseq
        %v7617 = vshrl.u32 %v7616, 7
        %v7618 = vsub.s32 1, %v7617
        %v7619 = vrot.slane %v7581, %v7618
        %v7622 = vadd.f32 %v7609, %v7615
        %v7623 = vadd.f32 %v7610, %v7619
        %v7624 = vpack.c.bf16 %v7622, %v7622
        %v7625 = vpack.c.bf16 %v7623, %v7623
        %s7626 = scalar_lea.vmem [#allocation5], 1536
        %v7627 = vld [vmem:[%s7626] sm:$0xff]
        %v7628 = vld [vmem:[%s7626 + $0x8] sm:$0xff]
        %v7629 = vld [vmem:[%s7626 + $0x10] sm:$0xff]
        %v7630 = vld [vmem:[%s7626 + $0x18] sm:$0xff]
        %v7631 = vld [vmem:[%s7626 + $0x20] sm:$0xff]
        %v7632 = vld [vmem:[%s7626 + $0x28] sm:$0xff]
        %v7633 = vld [vmem:[%s7626 + $0x30] sm:$0xff]
        %v7634 = vld [vmem:[%s7626 + $0x38] sm:$0xff]
        %v7635 = vld [vmem:[%s7626 + $0x40] sm:$0xff]
        %v7636 = vld [vmem:[%s7626 + $0x48] sm:$0xff]
        %v7637 = vld [vmem:[%s7626 + $0x50] sm:$0xff]
        %v7638 = vld [vmem:[%s7626 + $0x58] sm:$0xff]
        %v7639 = vld [vmem:[%s7626 + $0x60] sm:$0xff]
        %v7640 = vld [vmem:[%s7626 + $0x68] sm:$0xff]
        %v7641 = vld [vmem:[%s7626 + $0x70] sm:$0xff]
        %v7642 = vld [vmem:[%s7626 + $0x78] sm:$0xff]
        %v7643 = vld [vmem:[%s7626 + $0x80] sm:$0xff]
        %v7644 = vld [vmem:[%s7626 + $0x88] sm:$0xff]
        %v7645 = vld [vmem:[%s7626 + $0x90] sm:$0xff]
        %v7646 = vld [vmem:[%s7626 + $0x98] sm:$0xff]
        %v7647 = vld [vmem:[%s7626 + $0xa0] sm:$0xff]
        %v7648 = vld [vmem:[%s7626 + $0xa8] sm:$0xff]
        %v7649 = vld [vmem:[%s7626 + $0xb0] sm:$0xff]
        %v7650 = vld [vmem:[%s7626 + $0xb8] sm:$0xff]
        %v7651 = vld [vmem:[%s7626 + $0xc0] sm:$0xff]
        %v7652 = vld [vmem:[%s7626 + $0xc8] sm:$0xff]
        %v7653 = vld [vmem:[%s7626 + $0xd0] sm:$0xff]
        %v7654 = vld [vmem:[%s7626 + $0xd8] sm:$0xff]
        %v7655 = vld [vmem:[%s7626 + $0xe0] sm:$0xff]
        %v7656 = vld [vmem:[%s7626 + $0xe8] sm:$0xff]
        %v7657 = vld [vmem:[%s7626 + $0xf0] sm:$0xff]
        %v7658 = vld [vmem:[%s7626 + $0xf8] sm:$0xff]
        %v7659 = vld [vmem:[%s7626 + $0x100] sm:$0xff]
        %v7660 = vld [vmem:[%s7626 + $0x108] sm:$0xff]
        %v7661 = vld [vmem:[%s7626 + $0x110] sm:$0xff]
        %v7662 = vld [vmem:[%s7626 + $0x118] sm:$0xff]
        %v7663 = vld [vmem:[%s7626 + $0x120] sm:$0xff]
        %v7664 = vld [vmem:[%s7626 + $0x128] sm:$0xff]
        %v7665 = vld [vmem:[%s7626 + $0x130] sm:$0xff]
        %v7666 = vld [vmem:[%s7626 + $0x138] sm:$0xff]
        %v7667 = vld [vmem:[%s7626 + $0x140] sm:$0xff]
        %v7668 = vld [vmem:[%s7626 + $0x148] sm:$0xff]
        %v7669 = vld [vmem:[%s7626 + $0x150] sm:$0xff]
        %v7670 = vld [vmem:[%s7626 + $0x158] sm:$0xff]
        %v7671 = vld [vmem:[%s7626 + $0x160] sm:$0xff]
        %v7672 = vld [vmem:[%s7626 + $0x168] sm:$0xff]
        %v7673 = vld [vmem:[%s7626 + $0x170] sm:$0xff]
        %v7674 = vld [vmem:[%s7626 + $0x178] sm:$0xff]
        %v7675 = vld [vmem:[%s7626 + $0x180] sm:$0xff]
        %v7676 = vld [vmem:[%s7626 + $0x188] sm:$0xff]
        %v7677 = vld [vmem:[%s7626 + $0x190] sm:$0xff]
        %v7678 = vld [vmem:[%s7626 + $0x198] sm:$0xff]
        %v7679 = vld [vmem:[%s7626 + $0x1a0] sm:$0xff]
        %v7680 = vld [vmem:[%s7626 + $0x1a8] sm:$0xff]
        %v7681 = vld [vmem:[%s7626 + $0x1b0] sm:$0xff]
        %v7682 = vld [vmem:[%s7626 + $0x1b8] sm:$0xff]
        %v7683 = vld [vmem:[%s7626 + $0x1c0] sm:$0xff]
        %v7684 = vld [vmem:[%s7626 + $0x1c8] sm:$0xff]
        %v7685 = vld [vmem:[%s7626 + $0x1d0] sm:$0xff]
        %v7686 = vld [vmem:[%s7626 + $0x1d8] sm:$0xff]
        %v7687 = vld [vmem:[%s7626 + $0x1e0] sm:$0xff]
        %v7688 = vld [vmem:[%s7626 + $0x1e8] sm:$0xff]
        %v7689 = vld [vmem:[%s7626 + $0x1f0] sm:$0xff]
        %v7690 = vld [vmem:[%s7626 + $0x1f8] sm:$0xff]
        %v7691 = vld [vmem:[%s7626 + $0x200] sm:$0xff]
        %v7692 = vld [vmem:[%s7626 + $0x208] sm:$0xff]
        %v7693 = vld [vmem:[%s7626 + $0x210] sm:$0xff]
        %v7694 = vld [vmem:[%s7626 + $0x218] sm:$0xff]
        %v7695 = vld [vmem:[%s7626 + $0x220] sm:$0xff]
        %v7696 = vld [vmem:[%s7626 + $0x228] sm:$0xff]
        %v7697 = vld [vmem:[%s7626 + $0x230] sm:$0xff]
        %v7698 = vld [vmem:[%s7626 + $0x238] sm:$0xff]
        %v7699 = vld [vmem:[%s7626 + $0x240] sm:$0xff]
        %v7700 = vld [vmem:[%s7626 + $0x248] sm:$0xff]
        %v7701 = vld [vmem:[%s7626 + $0x250] sm:$0xff]
        %v7702 = vld [vmem:[%s7626 + $0x258] sm:$0xff]
        %v7703 = vld [vmem:[%s7626 + $0x260] sm:$0xff]
        %v7704 = vld [vmem:[%s7626 + $0x268] sm:$0xff]
        %v7705 = vld [vmem:[%s7626 + $0x270] sm:$0xff]
        %v7706 = vld [vmem:[%s7626 + $0x278] sm:$0xff]
        %v7707 = vld [vmem:[%s7626 + $0x280] sm:$0xff]
        %v7708 = vld [vmem:[%s7626 + $0x288] sm:$0xff]
        %v7709 = vld [vmem:[%s7626 + $0x290] sm:$0xff]
        %v7710 = vld [vmem:[%s7626 + $0x298] sm:$0xff]
        %v7711 = vld [vmem:[%s7626 + $0x2a0] sm:$0xff]
        %v7712 = vld [vmem:[%s7626 + $0x2a8] sm:$0xff]
        %v7713 = vld [vmem:[%s7626 + $0x2b0] sm:$0xff]
        %v7714 = vld [vmem:[%s7626 + $0x2b8] sm:$0xff]
        %v7715 = vld [vmem:[%s7626 + $0x2c0] sm:$0xff]
        %v7716 = vld [vmem:[%s7626 + $0x2c8] sm:$0xff]
        %v7717 = vld [vmem:[%s7626 + $0x2d0] sm:$0xff]
        %v7718 = vld [vmem:[%s7626 + $0x2d8] sm:$0xff]
        %v7719 = vld [vmem:[%s7626 + $0x2e0] sm:$0xff]
        %v7720 = vld [vmem:[%s7626 + $0x2e8] sm:$0xff]
        %v7721 = vld [vmem:[%s7626 + $0x2f0] sm:$0xff]
        %v7722 = vld [vmem:[%s7626 + $0x2f8] sm:$0xff]
        %s7723 = scalar_lea.vmem [#allocation7], 12
        %v7724 = vld [vmem:[%s7723] sm:$0x3f]
        %v7726 = vlaneseq
        %v7727 = vshrl.u32 %v7726, 7
        %v7728 = vsub.s32 0, %v7727
        %v7729 = vrot.slane %v7724, %v7728
        %v7730 = vlaneseq
        %v7731 = vshrl.u32 %v7730, 7
        %v7732 = vsub.s32 1, %v7731
        %v7733 = vrot.slane %v7724, %v7732
        %v7734 = vlaneseq
        %v7735 = vshrl.u32 %v7734, 7
        %v7736 = vsub.s32 2, %v7735
        %v7737 = vrot.slane %v7724, %v7736
        %v7738 = vlaneseq
        %v7739 = vshrl.u32 %v7738, 7
        %v7740 = vsub.s32 3, %v7739
        %v7741 = vrot.slane %v7724, %v7740
        %v7742 = vlaneseq
        %v7743 = vshrl.u32 %v7742, 7
        %v7744 = vsub.s32 4, %v7743
        %v7745 = vrot.slane %v7724, %v7744
        %v7746 = vlaneseq
        %v7747 = vshrl.u32 %v7746, 7
        %v7748 = vsub.s32 5, %v7747
        %v7749 = vrot.slane %v7724, %v7748
        %v7852 = vunpack.c.l.b16 %v7627
        %v7853 = vunpack.c.h.b16 %v7627
        %v7854 = vunpack.c.l.b16 %v7628
        %v7855 = vunpack.c.h.b16 %v7628
        %v7856 = vunpack.c.l.b16 %v7629
        %v7857 = vunpack.c.h.b16 %v7629
        %v7858 = vunpack.c.l.b16 %v7630
        %v7859 = vunpack.c.h.b16 %v7630
        %v7860 = vunpack.c.l.b16 %v7631
        %v7861 = vunpack.c.h.b16 %v7631
        %v7862 = vunpack.c.l.b16 %v7632
        %v7863 = vunpack.c.h.b16 %v7632
        %v7864 = vunpack.c.l.b16 %v7633
        %v7865 = vunpack.c.h.b16 %v7633
        %v7866 = vunpack.c.l.b16 %v7634
        %v7867 = vunpack.c.h.b16 %v7634
        %v7868 = vunpack.c.l.b16 %v7635
        %v7869 = vunpack.c.h.b16 %v7635
        %v7870 = vunpack.c.l.b16 %v7636
        %v7871 = vunpack.c.h.b16 %v7636
        %v7872 = vunpack.c.l.b16 %v7637
        %v7873 = vunpack.c.h.b16 %v7637
        %v7874 = vunpack.c.l.b16 %v7638
        %v7875 = vunpack.c.h.b16 %v7638
        %v7876 = vunpack.c.l.b16 %v7639
        %v7877 = vunpack.c.h.b16 %v7639
        %v7878 = vunpack.c.l.b16 %v7640
        %v7879 = vunpack.c.h.b16 %v7640
        %v7880 = vunpack.c.l.b16 %v7641
        %v7881 = vunpack.c.h.b16 %v7641
        %v7882 = vunpack.c.l.b16 %v7642
        %v7883 = vunpack.c.h.b16 %v7642
        %v7884 = vunpack.c.l.b16 %v7643
        %v7885 = vunpack.c.h.b16 %v7643
        %v7886 = vunpack.c.l.b16 %v7644
        %v7887 = vunpack.c.h.b16 %v7644
        %v7888 = vunpack.c.l.b16 %v7645
        %v7889 = vunpack.c.h.b16 %v7645
        %v7890 = vunpack.c.l.b16 %v7646
        %v7891 = vunpack.c.h.b16 %v7646
        %v7892 = vunpack.c.l.b16 %v7647
        %v7893 = vunpack.c.h.b16 %v7647
        %v7894 = vunpack.c.l.b16 %v7648
        %v7895 = vunpack.c.h.b16 %v7648
        %v7896 = vunpack.c.l.b16 %v7649
        %v7897 = vunpack.c.h.b16 %v7649
        %v7898 = vunpack.c.l.b16 %v7650
        %v7899 = vunpack.c.h.b16 %v7650
        %v7900 = vunpack.c.l.b16 %v7651
        %v7901 = vunpack.c.h.b16 %v7651
        %v7902 = vunpack.c.l.b16 %v7652
        %v7903 = vunpack.c.h.b16 %v7652
        %v7904 = vunpack.c.l.b16 %v7653
        %v7905 = vunpack.c.h.b16 %v7653
        %v7906 = vunpack.c.l.b16 %v7654
        %v7907 = vunpack.c.h.b16 %v7654
        %v7908 = vunpack.c.l.b16 %v7655
        %v7909 = vunpack.c.h.b16 %v7655
        %v7910 = vunpack.c.l.b16 %v7656
        %v7911 = vunpack.c.h.b16 %v7656
        %v7912 = vunpack.c.l.b16 %v7657
        %v7913 = vunpack.c.h.b16 %v7657
        %v7914 = vunpack.c.l.b16 %v7658
        %v7915 = vunpack.c.h.b16 %v7658
        %v7916 = vunpack.c.l.b16 %v7659
        %v7917 = vunpack.c.h.b16 %v7659
        %v7918 = vunpack.c.l.b16 %v7660
        %v7919 = vunpack.c.h.b16 %v7660
        %v7920 = vunpack.c.l.b16 %v7661
        %v7921 = vunpack.c.h.b16 %v7661
        %v7922 = vunpack.c.l.b16 %v7662
        %v7923 = vunpack.c.h.b16 %v7662
        %v7924 = vunpack.c.l.b16 %v7663
        %v7925 = vunpack.c.h.b16 %v7663
        %v7926 = vunpack.c.l.b16 %v7664
        %v7927 = vunpack.c.h.b16 %v7664
        %v7928 = vunpack.c.l.b16 %v7665
        %v7929 = vunpack.c.h.b16 %v7665
        %v7930 = vunpack.c.l.b16 %v7666
        %v7931 = vunpack.c.h.b16 %v7666
        %v7932 = vunpack.c.l.b16 %v7667
        %v7933 = vunpack.c.h.b16 %v7667
        %v7934 = vunpack.c.l.b16 %v7668
        %v7935 = vunpack.c.h.b16 %v7668
        %v7936 = vunpack.c.l.b16 %v7669
        %v7937 = vunpack.c.h.b16 %v7669
        %v7938 = vunpack.c.l.b16 %v7670
        %v7939 = vunpack.c.h.b16 %v7670
        %v7940 = vunpack.c.l.b16 %v7671
        %v7941 = vunpack.c.h.b16 %v7671
        %v7942 = vunpack.c.l.b16 %v7672
        %v7943 = vunpack.c.h.b16 %v7672
        %v7944 = vunpack.c.l.b16 %v7673
        %v7945 = vunpack.c.h.b16 %v7673
        %v7946 = vunpack.c.l.b16 %v7674
        %v7947 = vunpack.c.h.b16 %v7674
        %v7948 = vunpack.c.l.b16 %v7675
        %v7949 = vunpack.c.h.b16 %v7675
        %v7950 = vunpack.c.l.b16 %v7676
        %v7951 = vunpack.c.h.b16 %v7676
        %v7952 = vunpack.c.l.b16 %v7677
        %v7953 = vunpack.c.h.b16 %v7677
        %v7954 = vunpack.c.l.b16 %v7678
        %v7955 = vunpack.c.h.b16 %v7678
        %v7956 = vunpack.c.l.b16 %v7679
        %v7957 = vunpack.c.h.b16 %v7679
        %v7958 = vunpack.c.l.b16 %v7680
        %v7959 = vunpack.c.h.b16 %v7680
        %v7960 = vunpack.c.l.b16 %v7681
        %v7961 = vunpack.c.h.b16 %v7681
        %v7962 = vunpack.c.l.b16 %v7682
        %v7963 = vunpack.c.h.b16 %v7682
        %v7964 = vunpack.c.l.b16 %v7683
        %v7965 = vunpack.c.h.b16 %v7683
        %v7966 = vunpack.c.l.b16 %v7684
        %v7967 = vunpack.c.h.b16 %v7684
        %v7968 = vunpack.c.l.b16 %v7685
        %v7969 = vunpack.c.h.b16 %v7685
        %v7970 = vunpack.c.l.b16 %v7686
        %v7971 = vunpack.c.h.b16 %v7686
        %v7972 = vunpack.c.l.b16 %v7687
        %v7973 = vunpack.c.h.b16 %v7687
        %v7974 = vunpack.c.l.b16 %v7688
        %v7975 = vunpack.c.h.b16 %v7688
        %v7976 = vunpack.c.l.b16 %v7689
        %v7977 = vunpack.c.h.b16 %v7689
        %v7978 = vunpack.c.l.b16 %v7690
        %v7979 = vunpack.c.h.b16 %v7690
        %v7980 = vunpack.c.l.b16 %v7691
        %v7981 = vunpack.c.h.b16 %v7691
        %v7982 = vunpack.c.l.b16 %v7692
        %v7983 = vunpack.c.h.b16 %v7692
        %v7984 = vunpack.c.l.b16 %v7693
        %v7985 = vunpack.c.h.b16 %v7693
        %v7986 = vunpack.c.l.b16 %v7694
        %v7987 = vunpack.c.h.b16 %v7694
        %v7988 = vunpack.c.l.b16 %v7695
        %v7989 = vunpack.c.h.b16 %v7695
        %v7990 = vunpack.c.l.b16 %v7696
        %v7991 = vunpack.c.h.b16 %v7696
        %v7992 = vunpack.c.l.b16 %v7697
        %v7993 = vunpack.c.h.b16 %v7697
        %v7994 = vunpack.c.l.b16 %v7698
        %v7995 = vunpack.c.h.b16 %v7698
        %v7996 = vunpack.c.l.b16 %v7699
        %v7997 = vunpack.c.h.b16 %v7699
        %v7998 = vunpack.c.l.b16 %v7700
        %v7999 = vunpack.c.h.b16 %v7700
        %v8000 = vunpack.c.l.b16 %v7701
        %v8001 = vunpack.c.h.b16 %v7701
        %v8002 = vunpack.c.l.b16 %v7702
        %v8003 = vunpack.c.h.b16 %v7702
        %v8004 = vunpack.c.l.b16 %v7703
        %v8005 = vunpack.c.h.b16 %v7703
        %v8006 = vunpack.c.l.b16 %v7704
        %v8007 = vunpack.c.h.b16 %v7704
        %v8008 = vunpack.c.l.b16 %v7705
        %v8009 = vunpack.c.h.b16 %v7705
        %v8010 = vunpack.c.l.b16 %v7706
        %v8011 = vunpack.c.h.b16 %v7706
        %v8012 = vunpack.c.l.b16 %v7707
        %v8013 = vunpack.c.h.b16 %v7707
        %v8014 = vunpack.c.l.b16 %v7708
        %v8015 = vunpack.c.h.b16 %v7708
        %v8016 = vunpack.c.l.b16 %v7709
        %v8017 = vunpack.c.h.b16 %v7709
        %v8018 = vunpack.c.l.b16 %v7710
        %v8019 = vunpack.c.h.b16 %v7710
        %v8020 = vunpack.c.l.b16 %v7711
        %v8021 = vunpack.c.h.b16 %v7711
        %v8022 = vunpack.c.l.b16 %v7712
        %v8023 = vunpack.c.h.b16 %v7712
        %v8024 = vunpack.c.l.b16 %v7713
        %v8025 = vunpack.c.h.b16 %v7713
        %v8026 = vunpack.c.l.b16 %v7714
        %v8027 = vunpack.c.h.b16 %v7714
        %v8028 = vunpack.c.l.b16 %v7715
        %v8029 = vunpack.c.h.b16 %v7715
        %v8030 = vunpack.c.l.b16 %v7716
        %v8031 = vunpack.c.h.b16 %v7716
        %v8032 = vunpack.c.l.b16 %v7717
        %v8033 = vunpack.c.h.b16 %v7717
        %v8034 = vunpack.c.l.b16 %v7718
        %v8035 = vunpack.c.h.b16 %v7718
        %v8036 = vunpack.c.l.b16 %v7719
        %v8037 = vunpack.c.h.b16 %v7719
        %v8038 = vunpack.c.l.b16 %v7720
        %v8039 = vunpack.c.h.b16 %v7720
        %v8040 = vunpack.c.l.b16 %v7721
        %v8041 = vunpack.c.h.b16 %v7721
        %v8042 = vunpack.c.l.b16 %v7722
        %v8043 = vunpack.c.h.b16 %v7722
        %v8044 = vpack.c.b16 %v7858, %v7852
        %v8045 = vpack.c.b16 %v7859, %v7853
        %v8046 = vpack.c.b16 %v7860, %v7854
        %v8047 = vpack.c.b16 %v7861, %v7855
        %v8048 = vpack.c.b16 %v7862, %v7856
        %v8049 = vpack.c.b16 %v7863, %v7857
        %v8050 = vpack.c.b16 %v7870, %v7864
        %v8051 = vpack.c.b16 %v7871, %v7865
        %v8052 = vpack.c.b16 %v7872, %v7866
        %v8053 = vpack.c.b16 %v7873, %v7867
        %v8054 = vpack.c.b16 %v7874, %v7868
        %v8055 = vpack.c.b16 %v7875, %v7869
        %v8056 = vpack.c.b16 %v7882, %v7876
        %v8057 = vpack.c.b16 %v7883, %v7877
        %v8058 = vpack.c.b16 %v7884, %v7878
        %v8059 = vpack.c.b16 %v7885, %v7879
        %v8060 = vpack.c.b16 %v7886, %v7880
        %v8061 = vpack.c.b16 %v7887, %v7881
        %v8062 = vpack.c.b16 %v7894, %v7888
        %v8063 = vpack.c.b16 %v7895, %v7889
        %v8064 = vpack.c.b16 %v7896, %v7890
        %v8065 = vpack.c.b16 %v7897, %v7891
        %v8066 = vpack.c.b16 %v7898, %v7892
        %v8067 = vpack.c.b16 %v7899, %v7893
        %v8068 = vpack.c.b16 %v7906, %v7900
        %v8069 = vpack.c.b16 %v7907, %v7901
        %v8070 = vpack.c.b16 %v7908, %v7902
        %v8071 = vpack.c.b16 %v7909, %v7903
        %v8072 = vpack.c.b16 %v7910, %v7904
        %v8073 = vpack.c.b16 %v7911, %v7905
        %v8074 = vpack.c.b16 %v7918, %v7912
        %v8075 = vpack.c.b16 %v7919, %v7913
        %v8076 = vpack.c.b16 %v7920, %v7914
        %v8077 = vpack.c.b16 %v7921, %v7915
        %v8078 = vpack.c.b16 %v7922, %v7916
        %v8079 = vpack.c.b16 %v7923, %v7917
        %v8080 = vpack.c.b16 %v7930, %v7924
        %v8081 = vpack.c.b16 %v7931, %v7925
        %v8082 = vpack.c.b16 %v7932, %v7926
        %v8083 = vpack.c.b16 %v7933, %v7927
        %v8084 = vpack.c.b16 %v7934, %v7928
        %v8085 = vpack.c.b16 %v7935, %v7929
        %v8086 = vpack.c.b16 %v7942, %v7936
        %v8087 = vpack.c.b16 %v7943, %v7937
        %v8088 = vpack.c.b16 %v7944, %v7938
        %v8089 = vpack.c.b16 %v7945, %v7939
        %v8090 = vpack.c.b16 %v7946, %v7940
        %v8091 = vpack.c.b16 %v7947, %v7941
        %v8092 = vpack.c.b16 %v7954, %v7948
        %v8093 = vpack.c.b16 %v7955, %v7949
        %v8094 = vpack.c.b16 %v7956, %v7950
        %v8095 = vpack.c.b16 %v7957, %v7951
        %v8096 = vpack.c.b16 %v7958, %v7952
        %v8097 = vpack.c.b16 %v7959, %v7953
        %v8098 = vpack.c.b16 %v7966, %v7960
        %v8099 = vpack.c.b16 %v7967, %v7961
        %v8100 = vpack.c.b16 %v7968, %v7962
        %v8101 = vpack.c.b16 %v7969, %v7963
        %v8102 = vpack.c.b16 %v7970, %v7964
        %v8103 = vpack.c.b16 %v7971, %v7965
        %v8104 = vpack.c.b16 %v7978, %v7972
        %v8105 = vpack.c.b16 %v7979, %v7973
        %v8106 = vpack.c.b16 %v7980, %v7974
        %v8107 = vpack.c.b16 %v7981, %v7975
        %v8108 = vpack.c.b16 %v7982, %v7976
        %v8109 = vpack.c.b16 %v7983, %v7977
        %v8110 = vpack.c.b16 %v7990, %v7984
        %v8111 = vpack.c.b16 %v7991, %v7985
        %v8112 = vpack.c.b16 %v7992, %v7986
        %v8113 = vpack.c.b16 %v7993, %v7987
        %v8114 = vpack.c.b16 %v7994, %v7988
        %v8115 = vpack.c.b16 %v7995, %v7989
        %v8116 = vpack.c.b16 %v8002, %v7996
        %v8117 = vpack.c.b16 %v8003, %v7997
        %v8118 = vpack.c.b16 %v8004, %v7998
        %v8119 = vpack.c.b16 %v8005, %v7999
        %v8120 = vpack.c.b16 %v8006, %v8000
        %v8121 = vpack.c.b16 %v8007, %v8001
        %v8122 = vpack.c.b16 %v8014, %v8008
        %v8123 = vpack.c.b16 %v8015, %v8009
        %v8124 = vpack.c.b16 %v8016, %v8010
        %v8125 = vpack.c.b16 %v8017, %v8011
        %v8126 = vpack.c.b16 %v8018, %v8012
        %v8127 = vpack.c.b16 %v8019, %v8013
        %v8128 = vpack.c.b16 %v8026, %v8020
        %v8129 = vpack.c.b16 %v8027, %v8021
        %v8130 = vpack.c.b16 %v8028, %v8022
        %v8131 = vpack.c.b16 %v8029, %v8023
        %v8132 = vpack.c.b16 %v8030, %v8024
        %v8133 = vpack.c.b16 %v8031, %v8025
        %v8134 = vpack.c.b16 %v8038, %v8032
        %v8135 = vpack.c.b16 %v8039, %v8033
        %v8136 = vpack.c.b16 %v8040, %v8034
        %v8137 = vpack.c.b16 %v8041, %v8035
        %v8138 = vpack.c.b16 %v8042, %v8036
        %v8139 = vpack.c.b16 %v8043, %v8037
        %8236 = vmatprep.subr.bf16.mxu0 %v8045
        %8237 = vmatpush1.bf16.msra.mxu0 %v8044
        %8238 = vmatprep.subr.bf16.mxu0 %v8051
        %8239 = vmatpush1.bf16.msra.mxu0 %v8050
        %8240 = vmatprep.subr.bf16.mxu0 %v8057
        %8241 = vmatpush1.bf16.msra.mxu0 %v8056
        %8242 = vmatprep.subr.bf16.mxu0 %v8063
        %8243 = vmatpush1.bf16.msra.mxu0 %v8062
        %8244 = vmatprep.subr.bf16.mxu0 %v8069
        %8245 = vmatpush1.bf16.msra.mxu0 %v8068
        %8246 = vmatprep.subr.bf16.mxu0 %v8075
        %8247 = vmatpush1.bf16.msra.mxu0 %v8074
        %8248 = vmatprep.subr.bf16.mxu0 %v8081
        %8249 = vmatpush1.bf16.msra.mxu0 %v8080
        %8250 = vmatprep.subr.bf16.mxu0 %v8087
        %8251 = vmatpush1.bf16.msra.mxu0 %v8086
        %8252 = vmatprep.subr.bf16.mxu0 %v8093
        %8253 = vmatpush1.bf16.msra.mxu0 %v8092
        %8254 = vmatprep.subr.bf16.mxu0 %v8099
        %8255 = vmatpush1.bf16.msra.mxu0 %v8098
        %8256 = vmatprep.subr.bf16.mxu0 %v8105
        %8257 = vmatpush1.bf16.msra.mxu0 %v8104
        %8258 = vmatprep.subr.bf16.mxu0 %v8111
        %8259 = vmatpush1.bf16.msra.mxu0 %v8110
        %8260 = vmatprep.subr.bf16.mxu0 %v8117
        %8261 = vmatpush1.bf16.msra.mxu0 %v8116
        %8262 = vmatprep.subr.bf16.mxu0 %v8123
        %8263 = vmatpush1.bf16.msra.mxu0 %v8122
        %8264 = vmatprep.subr.bf16.mxu0 %v8129
        %8265 = vmatpush1.bf16.msra.mxu0 %v8128
        %8266 = vmatprep.subr.bf16.mxu0 %v8135
        %8267 = vmatpush1.bf16.msra.mxu0 %v8134
        %8268 = vmatprep.mubr.bf16.mxu0 %v7625
        %8269 = vmatmul.mubr.bf16.gmra.mrb[0].mxu0 %v7624
        %v8270 = vpop.f32.mrb[0].mxu0
        %v8271 = vadd.f32 %v7729, %v8270
        %v8272 = vpop.f32.mrb[0].mxu0
        %v8273 = vadd.f32 %v7733, %v8272
        %v8274 = vpop.f32.mrb[0].mxu0
        %v8275 = vpop.f32.mrb[0].mxu0
        %8276 = vdwg.mxu0
        %8277 = vmatprep.subr.bf16.mxu0 %v8047
        %8278 = vmatpush1.bf16.msra.mxu0 %v8046
        %8279 = vmatprep.subr.bf16.mxu0 %v8053
        %8280 = vmatpush1.bf16.msra.mxu0 %v8052
        %8281 = vmatprep.subr.bf16.mxu0 %v8059
        %8282 = vmatpush1.bf16.msra.mxu0 %v8058
        %8283 = vmatprep.subr.bf16.mxu0 %v8065
        %8284 = vmatpush1.bf16.msra.mxu0 %v8064
        %8285 = vmatprep.subr.bf16.mxu0 %v8071
        %8286 = vmatpush1.bf16.msra.mxu0 %v8070
        %8287 = vmatprep.subr.bf16.mxu0 %v8077
        %8288 = vmatpush1.bf16.msra.mxu0 %v8076
        %8289 = vmatprep.subr.bf16.mxu0 %v8083
        %8290 = vmatpush1.bf16.msra.mxu0 %v8082
        %8291 = vmatprep.subr.bf16.mxu0 %v8089
        %8292 = vmatpush1.bf16.msra.mxu0 %v8088
        %8293 = vmatprep.subr.bf16.mxu0 %v8095
        %8294 = vmatpush1.bf16.msra.mxu0 %v8094
        %8295 = vmatprep.subr.bf16.mxu0 %v8101
        %8296 = vmatpush1.bf16.msra.mxu0 %v8100
        %8297 = vmatprep.subr.bf16.mxu0 %v8107
        %8298 = vmatpush1.bf16.msra.mxu0 %v8106
        %8299 = vmatprep.subr.bf16.mxu0 %v8113
        %8300 = vmatpush1.bf16.msra.mxu0 %v8112
        %8301 = vmatprep.subr.bf16.mxu0 %v8119
        %8302 = vmatpush1.bf16.msra.mxu0 %v8118
        %8303 = vmatprep.subr.bf16.mxu0 %v8125
        %8304 = vmatpush1.bf16.msra.mxu0 %v8124
        %8305 = vmatprep.subr.bf16.mxu0 %v8131
        %8306 = vmatpush1.bf16.msra.mxu0 %v8130
        %8307 = vmatprep.subr.bf16.mxu0 %v8137
        %8308 = vmatpush1.bf16.msra.mxu0 %v8136
        %8309 = vmatprep.mubr.bf16.mxu0 %v7625
        %8310 = vmatmul.mubr.bf16.gmra.mrb[0].mxu0 %v7624
        %v8311 = vpop.f32.mrb[0].mxu0
        %v8312 = vadd.f32 %v7737, %v8311
        %v8313 = vpop.f32.mrb[0].mxu0
        %v8314 = vadd.f32 %v7741, %v8313
        %v8315 = vpop.f32.mrb[0].mxu0
        %v8316 = vpop.f32.mrb[0].mxu0
        %8317 = vdwg.mxu0
        %8318 = vmatprep.subr.bf16.mxu0 %v8049
        %8319 = vmatpush1.bf16.msra.mxu0 %v8048
        %8320 = vmatprep.subr.bf16.mxu0 %v8055
        %8321 = vmatpush1.bf16.msra.mxu0 %v8054
        %8322 = vmatprep.subr.bf16.mxu0 %v8061
        %8323 = vmatpush1.bf16.msra.mxu0 %v8060
        %8324 = vmatprep.subr.bf16.mxu0 %v8067
        %8325 = vmatpush1.bf16.msra.mxu0 %v8066
        %8326 = vmatprep.subr.bf16.mxu0 %v8073
        %8327 = vmatpush1.bf16.msra.mxu0 %v8072
        %8328 = vmatprep.subr.bf16.mxu0 %v8079
        %8329 = vmatpush1.bf16.msra.mxu0 %v8078
        %8330 = vmatprep.subr.bf16.mxu0 %v8085
        %8331 = vmatpush1.bf16.msra.mxu0 %v8084
        %8332 = vmatprep.subr.bf16.mxu0 %v8091
        %8333 = vmatpush1.bf16.msra.mxu0 %v8090
        %8334 = vmatprep.subr.bf16.mxu0 %v8097
        %8335 = vmatpush1.bf16.msra.mxu0 %v8096
        %8336 = vmatprep.subr.bf16.mxu0 %v8103
        %8337 = vmatpush1.bf16.msra.mxu0 %v8102
        %8338 = vmatprep.subr.bf16.mxu0 %v8109
        %8339 = vmatpush1.bf16.msra.mxu0 %v8108
        %8340 = vmatprep.subr.bf16.mxu0 %v8115
        %8341 = vmatpush1.bf16.msra.mxu0 %v8114
        %8342 = vmatprep.subr.bf16.mxu0 %v8121
        %8343 = vmatpush1.bf16.msra.mxu0 %v8120
        %8344 = vmatprep.subr.bf16.mxu0 %v8127
        %8345 = vmatpush1.bf16.msra.mxu0 %v8126
        %8346 = vmatprep.subr.bf16.mxu0 %v8133
        %8347 = vmatpush1.bf16.msra.mxu0 %v8132
        %8348 = vmatprep.subr.bf16.mxu0 %v8139
        %8349 = vmatpush1.bf16.msra.mxu0 %v8138
        %8350 = vmatprep.mubr.bf16.mxu0 %v7625
        %8351 = vmatmul.mubr.bf16.gmra.mrb[0].mxu0 %v7624
        %v8352 = vpop.f32.mrb[0].mxu0
        %v8353 = vadd.f32 %v7745, %v8352
        %v8354 = vpop.f32.mrb[0].mxu0
        %v8355 = vadd.f32 %v7749, %v8354
        %v8356 = vpop.f32.mrb[0].mxu0
        %v8357 = vpop.f32.mrb[0].mxu0
        %8358 = vdwg.mxu0
        %v8359 = vpack.c.bf16 %v8271, %v8271
        %v8360 = vpack.c.bf16 %v8312, %v8312
        %v8361 = vpack.c.bf16 %v8353, %v8353
        %v8363 = vsel %vm1370, %v8359, 0
        %v8366 = vsel %vm1370, %v8360, 0
        %8368 = vmatprep.subr.bf16.mxu0 0
        %8369 = vmatpush1.bf16.xpose.msra.mxu0 %v8366
        %8370 = vmatprep.subr.bf16.mxu0 0
        %8371 = vmatpush1.bf16.xpose.msra.mxu0 0
        %8372 = vmatprep.subr.bf16.mxu0 0
        %8373 = vmatpush1.bf16.xpose.msra.mxu0 0
        %8374 = vmatprep.subr.bf16.mxu0 0
        %8375 = vmatpush1.bf16.xpose.msra.mxu0 0
        %8376 = vmatprep.subr.bf16.mxu0 0
        %8377 = vmatpush1.bf16.xpose.msra.mxu0 0
        %8378 = vmatprep.subr.bf16.mxu0 0
        %8379 = vmatpush1.bf16.xpose.msra.mxu0 0
        %8380 = vmatprep.subr.bf16.mxu0 0
        %8381 = vmatpush1.bf16.xpose.msra.mxu0 0
        %8382 = vmatprep.subr.bf16.mxu0 0
        %8383 = vmatpush1.bf16.xpose.msra.mxu0 0
        %8384 = vmatprep.subr.bf16.mxu0 0
        %8385 = vmatpush1.bf16.xpose.msra.mxu0 0
        %8386 = vmatprep.subr.bf16.mxu0 0
        %8387 = vmatpush1.bf16.xpose.msra.mxu0 0
        %8388 = vmatprep.subr.bf16.mxu0 0
        %8389 = vmatpush1.bf16.xpose.msra.mxu0 0
        %8390 = vmatprep.subr.bf16.mxu0 0
        %8391 = vmatpush1.bf16.xpose.msra.mxu0 0
        %8392 = vmatprep.subr.bf16.mxu0 0
        %8393 = vmatpush1.bf16.xpose.msra.mxu0 0
        %8394 = vmatprep.subr.bf16.mxu0 0
        %8395 = vmatpush1.bf16.xpose.msra.mxu0 0
        %8396 = vmatprep.subr.bf16.mxu0 0
        %8397 = vmatpush1.bf16.xpose.msra.mxu0 0
        %8398 = vmatprep.subr.bf16.mxu0 0
        %8399 = vmatpush1.bf16.xpose.msra.mxu0 0
        %8400 = vmatprep.mubr.bf16.mxu0 0
        %8401 = vmatmul.mubr.bf16.gmra.mrb[0].mxu0 %v8363
        %v8402 = vpop.f32.mrb[0].mxu0
        %v8403 = vadd.f32 0.0, %v8402
        %v8404 = vpop.f32.mrb[0].mxu0
        %v8405 = vpop.f32.mrb[0].mxu0
        %v8406 = vpop.f32.mrb[0].mxu0
        %8407 = vdwg.mxu0
        %v8408 = vsel %vm1417, %v8403, -inf
        %8409 = vmax.xlane.f32.xlu0 %v8408
        %v8410 = vpop.xlane.xlu0 %8409
        %v8411 = vsub.f32 %v8403, %v8410
        %v8412 = vmul.f32 %v8411, 1.442695
        %v8413 = vpow.pop %v8412
        %v8414 = vsel %vm1417, %v8413, 0.0
        %8415 = vadd.xlane.f32.xlu0 %v8414
        %v8416 = vpop.xlane.xlu0 %8415
        %v8417 = vrcp.pop %v8416
        %v8418 = vmul.f32 %v8413, %v8417
        %v8419 = vpack.c.bf16 %v8418, %v8418
        %v8421 = vsel %vm1417, %v8419, 0
        %v8424 = vsel %vm1433, %v8361, 0
        %8426 = vmatprep.subr.bf16.mxu0 0
        %8427 = vmatpush1.bf16.msra.mxu0 %v8424
        %8428 = vmatprep.subr.bf16.mxu0 0
        %8429 = vmatpush1.bf16.msra.mxu0 0
        %8430 = vmatprep.subr.bf16.mxu0 0
        %8431 = vmatpush1.bf16.msra.mxu0 0
        %8432 = vmatprep.subr.bf16.mxu0 0
        %8433 = vmatpush1.bf16.msra.mxu0 0
        %8434 = vmatprep.subr.bf16.mxu0 0
        %8435 = vmatpush1.bf16.msra.mxu0 0
        %8436 = vmatprep.subr.bf16.mxu0 0
        %8437 = vmatpush1.bf16.msra.mxu0 0
        %8438 = vmatprep.subr.bf16.mxu0 0
        %8439 = vmatpush1.bf16.msra.mxu0 0
        %8440 = vmatprep.subr.bf16.mxu0 0
        %8441 = vmatpush1.bf16.msra.mxu0 0
        %8442 = vmatprep.subr.bf16.mxu0 0
        %8443 = vmatpush1.bf16.msra.mxu0 0
        %8444 = vmatprep.subr.bf16.mxu0 0
        %8445 = vmatpush1.bf16.msra.mxu0 0
        %8446 = vmatprep.subr.bf16.mxu0 0
        %8447 = vmatpush1.bf16.msra.mxu0 0
        %8448 = vmatprep.subr.bf16.mxu0 0
        %8449 = vmatpush1.bf16.msra.mxu0 0
        %8450 = vmatprep.subr.bf16.mxu0 0
        %8451 = vmatpush1.bf16.msra.mxu0 0
        %8452 = vmatprep.subr.bf16.mxu0 0
        %8453 = vmatpush1.bf16.msra.mxu0 0
        %8454 = vmatprep.subr.bf16.mxu0 0
        %8455 = vmatpush1.bf16.msra.mxu0 0
        %8456 = vmatprep.subr.bf16.mxu0 0
        %8457 = vmatpush1.bf16.msra.mxu0 0
        %8458 = vmatprep.mubr.bf16.mxu0 0
        %8459 = vmatmul.mubr.bf16.gmra.mrb[0].mxu0 %v8421
        %v8460 = vpop.f32.mrb[0].mxu0
        %v8461 = vadd.f32 0.0, %v8460
        %v8462 = vpop.f32.mrb[0].mxu0
        %v8463 = vpop.f32.mrb[0].mxu0
        %v8464 = vpop.f32.mrb[0].mxu0
        %8465 = vdwg.mxu0
        %v8466 = vpack.c.bf16 %v8461, %v8461
        %8468 = vrot.lane.b32.xlu0 %v8359, 64
        %v8469 = vpop.permute.xlu0 %8468
        %8471 = vrot.lane.b32.xlu0 %v8360, 64
        %v8472 = vpop.permute.xlu0 %8471
        %v8474 = vsel %vm1370, %v8469, 0
        %v8477 = vsel %vm1370, %v8472, 0
        %8479 = vmatprep.subr.bf16.mxu0 0
        %8480 = vmatpush1.bf16.xpose.msra.mxu0 %v8477
        %8481 = vmatprep.subr.bf16.mxu0 0
        %8482 = vmatpush1.bf16.xpose.msra.mxu0 0
        %8483 = vmatprep.subr.bf16.mxu0 0
        %8484 = vmatpush1.bf16.xpose.msra.mxu0 0
        %8485 = vmatprep.subr.bf16.mxu0 0
        %8486 = vmatpush1.bf16.xpose.msra.mxu0 0
        %8487 = vmatprep.subr.bf16.mxu0 0
        %8488 = vmatpush1.bf16.xpose.msra.mxu0 0
        %8489 = vmatprep.subr.bf16.mxu0 0
        %8490 = vmatpush1.bf16.xpose.msra.mxu0 0
        %8491 = vmatprep.subr.bf16.mxu0 0
        %8492 = vmatpush1.bf16.xpose.msra.mxu0 0
        %8493 = vmatprep.subr.bf16.mxu0 0
        %8494 = vmatpush1.bf16.xpose.msra.mxu0 0
        %8495 = vmatprep.subr.bf16.mxu0 0
        %8496 = vmatpush1.bf16.xpose.msra.mxu0 0
        %8497 = vmatprep.subr.bf16.mxu0 0
        %8498 = vmatpush1.bf16.xpose.msra.mxu0 0
        %8499 = vmatprep.subr.bf16.mxu0 0
        %8500 = vmatpush1.bf16.xpose.msra.mxu0 0
        %8501 = vmatprep.subr.bf16.mxu0 0
        %8502 = vmatpush1.bf16.xpose.msra.mxu0 0
        %8503 = vmatprep.subr.bf16.mxu0 0
        %8504 = vmatpush1.bf16.xpose.msra.mxu0 0
        %8505 = vmatprep.subr.bf16.mxu0 0
        %8506 = vmatpush1.bf16.xpose.msra.mxu0 0
        %8507 = vmatprep.subr.bf16.mxu0 0
        %8508 = vmatpush1.bf16.xpose.msra.mxu0 0
        %8509 = vmatprep.subr.bf16.mxu0 0
        %8510 = vmatpush1.bf16.xpose.msra.mxu0 0
        %8511 = vmatprep.mubr.bf16.mxu0 0
        %8512 = vmatmul.mubr.bf16.gmra.mrb[0].mxu0 %v8474
        %v8513 = vpop.f32.mrb[0].mxu0
        %v8514 = vadd.f32 0.0, %v8513
        %v8515 = vpop.f32.mrb[0].mxu0
        %v8516 = vpop.f32.mrb[0].mxu0
        %v8517 = vpop.f32.mrb[0].mxu0
        %8518 = vdwg.mxu0
        %v8519 = vsel %vm1417, %v8514, -inf
        %8520 = vmax.xlane.f32.xlu0 %v8519
        %v8521 = vpop.xlane.xlu0 %8520
        %v8522 = vsub.f32 %v8514, %v8521
        %v8523 = vmul.f32 %v8522, 1.442695
        %v8524 = vpow.pop %v8523
        %v8525 = vsel %vm1417, %v8524, 0.0
        %8526 = vadd.xlane.f32.xlu0 %v8525
        %v8527 = vpop.xlane.xlu0 %8526
        %v8528 = vrcp.pop %v8527
        %v8529 = vmul.f32 %v8524, %v8528
        %v8530 = vpack.c.bf16 %v8529, %v8529
        %8532 = vrot.lane.b32.xlu0 %v8361, 64
        %v8533 = vpop.permute.xlu0 %8532
        %v8535 = vsel %vm1417, %v8530, 0
        %v8538 = vsel %vm1433, %v8533, 0
        %8540 = vmatprep.subr.bf16.mxu0 0
        %8541 = vmatpush1.bf16.msra.mxu0 %v8538
        %8542 = vmatprep.subr.bf16.mxu0 0
        %8543 = vmatpush1.bf16.msra.mxu0 0
        %8544 = vmatprep.subr.bf16.mxu0 0
        %8545 = vmatpush1.bf16.msra.mxu0 0
        %8546 = vmatprep.subr.bf16.mxu0 0
        %8547 = vmatpush1.bf16.msra.mxu0 0
        %8548 = vmatprep.subr.bf16.mxu0 0
        %8549 = vmatpush1.bf16.msra.mxu0 0
        %8550 = vmatprep.subr.bf16.mxu0 0
        %8551 = vmatpush1.bf16.msra.mxu0 0
        %8552 = vmatprep.subr.bf16.mxu0 0
        %8553 = vmatpush1.bf16.msra.mxu0 0
        %8554 = vmatprep.subr.bf16.mxu0 0
        %8555 = vmatpush1.bf16.msra.mxu0 0
        %8556 = vmatprep.subr.bf16.mxu0 0
        %8557 = vmatpush1.bf16.msra.mxu0 0
        %8558 = vmatprep.subr.bf16.mxu0 0
        %8559 = vmatpush1.bf16.msra.mxu0 0
        %8560 = vmatprep.subr.bf16.mxu0 0
        %8561 = vmatpush1.bf16.msra.mxu0 0
        %8562 = vmatprep.subr.bf16.mxu0 0
        %8563 = vmatpush1.bf16.msra.mxu0 0
        %8564 = vmatprep.subr.bf16.mxu0 0
        %8565 = vmatpush1.bf16.msra.mxu0 0
        %8566 = vmatprep.subr.bf16.mxu0 0
        %8567 = vmatpush1.bf16.msra.mxu0 0
        %8568 = vmatprep.subr.bf16.mxu0 0
        %8569 = vmatpush1.bf16.msra.mxu0 0
        %8570 = vmatprep.subr.bf16.mxu0 0
        %8571 = vmatpush1.bf16.msra.mxu0 0
        %8572 = vmatprep.mubr.bf16.mxu0 0
        %8573 = vmatmul.mubr.bf16.gmra.mrb[0].mxu0 %v8535
        %v8574 = vpop.f32.mrb[0].mxu0
        %v8575 = vadd.f32 0.0, %v8574
        %v8576 = vpop.f32.mrb[0].mxu0
        %v8577 = vpop.f32.mrb[0].mxu0
        %v8578 = vpop.f32.mrb[0].mxu0
        %8579 = vdwg.mxu0
        %v8580 = vpack.c.bf16 %v8575, %v8575
        %v8581 = vpack.c.bf16 %v8273, %v8273
        %v8582 = vpack.c.bf16 %v8314, %v8314
        %v8583 = vpack.c.bf16 %v8355, %v8355
        %v8585 = vsel %vm1370, %v8581, 0
        %v8588 = vsel %vm1370, %v8582, 0
        %8590 = vmatprep.subr.bf16.mxu0 0
        %8591 = vmatpush1.bf16.xpose.msra.mxu0 %v8588
        %8592 = vmatprep.subr.bf16.mxu0 0
        %8593 = vmatpush1.bf16.xpose.msra.mxu0 0
        %8594 = vmatprep.subr.bf16.mxu0 0
        %8595 = vmatpush1.bf16.xpose.msra.mxu0 0
        %8596 = vmatprep.subr.bf16.mxu0 0
        %8597 = vmatpush1.bf16.xpose.msra.mxu0 0
        %8598 = vmatprep.subr.bf16.mxu0 0
        %8599 = vmatpush1.bf16.xpose.msra.mxu0 0
        %8600 = vmatprep.subr.bf16.mxu0 0
        %8601 = vmatpush1.bf16.xpose.msra.mxu0 0
        %8602 = vmatprep.subr.bf16.mxu0 0
        %8603 = vmatpush1.bf16.xpose.msra.mxu0 0
        %8604 = vmatprep.subr.bf16.mxu0 0
        %8605 = vmatpush1.bf16.xpose.msra.mxu0 0
        %8606 = vmatprep.subr.bf16.mxu0 0
        %8607 = vmatpush1.bf16.xpose.msra.mxu0 0
        %8608 = vmatprep.subr.bf16.mxu0 0
        %8609 = vmatpush1.bf16.xpose.msra.mxu0 0
        %8610 = vmatprep.subr.bf16.mxu0 0
        %8611 = vmatpush1.bf16.xpose.msra.mxu0 0
        %8612 = vmatprep.subr.bf16.mxu0 0
        %8613 = vmatpush1.bf16.xpose.msra.mxu0 0
        %8614 = vmatprep.subr.bf16.mxu0 0
        %8615 = vmatpush1.bf16.xpose.msra.mxu0 0
        %8616 = vmatprep.subr.bf16.mxu0 0
        %8617 = vmatpush1.bf16.xpose.msra.mxu0 0
        %8618 = vmatprep.subr.bf16.mxu0 0
        %8619 = vmatpush1.bf16.xpose.msra.mxu0 0
        %8620 = vmatprep.subr.bf16.mxu0 0
        %8621 = vmatpush1.bf16.xpose.msra.mxu0 0
        %8622 = vmatprep.mubr.bf16.mxu0 0
        %8623 = vmatmul.mubr.bf16.gmra.mrb[0].mxu0 %v8585
        %v8624 = vpop.f32.mrb[0].mxu0
        %v8625 = vadd.f32 0.0, %v8624
        %v8626 = vpop.f32.mrb[0].mxu0
        %v8627 = vpop.f32.mrb[0].mxu0
        %v8628 = vpop.f32.mrb[0].mxu0
        %8629 = vdwg.mxu0
        %v8630 = vsel %vm1417, %v8625, -inf
        %8631 = vmax.xlane.f32.xlu0 %v8630
        %v8632 = vpop.xlane.xlu0 %8631
        %v8633 = vsub.f32 %v8625, %v8632
        %v8634 = vmul.f32 %v8633, 1.442695
        %v8635 = vpow.pop %v8634
        %v8636 = vsel %vm1417, %v8635, 0.0
        %8637 = vadd.xlane.f32.xlu0 %v8636
        %v8638 = vpop.xlane.xlu0 %8637
        %v8639 = vrcp.pop %v8638
        %v8640 = vmul.f32 %v8635, %v8639
        %v8641 = vpack.c.bf16 %v8640, %v8640
        %v8643 = vsel %vm1417, %v8641, 0
        %v8646 = vsel %vm1433, %v8583, 0
        %8648 = vmatprep.subr.bf16.mxu0 0
        %8649 = vmatpush1.bf16.msra.mxu0 %v8646
        %8650 = vmatprep.subr.bf16.mxu0 0
        %8651 = vmatpush1.bf16.msra.mxu0 0
        %8652 = vmatprep.subr.bf16.mxu0 0
        %8653 = vmatpush1.bf16.msra.mxu0 0
        %8654 = vmatprep.subr.bf16.mxu0 0
        %8655 = vmatpush1.bf16.msra.mxu0 0
        %8656 = vmatprep.subr.bf16.mxu0 0
        %8657 = vmatpush1.bf16.msra.mxu0 0
        %8658 = vmatprep.subr.bf16.mxu0 0
        %8659 = vmatpush1.bf16.msra.mxu0 0
        %8660 = vmatprep.subr.bf16.mxu0 0
        %8661 = vmatpush1.bf16.msra.mxu0 0
        %8662 = vmatprep.subr.bf16.mxu0 0
        %8663 = vmatpush1.bf16.msra.mxu0 0
        %8664 = vmatprep.subr.bf16.mxu0 0
        %8665 = vmatpush1.bf16.msra.mxu0 0
        %8666 = vmatprep.subr.bf16.mxu0 0
        %8667 = vmatpush1.bf16.msra.mxu0 0
        %8668 = vmatprep.subr.bf16.mxu0 0
        %8669 = vmatpush1.bf16.msra.mxu0 0
        %8670 = vmatprep.subr.bf16.mxu0 0
        %8671 = vmatpush1.bf16.msra.mxu0 0
        %8672 = vmatprep.subr.bf16.mxu0 0
        %8673 = vmatpush1.bf16.msra.mxu0 0
        %8674 = vmatprep.subr.bf16.mxu0 0
        %8675 = vmatpush1.bf16.msra.mxu0 0
        %8676 = vmatprep.subr.bf16.mxu0 0
        %8677 = vmatpush1.bf16.msra.mxu0 0
        %8678 = vmatprep.subr.bf16.mxu0 0
        %8679 = vmatpush1.bf16.msra.mxu0 0
        %8680 = vmatprep.mubr.bf16.mxu0 0
        %8681 = vmatmul.mubr.bf16.gmra.mrb[0].mxu0 %v8643
        %v8682 = vpop.f32.mrb[0].mxu0
        %v8683 = vadd.f32 0.0, %v8682
        %v8684 = vpop.f32.mrb[0].mxu0
        %v8685 = vpop.f32.mrb[0].mxu0
        %v8686 = vpop.f32.mrb[0].mxu0
        %8687 = vdwg.mxu0
        %v8688 = vpack.c.bf16 %v8683, %v8683
        %8690 = vrot.lane.b32.xlu0 %v8581, 64
        %v8691 = vpop.permute.xlu0 %8690
        %8693 = vrot.lane.b32.xlu0 %v8582, 64
        %v8694 = vpop.permute.xlu0 %8693
        %v8696 = vsel %vm1370, %v8691, 0
        %v8699 = vsel %vm1370, %v8694, 0
        %8701 = vmatprep.subr.bf16.mxu0 0
        %8702 = vmatpush1.bf16.xpose.msra.mxu0 %v8699
        %8703 = vmatprep.subr.bf16.mxu0 0
        %8704 = vmatpush1.bf16.xpose.msra.mxu0 0
        %8705 = vmatprep.subr.bf16.mxu0 0
        %8706 = vmatpush1.bf16.xpose.msra.mxu0 0
        %8707 = vmatprep.subr.bf16.mxu0 0
        %8708 = vmatpush1.bf16.xpose.msra.mxu0 0
        %8709 = vmatprep.subr.bf16.mxu0 0
        %8710 = vmatpush1.bf16.xpose.msra.mxu0 0
        %8711 = vmatprep.subr.bf16.mxu0 0
        %8712 = vmatpush1.bf16.xpose.msra.mxu0 0
        %8713 = vmatprep.subr.bf16.mxu0 0
        %8714 = vmatpush1.bf16.xpose.msra.mxu0 0
        %8715 = vmatprep.subr.bf16.mxu0 0
        %8716 = vmatpush1.bf16.xpose.msra.mxu0 0
        %8717 = vmatprep.subr.bf16.mxu0 0
        %8718 = vmatpush1.bf16.xpose.msra.mxu0 0
        %8719 = vmatprep.subr.bf16.mxu0 0
        %8720 = vmatpush1.bf16.xpose.msra.mxu0 0
        %8721 = vmatprep.subr.bf16.mxu0 0
        %8722 = vmatpush1.bf16.xpose.msra.mxu0 0
        %8723 = vmatprep.subr.bf16.mxu0 0
        %8724 = vmatpush1.bf16.xpose.msra.mxu0 0
        %8725 = vmatprep.subr.bf16.mxu0 0
        %8726 = vmatpush1.bf16.xpose.msra.mxu0 0
        %8727 = vmatprep.subr.bf16.mxu0 0
        %8728 = vmatpush1.bf16.xpose.msra.mxu0 0
        %8729 = vmatprep.subr.bf16.mxu0 0
        %8730 = vmatpush1.bf16.xpose.msra.mxu0 0
        %8731 = vmatprep.subr.bf16.mxu0 0
        %8732 = vmatpush1.bf16.xpose.msra.mxu0 0
        %8733 = vmatprep.mubr.bf16.mxu0 0
        %8734 = vmatmul.mubr.bf16.gmra.mrb[0].mxu0 %v8696
        %v8735 = vpop.f32.mrb[0].mxu0
        %v8736 = vadd.f32 0.0, %v8735
        %v8737 = vpop.f32.mrb[0].mxu0
        %v8738 = vpop.f32.mrb[0].mxu0
        %v8739 = vpop.f32.mrb[0].mxu0
        %8740 = vdwg.mxu0
        %v8741 = vsel %vm1417, %v8736, -inf
        %8742 = vmax.xlane.f32.xlu0 %v8741
        %v8743 = vpop.xlane.xlu0 %8742
        %v8744 = vsub.f32 %v8736, %v8743
        %v8745 = vmul.f32 %v8744, 1.442695
        %v8746 = vpow.pop %v8745
        %v8747 = vsel %vm1417, %v8746, 0.0
        %8748 = vadd.xlane.f32.xlu0 %v8747
        %v8749 = vpop.xlane.xlu0 %8748
        %v8750 = vrcp.pop %v8749
        %v8751 = vmul.f32 %v8746, %v8750
        %v8752 = vpack.c.bf16 %v8751, %v8751
        %8754 = vrot.lane.b32.xlu0 %v8583, 64
        %v8755 = vpop.permute.xlu0 %8754
        %v8757 = vsel %vm1417, %v8752, 0
        %v8760 = vsel %vm1433, %v8755, 0
        %8762 = vmatprep.subr.bf16.mxu0 0
        %8763 = vmatpush1.bf16.msra.mxu0 %v8760
        %8764 = vmatprep.subr.bf16.mxu0 0
        %8765 = vmatpush1.bf16.msra.mxu0 0
        %8766 = vmatprep.subr.bf16.mxu0 0
        %8767 = vmatpush1.bf16.msra.mxu0 0
        %8768 = vmatprep.subr.bf16.mxu0 0
        %8769 = vmatpush1.bf16.msra.mxu0 0
        %8770 = vmatprep.subr.bf16.mxu0 0
        %8771 = vmatpush1.bf16.msra.mxu0 0
        %8772 = vmatprep.subr.bf16.mxu0 0
        %8773 = vmatpush1.bf16.msra.mxu0 0
        %8774 = vmatprep.subr.bf16.mxu0 0
        %8775 = vmatpush1.bf16.msra.mxu0 0
        %8776 = vmatprep.subr.bf16.mxu0 0
        %8777 = vmatpush1.bf16.msra.mxu0 0
        %8778 = vmatprep.subr.bf16.mxu0 0
        %8779 = vmatpush1.bf16.msra.mxu0 0
        %8780 = vmatprep.subr.bf16.mxu0 0
        %8781 = vmatpush1.bf16.msra.mxu0 0
        %8782 = vmatprep.subr.bf16.mxu0 0
        %8783 = vmatpush1.bf16.msra.mxu0 0
        %8784 = vmatprep.subr.bf16.mxu0 0
        %8785 = vmatpush1.bf16.msra.mxu0 0
        %8786 = vmatprep.subr.bf16.mxu0 0
        %8787 = vmatpush1.bf16.msra.mxu0 0
        %8788 = vmatprep.subr.bf16.mxu0 0
        %8789 = vmatpush1.bf16.msra.mxu0 0
        %8790 = vmatprep.subr.bf16.mxu0 0
        %8791 = vmatpush1.bf16.msra.mxu0 0
        %8792 = vmatprep.subr.bf16.mxu0 0
        %8793 = vmatpush1.bf16.msra.mxu0 0
        %8794 = vmatprep.mubr.bf16.mxu0 0
        %8795 = vmatmul.mubr.bf16.gmra.mrb[0].mxu0 %v8757
        %v8796 = vpop.f32.mrb[0].mxu0
        %v8797 = vadd.f32 0.0, %v8796
        %v8798 = vpop.f32.mrb[0].mxu0
        %v8799 = vpop.f32.mrb[0].mxu0
        %v8800 = vpop.f32.mrb[0].mxu0
        %8801 = vdwg.mxu0
        %v8802 = vpack.c.bf16 %v8797, %v8797
        %8804 = vrot.lane.b32.xlu0 %v8580, 64
        %v8805 = vpop.permute.xlu0 %8804
        %8807 = vrot.lane.b32.xlu0 %v8802, 64
        %v8808 = vpop.permute.xlu0 %8807
        %v8811 = vsel %vm1370, %v8466, %v8805
        %v8815 = vsel %vm1370, %v8688, %v8808
        %s8817 = scalar_lea.vmem [#allocation8], 512
        %v8818 = vld [vmem:[%s8817] sm:$0xff]
        %v8819 = vld [vmem:[%s8817 + $0x8] sm:$0xff]
        %v8820 = vld [vmem:[%s8817 + $0x10] sm:$0xff]
        %v8821 = vld [vmem:[%s8817 + $0x18] sm:$0xff]
        %v8822 = vld [vmem:[%s8817 + $0x20] sm:$0xff]
        %v8823 = vld [vmem:[%s8817 + $0x28] sm:$0xff]
        %v8824 = vld [vmem:[%s8817 + $0x30] sm:$0xff]
        %v8825 = vld [vmem:[%s8817 + $0x38] sm:$0xff]
        %v8826 = vld [vmem:[%s8817 + $0x40] sm:$0xff]
        %v8827 = vld [vmem:[%s8817 + $0x48] sm:$0xff]
        %v8828 = vld [vmem:[%s8817 + $0x50] sm:$0xff]
        %v8829 = vld [vmem:[%s8817 + $0x58] sm:$0xff]
        %v8830 = vld [vmem:[%s8817 + $0x60] sm:$0xff]
        %v8831 = vld [vmem:[%s8817 + $0x68] sm:$0xff]
        %v8832 = vld [vmem:[%s8817 + $0x70] sm:$0xff]
        %v8833 = vld [vmem:[%s8817 + $0x78] sm:$0xff]
        %v8834 = vld [vmem:[%s8817 + $0x80] sm:$0xff]
        %v8835 = vld [vmem:[%s8817 + $0x88] sm:$0xff]
        %v8836 = vld [vmem:[%s8817 + $0x90] sm:$0xff]
        %v8837 = vld [vmem:[%s8817 + $0x98] sm:$0xff]
        %v8838 = vld [vmem:[%s8817 + $0xa0] sm:$0xff]
        %v8839 = vld [vmem:[%s8817 + $0xa8] sm:$0xff]
        %v8840 = vld [vmem:[%s8817 + $0xb0] sm:$0xff]
        %v8841 = vld [vmem:[%s8817 + $0xb8] sm:$0xff]
        %v8842 = vld [vmem:[%s8817 + $0xc0] sm:$0xff]
        %v8843 = vld [vmem:[%s8817 + $0xc8] sm:$0xff]
        %v8844 = vld [vmem:[%s8817 + $0xd0] sm:$0xff]
        %v8845 = vld [vmem:[%s8817 + $0xd8] sm:$0xff]
        %v8846 = vld [vmem:[%s8817 + $0xe0] sm:$0xff]
        %v8847 = vld [vmem:[%s8817 + $0xe8] sm:$0xff]
        %v8848 = vld [vmem:[%s8817 + $0xf0] sm:$0xff]
        %v8849 = vld [vmem:[%s8817 + $0xf8] sm:$0xff]
        %s8850 = scalar_lea.vmem [#allocation10], 4
        %v8851 = vld [vmem:[%s8850] sm:$0x3]
        %v8853 = vlaneseq
        %v8854 = vshrl.u32 %v8853, 7
        %v8855 = vsub.s32 0, %v8854
        %v8856 = vrot.slane %v8851, %v8855
        %v8857 = vlaneseq
        %v8858 = vshrl.u32 %v8857, 7
        %v8859 = vsub.s32 1, %v8858
        %v8860 = vrot.slane %v8851, %v8859
        %v8895 = vunpack.c.l.b16 %v8818
        %v8896 = vunpack.c.h.b16 %v8818
        %v8897 = vunpack.c.l.b16 %v8819
        %v8898 = vunpack.c.h.b16 %v8819
        %v8899 = vunpack.c.l.b16 %v8820
        %v8900 = vunpack.c.h.b16 %v8820
        %v8901 = vunpack.c.l.b16 %v8821
        %v8902 = vunpack.c.h.b16 %v8821
        %v8903 = vunpack.c.l.b16 %v8822
        %v8904 = vunpack.c.h.b16 %v8822
        %v8905 = vunpack.c.l.b16 %v8823
        %v8906 = vunpack.c.h.b16 %v8823
        %v8907 = vunpack.c.l.b16 %v8824
        %v8908 = vunpack.c.h.b16 %v8824
        %v8909 = vunpack.c.l.b16 %v8825
        %v8910 = vunpack.c.h.b16 %v8825
        %v8911 = vunpack.c.l.b16 %v8826
        %v8912 = vunpack.c.h.b16 %v8826
        %v8913 = vunpack.c.l.b16 %v8827
        %v8914 = vunpack.c.h.b16 %v8827
        %v8915 = vunpack.c.l.b16 %v8828
        %v8916 = vunpack.c.h.b16 %v8828
        %v8917 = vunpack.c.l.b16 %v8829
        %v8918 = vunpack.c.h.b16 %v8829
        %v8919 = vunpack.c.l.b16 %v8830
        %v8920 = vunpack.c.h.b16 %v8830
        %v8921 = vunpack.c.l.b16 %v8831
        %v8922 = vunpack.c.h.b16 %v8831
        %v8923 = vunpack.c.l.b16 %v8832
        %v8924 = vunpack.c.h.b16 %v8832
        %v8925 = vunpack.c.l.b16 %v8833
        %v8926 = vunpack.c.h.b16 %v8833
        %v8927 = vunpack.c.l.b16 %v8834
        %v8928 = vunpack.c.h.b16 %v8834
        %v8929 = vunpack.c.l.b16 %v8835
        %v8930 = vunpack.c.h.b16 %v8835
        %v8931 = vunpack.c.l.b16 %v8836
        %v8932 = vunpack.c.h.b16 %v8836
        %v8933 = vunpack.c.l.b16 %v8837
        %v8934 = vunpack.c.h.b16 %v8837
        %v8935 = vunpack.c.l.b16 %v8838
        %v8936 = vunpack.c.h.b16 %v8838
        %v8937 = vunpack.c.l.b16 %v8839
        %v8938 = vunpack.c.h.b16 %v8839
        %v8939 = vunpack.c.l.b16 %v8840
        %v8940 = vunpack.c.h.b16 %v8840
        %v8941 = vunpack.c.l.b16 %v8841
        %v8942 = vunpack.c.h.b16 %v8841
        %v8943 = vunpack.c.l.b16 %v8842
        %v8944 = vunpack.c.h.b16 %v8842
        %v8945 = vunpack.c.l.b16 %v8843
        %v8946 = vunpack.c.h.b16 %v8843
        %v8947 = vunpack.c.l.b16 %v8844
        %v8948 = vunpack.c.h.b16 %v8844
        %v8949 = vunpack.c.l.b16 %v8845
        %v8950 = vunpack.c.h.b16 %v8845
        %v8951 = vunpack.c.l.b16 %v8846
        %v8952 = vunpack.c.h.b16 %v8846
        %v8953 = vunpack.c.l.b16 %v8847
        %v8954 = vunpack.c.h.b16 %v8847
        %v8955 = vunpack.c.l.b16 %v8848
        %v8956 = vunpack.c.h.b16 %v8848
        %v8957 = vunpack.c.l.b16 %v8849
        %v8958 = vunpack.c.h.b16 %v8849
        %v8959 = vpack.c.b16 %v8897, %v8895
        %v8960 = vpack.c.b16 %v8898, %v8896
        %v8961 = vpack.c.b16 %v8901, %v8899
        %v8962 = vpack.c.b16 %v8902, %v8900
        %v8963 = vpack.c.b16 %v8905, %v8903
        %v8964 = vpack.c.b16 %v8906, %v8904
        %v8965 = vpack.c.b16 %v8909, %v8907
        %v8966 = vpack.c.b16 %v8910, %v8908
        %v8967 = vpack.c.b16 %v8913, %v8911
        %v8968 = vpack.c.b16 %v8914, %v8912
        %v8969 = vpack.c.b16 %v8917, %v8915
        %v8970 = vpack.c.b16 %v8918, %v8916
        %v8971 = vpack.c.b16 %v8921, %v8919
        %v8972 = vpack.c.b16 %v8922, %v8920
        %v8973 = vpack.c.b16 %v8925, %v8923
        %v8974 = vpack.c.b16 %v8926, %v8924
        %v8975 = vpack.c.b16 %v8929, %v8927
        %v8976 = vpack.c.b16 %v8930, %v8928
        %v8977 = vpack.c.b16 %v8933, %v8931
        %v8978 = vpack.c.b16 %v8934, %v8932
        %v8979 = vpack.c.b16 %v8937, %v8935
        %v8980 = vpack.c.b16 %v8938, %v8936
        %v8981 = vpack.c.b16 %v8941, %v8939
        %v8982 = vpack.c.b16 %v8942, %v8940
        %v8983 = vpack.c.b16 %v8945, %v8943
        %v8984 = vpack.c.b16 %v8946, %v8944
        %v8985 = vpack.c.b16 %v8949, %v8947
        %v8986 = vpack.c.b16 %v8950, %v8948
        %v8987 = vpack.c.b16 %v8953, %v8951
        %v8988 = vpack.c.b16 %v8954, %v8952
        %v8989 = vpack.c.b16 %v8957, %v8955
        %v8990 = vpack.c.b16 %v8958, %v8956
        %9023 = vmatprep.subr.bf16.mxu0 %v8960
        %9024 = vmatpush1.bf16.msra.mxu0 %v8959
        %9025 = vmatprep.subr.bf16.mxu0 %v8962
        %9026 = vmatpush1.bf16.msra.mxu0 %v8961
        %9027 = vmatprep.subr.bf16.mxu0 %v8964
        %9028 = vmatpush1.bf16.msra.mxu0 %v8963
        %9029 = vmatprep.subr.bf16.mxu0 %v8966
        %9030 = vmatpush1.bf16.msra.mxu0 %v8965
        %9031 = vmatprep.subr.bf16.mxu0 %v8968
        %9032 = vmatpush1.bf16.msra.mxu0 %v8967
        %9033 = vmatprep.subr.bf16.mxu0 %v8970
        %9034 = vmatpush1.bf16.msra.mxu0 %v8969
        %9035 = vmatprep.subr.bf16.mxu0 %v8972
        %9036 = vmatpush1.bf16.msra.mxu0 %v8971
        %9037 = vmatprep.subr.bf16.mxu0 %v8974
        %9038 = vmatpush1.bf16.msra.mxu0 %v8973
        %9039 = vmatprep.subr.bf16.mxu0 %v8976
        %9040 = vmatpush1.bf16.msra.mxu0 %v8975
        %9041 = vmatprep.subr.bf16.mxu0 %v8978
        %9042 = vmatpush1.bf16.msra.mxu0 %v8977
        %9043 = vmatprep.subr.bf16.mxu0 %v8980
        %9044 = vmatpush1.bf16.msra.mxu0 %v8979
        %9045 = vmatprep.subr.bf16.mxu0 %v8982
        %9046 = vmatpush1.bf16.msra.mxu0 %v8981
        %9047 = vmatprep.subr.bf16.mxu0 %v8984
        %9048 = vmatpush1.bf16.msra.mxu0 %v8983
        %9049 = vmatprep.subr.bf16.mxu0 %v8986
        %9050 = vmatpush1.bf16.msra.mxu0 %v8985
        %9051 = vmatprep.subr.bf16.mxu0 %v8988
        %9052 = vmatpush1.bf16.msra.mxu0 %v8987
        %9053 = vmatprep.subr.bf16.mxu0 %v8990
        %9054 = vmatpush1.bf16.msra.mxu0 %v8989
        %9055 = vmatprep.mubr.bf16.mxu0 %v8815
        %9056 = vmatmul.mubr.bf16.gmra.mrb[0].mxu0 %v8811
        %v9057 = vpop.f32.mrb[0].mxu0
        %v9058 = vadd.f32 %v8856, %v9057
        %v9059 = vpop.f32.mrb[0].mxu0
        %v9060 = vadd.f32 %v8860, %v9059
        %v9061 = vpop.f32.mrb[0].mxu0
        %v9062 = vpop.f32.mrb[0].mxu0
        %9063 = vdwg.mxu0
        %v9064 = vadd.f32 %v7622, %v9058
        %v9065 = vadd.f32 %v7623, %v9060
        %s9066 = scalar_lea.vmem [#allocation11], 4
        %v9067 = vld [vmem:[%s9066] sm:$0x3]
        %s9068 = scalar_lea.vmem [#allocation13], 4
        %v9069 = vld [vmem:[%s9068] sm:$0x3]
        %v9070 = vadd.f32 %v9064, %v9065
        %9071 = vadd.xlane.f32.xlu0 %v9070
        %v9072 = vpop.xlane.xlu0 %9071
        %v9073 = vmul.f32 %v9072, %v2080
        %v9074 = vsub.f32 %v9064, %v9073
        %v9075 = vsub.f32 %v9065, %v9073
        %v9076 = vmul.f32 %v9074, %v9074
        %v9077 = vmul.f32 %v9075, %v9075
        %v9078 = vadd.f32 %v9076, %v9077
        %9079 = vadd.xlane.f32.xlu0 %v9078
        %v9080 = vpop.xlane.xlu0 %9079
        %v9081 = vmul.f32 %v9080, %v2080
        %v9082 = vadd.f32 %v9081, 1e-05
        %v9083 = vrsqrt.pop %v9082
        %v9084 = vmul.f32 %v9074, %v9083
        %v9085 = vmul.f32 %v9075, %v9083
        %v9087 = vlaneseq
        %v9088 = vshrl.u32 %v9087, 7
        %v9089 = vsub.s32 0, %v9088
        %v9090 = vrot.slane %v9067, %v9089
        %v9091 = vlaneseq
        %v9092 = vshrl.u32 %v9091, 7
        %v9093 = vsub.s32 1, %v9092
        %v9094 = vrot.slane %v9067, %v9093
        %v9097 = vmul.f32 %v9084, %v9090
        %v9098 = vmul.f32 %v9085, %v9094
        %v9100 = vlaneseq
        %v9101 = vshrl.u32 %v9100, 7
        %v9102 = vsub.s32 0, %v9101
        %v9103 = vrot.slane %v9069, %v9102
        %v9104 = vlaneseq
        %v9105 = vshrl.u32 %v9104, 7
        %v9106 = vsub.s32 1, %v9105
        %v9107 = vrot.slane %v9069, %v9106
        %v9110 = vadd.f32 %v9097, %v9103
        %v9111 = vadd.f32 %v9098, %v9107
        %v9112 = vpack.c.bf16 %v9110, %v9110
        %v9113 = vpack.c.bf16 %v9111, %v9111
        %s9114 = scalar_lea.vmem [#allocation19], 4
        %v9115 = vld [vmem:[%s9114] sm:$0x3]
        %s9116 = scalar_lea.vmem [#allocation14], 2048
        %v9117 = vld [vmem:[%s9116] sm:$0xff]
        %v9118 = vld [vmem:[%s9116 + $0x8] sm:$0xff]
        %v9119 = vld [vmem:[%s9116 + $0x10] sm:$0xff]
        %v9120 = vld [vmem:[%s9116 + $0x18] sm:$0xff]
        %v9121 = vld [vmem:[%s9116 + $0x20] sm:$0xff]
        %v9122 = vld [vmem:[%s9116 + $0x28] sm:$0xff]
        %v9123 = vld [vmem:[%s9116 + $0x30] sm:$0xff]
        %v9124 = vld [vmem:[%s9116 + $0x38] sm:$0xff]
        %v9125 = vld [vmem:[%s9116 + $0x40] sm:$0xff]
        %v9126 = vld [vmem:[%s9116 + $0x48] sm:$0xff]
        %v9127 = vld [vmem:[%s9116 + $0x50] sm:$0xff]
        %v9128 = vld [vmem:[%s9116 + $0x58] sm:$0xff]
        %v9129 = vld [vmem:[%s9116 + $0x60] sm:$0xff]
        %v9130 = vld [vmem:[%s9116 + $0x68] sm:$0xff]
        %v9131 = vld [vmem:[%s9116 + $0x70] sm:$0xff]
        %v9132 = vld [vmem:[%s9116 + $0x78] sm:$0xff]
        %v9133 = vld [vmem:[%s9116 + $0x80] sm:$0xff]
        %v9134 = vld [vmem:[%s9116 + $0x88] sm:$0xff]
        %v9135 = vld [vmem:[%s9116 + $0x90] sm:$0xff]
        %v9136 = vld [vmem:[%s9116 + $0x98] sm:$0xff]
        %v9137 = vld [vmem:[%s9116 + $0xa0] sm:$0xff]
        %v9138 = vld [vmem:[%s9116 + $0xa8] sm:$0xff]
        %v9139 = vld [vmem:[%s9116 + $0xb0] sm:$0xff]
        %v9140 = vld [vmem:[%s9116 + $0xb8] sm:$0xff]
        %v9141 = vld [vmem:[%s9116 + $0xc0] sm:$0xff]
        %v9142 = vld [vmem:[%s9116 + $0xc8] sm:$0xff]
        %v9143 = vld [vmem:[%s9116 + $0xd0] sm:$0xff]
        %v9144 = vld [vmem:[%s9116 + $0xd8] sm:$0xff]
        %v9145 = vld [vmem:[%s9116 + $0xe0] sm:$0xff]
        %v9146 = vld [vmem:[%s9116 + $0xe8] sm:$0xff]
        %v9147 = vld [vmem:[%s9116 + $0xf0] sm:$0xff]
        %v9148 = vld [vmem:[%s9116 + $0xf8] sm:$0xff]
        %s9149 = scalar_lea.vmem [#allocation16], 16
        %v9150 = vld [vmem:[%s9149] sm:$0x3]
        %v9152 = vlaneseq
        %v9153 = vshrl.u32 %v9152, 7
        %v9154 = vsub.s32 0, %v9153
        %v9155 = vrot.slane %v9150, %v9154
        %v9156 = vlaneseq
        %v9157 = vshrl.u32 %v9156, 7
        %v9158 = vsub.s32 1, %v9157
        %v9159 = vrot.slane %v9150, %v9158
        %v9194 = vunpack.c.l.b16 %v9117
        %v9195 = vunpack.c.h.b16 %v9117
        %v9196 = vunpack.c.l.b16 %v9118
        %v9197 = vunpack.c.h.b16 %v9118
        %v9198 = vunpack.c.l.b16 %v9119
        %v9199 = vunpack.c.h.b16 %v9119
        %v9200 = vunpack.c.l.b16 %v9120
        %v9201 = vunpack.c.h.b16 %v9120
        %v9202 = vunpack.c.l.b16 %v9121
        %v9203 = vunpack.c.h.b16 %v9121
        %v9204 = vunpack.c.l.b16 %v9122
        %v9205 = vunpack.c.h.b16 %v9122
        %v9206 = vunpack.c.l.b16 %v9123
        %v9207 = vunpack.c.h.b16 %v9123
        %v9208 = vunpack.c.l.b16 %v9124
        %v9209 = vunpack.c.h.b16 %v9124
        %v9210 = vunpack.c.l.b16 %v9125
        %v9211 = vunpack.c.h.b16 %v9125
        %v9212 = vunpack.c.l.b16 %v9126
        %v9213 = vunpack.c.h.b16 %v9126
        %v9214 = vunpack.c.l.b16 %v9127
        %v9215 = vunpack.c.h.b16 %v9127
        %v9216 = vunpack.c.l.b16 %v9128
        %v9217 = vunpack.c.h.b16 %v9128
        %v9218 = vunpack.c.l.b16 %v9129
        %v9219 = vunpack.c.h.b16 %v9129
        %v9220 = vunpack.c.l.b16 %v9130
        %v9221 = vunpack.c.h.b16 %v9130
        %v9222 = vunpack.c.l.b16 %v9131
        %v9223 = vunpack.c.h.b16 %v9131
        %v9224 = vunpack.c.l.b16 %v9132
        %v9225 = vunpack.c.h.b16 %v9132
        %v9226 = vunpack.c.l.b16 %v9133
        %v9227 = vunpack.c.h.b16 %v9133
        %v9228 = vunpack.c.l.b16 %v9134
        %v9229 = vunpack.c.h.b16 %v9134
        %v9230 = vunpack.c.l.b16 %v9135
        %v9231 = vunpack.c.h.b16 %v9135
        %v9232 = vunpack.c.l.b16 %v9136
        %v9233 = vunpack.c.h.b16 %v9136
        %v9234 = vunpack.c.l.b16 %v9137
        %v9235 = vunpack.c.h.b16 %v9137
        %v9236 = vunpack.c.l.b16 %v9138
        %v9237 = vunpack.c.h.b16 %v9138
        %v9238 = vunpack.c.l.b16 %v9139
        %v9239 = vunpack.c.h.b16 %v9139
        %v9240 = vunpack.c.l.b16 %v9140
        %v9241 = vunpack.c.h.b16 %v9140
        %v9242 = vunpack.c.l.b16 %v9141
        %v9243 = vunpack.c.h.b16 %v9141
        %v9244 = vunpack.c.l.b16 %v9142
        %v9245 = vunpack.c.h.b16 %v9142
        %v9246 = vunpack.c.l.b16 %v9143
        %v9247 = vunpack.c.h.b16 %v9143
        %v9248 = vunpack.c.l.b16 %v9144
        %v9249 = vunpack.c.h.b16 %v9144
        %v9250 = vunpack.c.l.b16 %v9145
        %v9251 = vunpack.c.h.b16 %v9145
        %v9252 = vunpack.c.l.b16 %v9146
        %v9253 = vunpack.c.h.b16 %v9146
        %v9254 = vunpack.c.l.b16 %v9147
        %v9255 = vunpack.c.h.b16 %v9147
        %v9256 = vunpack.c.l.b16 %v9148
        %v9257 = vunpack.c.h.b16 %v9148
        %v9258 = vpack.c.b16 %v9196, %v9194
        %v9259 = vpack.c.b16 %v9197, %v9195
        %v9260 = vpack.c.b16 %v9200, %v9198
        %v9261 = vpack.c.b16 %v9201, %v9199
        %v9262 = vpack.c.b16 %v9204, %v9202
        %v9263 = vpack.c.b16 %v9205, %v9203
        %v9264 = vpack.c.b16 %v9208, %v9206
        %v9265 = vpack.c.b16 %v9209, %v9207
        %v9266 = vpack.c.b16 %v9212, %v9210
        %v9267 = vpack.c.b16 %v9213, %v9211
        %v9268 = vpack.c.b16 %v9216, %v9214
        %v9269 = vpack.c.b16 %v9217, %v9215
        %v9270 = vpack.c.b16 %v9220, %v9218
        %v9271 = vpack.c.b16 %v9221, %v9219
        %v9272 = vpack.c.b16 %v9224, %v9222
        %v9273 = vpack.c.b16 %v9225, %v9223
        %v9274 = vpack.c.b16 %v9228, %v9226
        %v9275 = vpack.c.b16 %v9229, %v9227
        %v9276 = vpack.c.b16 %v9232, %v9230
        %v9277 = vpack.c.b16 %v9233, %v9231
        %v9278 = vpack.c.b16 %v9236, %v9234
        %v9279 = vpack.c.b16 %v9237, %v9235
        %v9280 = vpack.c.b16 %v9240, %v9238
        %v9281 = vpack.c.b16 %v9241, %v9239
        %v9282 = vpack.c.b16 %v9244, %v9242
        %v9283 = vpack.c.b16 %v9245, %v9243
        %v9284 = vpack.c.b16 %v9248, %v9246
        %v9285 = vpack.c.b16 %v9249, %v9247
        %v9286 = vpack.c.b16 %v9252, %v9250
        %v9287 = vpack.c.b16 %v9253, %v9251
        %v9288 = vpack.c.b16 %v9256, %v9254
        %v9289 = vpack.c.b16 %v9257, %v9255
        %9322 = vmatprep.subr.bf16.mxu0 %v9259
        %9323 = vmatpush1.bf16.msra.mxu0 %v9258
        %9324 = vmatprep.subr.bf16.mxu0 %v9261
        %9325 = vmatpush1.bf16.msra.mxu0 %v9260
        %9326 = vmatprep.subr.bf16.mxu0 %v9263
        %9327 = vmatpush1.bf16.msra.mxu0 %v9262
        %9328 = vmatprep.subr.bf16.mxu0 %v9265
        %9329 = vmatpush1.bf16.msra.mxu0 %v9264
        %9330 = vmatprep.subr.bf16.mxu0 %v9267
        %9331 = vmatpush1.bf16.msra.mxu0 %v9266
        %9332 = vmatprep.subr.bf16.mxu0 %v9269
        %9333 = vmatpush1.bf16.msra.mxu0 %v9268
        %9334 = vmatprep.subr.bf16.mxu0 %v9271
        %9335 = vmatpush1.bf16.msra.mxu0 %v9270
        %9336 = vmatprep.subr.bf16.mxu0 %v9273
        %9337 = vmatpush1.bf16.msra.mxu0 %v9272
        %9338 = vmatprep.subr.bf16.mxu0 %v9275
        %9339 = vmatpush1.bf16.msra.mxu0 %v9274
        %9340 = vmatprep.subr.bf16.mxu0 %v9277
        %9341 = vmatpush1.bf16.msra.mxu0 %v9276
        %9342 = vmatprep.subr.bf16.mxu0 %v9279
        %9343 = vmatpush1.bf16.msra.mxu0 %v9278
        %9344 = vmatprep.subr.bf16.mxu0 %v9281
        %9345 = vmatpush1.bf16.msra.mxu0 %v9280
        %9346 = vmatprep.subr.bf16.mxu0 %v9283
        %9347 = vmatpush1.bf16.msra.mxu0 %v9282
        %9348 = vmatprep.subr.bf16.mxu0 %v9285
        %9349 = vmatpush1.bf16.msra.mxu0 %v9284
        %9350 = vmatprep.subr.bf16.mxu0 %v9287
        %9351 = vmatpush1.bf16.msra.mxu0 %v9286
        %9352 = vmatprep.subr.bf16.mxu0 %v9289
        %9353 = vmatpush1.bf16.msra.mxu0 %v9288
        %9354 = vmatprep.mubr.bf16.mxu0 %v9113
        %9355 = vmatmul.mubr.bf16.gmra.mrb[0].mxu0 %v9112
        %v9356 = vpop.f32.mrb[0].mxu0
        %v9357 = vadd.f32 %v9155, %v9356
        %v9358 = vpop.f32.mrb[0].mxu0
        %v9359 = vadd.f32 %v9159, %v9358
        %v9360 = vpop.f32.mrb[0].mxu0
        %v9361 = vpop.f32.mrb[0].mxu0
        %9362 = vdwg.mxu0
        %v9363 = vmax.f32 %v9357, 0.0
        %v9364 = vmax.f32 %v9359, 0.0
        %v9365 = vpack.c.bf16 %v9363, %v9363
        %v9366 = vpack.c.bf16 %v9364, %v9364
        %s9367 = scalar_lea.vmem [#allocation17], 2048
        %v9368 = vld [vmem:[%s9367] sm:$0xff]
        %v9369 = vld [vmem:[%s9367 + $0x8] sm:$0xff]
        %v9370 = vld [vmem:[%s9367 + $0x10] sm:$0xff]
        %v9371 = vld [vmem:[%s9367 + $0x18] sm:$0xff]
        %v9372 = vld [vmem:[%s9367 + $0x20] sm:$0xff]
        %v9373 = vld [vmem:[%s9367 + $0x28] sm:$0xff]
        %v9374 = vld [vmem:[%s9367 + $0x30] sm:$0xff]
        %v9375 = vld [vmem:[%s9367 + $0x38] sm:$0xff]
        %v9376 = vld [vmem:[%s9367 + $0x40] sm:$0xff]
        %v9377 = vld [vmem:[%s9367 + $0x48] sm:$0xff]
        %v9378 = vld [vmem:[%s9367 + $0x50] sm:$0xff]
        %v9379 = vld [vmem:[%s9367 + $0x58] sm:$0xff]
        %v9380 = vld [vmem:[%s9367 + $0x60] sm:$0xff]
        %v9381 = vld [vmem:[%s9367 + $0x68] sm:$0xff]
        %v9382 = vld [vmem:[%s9367 + $0x70] sm:$0xff]
        %v9383 = vld [vmem:[%s9367 + $0x78] sm:$0xff]
        %v9384 = vld [vmem:[%s9367 + $0x80] sm:$0xff]
        %v9385 = vld [vmem:[%s9367 + $0x88] sm:$0xff]
        %v9386 = vld [vmem:[%s9367 + $0x90] sm:$0xff]
        %v9387 = vld [vmem:[%s9367 + $0x98] sm:$0xff]
        %v9388 = vld [vmem:[%s9367 + $0xa0] sm:$0xff]
        %v9389 = vld [vmem:[%s9367 + $0xa8] sm:$0xff]
        %v9390 = vld [vmem:[%s9367 + $0xb0] sm:$0xff]
        %v9391 = vld [vmem:[%s9367 + $0xb8] sm:$0xff]
        %v9392 = vld [vmem:[%s9367 + $0xc0] sm:$0xff]
        %v9393 = vld [vmem:[%s9367 + $0xc8] sm:$0xff]
        %v9394 = vld [vmem:[%s9367 + $0xd0] sm:$0xff]
        %v9395 = vld [vmem:[%s9367 + $0xd8] sm:$0xff]
        %v9396 = vld [vmem:[%s9367 + $0xe0] sm:$0xff]
        %v9397 = vld [vmem:[%s9367 + $0xe8] sm:$0xff]
        %v9398 = vld [vmem:[%s9367 + $0xf0] sm:$0xff]
        %v9399 = vld [vmem:[%s9367 + $0xf8] sm:$0xff]
        %v9432 = vunpack.c.l.b16 %v9368
        %v9433 = vunpack.c.h.b16 %v9368
        %v9434 = vunpack.c.l.b16 %v9369
        %v9435 = vunpack.c.h.b16 %v9369
        %v9436 = vunpack.c.l.b16 %v9370
        %v9437 = vunpack.c.h.b16 %v9370
        %v9438 = vunpack.c.l.b16 %v9371
        %v9439 = vunpack.c.h.b16 %v9371
        %v9440 = vunpack.c.l.b16 %v9372
        %v9441 = vunpack.c.h.b16 %v9372
        %v9442 = vunpack.c.l.b16 %v9373
        %v9443 = vunpack.c.h.b16 %v9373
        %v9444 = vunpack.c.l.b16 %v9374
        %v9445 = vunpack.c.h.b16 %v9374
        %v9446 = vunpack.c.l.b16 %v9375
        %v9447 = vunpack.c.h.b16 %v9375
        %v9448 = vunpack.c.l.b16 %v9376
        %v9449 = vunpack.c.h.b16 %v9376
        %v9450 = vunpack.c.l.b16 %v9377
        %v9451 = vunpack.c.h.b16 %v9377
        %v9452 = vunpack.c.l.b16 %v9378
        %v9453 = vunpack.c.h.b16 %v9378
        %v9454 = vunpack.c.l.b16 %v9379
        %v9455 = vunpack.c.h.b16 %v9379
        %v9456 = vunpack.c.l.b16 %v9380
        %v9457 = vunpack.c.h.b16 %v9380
        %v9458 = vunpack.c.l.b16 %v9381
        %v9459 = vunpack.c.h.b16 %v9381
        %v9460 = vunpack.c.l.b16 %v9382
        %v9461 = vunpack.c.h.b16 %v9382
        %v9462 = vunpack.c.l.b16 %v9383
        %v9463 = vunpack.c.h.b16 %v9383
        %v9464 = vunpack.c.l.b16 %v9384
        %v9465 = vunpack.c.h.b16 %v9384
        %v9466 = vunpack.c.l.b16 %v9385
        %v9467 = vunpack.c.h.b16 %v9385
        %v9468 = vunpack.c.l.b16 %v9386
        %v9469 = vunpack.c.h.b16 %v9386
        %v9470 = vunpack.c.l.b16 %v9387
        %v9471 = vunpack.c.h.b16 %v9387
        %v9472 = vunpack.c.l.b16 %v9388
        %v9473 = vunpack.c.h.b16 %v9388
        %v9474 = vunpack.c.l.b16 %v9389
        %v9475 = vunpack.c.h.b16 %v9389
        %v9476 = vunpack.c.l.b16 %v9390
        %v9477 = vunpack.c.h.b16 %v9390
        %v9478 = vunpack.c.l.b16 %v9391
        %v9479 = vunpack.c.h.b16 %v9391
        %v9480 = vunpack.c.l.b16 %v9392
        %v9481 = vunpack.c.h.b16 %v9392
        %v9482 = vunpack.c.l.b16 %v9393
        %v9483 = vunpack.c.h.b16 %v9393
        %v9484 = vunpack.c.l.b16 %v9394
        %v9485 = vunpack.c.h.b16 %v9394
        %v9486 = vunpack.c.l.b16 %v9395
        %v9487 = vunpack.c.h.b16 %v9395
        %v9488 = vunpack.c.l.b16 %v9396
        %v9489 = vunpack.c.h.b16 %v9396
        %v9490 = vunpack.c.l.b16 %v9397
        %v9491 = vunpack.c.h.b16 %v9397
        %v9492 = vunpack.c.l.b16 %v9398
        %v9493 = vunpack.c.h.b16 %v9398
        %v9494 = vunpack.c.l.b16 %v9399
        %v9495 = vunpack.c.h.b16 %v9399
        %v9496 = vpack.c.b16 %v9434, %v9432
        %v9497 = vpack.c.b16 %v9435, %v9433
        %v9498 = vpack.c.b16 %v9438, %v9436
        %v9499 = vpack.c.b16 %v9439, %v9437
        %v9500 = vpack.c.b16 %v9442, %v9440
        %v9501 = vpack.c.b16 %v9443, %v9441
        %v9502 = vpack.c.b16 %v9446, %v9444
        %v9503 = vpack.c.b16 %v9447, %v9445
        %v9504 = vpack.c.b16 %v9450, %v9448
        %v9505 = vpack.c.b16 %v9451, %v9449
        %v9506 = vpack.c.b16 %v9454, %v9452
        %v9507 = vpack.c.b16 %v9455, %v9453
        %v9508 = vpack.c.b16 %v9458, %v9456
        %v9509 = vpack.c.b16 %v9459, %v9457
        %v9510 = vpack.c.b16 %v9462, %v9460
        %v9511 = vpack.c.b16 %v9463, %v9461
        %v9512 = vpack.c.b16 %v9466, %v9464
        %v9513 = vpack.c.b16 %v9467, %v9465
        %v9514 = vpack.c.b16 %v9470, %v9468
        %v9515 = vpack.c.b16 %v9471, %v9469
        %v9516 = vpack.c.b16 %v9474, %v9472
        %v9517 = vpack.c.b16 %v9475, %v9473
        %v9518 = vpack.c.b16 %v9478, %v9476
        %v9519 = vpack.c.b16 %v9479, %v9477
        %v9520 = vpack.c.b16 %v9482, %v9480
        %v9521 = vpack.c.b16 %v9483, %v9481
        %v9522 = vpack.c.b16 %v9486, %v9484
        %v9523 = vpack.c.b16 %v9487, %v9485
        %v9524 = vpack.c.b16 %v9490, %v9488
        %v9525 = vpack.c.b16 %v9491, %v9489
        %v9526 = vpack.c.b16 %v9494, %v9492
        %v9527 = vpack.c.b16 %v9495, %v9493
        %9560 = vmatprep.subr.bf16.mxu0 %v9497
        %9561 = vmatpush1.bf16.msra.mxu0 %v9496
        %9562 = vmatprep.subr.bf16.mxu0 %v9499
        %9563 = vmatpush1.bf16.msra.mxu0 %v9498
        %9564 = vmatprep.subr.bf16.mxu0 %v9501
        %9565 = vmatpush1.bf16.msra.mxu0 %v9500
        %9566 = vmatprep.subr.bf16.mxu0 %v9503
        %9567 = vmatpush1.bf16.msra.mxu0 %v9502
        %9568 = vmatprep.subr.bf16.mxu0 %v9505
        %9569 = vmatpush1.bf16.msra.mxu0 %v9504
        %9570 = vmatprep.subr.bf16.mxu0 %v9507
        %9571 = vmatpush1.bf16.msra.mxu0 %v9506
        %9572 = vmatprep.subr.bf16.mxu0 %v9509
        %9573 = vmatpush1.bf16.msra.mxu0 %v9508
        %9574 = vmatprep.subr.bf16.mxu0 %v9511
        %9575 = vmatpush1.bf16.msra.mxu0 %v9510
        %9576 = vmatprep.subr.bf16.mxu0 %v9513
        %9577 = vmatpush1.bf16.msra.mxu0 %v9512
        %9578 = vmatprep.subr.bf16.mxu0 %v9515
        %9579 = vmatpush1.bf16.msra.mxu0 %v9514
        %9580 = vmatprep.subr.bf16.mxu0 %v9517
        %9581 = vmatpush1.bf16.msra.mxu0 %v9516
        %9582 = vmatprep.subr.bf16.mxu0 %v9519
        %9583 = vmatpush1.bf16.msra.mxu0 %v9518
        %9584 = vmatprep.subr.bf16.mxu0 %v9521
        %9585 = vmatpush1.bf16.msra.mxu0 %v9520
        %9586 = vmatprep.subr.bf16.mxu0 %v9523
        %9587 = vmatpush1.bf16.msra.mxu0 %v9522
        %9588 = vmatprep.subr.bf16.mxu0 %v9525
        %9589 = vmatpush1.bf16.msra.mxu0 %v9524
        %9590 = vmatprep.subr.bf16.mxu0 %v9527
        %9591 = vmatpush1.bf16.msra.mxu0 %v9526
        %9592 = vmatprep.mubr.bf16.mxu0 %v9366
        %9593 = vmatmul.mubr.bf16.gmra.mrb[0].mxu0 %v9365
        %v9594 = vpop.f32.mrb[0].mxu0
        %v9595 = vadd.f32 0.0, %v9594
        %v9596 = vpop.f32.mrb[0].mxu0
        %v9597 = vadd.f32 0.0, %v9596
        %v9598 = vpop.f32.mrb[0].mxu0
        %v9599 = vpop.f32.mrb[0].mxu0
        %9600 = vdwg.mxu0
        %v9602 = vlaneseq
        %v9603 = vshrl.u32 %v9602, 7
        %v9604 = vsub.s32 0, %v9603
        %v9605 = vrot.slane %v9115, %v9604
        %v9606 = vlaneseq
        %v9607 = vshrl.u32 %v9606, 7
        %v9608 = vsub.s32 1, %v9607
        %v9609 = vrot.slane %v9115, %v9608
        %v9612 = vadd.f32 %v9605, %v9595
        %v9613 = vadd.f32 %v9609, %v9597
        %s9614 = scalar_lea.vmem [#allocation14], 2304
        %v9615 = vld [vmem:[%s9614] sm:$0xff]
        %v9616 = vld [vmem:[%s9614 + $0x8] sm:$0xff]
        %v9617 = vld [vmem:[%s9614 + $0x10] sm:$0xff]
        %v9618 = vld [vmem:[%s9614 + $0x18] sm:$0xff]
        %v9619 = vld [vmem:[%s9614 + $0x20] sm:$0xff]
        %v9620 = vld [vmem:[%s9614 + $0x28] sm:$0xff]
        %v9621 = vld [vmem:[%s9614 + $0x30] sm:$0xff]
        %v9622 = vld [vmem:[%s9614 + $0x38] sm:$0xff]
        %v9623 = vld [vmem:[%s9614 + $0x40] sm:$0xff]
        %v9624 = vld [vmem:[%s9614 + $0x48] sm:$0xff]
        %v9625 = vld [vmem:[%s9614 + $0x50] sm:$0xff]
        %v9626 = vld [vmem:[%s9614 + $0x58] sm:$0xff]
        %v9627 = vld [vmem:[%s9614 + $0x60] sm:$0xff]
        %v9628 = vld [vmem:[%s9614 + $0x68] sm:$0xff]
        %v9629 = vld [vmem:[%s9614 + $0x70] sm:$0xff]
        %v9630 = vld [vmem:[%s9614 + $0x78] sm:$0xff]
        %v9631 = vld [vmem:[%s9614 + $0x80] sm:$0xff]
        %v9632 = vld [vmem:[%s9614 + $0x88] sm:$0xff]
        %v9633 = vld [vmem:[%s9614 + $0x90] sm:$0xff]
        %v9634 = vld [vmem:[%s9614 + $0x98] sm:$0xff]
        %v9635 = vld [vmem:[%s9614 + $0xa0] sm:$0xff]
        %v9636 = vld [vmem:[%s9614 + $0xa8] sm:$0xff]
        %v9637 = vld [vmem:[%s9614 + $0xb0] sm:$0xff]
        %v9638 = vld [vmem:[%s9614 + $0xb8] sm:$0xff]
        %v9639 = vld [vmem:[%s9614 + $0xc0] sm:$0xff]
        %v9640 = vld [vmem:[%s9614 + $0xc8] sm:$0xff]
        %v9641 = vld [vmem:[%s9614 + $0xd0] sm:$0xff]
        %v9642 = vld [vmem:[%s9614 + $0xd8] sm:$0xff]
        %v9643 = vld [vmem:[%s9614 + $0xe0] sm:$0xff]
        %v9644 = vld [vmem:[%s9614 + $0xe8] sm:$0xff]
        %v9645 = vld [vmem:[%s9614 + $0xf0] sm:$0xff]
        %v9646 = vld [vmem:[%s9614 + $0xf8] sm:$0xff]
        %s9647 = scalar_lea.vmem [#allocation16], 18
        %v9648 = vld [vmem:[%s9647] sm:$0x3]
        %v9650 = vlaneseq
        %v9651 = vshrl.u32 %v9650, 7
        %v9652 = vsub.s32 0, %v9651
        %v9653 = vrot.slane %v9648, %v9652
        %v9654 = vlaneseq
        %v9655 = vshrl.u32 %v9654, 7
        %v9656 = vsub.s32 1, %v9655
        %v9657 = vrot.slane %v9648, %v9656
        %v9692 = vunpack.c.l.b16 %v9615
        %v9693 = vunpack.c.h.b16 %v9615
        %v9694 = vunpack.c.l.b16 %v9616
        %v9695 = vunpack.c.h.b16 %v9616
        %v9696 = vunpack.c.l.b16 %v9617
        %v9697 = vunpack.c.h.b16 %v9617
        %v9698 = vunpack.c.l.b16 %v9618
        %v9699 = vunpack.c.h.b16 %v9618
        %v9700 = vunpack.c.l.b16 %v9619
        %v9701 = vunpack.c.h.b16 %v9619
        %v9702 = vunpack.c.l.b16 %v9620
        %v9703 = vunpack.c.h.b16 %v9620
        %v9704 = vunpack.c.l.b16 %v9621
        %v9705 = vunpack.c.h.b16 %v9621
        %v9706 = vunpack.c.l.b16 %v9622
        %v9707 = vunpack.c.h.b16 %v9622
        %v9708 = vunpack.c.l.b16 %v9623
        %v9709 = vunpack.c.h.b16 %v9623
        %v9710 = vunpack.c.l.b16 %v9624
        %v9711 = vunpack.c.h.b16 %v9624
        %v9712 = vunpack.c.l.b16 %v9625
        %v9713 = vunpack.c.h.b16 %v9625
        %v9714 = vunpack.c.l.b16 %v9626
        %v9715 = vunpack.c.h.b16 %v9626
        %v9716 = vunpack.c.l.b16 %v9627
        %v9717 = vunpack.c.h.b16 %v9627
        %v9718 = vunpack.c.l.b16 %v9628
        %v9719 = vunpack.c.h.b16 %v9628
        %v9720 = vunpack.c.l.b16 %v9629
        %v9721 = vunpack.c.h.b16 %v9629
        %v9722 = vunpack.c.l.b16 %v9630
        %v9723 = vunpack.c.h.b16 %v9630
        %v9724 = vunpack.c.l.b16 %v9631
        %v9725 = vunpack.c.h.b16 %v9631
        %v9726 = vunpack.c.l.b16 %v9632
        %v9727 = vunpack.c.h.b16 %v9632
        %v9728 = vunpack.c.l.b16 %v9633
        %v9729 = vunpack.c.h.b16 %v9633
        %v9730 = vunpack.c.l.b16 %v9634
        %v9731 = vunpack.c.h.b16 %v9634
        %v9732 = vunpack.c.l.b16 %v9635
        %v9733 = vunpack.c.h.b16 %v9635
        %v9734 = vunpack.c.l.b16 %v9636
        %v9735 = vunpack.c.h.b16 %v9636
        %v9736 = vunpack.c.l.b16 %v9637
        %v9737 = vunpack.c.h.b16 %v9637
        %v9738 = vunpack.c.l.b16 %v9638
        %v9739 = vunpack.c.h.b16 %v9638
        %v9740 = vunpack.c.l.b16 %v9639
        %v9741 = vunpack.c.h.b16 %v9639
        %v9742 = vunpack.c.l.b16 %v9640
        %v9743 = vunpack.c.h.b16 %v9640
        %v9744 = vunpack.c.l.b16 %v9641
        %v9745 = vunpack.c.h.b16 %v9641
        %v9746 = vunpack.c.l.b16 %v9642
        %v9747 = vunpack.c.h.b16 %v9642
        %v9748 = vunpack.c.l.b16 %v9643
        %v9749 = vunpack.c.h.b16 %v9643
        %v9750 = vunpack.c.l.b16 %v9644
        %v9751 = vunpack.c.h.b16 %v9644
        %v9752 = vunpack.c.l.b16 %v9645
        %v9753 = vunpack.c.h.b16 %v9645
        %v9754 = vunpack.c.l.b16 %v9646
        %v9755 = vunpack.c.h.b16 %v9646
        %v9756 = vpack.c.b16 %v9694, %v9692
        %v9757 = vpack.c.b16 %v9695, %v9693
        %v9758 = vpack.c.b16 %v9698, %v9696
        %v9759 = vpack.c.b16 %v9699, %v9697
        %v9760 = vpack.c.b16 %v9702, %v9700
        %v9761 = vpack.c.b16 %v9703, %v9701
        %v9762 = vpack.c.b16 %v9706, %v9704
        %v9763 = vpack.c.b16 %v9707, %v9705
        %v9764 = vpack.c.b16 %v9710, %v9708
        %v9765 = vpack.c.b16 %v9711, %v9709
        %v9766 = vpack.c.b16 %v9714, %v9712
        %v9767 = vpack.c.b16 %v9715, %v9713
        %v9768 = vpack.c.b16 %v9718, %v9716
        %v9769 = vpack.c.b16 %v9719, %v9717
        %v9770 = vpack.c.b16 %v9722, %v9720
        %v9771 = vpack.c.b16 %v9723, %v9721
        %v9772 = vpack.c.b16 %v9726, %v9724
        %v9773 = vpack.c.b16 %v9727, %v9725
        %v9774 = vpack.c.b16 %v9730, %v9728
        %v9775 = vpack.c.b16 %v9731, %v9729
        %v9776 = vpack.c.b16 %v9734, %v9732
        %v9777 = vpack.c.b16 %v9735, %v9733
        %v9778 = vpack.c.b16 %v9738, %v9736
        %v9779 = vpack.c.b16 %v9739, %v9737
        %v9780 = vpack.c.b16 %v9742, %v9740
        %v9781 = vpack.c.b16 %v9743, %v9741
        %v9782 = vpack.c.b16 %v9746, %v9744
        %v9783 = vpack.c.b16 %v9747, %v9745
        %v9784 = vpack.c.b16 %v9750, %v9748
        %v9785 = vpack.c.b16 %v9751, %v9749
        %v9786 = vpack.c.b16 %v9754, %v9752
        %v9787 = vpack.c.b16 %v9755, %v9753
        %9820 = vmatprep.subr.bf16.mxu0 %v9757
        %9821 = vmatpush1.bf16.msra.mxu0 %v9756
        %9822 = vmatprep.subr.bf16.mxu0 %v9759
        %9823 = vmatpush1.bf16.msra.mxu0 %v9758
        %9824 = vmatprep.subr.bf16.mxu0 %v9761
        %9825 = vmatpush1.bf16.msra.mxu0 %v9760
        %9826 = vmatprep.subr.bf16.mxu0 %v9763
        %9827 = vmatpush1.bf16.msra.mxu0 %v9762
        %9828 = vmatprep.subr.bf16.mxu0 %v9765
        %9829 = vmatpush1.bf16.msra.mxu0 %v9764
        %9830 = vmatprep.subr.bf16.mxu0 %v9767
        %9831 = vmatpush1.bf16.msra.mxu0 %v9766
        %9832 = vmatprep.subr.bf16.mxu0 %v9769
        %9833 = vmatpush1.bf16.msra.mxu0 %v9768
        %9834 = vmatprep.subr.bf16.mxu0 %v9771
        %9835 = vmatpush1.bf16.msra.mxu0 %v9770
        %9836 = vmatprep.subr.bf16.mxu0 %v9773
        %9837 = vmatpush1.bf16.msra.mxu0 %v9772
        %9838 = vmatprep.subr.bf16.mxu0 %v9775
        %9839 = vmatpush1.bf16.msra.mxu0 %v9774
        %9840 = vmatprep.subr.bf16.mxu0 %v9777
        %9841 = vmatpush1.bf16.msra.mxu0 %v9776
        %9842 = vmatprep.subr.bf16.mxu0 %v9779
        %9843 = vmatpush1.bf16.msra.mxu0 %v9778
        %9844 = vmatprep.subr.bf16.mxu0 %v9781
        %9845 = vmatpush1.bf16.msra.mxu0 %v9780
        %9846 = vmatprep.subr.bf16.mxu0 %v9783
        %9847 = vmatpush1.bf16.msra.mxu0 %v9782
        %9848 = vmatprep.subr.bf16.mxu0 %v9785
        %9849 = vmatpush1.bf16.msra.mxu0 %v9784
        %9850 = vmatprep.subr.bf16.mxu0 %v9787
        %9851 = vmatpush1.bf16.msra.mxu0 %v9786
        %9852 = vmatprep.mubr.bf16.mxu0 %v9113
        %9853 = vmatmul.mubr.bf16.gmra.mrb[0].mxu0 %v9112
        %v9854 = vpop.f32.mrb[0].mxu0
        %v9855 = vadd.f32 %v9653, %v9854
        %v9856 = vpop.f32.mrb[0].mxu0
        %v9857 = vadd.f32 %v9657, %v9856
        %v9858 = vpop.f32.mrb[0].mxu0
        %v9859 = vpop.f32.mrb[0].mxu0
        %9860 = vdwg.mxu0
        %v9861 = vmax.f32 %v9855, 0.0
        %v9862 = vmax.f32 %v9857, 0.0
        %v9863 = vpack.c.bf16 %v9861, %v9861
        %v9864 = vpack.c.bf16 %v9862, %v9862
        %s9865 = scalar_lea.vmem [#allocation17], 2304
        %v9866 = vld [vmem:[%s9865] sm:$0xff]
        %v9867 = vld [vmem:[%s9865 + $0x8] sm:$0xff]
        %v9868 = vld [vmem:[%s9865 + $0x10] sm:$0xff]
        %v9869 = vld [vmem:[%s9865 + $0x18] sm:$0xff]
        %v9870 = vld [vmem:[%s9865 + $0x20] sm:$0xff]
        %v9871 = vld [vmem:[%s9865 + $0x28] sm:$0xff]
        %v9872 = vld [vmem:[%s9865 + $0x30] sm:$0xff]
        %v9873 = vld [vmem:[%s9865 + $0x38] sm:$0xff]
        %v9874 = vld [vmem:[%s9865 + $0x40] sm:$0xff]
        %v9875 = vld [vmem:[%s9865 + $0x48] sm:$0xff]
        %v9876 = vld [vmem:[%s9865 + $0x50] sm:$0xff]
        %v9877 = vld [vmem:[%s9865 + $0x58] sm:$0xff]
        %v9878 = vld [vmem:[%s9865 + $0x60] sm:$0xff]
        %v9879 = vld [vmem:[%s9865 + $0x68] sm:$0xff]
        %v9880 = vld [vmem:[%s9865 + $0x70] sm:$0xff]
        %v9881 = vld [vmem:[%s9865 + $0x78] sm:$0xff]
        %v9882 = vld [vmem:[%s9865 + $0x80] sm:$0xff]
        %v9883 = vld [vmem:[%s9865 + $0x88] sm:$0xff]
        %v9884 = vld [vmem:[%s9865 + $0x90] sm:$0xff]
        %v9885 = vld [vmem:[%s9865 + $0x98] sm:$0xff]
        %v9886 = vld [vmem:[%s9865 + $0xa0] sm:$0xff]
        %v9887 = vld [vmem:[%s9865 + $0xa8] sm:$0xff]
        %v9888 = vld [vmem:[%s9865 + $0xb0] sm:$0xff]
        %v9889 = vld [vmem:[%s9865 + $0xb8] sm:$0xff]
        %v9890 = vld [vmem:[%s9865 + $0xc0] sm:$0xff]
        %v9891 = vld [vmem:[%s9865 + $0xc8] sm:$0xff]
        %v9892 = vld [vmem:[%s9865 + $0xd0] sm:$0xff]
        %v9893 = vld [vmem:[%s9865 + $0xd8] sm:$0xff]
        %v9894 = vld [vmem:[%s9865 + $0xe0] sm:$0xff]
        %v9895 = vld [vmem:[%s9865 + $0xe8] sm:$0xff]
        %v9896 = vld [vmem:[%s9865 + $0xf0] sm:$0xff]
        %v9897 = vld [vmem:[%s9865 + $0xf8] sm:$0xff]
        %v9930 = vunpack.c.l.b16 %v9866
        %v9931 = vunpack.c.h.b16 %v9866
        %v9932 = vunpack.c.l.b16 %v9867
        %v9933 = vunpack.c.h.b16 %v9867
        %v9934 = vunpack.c.l.b16 %v9868
        %v9935 = vunpack.c.h.b16 %v9868
        %v9936 = vunpack.c.l.b16 %v9869
        %v9937 = vunpack.c.h.b16 %v9869
        %v9938 = vunpack.c.l.b16 %v9870
        %v9939 = vunpack.c.h.b16 %v9870
        %v9940 = vunpack.c.l.b16 %v9871
        %v9941 = vunpack.c.h.b16 %v9871
        %v9942 = vunpack.c.l.b16 %v9872
        %v9943 = vunpack.c.h.b16 %v9872
        %v9944 = vunpack.c.l.b16 %v9873
        %v9945 = vunpack.c.h.b16 %v9873
        %v9946 = vunpack.c.l.b16 %v9874
        %v9947 = vunpack.c.h.b16 %v9874
        %v9948 = vunpack.c.l.b16 %v9875
        %v9949 = vunpack.c.h.b16 %v9875
        %v9950 = vunpack.c.l.b16 %v9876
        %v9951 = vunpack.c.h.b16 %v9876
        %v9952 = vunpack.c.l.b16 %v9877
        %v9953 = vunpack.c.h.b16 %v9877
        %v9954 = vunpack.c.l.b16 %v9878
        %v9955 = vunpack.c.h.b16 %v9878
        %v9956 = vunpack.c.l.b16 %v9879
        %v9957 = vunpack.c.h.b16 %v9879
        %v9958 = vunpack.c.l.b16 %v9880
        %v9959 = vunpack.c.h.b16 %v9880
        %v9960 = vunpack.c.l.b16 %v9881
        %v9961 = vunpack.c.h.b16 %v9881
        %v9962 = vunpack.c.l.b16 %v9882
        %v9963 = vunpack.c.h.b16 %v9882
        %v9964 = vunpack.c.l.b16 %v9883
        %v9965 = vunpack.c.h.b16 %v9883
        %v9966 = vunpack.c.l.b16 %v9884
        %v9967 = vunpack.c.h.b16 %v9884
        %v9968 = vunpack.c.l.b16 %v9885
        %v9969 = vunpack.c.h.b16 %v9885
        %v9970 = vunpack.c.l.b16 %v9886
        %v9971 = vunpack.c.h.b16 %v9886
        %v9972 = vunpack.c.l.b16 %v9887
        %v9973 = vunpack.c.h.b16 %v9887
        %v9974 = vunpack.c.l.b16 %v9888
        %v9975 = vunpack.c.h.b16 %v9888
        %v9976 = vunpack.c.l.b16 %v9889
        %v9977 = vunpack.c.h.b16 %v9889
        %v9978 = vunpack.c.l.b16 %v9890
        %v9979 = vunpack.c.h.b16 %v9890
        %v9980 = vunpack.c.l.b16 %v9891
        %v9981 = vunpack.c.h.b16 %v9891
        %v9982 = vunpack.c.l.b16 %v9892
        %v9983 = vunpack.c.h.b16 %v9892
        %v9984 = vunpack.c.l.b16 %v9893
        %v9985 = vunpack.c.h.b16 %v9893
        %v9986 = vunpack.c.l.b16 %v9894
        %v9987 = vunpack.c.h.b16 %v9894
        %v9988 = vunpack.c.l.b16 %v9895
        %v9989 = vunpack.c.h.b16 %v9895
        %v9990 = vunpack.c.l.b16 %v9896
        %v9991 = vunpack.c.h.b16 %v9896
        %v9992 = vunpack.c.l.b16 %v9897
        %v9993 = vunpack.c.h.b16 %v9897
        %v9994 = vpack.c.b16 %v9932, %v9930
        %v9995 = vpack.c.b16 %v9933, %v9931
        %v9996 = vpack.c.b16 %v9936, %v9934
        %v9997 = vpack.c.b16 %v9937, %v9935
        %v9998 = vpack.c.b16 %v9940, %v9938
        %v9999 = vpack.c.b16 %v9941, %v9939
        %v10000 = vpack.c.b16 %v9944, %v9942
        %v10001 = vpack.c.b16 %v9945, %v9943
        %v10002 = vpack.c.b16 %v9948, %v9946
        %v10003 = vpack.c.b16 %v9949, %v9947
        %v10004 = vpack.c.b16 %v9952, %v9950
        %v10005 = vpack.c.b16 %v9953, %v9951
        %v10006 = vpack.c.b16 %v9956, %v9954
        %v10007 = vpack.c.b16 %v9957, %v9955
        %v10008 = vpack.c.b16 %v9960, %v9958
        %v10009 = vpack.c.b16 %v9961, %v9959
        %v10010 = vpack.c.b16 %v9964, %v9962
        %v10011 = vpack.c.b16 %v9965, %v9963
        %v10012 = vpack.c.b16 %v9968, %v9966
        %v10013 = vpack.c.b16 %v9969, %v9967
        %v10014 = vpack.c.b16 %v9972, %v9970
        %v10015 = vpack.c.b16 %v9973, %v9971
        %v10016 = vpack.c.b16 %v9976, %v9974
        %v10017 = vpack.c.b16 %v9977, %v9975
        %v10018 = vpack.c.b16 %v9980, %v9978
        %v10019 = vpack.c.b16 %v9981, %v9979
        %v10020 = vpack.c.b16 %v9984, %v9982
        %v10021 = vpack.c.b16 %v9985, %v9983
        %v10022 = vpack.c.b16 %v9988, %v9986
        %v10023 = vpack.c.b16 %v9989, %v9987
        %v10024 = vpack.c.b16 %v9992, %v9990
        %v10025 = vpack.c.b16 %v9993, %v9991
        %10058 = vmatprep.subr.bf16.mxu0 %v9995
        %10059 = vmatpush1.bf16.msra.mxu0 %v9994
        %10060 = vmatprep.subr.bf16.mxu0 %v9997
        %10061 = vmatpush1.bf16.msra.mxu0 %v9996
        %10062 = vmatprep.subr.bf16.mxu0 %v9999
        %10063 = vmatpush1.bf16.msra.mxu0 %v9998
        %10064 = vmatprep.subr.bf16.mxu0 %v10001
        %10065 = vmatpush1.bf16.msra.mxu0 %v10000
        %10066 = vmatprep.subr.bf16.mxu0 %v10003
        %10067 = vmatpush1.bf16.msra.mxu0 %v10002
        %10068 = vmatprep.subr.bf16.mxu0 %v10005
        %10069 = vmatpush1.bf16.msra.mxu0 %v10004
        %10070 = vmatprep.subr.bf16.mxu0 %v10007
        %10071 = vmatpush1.bf16.msra.mxu0 %v10006
        %10072 = vmatprep.subr.bf16.mxu0 %v10009
        %10073 = vmatpush1.bf16.msra.mxu0 %v10008
        %10074 = vmatprep.subr.bf16.mxu0 %v10011
        %10075 = vmatpush1.bf16.msra.mxu0 %v10010
        %10076 = vmatprep.subr.bf16.mxu0 %v10013
        %10077 = vmatpush1.bf16.msra.mxu0 %v10012
        %10078 = vmatprep.subr.bf16.mxu0 %v10015
        %10079 = vmatpush1.bf16.msra.mxu0 %v10014
        %10080 = vmatprep.subr.bf16.mxu0 %v10017
        %10081 = vmatpush1.bf16.msra.mxu0 %v10016
        %10082 = vmatprep.subr.bf16.mxu0 %v10019
        %10083 = vmatpush1.bf16.msra.mxu0 %v10018
        %10084 = vmatprep.subr.bf16.mxu0 %v10021
        %10085 = vmatpush1.bf16.msra.mxu0 %v10020
        %10086 = vmatprep.subr.bf16.mxu0 %v10023
        %10087 = vmatpush1.bf16.msra.mxu0 %v10022
        %10088 = vmatprep.subr.bf16.mxu0 %v10025
        %10089 = vmatpush1.bf16.msra.mxu0 %v10024
        %10090 = vmatprep.mubr.bf16.mxu0 %v9864
        %10091 = vmatmul.mubr.bf16.gmra.mrb[0].mxu0 %v9863
        %v10092 = vpop.f32.mrb[0].mxu0
        %v10093 = vadd.f32 0.0, %v10092
        %v10094 = vpop.f32.mrb[0].mxu0
        %v10095 = vadd.f32 0.0, %v10094
        %v10096 = vpop.f32.mrb[0].mxu0
        %v10097 = vpop.f32.mrb[0].mxu0
        %10098 = vdwg.mxu0
        %v10099 = vadd.f32 %v9612, %v10093
        %v10100 = vadd.f32 %v9613, %v10095
        %s10101 = scalar_lea.vmem [#allocation14], 2560
        %v10102 = vld [vmem:[%s10101] sm:$0xff]
        %v10103 = vld [vmem:[%s10101 + $0x8] sm:$0xff]
        %v10104 = vld [vmem:[%s10101 + $0x10] sm:$0xff]
        %v10105 = vld [vmem:[%s10101 + $0x18] sm:$0xff]
        %v10106 = vld [vmem:[%s10101 + $0x20] sm:$0xff]
        %v10107 = vld [vmem:[%s10101 + $0x28] sm:$0xff]
        %v10108 = vld [vmem:[%s10101 + $0x30] sm:$0xff]
        %v10109 = vld [vmem:[%s10101 + $0x38] sm:$0xff]
        %v10110 = vld [vmem:[%s10101 + $0x40] sm:$0xff]
        %v10111 = vld [vmem:[%s10101 + $0x48] sm:$0xff]
        %v10112 = vld [vmem:[%s10101 + $0x50] sm:$0xff]
        %v10113 = vld [vmem:[%s10101 + $0x58] sm:$0xff]
        %v10114 = vld [vmem:[%s10101 + $0x60] sm:$0xff]
        %v10115 = vld [vmem:[%s10101 + $0x68] sm:$0xff]
        %v10116 = vld [vmem:[%s10101 + $0x70] sm:$0xff]
        %v10117 = vld [vmem:[%s10101 + $0x78] sm:$0xff]
        %v10118 = vld [vmem:[%s10101 + $0x80] sm:$0xff]
        %v10119 = vld [vmem:[%s10101 + $0x88] sm:$0xff]
        %v10120 = vld [vmem:[%s10101 + $0x90] sm:$0xff]
        %v10121 = vld [vmem:[%s10101 + $0x98] sm:$0xff]
        %v10122 = vld [vmem:[%s10101 + $0xa0] sm:$0xff]
        %v10123 = vld [vmem:[%s10101 + $0xa8] sm:$0xff]
        %v10124 = vld [vmem:[%s10101 + $0xb0] sm:$0xff]
        %v10125 = vld [vmem:[%s10101 + $0xb8] sm:$0xff]
        %v10126 = vld [vmem:[%s10101 + $0xc0] sm:$0xff]
        %v10127 = vld [vmem:[%s10101 + $0xc8] sm:$0xff]
        %v10128 = vld [vmem:[%s10101 + $0xd0] sm:$0xff]
        %v10129 = vld [vmem:[%s10101 + $0xd8] sm:$0xff]
        %v10130 = vld [vmem:[%s10101 + $0xe0] sm:$0xff]
        %v10131 = vld [vmem:[%s10101 + $0xe8] sm:$0xff]
        %v10132 = vld [vmem:[%s10101 + $0xf0] sm:$0xff]
        %v10133 = vld [vmem:[%s10101 + $0xf8] sm:$0xff]
        %s10134 = scalar_lea.vmem [#allocation16], 20
        %v10135 = vld [vmem:[%s10134] sm:$0x3]
        %v10137 = vlaneseq
        %v10138 = vshrl.u32 %v10137, 7
        %v10139 = vsub.s32 0, %v10138
        %v10140 = vrot.slane %v10135, %v10139
        %v10141 = vlaneseq
        %v10142 = vshrl.u32 %v10141, 7
        %v10143 = vsub.s32 1, %v10142
        %v10144 = vrot.slane %v10135, %v10143
        %v10179 = vunpack.c.l.b16 %v10102
        %v10180 = vunpack.c.h.b16 %v10102
        %v10181 = vunpack.c.l.b16 %v10103
        %v10182 = vunpack.c.h.b16 %v10103
        %v10183 = vunpack.c.l.b16 %v10104
        %v10184 = vunpack.c.h.b16 %v10104
        %v10185 = vunpack.c.l.b16 %v10105
        %v10186 = vunpack.c.h.b16 %v10105
        %v10187 = vunpack.c.l.b16 %v10106
        %v10188 = vunpack.c.h.b16 %v10106
        %v10189 = vunpack.c.l.b16 %v10107
        %v10190 = vunpack.c.h.b16 %v10107
        %v10191 = vunpack.c.l.b16 %v10108
        %v10192 = vunpack.c.h.b16 %v10108
        %v10193 = vunpack.c.l.b16 %v10109
        %v10194 = vunpack.c.h.b16 %v10109
        %v10195 = vunpack.c.l.b16 %v10110
        %v10196 = vunpack.c.h.b16 %v10110
        %v10197 = vunpack.c.l.b16 %v10111
        %v10198 = vunpack.c.h.b16 %v10111
        %v10199 = vunpack.c.l.b16 %v10112
        %v10200 = vunpack.c.h.b16 %v10112
        %v10201 = vunpack.c.l.b16 %v10113
        %v10202 = vunpack.c.h.b16 %v10113
        %v10203 = vunpack.c.l.b16 %v10114
        %v10204 = vunpack.c.h.b16 %v10114
        %v10205 = vunpack.c.l.b16 %v10115
        %v10206 = vunpack.c.h.b16 %v10115
        %v10207 = vunpack.c.l.b16 %v10116
        %v10208 = vunpack.c.h.b16 %v10116
        %v10209 = vunpack.c.l.b16 %v10117
        %v10210 = vunpack.c.h.b16 %v10117
        %v10211 = vunpack.c.l.b16 %v10118
        %v10212 = vunpack.c.h.b16 %v10118
        %v10213 = vunpack.c.l.b16 %v10119
        %v10214 = vunpack.c.h.b16 %v10119
        %v10215 = vunpack.c.l.b16 %v10120
        %v10216 = vunpack.c.h.b16 %v10120
        %v10217 = vunpack.c.l.b16 %v10121
        %v10218 = vunpack.c.h.b16 %v10121
        %v10219 = vunpack.c.l.b16 %v10122
        %v10220 = vunpack.c.h.b16 %v10122
        %v10221 = vunpack.c.l.b16 %v10123
        %v10222 = vunpack.c.h.b16 %v10123
        %v10223 = vunpack.c.l.b16 %v10124
        %v10224 = vunpack.c.h.b16 %v10124
        %v10225 = vunpack.c.l.b16 %v10125
        %v10226 = vunpack.c.h.b16 %v10125
        %v10227 = vunpack.c.l.b16 %v10126
        %v10228 = vunpack.c.h.b16 %v10126
        %v10229 = vunpack.c.l.b16 %v10127
        %v10230 = vunpack.c.h.b16 %v10127
        %v10231 = vunpack.c.l.b16 %v10128
        %v10232 = vunpack.c.h.b16 %v10128
        %v10233 = vunpack.c.l.b16 %v10129
        %v10234 = vunpack.c.h.b16 %v10129
        %v10235 = vunpack.c.l.b16 %v10130
        %v10236 = vunpack.c.h.b16 %v10130
        %v10237 = vunpack.c.l.b16 %v10131
        %v10238 = vunpack.c.h.b16 %v10131
        %v10239 = vunpack.c.l.b16 %v10132
        %v10240 = vunpack.c.h.b16 %v10132
        %v10241 = vunpack.c.l.b16 %v10133
        %v10242 = vunpack.c.h.b16 %v10133
        %v10243 = vpack.c.b16 %v10181, %v10179
        %v10244 = vpack.c.b16 %v10182, %v10180
        %v10245 = vpack.c.b16 %v10185, %v10183
        %v10246 = vpack.c.b16 %v10186, %v10184
        %v10247 = vpack.c.b16 %v10189, %v10187
        %v10248 = vpack.c.b16 %v10190, %v10188
        %v10249 = vpack.c.b16 %v10193, %v10191
        %v10250 = vpack.c.b16 %v10194, %v10192
        %v10251 = vpack.c.b16 %v10197, %v10195
        %v10252 = vpack.c.b16 %v10198, %v10196
        %v10253 = vpack.c.b16 %v10201, %v10199
        %v10254 = vpack.c.b16 %v10202, %v10200
        %v10255 = vpack.c.b16 %v10205, %v10203
        %v10256 = vpack.c.b16 %v10206, %v10204
        %v10257 = vpack.c.b16 %v10209, %v10207
        %v10258 = vpack.c.b16 %v10210, %v10208
        %v10259 = vpack.c.b16 %v10213, %v10211
        %v10260 = vpack.c.b16 %v10214, %v10212
        %v10261 = vpack.c.b16 %v10217, %v10215
        %v10262 = vpack.c.b16 %v10218, %v10216
        %v10263 = vpack.c.b16 %v10221, %v10219
        %v10264 = vpack.c.b16 %v10222, %v10220
        %v10265 = vpack.c.b16 %v10225, %v10223
        %v10266 = vpack.c.b16 %v10226, %v10224
        %v10267 = vpack.c.b16 %v10229, %v10227
        %v10268 = vpack.c.b16 %v10230, %v10228
        %v10269 = vpack.c.b16 %v10233, %v10231
        %v10270 = vpack.c.b16 %v10234, %v10232
        %v10271 = vpack.c.b16 %v10237, %v10235
        %v10272 = vpack.c.b16 %v10238, %v10236
        %v10273 = vpack.c.b16 %v10241, %v10239
        %v10274 = vpack.c.b16 %v10242, %v10240
        %10307 = vmatprep.subr.bf16.mxu0 %v10244
        %10308 = vmatpush1.bf16.msra.mxu0 %v10243
        %10309 = vmatprep.subr.bf16.mxu0 %v10246
        %10310 = vmatpush1.bf16.msra.mxu0 %v10245
        %10311 = vmatprep.subr.bf16.mxu0 %v10248
        %10312 = vmatpush1.bf16.msra.mxu0 %v10247
        %10313 = vmatprep.subr.bf16.mxu0 %v10250
        %10314 = vmatpush1.bf16.msra.mxu0 %v10249
        %10315 = vmatprep.subr.bf16.mxu0 %v10252
        %10316 = vmatpush1.bf16.msra.mxu0 %v10251
        %10317 = vmatprep.subr.bf16.mxu0 %v10254
        %10318 = vmatpush1.bf16.msra.mxu0 %v10253
        %10319 = vmatprep.subr.bf16.mxu0 %v10256
        %10320 = vmatpush1.bf16.msra.mxu0 %v10255
        %10321 = vmatprep.subr.bf16.mxu0 %v10258
        %10322 = vmatpush1.bf16.msra.mxu0 %v10257
        %10323 = vmatprep.subr.bf16.mxu0 %v10260
        %10324 = vmatpush1.bf16.msra.mxu0 %v10259
        %10325 = vmatprep.subr.bf16.mxu0 %v10262
        %10326 = vmatpush1.bf16.msra.mxu0 %v10261
        %10327 = vmatprep.subr.bf16.mxu0 %v10264
        %10328 = vmatpush1.bf16.msra.mxu0 %v10263
        %10329 = vmatprep.subr.bf16.mxu0 %v10266
        %10330 = vmatpush1.bf16.msra.mxu0 %v10265
        %10331 = vmatprep.subr.bf16.mxu0 %v10268
        %10332 = vmatpush1.bf16.msra.mxu0 %v10267
        %10333 = vmatprep.subr.bf16.mxu0 %v10270
        %10334 = vmatpush1.bf16.msra.mxu0 %v10269
        %10335 = vmatprep.subr.bf16.mxu0 %v10272
        %10336 = vmatpush1.bf16.msra.mxu0 %v10271
        %10337 = vmatprep.subr.bf16.mxu0 %v10274
        %10338 = vmatpush1.bf16.msra.mxu0 %v10273
        %10339 = vmatprep.mubr.bf16.mxu0 %v9113
        %10340 = vmatmul.mubr.bf16.gmra.mrb[0].mxu0 %v9112
        %v10341 = vpop.f32.mrb[0].mxu0
        %v10342 = vadd.f32 %v10140, %v10341
        %v10343 = vpop.f32.mrb[0].mxu0
        %v10344 = vadd.f32 %v10144, %v10343
        %v10345 = vpop.f32.mrb[0].mxu0
        %v10346 = vpop.f32.mrb[0].mxu0
        %10347 = vdwg.mxu0
        %v10348 = vmax.f32 %v10342, 0.0
        %v10349 = vmax.f32 %v10344, 0.0
        %v10350 = vpack.c.bf16 %v10348, %v10348
        %v10351 = vpack.c.bf16 %v10349, %v10349
        %s10352 = scalar_lea.vmem [#allocation17], 2560
        %v10353 = vld [vmem:[%s10352] sm:$0xff]
        %v10354 = vld [vmem:[%s10352 + $0x8] sm:$0xff]
        %v10355 = vld [vmem:[%s10352 + $0x10] sm:$0xff]
        %v10356 = vld [vmem:[%s10352 + $0x18] sm:$0xff]
        %v10357 = vld [vmem:[%s10352 + $0x20] sm:$0xff]
        %v10358 = vld [vmem:[%s10352 + $0x28] sm:$0xff]
        %v10359 = vld [vmem:[%s10352 + $0x30] sm:$0xff]
        %v10360 = vld [vmem:[%s10352 + $0x38] sm:$0xff]
        %v10361 = vld [vmem:[%s10352 + $0x40] sm:$0xff]
        %v10362 = vld [vmem:[%s10352 + $0x48] sm:$0xff]
        %v10363 = vld [vmem:[%s10352 + $0x50] sm:$0xff]
        %v10364 = vld [vmem:[%s10352 + $0x58] sm:$0xff]
        %v10365 = vld [vmem:[%s10352 + $0x60] sm:$0xff]
        %v10366 = vld [vmem:[%s10352 + $0x68] sm:$0xff]
        %v10367 = vld [vmem:[%s10352 + $0x70] sm:$0xff]
        %v10368 = vld [vmem:[%s10352 + $0x78] sm:$0xff]
        %v10369 = vld [vmem:[%s10352 + $0x80] sm:$0xff]
        %v10370 = vld [vmem:[%s10352 + $0x88] sm:$0xff]
        %v10371 = vld [vmem:[%s10352 + $0x90] sm:$0xff]
        %v10372 = vld [vmem:[%s10352 + $0x98] sm:$0xff]
        %v10373 = vld [vmem:[%s10352 + $0xa0] sm:$0xff]
        %v10374 = vld [vmem:[%s10352 + $0xa8] sm:$0xff]
        %v10375 = vld [vmem:[%s10352 + $0xb0] sm:$0xff]
        %v10376 = vld [vmem:[%s10352 + $0xb8] sm:$0xff]
        %v10377 = vld [vmem:[%s10352 + $0xc0] sm:$0xff]
        %v10378 = vld [vmem:[%s10352 + $0xc8] sm:$0xff]
        %v10379 = vld [vmem:[%s10352 + $0xd0] sm:$0xff]
        %v10380 = vld [vmem:[%s10352 + $0xd8] sm:$0xff]
        %v10381 = vld [vmem:[%s10352 + $0xe0] sm:$0xff]
        %v10382 = vld [vmem:[%s10352 + $0xe8] sm:$0xff]
        %v10383 = vld [vmem:[%s10352 + $0xf0] sm:$0xff]
        %v10384 = vld [vmem:[%s10352 + $0xf8] sm:$0xff]
        %v10417 = vunpack.c.l.b16 %v10353
        %v10418 = vunpack.c.h.b16 %v10353
        %v10419 = vunpack.c.l.b16 %v10354
        %v10420 = vunpack.c.h.b16 %v10354
        %v10421 = vunpack.c.l.b16 %v10355
        %v10422 = vunpack.c.h.b16 %v10355
        %v10423 = vunpack.c.l.b16 %v10356
        %v10424 = vunpack.c.h.b16 %v10356
        %v10425 = vunpack.c.l.b16 %v10357
        %v10426 = vunpack.c.h.b16 %v10357
        %v10427 = vunpack.c.l.b16 %v10358
        %v10428 = vunpack.c.h.b16 %v10358
        %v10429 = vunpack.c.l.b16 %v10359
        %v10430 = vunpack.c.h.b16 %v10359
        %v10431 = vunpack.c.l.b16 %v10360
        %v10432 = vunpack.c.h.b16 %v10360
        %v10433 = vunpack.c.l.b16 %v10361
        %v10434 = vunpack.c.h.b16 %v10361
        %v10435 = vunpack.c.l.b16 %v10362
        %v10436 = vunpack.c.h.b16 %v10362
        %v10437 = vunpack.c.l.b16 %v10363
        %v10438 = vunpack.c.h.b16 %v10363
        %v10439 = vunpack.c.l.b16 %v10364
        %v10440 = vunpack.c.h.b16 %v10364
        %v10441 = vunpack.c.l.b16 %v10365
        %v10442 = vunpack.c.h.b16 %v10365
        %v10443 = vunpack.c.l.b16 %v10366
        %v10444 = vunpack.c.h.b16 %v10366
        %v10445 = vunpack.c.l.b16 %v10367
        %v10446 = vunpack.c.h.b16 %v10367
        %v10447 = vunpack.c.l.b16 %v10368
        %v10448 = vunpack.c.h.b16 %v10368
        %v10449 = vunpack.c.l.b16 %v10369
        %v10450 = vunpack.c.h.b16 %v10369
        %v10451 = vunpack.c.l.b16 %v10370
        %v10452 = vunpack.c.h.b16 %v10370
        %v10453 = vunpack.c.l.b16 %v10371
        %v10454 = vunpack.c.h.b16 %v10371
        %v10455 = vunpack.c.l.b16 %v10372
        %v10456 = vunpack.c.h.b16 %v10372
        %v10457 = vunpack.c.l.b16 %v10373
        %v10458 = vunpack.c.h.b16 %v10373
        %v10459 = vunpack.c.l.b16 %v10374
        %v10460 = vunpack.c.h.b16 %v10374
        %v10461 = vunpack.c.l.b16 %v10375
        %v10462 = vunpack.c.h.b16 %v10375
        %v10463 = vunpack.c.l.b16 %v10376
        %v10464 = vunpack.c.h.b16 %v10376
        %v10465 = vunpack.c.l.b16 %v10377
        %v10466 = vunpack.c.h.b16 %v10377
        %v10467 = vunpack.c.l.b16 %v10378
        %v10468 = vunpack.c.h.b16 %v10378
        %v10469 = vunpack.c.l.b16 %v10379
        %v10470 = vunpack.c.h.b16 %v10379
        %v10471 = vunpack.c.l.b16 %v10380
        %v10472 = vunpack.c.h.b16 %v10380
        %v10473 = vunpack.c.l.b16 %v10381
        %v10474 = vunpack.c.h.b16 %v10381
        %v10475 = vunpack.c.l.b16 %v10382
        %v10476 = vunpack.c.h.b16 %v10382
        %v10477 = vunpack.c.l.b16 %v10383
        %v10478 = vunpack.c.h.b16 %v10383
        %v10479 = vunpack.c.l.b16 %v10384
        %v10480 = vunpack.c.h.b16 %v10384
        %v10481 = vpack.c.b16 %v10419, %v10417
        %v10482 = vpack.c.b16 %v10420, %v10418
        %v10483 = vpack.c.b16 %v10423, %v10421
        %v10484 = vpack.c.b16 %v10424, %v10422
        %v10485 = vpack.c.b16 %v10427, %v10425
        %v10486 = vpack.c.b16 %v10428, %v10426
        %v10487 = vpack.c.b16 %v10431, %v10429
        %v10488 = vpack.c.b16 %v10432, %v10430
        %v10489 = vpack.c.b16 %v10435, %v10433
        %v10490 = vpack.c.b16 %v10436, %v10434
        %v10491 = vpack.c.b16 %v10439, %v10437
        %v10492 = vpack.c.b16 %v10440, %v10438
        %v10493 = vpack.c.b16 %v10443, %v10441
        %v10494 = vpack.c.b16 %v10444, %v10442
        %v10495 = vpack.c.b16 %v10447, %v10445
        %v10496 = vpack.c.b16 %v10448, %v10446
        %v10497 = vpack.c.b16 %v10451, %v10449
        %v10498 = vpack.c.b16 %v10452, %v10450
        %v10499 = vpack.c.b16 %v10455, %v10453
        %v10500 = vpack.c.b16 %v10456, %v10454
        %v10501 = vpack.c.b16 %v10459, %v10457
        %v10502 = vpack.c.b16 %v10460, %v10458
        %v10503 = vpack.c.b16 %v10463, %v10461
        %v10504 = vpack.c.b16 %v10464, %v10462
        %v10505 = vpack.c.b16 %v10467, %v10465
        %v10506 = vpack.c.b16 %v10468, %v10466
        %v10507 = vpack.c.b16 %v10471, %v10469
        %v10508 = vpack.c.b16 %v10472, %v10470
        %v10509 = vpack.c.b16 %v10475, %v10473
        %v10510 = vpack.c.b16 %v10476, %v10474
        %v10511 = vpack.c.b16 %v10479, %v10477
        %v10512 = vpack.c.b16 %v10480, %v10478
        %10545 = vmatprep.subr.bf16.mxu0 %v10482
        %10546 = vmatpush1.bf16.msra.mxu0 %v10481
        %10547 = vmatprep.subr.bf16.mxu0 %v10484
        %10548 = vmatpush1.bf16.msra.mxu0 %v10483
        %10549 = vmatprep.subr.bf16.mxu0 %v10486
        %10550 = vmatpush1.bf16.msra.mxu0 %v10485
        %10551 = vmatprep.subr.bf16.mxu0 %v10488
        %10552 = vmatpush1.bf16.msra.mxu0 %v10487
        %10553 = vmatprep.subr.bf16.mxu0 %v10490
        %10554 = vmatpush1.bf16.msra.mxu0 %v10489
        %10555 = vmatprep.subr.bf16.mxu0 %v10492
        %10556 = vmatpush1.bf16.msra.mxu0 %v10491
        %10557 = vmatprep.subr.bf16.mxu0 %v10494
        %10558 = vmatpush1.bf16.msra.mxu0 %v10493
        %10559 = vmatprep.subr.bf16.mxu0 %v10496
        %10560 = vmatpush1.bf16.msra.mxu0 %v10495
        %10561 = vmatprep.subr.bf16.mxu0 %v10498
        %10562 = vmatpush1.bf16.msra.mxu0 %v10497
        %10563 = vmatprep.subr.bf16.mxu0 %v10500
        %10564 = vmatpush1.bf16.msra.mxu0 %v10499
        %10565 = vmatprep.subr.bf16.mxu0 %v10502
        %10566 = vmatpush1.bf16.msra.mxu0 %v10501
        %10567 = vmatprep.subr.bf16.mxu0 %v10504
        %10568 = vmatpush1.bf16.msra.mxu0 %v10503
        %10569 = vmatprep.subr.bf16.mxu0 %v10506
        %10570 = vmatpush1.bf16.msra.mxu0 %v10505
        %10571 = vmatprep.subr.bf16.mxu0 %v10508
        %10572 = vmatpush1.bf16.msra.mxu0 %v10507
        %10573 = vmatprep.subr.bf16.mxu0 %v10510
        %10574 = vmatpush1.bf16.msra.mxu0 %v10509
        %10575 = vmatprep.subr.bf16.mxu0 %v10512
        %10576 = vmatpush1.bf16.msra.mxu0 %v10511
        %10577 = vmatprep.mubr.bf16.mxu0 %v10351
        %10578 = vmatmul.mubr.bf16.gmra.mrb[0].mxu0 %v10350
        %v10579 = vpop.f32.mrb[0].mxu0
        %v10580 = vadd.f32 0.0, %v10579
        %v10581 = vpop.f32.mrb[0].mxu0
        %v10582 = vadd.f32 0.0, %v10581
        %v10583 = vpop.f32.mrb[0].mxu0
        %v10584 = vpop.f32.mrb[0].mxu0
        %10585 = vdwg.mxu0
        %v10586 = vadd.f32 %v10099, %v10580
        %v10587 = vadd.f32 %v10100, %v10582
        %s10588 = scalar_lea.vmem [#allocation14], 2816
        %v10589 = vld [vmem:[%s10588] sm:$0xff]
        %v10590 = vld [vmem:[%s10588 + $0x8] sm:$0xff]
        %v10591 = vld [vmem:[%s10588 + $0x10] sm:$0xff]
        %v10592 = vld [vmem:[%s10588 + $0x18] sm:$0xff]
        %v10593 = vld [vmem:[%s10588 + $0x20] sm:$0xff]
        %v10594 = vld [vmem:[%s10588 + $0x28] sm:$0xff]
        %v10595 = vld [vmem:[%s10588 + $0x30] sm:$0xff]
        %v10596 = vld [vmem:[%s10588 + $0x38] sm:$0xff]
        %v10597 = vld [vmem:[%s10588 + $0x40] sm:$0xff]
        %v10598 = vld [vmem:[%s10588 + $0x48] sm:$0xff]
        %v10599 = vld [vmem:[%s10588 + $0x50] sm:$0xff]
        %v10600 = vld [vmem:[%s10588 + $0x58] sm:$0xff]
        %v10601 = vld [vmem:[%s10588 + $0x60] sm:$0xff]
        %v10602 = vld [vmem:[%s10588 + $0x68] sm:$0xff]
        %v10603 = vld [vmem:[%s10588 + $0x70] sm:$0xff]
        %v10604 = vld [vmem:[%s10588 + $0x78] sm:$0xff]
        %v10605 = vld [vmem:[%s10588 + $0x80] sm:$0xff]
        %v10606 = vld [vmem:[%s10588 + $0x88] sm:$0xff]
        %v10607 = vld [vmem:[%s10588 + $0x90] sm:$0xff]
        %v10608 = vld [vmem:[%s10588 + $0x98] sm:$0xff]
        %v10609 = vld [vmem:[%s10588 + $0xa0] sm:$0xff]
        %v10610 = vld [vmem:[%s10588 + $0xa8] sm:$0xff]
        %v10611 = vld [vmem:[%s10588 + $0xb0] sm:$0xff]
        %v10612 = vld [vmem:[%s10588 + $0xb8] sm:$0xff]
        %v10613 = vld [vmem:[%s10588 + $0xc0] sm:$0xff]
        %v10614 = vld [vmem:[%s10588 + $0xc8] sm:$0xff]
        %v10615 = vld [vmem:[%s10588 + $0xd0] sm:$0xff]
        %v10616 = vld [vmem:[%s10588 + $0xd8] sm:$0xff]
        %v10617 = vld [vmem:[%s10588 + $0xe0] sm:$0xff]
        %v10618 = vld [vmem:[%s10588 + $0xe8] sm:$0xff]
        %v10619 = vld [vmem:[%s10588 + $0xf0] sm:$0xff]
        %v10620 = vld [vmem:[%s10588 + $0xf8] sm:$0xff]
        %s10621 = scalar_lea.vmem [#allocation16], 22
        %v10622 = vld [vmem:[%s10621] sm:$0x3]
        %v10624 = vlaneseq
        %v10625 = vshrl.u32 %v10624, 7
        %v10626 = vsub.s32 0, %v10625
        %v10627 = vrot.slane %v10622, %v10626
        %v10628 = vlaneseq
        %v10629 = vshrl.u32 %v10628, 7
        %v10630 = vsub.s32 1, %v10629
        %v10631 = vrot.slane %v10622, %v10630
        %v10666 = vunpack.c.l.b16 %v10589
        %v10667 = vunpack.c.h.b16 %v10589
        %v10668 = vunpack.c.l.b16 %v10590
        %v10669 = vunpack.c.h.b16 %v10590
        %v10670 = vunpack.c.l.b16 %v10591
        %v10671 = vunpack.c.h.b16 %v10591
        %v10672 = vunpack.c.l.b16 %v10592
        %v10673 = vunpack.c.h.b16 %v10592
        %v10674 = vunpack.c.l.b16 %v10593
        %v10675 = vunpack.c.h.b16 %v10593
        %v10676 = vunpack.c.l.b16 %v10594
        %v10677 = vunpack.c.h.b16 %v10594
        %v10678 = vunpack.c.l.b16 %v10595
        %v10679 = vunpack.c.h.b16 %v10595
        %v10680 = vunpack.c.l.b16 %v10596
        %v10681 = vunpack.c.h.b16 %v10596
        %v10682 = vunpack.c.l.b16 %v10597
        %v10683 = vunpack.c.h.b16 %v10597
        %v10684 = vunpack.c.l.b16 %v10598
        %v10685 = vunpack.c.h.b16 %v10598
        %v10686 = vunpack.c.l.b16 %v10599
        %v10687 = vunpack.c.h.b16 %v10599
        %v10688 = vunpack.c.l.b16 %v10600
        %v10689 = vunpack.c.h.b16 %v10600
        %v10690 = vunpack.c.l.b16 %v10601
        %v10691 = vunpack.c.h.b16 %v10601
        %v10692 = vunpack.c.l.b16 %v10602
        %v10693 = vunpack.c.h.b16 %v10602
        %v10694 = vunpack.c.l.b16 %v10603
        %v10695 = vunpack.c.h.b16 %v10603
        %v10696 = vunpack.c.l.b16 %v10604
        %v10697 = vunpack.c.h.b16 %v10604
        %v10698 = vunpack.c.l.b16 %v10605
        %v10699 = vunpack.c.h.b16 %v10605
        %v10700 = vunpack.c.l.b16 %v10606
        %v10701 = vunpack.c.h.b16 %v10606
        %v10702 = vunpack.c.l.b16 %v10607
        %v10703 = vunpack.c.h.b16 %v10607
        %v10704 = vunpack.c.l.b16 %v10608
        %v10705 = vunpack.c.h.b16 %v10608
        %v10706 = vunpack.c.l.b16 %v10609
        %v10707 = vunpack.c.h.b16 %v10609
        %v10708 = vunpack.c.l.b16 %v10610
        %v10709 = vunpack.c.h.b16 %v10610
        %v10710 = vunpack.c.l.b16 %v10611
        %v10711 = vunpack.c.h.b16 %v10611
        %v10712 = vunpack.c.l.b16 %v10612
        %v10713 = vunpack.c.h.b16 %v10612
        %v10714 = vunpack.c.l.b16 %v10613
        %v10715 = vunpack.c.h.b16 %v10613
        %v10716 = vunpack.c.l.b16 %v10614
        %v10717 = vunpack.c.h.b16 %v10614
        %v10718 = vunpack.c.l.b16 %v10615
        %v10719 = vunpack.c.h.b16 %v10615
        %v10720 = vunpack.c.l.b16 %v10616
        %v10721 = vunpack.c.h.b16 %v10616
        %v10722 = vunpack.c.l.b16 %v10617
        %v10723 = vunpack.c.h.b16 %v10617
        %v10724 = vunpack.c.l.b16 %v10618
        %v10725 = vunpack.c.h.b16 %v10618
        %v10726 = vunpack.c.l.b16 %v10619
        %v10727 = vunpack.c.h.b16 %v10619
        %v10728 = vunpack.c.l.b16 %v10620
        %v10729 = vunpack.c.h.b16 %v10620
        %v10730 = vpack.c.b16 %v10668, %v10666
        %v10731 = vpack.c.b16 %v10669, %v10667
        %v10732 = vpack.c.b16 %v10672, %v10670
        %v10733 = vpack.c.b16 %v10673, %v10671
        %v10734 = vpack.c.b16 %v10676, %v10674
        %v10735 = vpack.c.b16 %v10677, %v10675
        %v10736 = vpack.c.b16 %v10680, %v10678
        %v10737 = vpack.c.b16 %v10681, %v10679
        %v10738 = vpack.c.b16 %v10684, %v10682
        %v10739 = vpack.c.b16 %v10685, %v10683
        %v10740 = vpack.c.b16 %v10688, %v10686
        %v10741 = vpack.c.b16 %v10689, %v10687
        %v10742 = vpack.c.b16 %v10692, %v10690
        %v10743 = vpack.c.b16 %v10693, %v10691
        %v10744 = vpack.c.b16 %v10696, %v10694
        %v10745 = vpack.c.b16 %v10697, %v10695
        %v10746 = vpack.c.b16 %v10700, %v10698
        %v10747 = vpack.c.b16 %v10701, %v10699
        %v10748 = vpack.c.b16 %v10704, %v10702
        %v10749 = vpack.c.b16 %v10705, %v10703
        %v10750 = vpack.c.b16 %v10708, %v10706
        %v10751 = vpack.c.b16 %v10709, %v10707
        %v10752 = vpack.c.b16 %v10712, %v10710
        %v10753 = vpack.c.b16 %v10713, %v10711
        %v10754 = vpack.c.b16 %v10716, %v10714
        %v10755 = vpack.c.b16 %v10717, %v10715
        %v10756 = vpack.c.b16 %v10720, %v10718
        %v10757 = vpack.c.b16 %v10721, %v10719
        %v10758 = vpack.c.b16 %v10724, %v10722
        %v10759 = vpack.c.b16 %v10725, %v10723
        %v10760 = vpack.c.b16 %v10728, %v10726
        %v10761 = vpack.c.b16 %v10729, %v10727
        %10794 = vmatprep.subr.bf16.mxu0 %v10731
        %10795 = vmatpush1.bf16.msra.mxu0 %v10730
        %10796 = vmatprep.subr.bf16.mxu0 %v10733
        %10797 = vmatpush1.bf16.msra.mxu0 %v10732
        %10798 = vmatprep.subr.bf16.mxu0 %v10735
        %10799 = vmatpush1.bf16.msra.mxu0 %v10734
        %10800 = vmatprep.subr.bf16.mxu0 %v10737
        %10801 = vmatpush1.bf16.msra.mxu0 %v10736
        %10802 = vmatprep.subr.bf16.mxu0 %v10739
        %10803 = vmatpush1.bf16.msra.mxu0 %v10738
        %10804 = vmatprep.subr.bf16.mxu0 %v10741
        %10805 = vmatpush1.bf16.msra.mxu0 %v10740
        %10806 = vmatprep.subr.bf16.mxu0 %v10743
        %10807 = vmatpush1.bf16.msra.mxu0 %v10742
        %10808 = vmatprep.subr.bf16.mxu0 %v10745
        %10809 = vmatpush1.bf16.msra.mxu0 %v10744
        %10810 = vmatprep.subr.bf16.mxu0 %v10747
        %10811 = vmatpush1.bf16.msra.mxu0 %v10746
        %10812 = vmatprep.subr.bf16.mxu0 %v10749
        %10813 = vmatpush1.bf16.msra.mxu0 %v10748
        %10814 = vmatprep.subr.bf16.mxu0 %v10751
        %10815 = vmatpush1.bf16.msra.mxu0 %v10750
        %10816 = vmatprep.subr.bf16.mxu0 %v10753
        %10817 = vmatpush1.bf16.msra.mxu0 %v10752
        %10818 = vmatprep.subr.bf16.mxu0 %v10755
        %10819 = vmatpush1.bf16.msra.mxu0 %v10754
        %10820 = vmatprep.subr.bf16.mxu0 %v10757
        %10821 = vmatpush1.bf16.msra.mxu0 %v10756
        %10822 = vmatprep.subr.bf16.mxu0 %v10759
        %10823 = vmatpush1.bf16.msra.mxu0 %v10758
        %10824 = vmatprep.subr.bf16.mxu0 %v10761
        %10825 = vmatpush1.bf16.msra.mxu0 %v10760
        %10826 = vmatprep.mubr.bf16.mxu0 %v9113
        %10827 = vmatmul.mubr.bf16.gmra.mrb[0].mxu0 %v9112
        %v10828 = vpop.f32.mrb[0].mxu0
        %v10829 = vadd.f32 %v10627, %v10828
        %v10830 = vpop.f32.mrb[0].mxu0
        %v10831 = vadd.f32 %v10631, %v10830
        %v10832 = vpop.f32.mrb[0].mxu0
        %v10833 = vpop.f32.mrb[0].mxu0
        %10834 = vdwg.mxu0
        %v10835 = vmax.f32 %v10829, 0.0
        %v10836 = vmax.f32 %v10831, 0.0
        %v10837 = vpack.c.bf16 %v10835, %v10835
        %v10838 = vpack.c.bf16 %v10836, %v10836
        %s10839 = scalar_lea.vmem [#allocation17], 2816
        %v10840 = vld [vmem:[%s10839] sm:$0xff]
        %v10841 = vld [vmem:[%s10839 + $0x8] sm:$0xff]
        %v10842 = vld [vmem:[%s10839 + $0x10] sm:$0xff]
        %v10843 = vld [vmem:[%s10839 + $0x18] sm:$0xff]
        %v10844 = vld [vmem:[%s10839 + $0x20] sm:$0xff]
        %v10845 = vld [vmem:[%s10839 + $0x28] sm:$0xff]
        %v10846 = vld [vmem:[%s10839 + $0x30] sm:$0xff]
        %v10847 = vld [vmem:[%s10839 + $0x38] sm:$0xff]
        %v10848 = vld [vmem:[%s10839 + $0x40] sm:$0xff]
        %v10849 = vld [vmem:[%s10839 + $0x48] sm:$0xff]
        %v10850 = vld [vmem:[%s10839 + $0x50] sm:$0xff]
        %v10851 = vld [vmem:[%s10839 + $0x58] sm:$0xff]
        %v10852 = vld [vmem:[%s10839 + $0x60] sm:$0xff]
        %v10853 = vld [vmem:[%s10839 + $0x68] sm:$0xff]
        %v10854 = vld [vmem:[%s10839 + $0x70] sm:$0xff]
        %v10855 = vld [vmem:[%s10839 + $0x78] sm:$0xff]
        %v10856 = vld [vmem:[%s10839 + $0x80] sm:$0xff]
        %v10857 = vld [vmem:[%s10839 + $0x88] sm:$0xff]
        %v10858 = vld [vmem:[%s10839 + $0x90] sm:$0xff]
        %v10859 = vld [vmem:[%s10839 + $0x98] sm:$0xff]
        %v10860 = vld [vmem:[%s10839 + $0xa0] sm:$0xff]
        %v10861 = vld [vmem:[%s10839 + $0xa8] sm:$0xff]
        %v10862 = vld [vmem:[%s10839 + $0xb0] sm:$0xff]
        %v10863 = vld [vmem:[%s10839 + $0xb8] sm:$0xff]
        %v10864 = vld [vmem:[%s10839 + $0xc0] sm:$0xff]
        %v10865 = vld [vmem:[%s10839 + $0xc8] sm:$0xff]
        %v10866 = vld [vmem:[%s10839 + $0xd0] sm:$0xff]
        %v10867 = vld [vmem:[%s10839 + $0xd8] sm:$0xff]
        %v10868 = vld [vmem:[%s10839 + $0xe0] sm:$0xff]
        %v10869 = vld [vmem:[%s10839 + $0xe8] sm:$0xff]
        %v10870 = vld [vmem:[%s10839 + $0xf0] sm:$0xff]
        %v10871 = vld [vmem:[%s10839 + $0xf8] sm:$0xff]
        %v10904 = vunpack.c.l.b16 %v10840
        %v10905 = vunpack.c.h.b16 %v10840
        %v10906 = vunpack.c.l.b16 %v10841
        %v10907 = vunpack.c.h.b16 %v10841
        %v10908 = vunpack.c.l.b16 %v10842
        %v10909 = vunpack.c.h.b16 %v10842
        %v10910 = vunpack.c.l.b16 %v10843
        %v10911 = vunpack.c.h.b16 %v10843
        %v10912 = vunpack.c.l.b16 %v10844
        %v10913 = vunpack.c.h.b16 %v10844
        %v10914 = vunpack.c.l.b16 %v10845
        %v10915 = vunpack.c.h.b16 %v10845
        %v10916 = vunpack.c.l.b16 %v10846
        %v10917 = vunpack.c.h.b16 %v10846
        %v10918 = vunpack.c.l.b16 %v10847
        %v10919 = vunpack.c.h.b16 %v10847
        %v10920 = vunpack.c.l.b16 %v10848
        %v10921 = vunpack.c.h.b16 %v10848
        %v10922 = vunpack.c.l.b16 %v10849
        %v10923 = vunpack.c.h.b16 %v10849
        %v10924 = vunpack.c.l.b16 %v10850
        %v10925 = vunpack.c.h.b16 %v10850
        %v10926 = vunpack.c.l.b16 %v10851
        %v10927 = vunpack.c.h.b16 %v10851
        %v10928 = vunpack.c.l.b16 %v10852
        %v10929 = vunpack.c.h.b16 %v10852
        %v10930 = vunpack.c.l.b16 %v10853
        %v10931 = vunpack.c.h.b16 %v10853
        %v10932 = vunpack.c.l.b16 %v10854
        %v10933 = vunpack.c.h.b16 %v10854
        %v10934 = vunpack.c.l.b16 %v10855
        %v10935 = vunpack.c.h.b16 %v10855
        %v10936 = vunpack.c.l.b16 %v10856
        %v10937 = vunpack.c.h.b16 %v10856
        %v10938 = vunpack.c.l.b16 %v10857
        %v10939 = vunpack.c.h.b16 %v10857
        %v10940 = vunpack.c.l.b16 %v10858
        %v10941 = vunpack.c.h.b16 %v10858
        %v10942 = vunpack.c.l.b16 %v10859
        %v10943 = vunpack.c.h.b16 %v10859
        %v10944 = vunpack.c.l.b16 %v10860
        %v10945 = vunpack.c.h.b16 %v10860
        %v10946 = vunpack.c.l.b16 %v10861
        %v10947 = vunpack.c.h.b16 %v10861
        %v10948 = vunpack.c.l.b16 %v10862
        %v10949 = vunpack.c.h.b16 %v10862
        %v10950 = vunpack.c.l.b16 %v10863
        %v10951 = vunpack.c.h.b16 %v10863
        %v10952 = vunpack.c.l.b16 %v10864
        %v10953 = vunpack.c.h.b16 %v10864
        %v10954 = vunpack.c.l.b16 %v10865
        %v10955 = vunpack.c.h.b16 %v10865
        %v10956 = vunpack.c.l.b16 %v10866
        %v10957 = vunpack.c.h.b16 %v10866
        %v10958 = vunpack.c.l.b16 %v10867
        %v10959 = vunpack.c.h.b16 %v10867
        %v10960 = vunpack.c.l.b16 %v10868
        %v10961 = vunpack.c.h.b16 %v10868
        %v10962 = vunpack.c.l.b16 %v10869
        %v10963 = vunpack.c.h.b16 %v10869
        %v10964 = vunpack.c.l.b16 %v10870
        %v10965 = vunpack.c.h.b16 %v10870
        %v10966 = vunpack.c.l.b16 %v10871
        %v10967 = vunpack.c.h.b16 %v10871
        %v10968 = vpack.c.b16 %v10906, %v10904
        %v10969 = vpack.c.b16 %v10907, %v10905
        %v10970 = vpack.c.b16 %v10910, %v10908
        %v10971 = vpack.c.b16 %v10911, %v10909
        %v10972 = vpack.c.b16 %v10914, %v10912
        %v10973 = vpack.c.b16 %v10915, %v10913
        %v10974 = vpack.c.b16 %v10918, %v10916
        %v10975 = vpack.c.b16 %v10919, %v10917
        %v10976 = vpack.c.b16 %v10922, %v10920
        %v10977 = vpack.c.b16 %v10923, %v10921
        %v10978 = vpack.c.b16 %v10926, %v10924
        %v10979 = vpack.c.b16 %v10927, %v10925
        %v10980 = vpack.c.b16 %v10930, %v10928
        %v10981 = vpack.c.b16 %v10931, %v10929
        %v10982 = vpack.c.b16 %v10934, %v10932
        %v10983 = vpack.c.b16 %v10935, %v10933
        %v10984 = vpack.c.b16 %v10938, %v10936
        %v10985 = vpack.c.b16 %v10939, %v10937
        %v10986 = vpack.c.b16 %v10942, %v10940
        %v10987 = vpack.c.b16 %v10943, %v10941
        %v10988 = vpack.c.b16 %v10946, %v10944
        %v10989 = vpack.c.b16 %v10947, %v10945
        %v10990 = vpack.c.b16 %v10950, %v10948
        %v10991 = vpack.c.b16 %v10951, %v10949
        %v10992 = vpack.c.b16 %v10954, %v10952
        %v10993 = vpack.c.b16 %v10955, %v10953
        %v10994 = vpack.c.b16 %v10958, %v10956
        %v10995 = vpack.c.b16 %v10959, %v10957
        %v10996 = vpack.c.b16 %v10962, %v10960
        %v10997 = vpack.c.b16 %v10963, %v10961
        %v10998 = vpack.c.b16 %v10966, %v10964
        %v10999 = vpack.c.b16 %v10967, %v10965
        %11032 = vmatprep.subr.bf16.mxu0 %v10969
        %11033 = vmatpush1.bf16.msra.mxu0 %v10968
        %11034 = vmatprep.subr.bf16.mxu0 %v10971
        %11035 = vmatpush1.bf16.msra.mxu0 %v10970
        %11036 = vmatprep.subr.bf16.mxu0 %v10973
        %11037 = vmatpush1.bf16.msra.mxu0 %v10972
        %11038 = vmatprep.subr.bf16.mxu0 %v10975
        %11039 = vmatpush1.bf16.msra.mxu0 %v10974
        %11040 = vmatprep.subr.bf16.mxu0 %v10977
        %11041 = vmatpush1.bf16.msra.mxu0 %v10976
        %11042 = vmatprep.subr.bf16.mxu0 %v10979
        %11043 = vmatpush1.bf16.msra.mxu0 %v10978
        %11044 = vmatprep.subr.bf16.mxu0 %v10981
        %11045 = vmatpush1.bf16.msra.mxu0 %v10980
        %11046 = vmatprep.subr.bf16.mxu0 %v10983
        %11047 = vmatpush1.bf16.msra.mxu0 %v10982
        %11048 = vmatprep.subr.bf16.mxu0 %v10985
        %11049 = vmatpush1.bf16.msra.mxu0 %v10984
        %11050 = vmatprep.subr.bf16.mxu0 %v10987
        %11051 = vmatpush1.bf16.msra.mxu0 %v10986
        %11052 = vmatprep.subr.bf16.mxu0 %v10989
        %11053 = vmatpush1.bf16.msra.mxu0 %v10988
        %11054 = vmatprep.subr.bf16.mxu0 %v10991
        %11055 = vmatpush1.bf16.msra.mxu0 %v10990
        %11056 = vmatprep.subr.bf16.mxu0 %v10993
        %11057 = vmatpush1.bf16.msra.mxu0 %v10992
        %11058 = vmatprep.subr.bf16.mxu0 %v10995
        %11059 = vmatpush1.bf16.msra.mxu0 %v10994
        %11060 = vmatprep.subr.bf16.mxu0 %v10997
        %11061 = vmatpush1.bf16.msra.mxu0 %v10996
        %11062 = vmatprep.subr.bf16.mxu0 %v10999
        %11063 = vmatpush1.bf16.msra.mxu0 %v10998
        %11064 = vmatprep.mubr.bf16.mxu0 %v10838
        %11065 = vmatmul.mubr.bf16.gmra.mrb[0].mxu0 %v10837
        %v11066 = vpop.f32.mrb[0].mxu0
        %v11067 = vadd.f32 0.0, %v11066
        %v11068 = vpop.f32.mrb[0].mxu0
        %v11069 = vadd.f32 0.0, %v11068
        %v11070 = vpop.f32.mrb[0].mxu0
        %v11071 = vpop.f32.mrb[0].mxu0
        %11072 = vdwg.mxu0
        %v11073 = vadd.f32 %v10586, %v11067
        %v11074 = vadd.f32 %v10587, %v11069
        %v11075 = vadd.f32 %v9110, %v11073
        %v11076 = vadd.f32 %v9111, %v11074
        %s11077 = scalar_lea.vmem [#allocation20], 4
        %v11078 = vld [vmem:[%s11077] sm:$0x3]
        %s11079 = scalar_lea.vmem [#allocation22], 4
        %v11080 = vld [vmem:[%s11079] sm:$0x3]
        %v11081 = vadd.f32 %v11075, %v11076
        %11082 = vadd.xlane.f32.xlu0 %v11081
        %v11083 = vpop.xlane.xlu0 %11082
        %v11084 = vmul.f32 %v11083, %v2080
        %v11085 = vsub.f32 %v11075, %v11084
        %v11086 = vsub.f32 %v11076, %v11084
        %v11087 = vmul.f32 %v11085, %v11085
        %v11088 = vmul.f32 %v11086, %v11086
        %v11089 = vadd.f32 %v11087, %v11088
        %11090 = vadd.xlane.f32.xlu0 %v11089
        %v11091 = vpop.xlane.xlu0 %11090
        %v11092 = vmul.f32 %v11091, %v2080
        %v11093 = vadd.f32 %v11092, 1e-05
        %v11094 = vrsqrt.pop %v11093
        %v11095 = vmul.f32 %v11085, %v11094
        %v11096 = vmul.f32 %v11086, %v11094
        %v11098 = vlaneseq
        %v11099 = vshrl.u32 %v11098, 7
        %v11100 = vsub.s32 0, %v11099
        %v11101 = vrot.slane %v11078, %v11100
        %v11102 = vlaneseq
        %v11103 = vshrl.u32 %v11102, 7
        %v11104 = vsub.s32 1, %v11103
        %v11105 = vrot.slane %v11078, %v11104
        %v11108 = vmul.f32 %v11095, %v11101
        %v11109 = vmul.f32 %v11096, %v11105
        %v11111 = vlaneseq
        %v11112 = vshrl.u32 %v11111, 7
        %v11113 = vsub.s32 0, %v11112
        %v11114 = vrot.slane %v11080, %v11113
        %v11115 = vlaneseq
        %v11116 = vshrl.u32 %v11115, 7
        %v11117 = vsub.s32 1, %v11116
        %v11118 = vrot.slane %v11080, %v11117
        %v11121 = vadd.f32 %v11108, %v11114
        %v11122 = vadd.f32 %v11109, %v11118
        %11123 = vst [vmem:[%s630] sm:$0xff] %v11121
        %11124 = vst [vmem:[%s630 + $0x8] sm:$0xff] %v11122
        %s11125 = sand.u32 %s322, 1
        %s11126 = scalar_lea.sflag [#allocation4], %s11125
        %s11127 = sand.u32 %s322, 1
        %s11128 = smul.addr %s11127, 16
        %s11129 = scalar_lea.vmem [#allocation23], %s11128
        // Predicated region
        $region125: #{tpu_custom_call.1} parent=71 // pred_check
          %p11130 = pneg %p332
        $region126: #{tpu_custom_call.1} parent=71 // pred_check_branch
          %11132 = sbr.rel (%p11130) target = $region128
        $region127: #{tpu_custom_call.1} parent=71 // pred_region
          %s11134 = ssub.s32 256, 256
          %11135 = vsyncadd %s11126, %s11134
          %s11136 = smul.addr %s36, 2
          %s11137 = smul.addr %s11136, 128
          %s11138 = scalar_lea.hbm %s13, %s11137
          %s11140 = sshll.u32 %s11129, 4
          %s11141 = int_to_ptr.vmem [resolvable:$true] %s11140
          %11143 = dma.vmem_to_hbm [thread:$0]  %s11141, 256, %s11138, %s11126
        $region128: #{tpu_custom_call.1} parent=71 // pred_fallthru
          _
      $region72: #{tpu_custom_call.1} parent=5 // pred_fallthru
        _
      %p11144 = scmp.le.s32.totalorder 2, %s31
      // Predicated region
      $region129: #{tpu_custom_call.1} parent=5 // pred_check
        %p11145 = pneg %p11144
      $region130: #{tpu_custom_call.1} parent=5 // pred_check_branch
        %11147 = sbr.rel (%p11145) target = $region132
      $region131: #{tpu_custom_call.1} parent=5 // pred_region
        %s11148 = ssub.s32 %s31, 2
        // Predicated region
        $region133: #{tpu_custom_call.1} parent=131 // pred_check
          %p11149 = pneg %p338
        $region134: #{tpu_custom_call.1} parent=131 // pred_check_branch
          %11151 = sbr.rel (%p11149) target = $region136
        $region135: #{tpu_custom_call.1} parent=131 // pred_region
          %s11152 = sand.u32 %s323, 1
          %s11153 = scalar_lea.sflag [#allocation4], %s11152
          %s11154 = sand.u32 %s323, 1
          %s11155 = smul.addr %s11154, 16
          %s11156 = scalar_lea.vmem [#allocation23], %s11155
          %11157 = dma.done %s11153, 256
        $region136: #{tpu_custom_call.1} parent=131 // pred_fallthru
          _
      $region132: #{tpu_custom_call.1} parent=5 // pred_fallthru
        _
    $region6: #{tpu_custom_call.1} parent=1 // loop_footer
      %s35 = sadd.s32 1, %s31
    $region7: #{tpu_custom_call.1} parent=1 // loop_footer_branch
      %30 = sbr.rel target = $region3
    $region8: #{tpu_custom_call.1} parent=1 // loop_exit
      _
    %11158 = vsyncpa [#allocation3], 1
    %s11159 = scalar_lea.sflag [#allocation3], 1
    %11160 = vsyncpa %s11159, 1
    %11161 = vsyncpa [#allocation6], 1
    %11162 = vsyncpa [#allocation9], 1
    %11163 = vsyncpa [#allocation12], 1
    %11164 = vsyncpa [#allocation15], 1
    %11165 = vsyncpa [#allocation18], 1
    %11166 = vsyncpa [#allocation21], 1
    %11167 = vsyncpa [#allocation4], 1
    %s11168 = scalar_lea.sflag [#allocation4], 1
    %11169 = vsyncpa %s11168, 1

</llo_original>
